<compile_context>
chip_gen: v6e
topology: v6e:2x2x1
jax: 0.10.0
libtpu: 0.0.40
codegen_flags: <defaults>
</compile_context>

<pallas_src>
import jax
import jax.numpy as jnp
import numpy as np
from jax import lax
from jax.experimental import pallas as pl
from jax.experimental.pallas import tpu as pltpu

# ----------------------------- hyper-parameters ------------------------------
N = 2                      # batch
C_IN = 16                  # in_channels
C_OUT = 16                 # out_channels (== in_channels -> identity residual/down)
T = 8                      # temporal length
V = 16                     # number of graph nodes
TV = T * V                 # joint (t, v) lane axis = 128
K_SUB = 3                  # num_subset (graph kernel size)
INTER = C_OUT // 4         # inter_channels
C_HALF = C_OUT // 2        # fc1c width
KT = 9                     # temporal kernel of the TCN conv (kernel_size[0], odd)
PAD_T = (KT - 1) // 2
KER_JPT = V - 1 if V % 2 == 0 else V      # conv_sa kernel size (15)
PAD_V = (KER_JPT - 1) // 2                # 7
KER_TMP = 9                               # conv_ta kernel size
PAD_TMP = 4                               # conv_ta padding
BN_EPS = 1e-5

assert C_IN == C_OUT, "kernel assumes identity residual / identity `down` path"

# ---------------- packed small-parameter slab (width 16) row offsets ---------
_ROW_WD = 0                               # conv_d weights, (K_SUB*C_OUT, C_IN)
_ROW_WSA = _ROW_WD + K_SUB * C_OUT        # 48: conv_sa weight^T (padded to 16 rows)
_ROW_WTA = _ROW_WSA + 16                  # 64: conv_ta weight^T (padded to 16 rows)
_ROW_FC1 = _ROW_WTA + 16                  # 80: fc1c weight (C_HALF, C_OUT)
_ROW_FC2 = _ROW_FC1 + C_HALF              # 88: fc2c weight^T (C_HALF, C_OUT)
_ROW_VEC = _ROW_FC2 + C_HALF              # 96: per-channel vectors (C_OUT, 8 -> 16)
_SLAB_ROWS = _ROW_VEC + C_OUT             # 112


def _sigmoid(x):
    return 1.0 / (1.0 + jnp.exp(-x))


def _tree_sum(terms):
    """Balanced (log-depth) summation of a list of equal-shape arrays."""
    terms = list(terms)
    while len(terms) > 1:
        nxt = [a + b for a, b in zip(terms[0::2], terms[1::2])]
        if len(terms) % 2:
            nxt.append(terms[-1])
        terms = nxt
    return terms[0]


# --------------------------------- kernel ------------------------------------
def _stgcn_kernel(
    x_cl_ref,      # (1, C_IN, TV)      channels-first activation
    x_vct_ref,     # (1, V, C_IN*T)     node-major view of the same data
    blk_ref,       # (1+K_SUB, TV, TV)  [alpha*time-block mask, block-diag PA_i ...]
    w_ab_ref,      # (K_SUB*2*INTER*T, C_IN*T)  bf16 fused conv_a/conv_b weights
    b_ab_ref,      # (1, K_SUB*2*INTER*T)
    bcast_ref,     # (TV, TV+V)         [frame-mean/broadcast (1/V) | node-mean^T (1/T)]
    w_tcn_ref,     # (C_OUT, KT*C_OUT)  im2col-ordered temporal-conv weight
    slab_ref,      # (_SLAB_ROWS, 16)   packed small parameters
    scal_ref,      # (2,) SMEM          [conv_sa bias, conv_ta bias]
    out_ref,       # (1, C_OUT, TV)
    rhs_scr,       # (K_SUB*TV, TV)     VMEM scratch: stacked block-diag A1 (matmul RHS)
    hstk_scr,      # (KT*C_OUT, TV)     VMEM scratch: TCN im2col stack
):
    f32 = jnp.float32
    x_cl = x_cl_ref[0]                                                     # (C, TV)
    sa_bias = scal_ref[0]
    ta_bias = scal_ref[1]

    # -------- adaptive graph convolution (3 subsets, fully fused) -----------
    # conv_a / conv_b for all subsets in ONE bf16 matmul (time-block-diag W).
    fab = lax.dot_general(x_vct_ref[0].astype(jnp.bfloat16), w_ab_ref[...],
                          (((1,), (1,)), ((), ())),
                          preferred_element_type=f32) + b_ab_ref[...]      # (V, 192)

    # conv_d channel mixing for all subsets in ONE matmul.
    w_d = slab_ref[pl.ds(_ROW_WD, K_SUB * C_OUT), :]                       # (48, C_IN)
    xw_all = jnp.dot(w_d, x_cl, preferred_element_type=f32)                # (48, TV)

    mask_alpha = blk_ref[0]                                                # (TV, TV), alpha folded
    half = INTER * T                                                       # 32
    for i in range(K_SUB):
        fa = fab[:, 2 * half * i: 2 * half * i + half]                     # (V, 32)
        fb = fab[:, 2 * half * i + half: 2 * half * (i + 1)]               # (V, 32)
        s = lax.dot_general(fa, fb, (((1,), (1,)), ((), ())),
                            preferred_element_type=f32) * (1.0 / float(half))
        # softmax over v1 (dim -2 in the reference)
        s = s - jnp.max(s, axis=0, keepdims=True)
        es = jnp.exp(s)
        s = es / jnp.sum(es, axis=0, keepdims=True)                        # (V, V)
        s_band = jnp.concatenate([s] * T, axis=1)                          # (V, TV)
        s_full = jnp.concatenate([s_band] * T, axis=0)                     # (TV, TV)
        # A1_blk = block-diag(PA_i) + (alpha * mask) * tiled(S); stream straight
        # into the VMEM-staged stacked RHS (keeps the vreg file small).
        rhs_scr[pl.ds(i * TV, TV), :] = blk_ref[1 + i] + mask_alpha * s_full

    # One K-stacked matmul replaces three (C,TV)@(TV,TV) dots + accumulation.
    xw_stack = jnp.concatenate(
        [xw_all[i * C_OUT:(i + 1) * C_OUT, :] for i in range(K_SUB)], axis=1)  # (C, 3*TV)
    y = jnp.dot(xw_stack, rhs_scr[...], preferred_element_type=f32)        # (C, TV)

    vecs = slab_ref[pl.ds(_ROW_VEC, C_OUT), :]                             # (16, 16)
    y = y * vecs[:, 0:1] + vecs[:, 1:2]           # gcn BN (conv_d biases folded in)
    y = jnp.maximum(y + x_cl, 0.0)                # identity `down` residual + ReLU

    # -------- spatial attention (conv_sa along V) ----------------------------
    b_vT = bcast_ref[:, pl.ds(TV, V)]                                      # (TV, V), 1/T folded
    se_s = jnp.dot(y, b_vT, preferred_element_type=f32)                    # (C, V)
    w_saT = slab_ref[pl.ds(_ROW_WSA, 16), :]                               # (16, C), rows<15 valid
    u_s = jnp.dot(w_saT, se_s, preferred_element_type=f32)                 # (16, V)
    zp = jnp.zeros((16, PAD_V), f32)
    u_s = jnp.concatenate([zp, u_s, zp], axis=1)                           # (16, V+2*PAD_V)
    logit_s = _tree_sum([u_s[k:k + 1, k:k + V] for k in range(KER_JPT)]) + sa_bias
    sa_bc = jnp.concatenate([_sigmoid(logit_s)] * T, axis=1)               # (1, TV) lane-tiled
    y = y * (1.0 + sa_bc)

    # -------- temporal attention (conv_ta along T), lane-broadcast form ------
    bt_full = bcast_ref[:, pl.ds(0, TV)]                                   # (TV, TV), 1/V folded
    se_t = jnp.dot(y, bt_full, preferred_element_type=f32)                 # (C, TV) frame means
    w_taT = slab_ref[pl.ds(_ROW_WTA, 16), :]                               # (16, C), rows<9 valid
    u_t = jnp.dot(w_taT, se_t, preferred_element_type=f32)                 # (16, TV)
    zt = jnp.zeros((16, PAD_TMP * V), f32)
    u_t = jnp.concatenate([zt, u_t, zt], axis=1)                           # (16, TV+2*PAD_TMP*V)
    logit_t = _tree_sum([u_t[k:k + 1, k * V:k * V + TV]
                         for k in range(KER_TMP)]) + ta_bias               # (1, TV)
    y = y * (1.0 + _sigmoid(logit_t))

    # -------- channel attention (fc1c -> relu -> fc2c -> sigmoid) ------------
    se_c = jnp.mean(y, axis=1, keepdims=True)                              # (C, 1)
    w_fc1 = slab_ref[pl.ds(_ROW_FC1, C_HALF), :]                           # (C/2, C)
    h = jnp.maximum(jnp.dot(w_fc1, se_c, preferred_element_type=f32)
                    + vecs[0:C_HALF, 6:7], 0.0)                            # (C/2, 1)
    w_fc2T = slab_ref[pl.ds(_ROW_FC2, C_HALF), :]                          # (C/2, C)
    s2 = _sigmoid(lax.dot_general(w_fc2T, h, (((0,), (0,)), ((), ())),
                                  preferred_element_type=f32) + vecs[:, 7:8])   # (C, 1)
    y = y * (1.0 + s2)

    # -------- TCN: BN -> ReLU -> (KTx1) temporal conv -> BN -------------------
    h_t = jnp.maximum(y * vecs[:, 2:3] + vecs[:, 3:4], 0.0)                # (C, TV)
    zpad = jnp.zeros((C_OUT, PAD_T * V), f32)
    h_pad = jnp.concatenate([zpad, h_t, zpad], axis=1)                     # (C, (T+2*PAD_T)*V)
    for k in range(KT):                      # im2col, staged through VMEM scratch
        hstk_scr[pl.ds(k * C_OUT, C_OUT), :] = h_pad[:, k * V:k * V + TV]
    conv = jnp.dot(w_tcn_ref[...], hstk_scr[...], preferred_element_type=f32)  # (C, TV)
    out = conv * vecs[:, 4:5] + vecs[:, 5:6]                               # BN2 (tcn bias folded)

    # STGCNBlock residual (identity) + final ReLU
    out = jnp.maximum(out + x_cl, 0.0)
    out_ref[0] = out.astype(out_ref.dtype)


# --------------------------------- wrapper -----------------------------------
def stgcn_block_apply(x_nctv, p):
    n, c, t, v = x_nctv.shape
    tv = t * v
    f32 = jnp.float32
    # (N, C, T, V) -> (N, C, T*V) is a pure reshape; second view is node-major.
    x_cl = x_nctv.reshape(n, c, tv).astype(f32)
    x_vct = jnp.transpose(x_nctv, (0, 3, 1, 2)).reshape(n, v, c * t).astype(f32)

    def fold_bn(q):
        scale = q["gamma"] / jnp.sqrt(q["var"] + BN_EPS)
        shift = q["beta"] - q["mean"] * scale
        return scale, shift

    bng_s, bng_b = fold_bn(p["gcn_bn"])
    bng_b = bng_b + bng_s * jnp.sum(p["bd"], axis=0)      # fold conv_d biases into BN shift
    bt1_s, bt1_b = fold_bn(p["tcn_bn1"])
    bt2_s, bt2_b = fold_bn(p["tcn_bn2"])
    bt2_b = bt2_b + bt2_s * p["tcn_b"]                    # fold tcn conv bias into BN2 shift

    # fused 1x1-conv weights (time-block-diagonal), bf16 MXU operand ------------
    eye_t = jnp.eye(t, dtype=f32)

    def expand_time(w):   # (rows, C_IN) -> (rows*T, C_IN*T), block-diagonal over time
        return jnp.einsum("rc,ts->rtcs", w, eye_t).reshape(w.shape[0] * t, w.shape[1] * t)

    ab_w, ab_b = [], []
    for i in range(K_SUB):
        ab_w += [expand_time(p["wa"][i]), expand_time(p["wb"][i])]
        ab_b += [jnp.repeat(p["ba"][i], t), jnp.repeat(p["bb"][i], t)]
    w_ab = jnp.concatenate(ab_w, axis=0).astype(jnp.bfloat16)   # (K*2*INTER*T, C_IN*T)
    b_ab = jnp.concatenate(ab_b)[None, :].astype(f32)           # (1, 192)

    # hoisted (TV,TV) constants: alpha-scaled block mask + block-diagonal PA ----
    lane = jnp.arange(tv)
    tmask = (lane[:, None] // v == lane[None, :] // v).astype(f32)      # (TV, TV)
    mask_alpha = tmask * p["alpha"][0]
    pa_blk = jnp.tile(p["PA"].astype(f32), (1, t, t)) * tmask[None]     # (K, TV, TV)
    blk_consts = jnp.concatenate([mask_alpha[None], pa_blk], axis=0)    # (1+K, TV, TV)

    # hoisted pooling / broadcast matrices (mean scaling folded in) -------------
    bt_full = tmask / float(v)                                          # (TV, TV)
    b_vT = ((lane[:, None] % v) == jnp.arange(v)[None, :]).astype(f32) / float(t)  # (TV, V)
    bcast = jnp.concatenate([bt_full, b_vT], axis=1)                    # (TV, TV+V)

    # TCN conv weight in im2col layout ------------------------------------------
    w_tcn = jnp.transpose(p["tcn_w"][:, :, :, 0], (0, 2, 1)).reshape(C_OUT, KT * C_OUT)

    # packed small-parameter slab (all width 16) --------------------------------
    def pad_rows(a, rows):
        return jnp.concatenate(
            [a, jnp.zeros((rows - a.shape[0], a.shape[1]), f32)], axis=0)

    w_d_fused = jnp.concatenate([p["wd"][i] for i in range(K_SUB)], axis=0)   # (48, C_IN)
    w_saT = pad_rows(p["sa_w"][0].T, 16)                                      # (16, C_OUT)
    w_taT = pad_rows(p["ta_w"][0].T, 16)                                      # (16, C_OUT)
    fc1_b_pad = jnp.concatenate([p["fc1_b"], jnp.zeros((C_OUT - C_HALF,), f32)])
    vecs = jnp.stack([bng_s, bng_b, bt1_s, bt1_b, bt2_s, bt2_b,
                      fc1_b_pad, p["fc2_b"]], axis=1)                         # (C_OUT, 8)
    vecs = jnp.concatenate([vecs, jnp.zeros((C_OUT, 16 - vecs.shape[1]), f32)], axis=1)
    slab = jnp.concatenate([w_d_fused, w_saT, w_taT, p["fc1_w"],
                            p["fc2_w"].T, vecs], axis=0)                      # (112, 16)

    scalars = jnp.concatenate([p["sa_b"], p["ta_b"]]).astype(f32)             # (2,) SMEM

    const_params = (blk_consts, w_ab, b_ab, bcast, w_tcn, slab)

    def const_spec(a):
        r = a.ndim
        return pl.BlockSpec(a.shape, lambda i, _r=r: (0,) * _r)

    out_cl = pl.pallas_call(
        _stgcn_kernel,
        out_shape=jax.ShapeDtypeStruct((n, C_OUT, tv), f32),
        grid=(n,),
        in_specs=([pl.BlockSpec((1, c, tv), lambda i: (i, 0, 0)),
                   pl.BlockSpec((1, v, c * t), lambda i: (i, 0, 0))]
                  + [const_spec(a) for a in const_params]
                  + [pl.BlockSpec(memory_space=pltpu.MemorySpace.SMEM)]),
        out_specs=pl.BlockSpec((1, C_OUT, tv), lambda i: (i, 0, 0)),
        scratch_shapes=[pltpu.VMEM((K_SUB * TV, TV), f32),
                        pltpu.VMEM((KT * C_OUT, TV), f32)],
        compiler_params=pltpu.CompilerParams(dimension_semantics=("parallel",)),
    )(x_cl, x_vct, *const_params, scalars)

    return out_cl.reshape(n, C_OUT, t, v)


# ------------------------- deterministic parameters --------------------------
def init_params(key):
    ks = jax.random.split(key, 20)

    def nrm(k, shape, scale=0.1):
        return scale * jax.random.normal(k, shape, dtype=jnp.float32)

    def bn_params(k, c):
        k1, k2, k3, k4 = jax.random.split(k, 4)
        return dict(gamma=1.0 + 0.1 * jax.random.normal(k1, (c,), jnp.float32),
                    beta=0.1 * jax.random.normal(k2, (c,), jnp.float32),
                    mean=0.1 * jax.random.normal(k3, (c,), jnp.float32),
                    var=1.0 + 0.1 * jax.random.uniform(k4, (c,), jnp.float32))

    return dict(
        PA=nrm(ks[0], (K_SUB, V, V), 0.3),
        alpha=jnp.array([0.5], jnp.float32),
        wa=nrm(ks[1], (K_SUB, INTER, C_IN)), ba=nrm(ks[2], (K_SUB, INTER), 0.05),
        wb=nrm(ks[3], (K_SUB, INTER, C_IN)), bb=nrm(ks[4], (K_SUB, INTER), 0.05),
        wd=nrm(ks[5], (K_SUB, C_OUT, C_IN)), bd=nrm(ks[6], (K_SUB, C_OUT), 0.05),
        gcn_bn=bn_params(ks[7], C_OUT),
        sa_w=nrm(ks[8], (1, C_OUT, KER_JPT)), sa_b=nrm(ks[9], (1,), 0.05),
        ta_w=nrm(ks[10], (1, C_OUT, KER_TMP)), ta_b=nrm(ks[11], (1,), 0.05),
        fc1_w=nrm(ks[12], (C_HALF, C_OUT)), fc1_b=nrm(ks[13], (C_HALF,), 0.05),
        fc2_w=nrm(ks[14], (C_OUT, C_HALF)), fc2_b=nrm(ks[15], (C_OUT,), 0.05),
        tcn_bn1=bn_params(ks[16], C_OUT),
        tcn_w=nrm(ks[17], (C_OUT, C_OUT, KT, 1)), tcn_b=nrm(ks[18], (C_OUT,), 0.05),
        tcn_bn2=bn_params(ks[19], C_OUT),
    )


# ------------------------- pure-JAX reference (NCHW) --------------------------
def reference_forward(x, p):
    n, c, t, v = x.shape
    prec = "highest"

    def conv1x1(xx, w, b):
        return jnp.einsum("oc,nctv->notv", w, xx, precision=prec) + b[None, :, None, None]

    def bn(xx, q):
        return ((xx - q["mean"][None, :, None, None])
                / jnp.sqrt(q["var"][None, :, None, None] + BN_EPS)
                * q["gamma"][None, :, None, None] + q["beta"][None, :, None, None])

    alpha = p["alpha"][0]
    y = None
    for i in range(K_SUB):
        fa = conv1x1(x, p["wa"][i], p["ba"][i])
        fb = conv1x1(x, p["wb"][i], p["bb"][i])
        a1 = jnp.transpose(fa, (0, 3, 1, 2)).reshape(n, v, INTER * t)
        a2 = fb.reshape(n, INTER * t, v)
        s = jnp.matmul(a1, a2, precision=prec) / (INTER * t)
        s = jax.nn.softmax(s, axis=-2)
        a1 = s * alpha + p["PA"][i]
        xz = jnp.matmul(x.reshape(n, c * t, v), a1, precision=prec).reshape(n, c, t, v)
        z = conv1x1(xz, p["wd"][i], p["bd"][i])
        y = z if y is None else y + z
    y = bn(y, p["gcn_bn"])
    y = y + x
    y = jnp.maximum(y, 0.0)

    se = y.mean(axis=2)
    sep = jnp.pad(se, ((0, 0), (0, 0), (PAD_V, PAD_V)))
    sa = jnp.zeros((n, v), jnp.float32) + p["sa_b"][0]
    for k in range(KER_JPT):
        sa = sa + jnp.einsum("c,ncv->nv", p["sa_w"][0, :, k], sep[:, :, k:k + v], precision=prec)
    sa = jax.nn.sigmoid(sa)
    y = y * sa[:, None, None, :] + y

    se = y.mean(axis=3)
    sep = jnp.pad(se, ((0, 0), (0, 0), (PAD_TMP, PAD_TMP)))
    ta = jnp.zeros((n, t), jnp.float32) + p["ta_b"][0]
    for k in range(KER_TMP):
        ta = ta + jnp.einsum("c,nct->nt", p["ta_w"][0, :, k], sep[:, :, k:k + t], precision=prec)
    ta = jax.nn.sigmoid(ta)
    y = y * ta[:, None, :, None] + y

    se = y.mean(axis=(2, 3))
    h = jnp.maximum(se @ p["fc1_w"].T + p["fc1_b"], 0.0)
    s2 = jax.nn.sigmoid(h @ p["fc2_w"].T + p["fc2_b"])
    y = y * s2[:, :, None, None] + y

    h = jnp.maximum(bn(y, p["tcn_bn1"]), 0.0)
    hpd = jnp.pad(h, ((0, 0), (0, 0), (PAD_T, PAD_T), (0, 0)))
    o = jnp.zeros_like(y) + p["tcn_b"][None, :, None, None]
    for k in range(KT):
        o = o + jnp.einsum("oc,nctv->notv", p["tcn_w"][:, :, k, 0],
                           hpd[:, :, k:k + t, :], precision=prec)
    o = bn(o, p["tcn_bn2"])
    o = o + x
    return jnp.maximum(o, 0.0)


# ----------------------------------- main -------------------------------------
if __name__ == "__main__":
    key = jax.random.PRNGKey(0)
    kx, kp = jax.random.split(key)
    x = jax.random.normal(kx, (N, C_IN, T, V), dtype=jnp.float32)
    params = init_params(kp)

    out = jax.jit(stgcn_block_apply)(x, params)
    out = jax.block_until_ready(out)

    ref = reference_forward(x, params)
    if not np.allclose(np.asarray(out), np.asarray(ref), atol=1e-2, rtol=1e-2):
        err = float(jnp.max(jnp.abs(out - ref)))
        raise AssertionError(f"Pallas kernel mismatch vs reference, max abs err = {err}")
    print("KERNEL_OK")
</pallas_src>

<mosaic_0001>
module attributes {stable_mosaic.version = 11 : i64} {
  func.func @_stgcn_kernel(%arg0: i32, %arg1: memref<1x16x128xf32, #tpu.memory_space<vmem>>, %arg2: memref<1x16x128xf32, #tpu.memory_space<vmem>>, %arg3: memref<4x128x128xf32, #tpu.memory_space<vmem>>, %arg4: memref<192x128xbf16, #tpu.memory_space<vmem>>, %arg5: memref<1x192xf32, #tpu.memory_space<vmem>>, %arg6: memref<128x144xf32, #tpu.memory_space<vmem>>, %arg7: memref<16x144xf32, #tpu.memory_space<vmem>>, %arg8: memref<112x16xf32, #tpu.memory_space<vmem>>, %arg9: memref<2xf32, #tpu.memory_space<smem>>, %arg10: memref<1x16x128xf32, #tpu.memory_space<vmem>>, %arg11: memref<384x128xf32, #tpu.memory_space<vmem>>, %arg12: memref<144x128xf32, #tpu.memory_space<vmem>>) attributes {dimension_semantics = [#tpu.dimension_semantics<parallel>], iteration_bounds = array<i64: 2>, scalar_prefetch = 0 : i64, scratch_operands = 2 : i64, tpu.core_type = #tpu.core_type<tc>, window_params = [{transform_indices = @transform_0, window_bounds = array<i64: 1, 16, 128>}, {transform_indices = @transform_1, window_bounds = array<i64: 1, 16, 128>}, {pipeline_mode = #tpu.pipeline_mode<synchronous>, transform_indices = @transform_2, window_bounds = array<i64: 4, 128, 128>}, {pipeline_mode = #tpu.pipeline_mode<synchronous>, transform_indices = @transform_3, window_bounds = array<i64: 192, 128>}, {pipeline_mode = #tpu.pipeline_mode<synchronous>, transform_indices = @transform_4, window_bounds = array<i64: 1, 192>}, {pipeline_mode = #tpu.pipeline_mode<synchronous>, transform_indices = @transform_5, window_bounds = array<i64: 128, 144>}, {pipeline_mode = #tpu.pipeline_mode<synchronous>, transform_indices = @transform_6, window_bounds = array<i64: 16, 144>}, {pipeline_mode = #tpu.pipeline_mode<synchronous>, transform_indices = @transform_7, window_bounds = array<i64: 112, 16>}, {transform_indices = @transform_8, window_bounds = array<i64: 2>}, {transform_indices = @transform_9, window_bounds = array<i64: 1, 16, 128>}]} {
    %c0 = arith.constant 0 : index
    %c0_0 = arith.constant 0 : index
    %c0_1 = arith.constant 0 : index
    %0 = vector.load %arg1[%c0, %c0_0, %c0_1] : memref<1x16x128xf32, #tpu.memory_space<vmem>>, vector<1x16x128xf32>
    %1 = vector.shape_cast %0 : vector<1x16x128xf32> to vector<16x128xf32>
    %c0_2 = arith.constant 0 : index
    %2 = memref.load %arg9[%c0_2] : memref<2xf32, #tpu.memory_space<smem>>
    %c1 = arith.constant 1 : index
    %3 = memref.load %arg9[%c1] : memref<2xf32, #tpu.memory_space<smem>>
    %c0_3 = arith.constant 0 : index
    %c0_4 = arith.constant 0 : index
    %c0_5 = arith.constant 0 : index
    %4 = vector.load %arg2[%c0_3, %c0_4, %c0_5] : memref<1x16x128xf32, #tpu.memory_space<vmem>>, vector<1x16x128xf32>
    %5 = vector.shape_cast %4 : vector<1x16x128xf32> to vector<16x128xf32>
    %6 = arith.truncf %5 : vector<16x128xf32> to vector<16x128xbf16>
    %c0_6 = arith.constant 0 : index
    %c0_7 = arith.constant 0 : index
    %7 = vector.load %arg4[%c0_6, %c0_7] : memref<192x128xbf16, #tpu.memory_space<vmem>>, vector<192x128xbf16>
    %cst = arith.constant dense<0.000000e+00> : vector<16x192xf32>
    %8 = tpu.matmul %6, %7, %cst {dimension_numbers = #tpu.dot_dimension_numbers<[1], [1], [0], [0], [0, 0, 1, 0], [], []>} : vector<16x128xbf16>, vector<192x128xbf16>, vector<16x192xf32> -> vector<16x192xf32>
    %c0_8 = arith.constant 0 : index
    %c0_9 = arith.constant 0 : index
    %9 = vector.load %arg5[%c0_8, %c0_9] : memref<1x192xf32, #tpu.memory_space<vmem>>, vector<1x192xf32>
    %10 = vector.broadcast %9 : vector<1x192xf32> to vector<16x192xf32>
    %11 = arith.addf %8, %10 : vector<16x192xf32>
    %c0_10 = arith.constant 0 : index
    %c0_11 = arith.constant 0 : index
    %12 = vector.load %arg8[%c0_10, %c0_11] : memref<112x16xf32, #tpu.memory_space<vmem>>, vector<48x16xf32>
    %cst_12 = arith.constant dense<0.000000e+00> : vector<48x128xf32>
    %13 = tpu.matmul %12, %1, %cst_12 {dimension_numbers = #tpu.dot_dimension_numbers<[1], [0], [0], [1], [0, 0, 1, 1], [], []>} : vector<48x16xf32>, vector<16x128xf32>, vector<48x128xf32> -> vector<48x128xf32>
    %c0_13 = arith.constant 0 : index
    %c0_14 = arith.constant 0 : index
    %c0_15 = arith.constant 0 : index
    %14 = vector.load %arg3[%c0_13, %c0_14, %c0_15] : memref<4x128x128xf32, #tpu.memory_space<vmem>>, vector<1x128x128xf32>
    %15 = vector.shape_cast %14 : vector<1x128x128xf32> to vector<128x128xf32>
    %16 = vector.extract_strided_slice %11 {offsets = [0, 0], sizes = [16, 32], strides = [1, 1]} : vector<16x192xf32> to vector<16x32xf32>
    %17 = vector.extract_strided_slice %11 {offsets = [0, 32], sizes = [16, 32], strides = [1, 1]} : vector<16x192xf32> to vector<16x32xf32>
    %cst_16 = arith.constant dense<0.000000e+00> : vector<16x16xf32>
    %18 = tpu.matmul %16, %17, %cst_16 {dimension_numbers = #tpu.dot_dimension_numbers<[1], [1], [0], [0], [0, 0, 1, 0], [], []>} : vector<16x32xf32>, vector<16x32xf32>, vector<16x16xf32> -> vector<16x16xf32>
    %cst_17 = arith.constant 3.125000e-02 : f32
    %19 = vector.broadcast %cst_17 : f32 to vector<16x16xf32>
    %20 = arith.mulf %18, %19 : vector<16x16xf32>
    %cst_18 = arith.constant dense<0xFF800000> : vector<16xf32>
    %21 = vector.multi_reduction <maximumf>, %20, %cst_18 [0] : vector<16x16xf32> to vector<16xf32>
    %22 = vector.shape_cast %21 : vector<16xf32> to vector<1x16xf32>
    %23 = vector.broadcast %22 : vector<1x16xf32> to vector<16x16xf32>
    %24 = arith.subf %20, %23 : vector<16x16xf32>
    %25 = math.exp %24 : vector<16x16xf32>
    %cst_19 = arith.constant dense<0.000000e+00> : vector<16xf32>
    %26 = vector.multi_reduction <add>, %25, %cst_19 [0] : vector<16x16xf32> to vector<16xf32>
    %27 = vector.shape_cast %26 : vector<16xf32> to vector<1x16xf32>
    %28 = vector.broadcast %27 : vector<1x16xf32> to vector<16x16xf32>
    %29 = arith.divf %25, %28 : vector<16x16xf32>
    %30 = tpu.concatenate %29, %29, %29, %29, %29, %29, %29, %29 in 1 : vector<16x16xf32>, vector<16x16xf32>, vector<16x16xf32>, vector<16x16xf32>, vector<16x16xf32>, vector<16x16xf32>, vector<16x16xf32>, vector<16x16xf32> -> vector<16x128xf32>
    %31 = tpu.concatenate %30, %30, %30, %30, %30, %30, %30, %30 in 0 : vector<16x128xf32>, vector<16x128xf32>, vector<16x128xf32>, vector<16x128xf32>, vector<16x128xf32>, vector<16x128xf32>, vector<16x128xf32>, vector<16x128xf32> -> vector<128x128xf32>
    %c1_20 = arith.constant 1 : index
    %c0_21 = arith.constant 0 : index
    %c0_22 = arith.constant 0 : index
    %32 = vector.load %arg3[%c1_20, %c0_21, %c0_22] : memref<4x128x128xf32, #tpu.memory_space<vmem>>, vector<1x128x128xf32>
    %33 = vector.shape_cast %32 : vector<1x128x128xf32> to vector<128x128xf32>
    %34 = arith.mulf %15, %31 : vector<128x128xf32>
    %35 = arith.addf %33, %34 : vector<128x128xf32>
    %c0_23 = arith.constant 0 : index
    %c0_24 = arith.constant 0 : index
    %36 = vector.load %arg11[%c0_23, %c0_24] : memref<384x128xf32, #tpu.memory_space<vmem>>, vector<128x128xf32>
    tpu.vector_store %arg11[%c0_23, %c0_24], %35 {strides = array<i32>} : memref<384x128xf32, #tpu.memory_space<vmem>>, vector<128x128xf32>,
    %37 = vector.extract_strided_slice %11 {offsets = [0, 64], sizes = [16, 32], strides = [1, 1]} : vector<16x192xf32> to vector<16x32xf32>
    %38 = vector.extract_strided_slice %11 {offsets = [0, 96], sizes = [16, 32], strides = [1, 1]} : vector<16x192xf32> to vector<16x32xf32>
    %cst_25 = arith.constant dense<0.000000e+00> : vector<16x16xf32>
    %39 = tpu.matmul %37, %38, %cst_25 {dimension_numbers = #tpu.dot_dimension_numbers<[1], [1], [0], [0], [0, 0, 1, 0], [], []>} : vector<16x32xf32>, vector<16x32xf32>, vector<16x16xf32> -> vector<16x16xf32>
    %cst_26 = arith.constant 3.125000e-02 : f32
    %40 = vector.broadcast %cst_26 : f32 to vector<16x16xf32>
    %41 = arith.mulf %39, %40 : vector<16x16xf32>
    %cst_27 = arith.constant dense<0xFF800000> : vector<16xf32>
    %42 = vector.multi_reduction <maximumf>, %41, %cst_27 [0] : vector<16x16xf32> to vector<16xf32>
    %43 = vector.shape_cast %42 : vector<16xf32> to vector<1x16xf32>
    %44 = vector.broadcast %43 : vector<1x16xf32> to vector<16x16xf32>
    %45 = arith.subf %41, %44 : vector<16x16xf32>
    %46 = math.exp %45 : vector<16x16xf32>
    %cst_28 = arith.constant dense<0.000000e+00> : vector<16xf32>
    %47 = vector.multi_reduction <add>, %46, %cst_28 [0] : vector<16x16xf32> to vector<16xf32>
    %48 = vector.shape_cast %47 : vector<16xf32> to vector<1x16xf32>
    %49 = vector.broadcast %48 : vector<1x16xf32> to vector<16x16xf32>
    %50 = arith.divf %46, %49 : vector<16x16xf32>
    %51 = tpu.concatenate %50, %50, %50, %50, %50, %50, %50, %50 in 1 : vector<16x16xf32>, vector<16x16xf32>, vector<16x16xf32>, vector<16x16xf32>, vector<16x16xf32>, vector<16x16xf32>, vector<16x16xf32>, vector<16x16xf32> -> vector<16x128xf32>
    %52 = tpu.concatenate %51, %51, %51, %51, %51, %51, %51, %51 in 0 : vector<16x128xf32>, vector<16x128xf32>, vector<16x128xf32>, vector<16x128xf32>, vector<16x128xf32>, vector<16x128xf32>, vector<16x128xf32>, vector<16x128xf32> -> vector<128x128xf32>
    %c2 = arith.constant 2 : index
    %c0_29 = arith.constant 0 : index
    %c0_30 = arith.constant 0 : index
    %53 = vector.load %arg3[%c2, %c0_29, %c0_30] : memref<4x128x128xf32, #tpu.memory_space<vmem>>, vector<1x128x128xf32>
    %54 = vector.shape_cast %53 : vector<1x128x128xf32> to vector<128x128xf32>
    %55 = arith.mulf %15, %52 : vector<128x128xf32>
    %56 = arith.addf %54, %55 : vector<128x128xf32>
    %c128 = arith.constant 128 : index
    %c0_31 = arith.constant 0 : index
    %57 = vector.load %arg11[%c128, %c0_31] : memref<384x128xf32, #tpu.memory_space<vmem>>, vector<128x128xf32>
    tpu.vector_store %arg11[%c128, %c0_31], %56 {strides = array<i32>} : memref<384x128xf32, #tpu.memory_space<vmem>>, vector<128x128xf32>,
    %58 = vector.extract_strided_slice %11 {offsets = [0, 128], sizes = [16, 32], strides = [1, 1]} : vector<16x192xf32> to vector<16x32xf32>
    %59 = vector.extract_strided_slice %11 {offsets = [0, 160], sizes = [16, 32], strides = [1, 1]} : vector<16x192xf32> to vector<16x32xf32>
    %cst_32 = arith.constant dense<0.000000e+00> : vector<16x16xf32>
    %60 = tpu.matmul %58, %59, %cst_32 {dimension_numbers = #tpu.dot_dimension_numbers<[1], [1], [0], [0], [0, 0, 1, 0], [], []>} : vector<16x32xf32>, vector<16x32xf32>, vector<16x16xf32> -> vector<16x16xf32>
    %cst_33 = arith.constant 3.125000e-02 : f32
    %61 = vector.broadcast %cst_33 : f32 to vector<16x16xf32>
    %62 = arith.mulf %60, %61 : vector<16x16xf32>
    %cst_34 = arith.constant dense<0xFF800000> : vector<16xf32>
    %63 = vector.multi_reduction <maximumf>, %62, %cst_34 [0] : vector<16x16xf32> to vector<16xf32>
    %64 = vector.shape_cast %63 : vector<16xf32> to vector<1x16xf32>
    %65 = vector.broadcast %64 : vector<1x16xf32> to vector<16x16xf32>
    %66 = arith.subf %62, %65 : vector<16x16xf32>
    %67 = math.exp %66 : vector<16x16xf32>
    %cst_35 = arith.constant dense<0.000000e+00> : vector<16xf32>
    %68 = vector.multi_reduction <add>, %67, %cst_35 [0] : vector<16x16xf32> to vector<16xf32>
    %69 = vector.shape_cast %68 : vector<16xf32> to vector<1x16xf32>
    %70 = vector.broadcast %69 : vector<1x16xf32> to vector<16x16xf32>
    %71 = arith.divf %67, %70 : vector<16x16xf32>
    %72 = tpu.concatenate %71, %71, %71, %71, %71, %71, %71, %71 in 1 : vector<16x16xf32>, vector<16x16xf32>, vector<16x16xf32>, vector<16x16xf32>, vector<16x16xf32>, vector<16x16xf32>, vector<16x16xf32>, vector<16x16xf32> -> vector<16x128xf32>
    %73 = tpu.concatenate %72, %72, %72, %72, %72, %72, %72, %72 in 0 : vector<16x128xf32>, vector<16x128xf32>, vector<16x128xf32>, vector<16x128xf32>, vector<16x128xf32>, vector<16x128xf32>, vector<16x128xf32>, vector<16x128xf32> -> vector<128x128xf32>
    %c3 = arith.constant 3 : index
    %c0_36 = arith.constant 0 : index
    %c0_37 = arith.constant 0 : index
    %74 = vector.load %arg3[%c3, %c0_36, %c0_37] : memref<4x128x128xf32, #tpu.memory_space<vmem>>, vector<1x128x128xf32>
    %75 = vector.shape_cast %74 : vector<1x128x128xf32> to vector<128x128xf32>
    %76 = arith.mulf %15, %73 : vector<128x128xf32>
    %77 = arith.addf %75, %76 : vector<128x128xf32>
    %c256 = arith.constant 256 : index
    %c0_38 = arith.constant 0 : index
    %78 = vector.load %arg11[%c256, %c0_38] : memref<384x128xf32, #tpu.memory_space<vmem>>, vector<128x128xf32>
    tpu.vector_store %arg11[%c256, %c0_38], %77 {strides = array<i32>} : memref<384x128xf32, #tpu.memory_space<vmem>>, vector<128x128xf32>,
    %79 = vector.extract_strided_slice %13 {offsets = [0, 0], sizes = [16, 128], strides = [1, 1]} : vector<48x128xf32> to vector<16x128xf32>
    %80 = vector.extract_strided_slice %13 {offsets = [16, 0], sizes = [16, 128], strides = [1, 1]} : vector<48x128xf32> to vector<16x128xf32>
    %81 = vector.extract_strided_slice %13 {offsets = [32, 0], sizes = [16, 128], strides = [1, 1]} : vector<48x128xf32> to vector<16x128xf32>
    %82 = tpu.concatenate %79, %80, %81 in 1 : vector<16x128xf32>, vector<16x128xf32>, vector<16x128xf32> -> vector<16x384xf32>
    %c0_39 = arith.constant 0 : index
    %c0_40 = arith.constant 0 : index
    %83 = vector.load %arg11[%c0_39, %c0_40] : memref<384x128xf32, #tpu.memory_space<vmem>>, vector<384x128xf32>
    %cst_41 = arith.constant dense<0.000000e+00> : vector<16x128xf32>
    %84 = tpu.matmul %82, %83, %cst_41 {dimension_numbers = #tpu.dot_dimension_numbers<[1], [0], [0], [1], [0, 0, 1, 1], [], []>} : vector<16x384xf32>, vector<384x128xf32>, vector<16x128xf32> -> vector<16x128xf32>
    %c96 = arith.constant 96 : index
    %c0_42 = arith.constant 0 : index
    %85 = vector.load %arg8[%c96, %c0_42] : memref<112x16xf32, #tpu.memory_space<vmem>>, vector<16x16xf32>
    %86 = vector.extract_strided_slice %85 {offsets = [0, 0], sizes = [16, 1], strides = [1, 1]} : vector<16x16xf32> to vector<16x1xf32>
    %87 = vector.broadcast %86 : vector<16x1xf32> to vector<16x128xf32>
    %88 = arith.mulf %84, %87 : vector<16x128xf32>
    %89 = vector.extract_strided_slice %85 {offsets = [0, 1], sizes = [16, 1], strides = [1, 1]} : vector<16x16xf32> to vector<16x1xf32>
    %90 = vector.broadcast %89 : vector<16x1xf32> to vector<16x128xf32>
    %91 = arith.addf %88, %90 : vector<16x128xf32>
    %92 = arith.addf %91, %1 : vector<16x128xf32>
    %cst_43 = arith.constant 0.000000e+00 : f32
    %93 = vector.broadcast %cst_43 : f32 to vector<16x128xf32>
    %94 = arith.maximumf %92, %93 : vector<16x128xf32>
    %c0_44 = arith.constant 0 : index
    %c128_45 = arith.constant 128 : index
    %95 = vector.load %arg6[%c0_44, %c128_45] : memref<128x144xf32, #tpu.memory_space<vmem>>, vector<128x16xf32>
    %cst_46 = arith.constant dense<0.000000e+00> : vector<16x16xf32>
    %96 = tpu.matmul %94, %95, %cst_46 {dimension_numbers = #tpu.dot_dimension_numbers<[1], [0], [0], [1], [0, 0, 1, 1], [], []>} : vector<16x128xf32>, vector<128x16xf32>, vector<16x16xf32> -> vector<16x16xf32>
    %c48 = arith.constant 48 : index
    %c0_47 = arith.constant 0 : index
    %97 = vector.load %arg8[%c48, %c0_47] : memref<112x16xf32, #tpu.memory_space<vmem>>, vector<16x16xf32>
    %cst_48 = arith.constant dense<0.000000e+00> : vector<16x16xf32>
    %98 = tpu.matmul %97, %96, %cst_48 {dimension_numbers = #tpu.dot_dimension_numbers<[1], [0], [0], [1], [0, 0, 1, 1], [], []>} : vector<16x16xf32>, vector<16x16xf32>, vector<16x16xf32> -> vector<16x16xf32>
    %cst_49 = arith.constant 0.000000e+00 : f32
    %99 = vector.broadcast %cst_49 : f32 to vector<16x7xf32>
    %100 = tpu.concatenate %99, %98, %99 in 1 : vector<16x7xf32>, vector<16x16xf32>, vector<16x7xf32> -> vector<16x30xf32>
    %101 = vector.extract_strided_slice %100 {offsets = [0, 0], sizes = [1, 16], strides = [1, 1]} : vector<16x30xf32> to vector<1x16xf32>
    %102 = vector.extract_strided_slice %100 {offsets = [1, 1], sizes = [1, 16], strides = [1, 1]} : vector<16x30xf32> to vector<1x16xf32>
    %103 = vector.extract_strided_slice %100 {offsets = [2, 2], sizes = [1, 16], strides = [1, 1]} : vector<16x30xf32> to vector<1x16xf32>
    %104 = vector.extract_strided_slice %100 {offsets = [3, 3], sizes = [1, 16], strides = [1, 1]} : vector<16x30xf32> to vector<1x16xf32>
    %105 = vector.extract_strided_slice %100 {offsets = [4, 4], sizes = [1, 16], strides = [1, 1]} : vector<16x30xf32> to vector<1x16xf32>
    %106 = vector.extract_strided_slice %100 {offsets = [5, 5], sizes = [1, 16], strides = [1, 1]} : vector<16x30xf32> to vector<1x16xf32>
    %107 = vector.extract_strided_slice %100 {offsets = [6, 6], sizes = [1, 16], strides = [1, 1]} : vector<16x30xf32> to vector<1x16xf32>
    %108 = vector.extract_strided_slice %100 {offsets = [7, 7], sizes = [1, 16], strides = [1, 1]} : vector<16x30xf32> to vector<1x16xf32>
    %109 = vector.extract_strided_slice %100 {offsets = [8, 8], sizes = [1, 16], strides = [1, 1]} : vector<16x30xf32> to vector<1x16xf32>
    %110 = vector.extract_strided_slice %100 {offsets = [9, 9], sizes = [1, 16], strides = [1, 1]} : vector<16x30xf32> to vector<1x16xf32>
    %111 = vector.extract_strided_slice %100 {offsets = [10, 10], sizes = [1, 16], strides = [1, 1]} : vector<16x30xf32> to vector<1x16xf32>
    %112 = vector.extract_strided_slice %100 {offsets = [11, 11], sizes = [1, 16], strides = [1, 1]} : vector<16x30xf32> to vector<1x16xf32>
    %113 = vector.extract_strided_slice %100 {offsets = [12, 12], sizes = [1, 16], strides = [1, 1]} : vector<16x30xf32> to vector<1x16xf32>
    %114 = vector.extract_strided_slice %100 {offsets = [13, 13], sizes = [1, 16], strides = [1, 1]} : vector<16x30xf32> to vector<1x16xf32>
    %115 = vector.extract_strided_slice %100 {offsets = [14, 14], sizes = [1, 16], strides = [1, 1]} : vector<16x30xf32> to vector<1x16xf32>
    %116 = arith.addf %101, %102 : vector<1x16xf32>
    %117 = arith.addf %103, %104 : vector<1x16xf32>
    %118 = arith.addf %105, %106 : vector<1x16xf32>
    %119 = arith.addf %107, %108 : vector<1x16xf32>
    %120 = arith.addf %109, %110 : vector<1x16xf32>
    %121 = arith.addf %111, %112 : vector<1x16xf32>
    %122 = arith.addf %113, %114 : vector<1x16xf32>
    %123 = arith.addf %116, %117 : vector<1x16xf32>
    %124 = arith.addf %118, %119 : vector<1x16xf32>
    %125 = arith.addf %120, %121 : vector<1x16xf32>
    %126 = arith.addf %122, %115 : vector<1x16xf32>
    %127 = arith.addf %123, %124 : vector<1x16xf32>
    %128 = arith.addf %125, %126 : vector<1x16xf32>
    %129 = arith.addf %127, %128 : vector<1x16xf32>
    %130 = vector.broadcast %2 : f32 to vector<1x16xf32>
    %131 = arith.addf %129, %130 : vector<1x16xf32>
    %cst_50 = arith.constant 0.000000e+00 : f32
    %132 = vector.broadcast %cst_50 : f32 to vector<1x16xf32>
    %133 = arith.subf %132, %131 : vector<1x16xf32>
    %134 = math.exp %133 : vector<1x16xf32>
    %cst_51 = arith.constant 1.000000e+00 : f32
    %135 = vector.broadcast %cst_51 : f32 to vector<1x16xf32>
    %136 = arith.addf %135, %134 : vector<1x16xf32>
    %cst_52 = arith.constant 1.000000e+00 : f32
    %137 = vector.broadcast %cst_52 : f32 to vector<1x16xf32>
    %138 = arith.divf %137, %136 : vector<1x16xf32>
    %139 = tpu.concatenate %138, %138, %138, %138, %138, %138, %138, %138 in 1 : vector<1x16xf32>, vector<1x16xf32>, vector<1x16xf32>, vector<1x16xf32>, vector<1x16xf32>, vector<1x16xf32>, vector<1x16xf32>, vector<1x16xf32> -> vector<1x128xf32>
    %cst_53 = arith.constant 1.000000e+00 : f32
    %140 = vector.broadcast %cst_53 : f32 to vector<1x128xf32>
    %141 = arith.addf %140, %139 : vector<1x128xf32>
    %142 = vector.broadcast %141 : vector<1x128xf32> to vector<16x128xf32>
    %143 = arith.mulf %94, %142 : vector<16x128xf32>
    %c0_54 = arith.constant 0 : index
    %c0_55 = arith.constant 0 : index
    %144 = vector.load %arg6[%c0_54, %c0_55] : memref<128x144xf32, #tpu.memory_space<vmem>>, vector<128x128xf32>
    %cst_56 = arith.constant dense<0.000000e+00> : vector<16x128xf32>
    %145 = tpu.matmul %143, %144, %cst_56 {dimension_numbers = #tpu.dot_dimension_numbers<[1], [0], [0], [1], [0, 0, 1, 1], [], []>} : vector<16x128xf32>, vector<128x128xf32>, vector<16x128xf32> -> vector<16x128xf32>
    %c64 = arith.constant 64 : index
    %c0_57 = arith.constant 0 : index
    %146 = vector.load %arg8[%c64, %c0_57] : memref<112x16xf32, #tpu.memory_space<vmem>>, vector<16x16xf32>
    %cst_58 = arith.constant dense<0.000000e+00> : vector<16x128xf32>
    %147 = tpu.matmul %146, %145, %cst_58 {dimension_numbers = #tpu.dot_dimension_numbers<[1], [0], [0], [1], [0, 0, 1, 1], [], []>} : vector<16x16xf32>, vector<16x128xf32>, vector<16x128xf32> -> vector<16x128xf32>
    %cst_59 = arith.constant 0.000000e+00 : f32
    %148 = vector.broadcast %cst_59 : f32 to vector<16x64xf32>
    %149 = tpu.concatenate %148, %147, %148 in 1 : vector<16x64xf32>, vector<16x128xf32>, vector<16x64xf32> -> vector<16x256xf32>
    %150 = vector.extract_strided_slice %149 {offsets = [0, 0], sizes = [1, 128], strides = [1, 1]} : vector<16x256xf32> to vector<1x128xf32>
    %151 = vector.extract_strided_slice %149 {offsets = [1, 16], sizes = [1, 128], strides = [1, 1]} : vector<16x256xf32> to vector<1x128xf32>
    %152 = vector.extract_strided_slice %149 {offsets = [2, 32], sizes = [1, 128], strides = [1, 1]} : vector<16x256xf32> to vector<1x128xf32>
    %153 = vector.extract_strided_slice %149 {offsets = [3, 48], sizes = [1, 128], strides = [1, 1]} : vector<16x256xf32> to vector<1x128xf32>
    %154 = vector.extract_strided_slice %149 {offsets = [4, 64], sizes = [1, 128], strides = [1, 1]} : vector<16x256xf32> to vector<1x128xf32>
    %155 = vector.extract_strided_slice %149 {offsets = [5, 80], sizes = [1, 128], strides = [1, 1]} : vector<16x256xf32> to vector<1x128xf32>
    %156 = vector.extract_strided_slice %149 {offsets = [6, 96], sizes = [1, 128], strides = [1, 1]} : vector<16x256xf32> to vector<1x128xf32>
    %157 = vector.extract_strided_slice %149 {offsets = [7, 112], sizes = [1, 128], strides = [1, 1]} : vector<16x256xf32> to vector<1x128xf32>
    %158 = vector.extract_strided_slice %149 {offsets = [8, 128], sizes = [1, 128], strides = [1, 1]} : vector<16x256xf32> to vector<1x128xf32>
    %159 = arith.addf %150, %151 : vector<1x128xf32>
    %160 = arith.addf %152, %153 : vector<1x128xf32>
    %161 = arith.addf %154, %155 : vector<1x128xf32>
    %162 = arith.addf %156, %157 : vector<1x128xf32>
    %163 = arith.addf %159, %160 : vector<1x128xf32>
    %164 = arith.addf %161, %162 : vector<1x128xf32>
    %165 = arith.addf %163, %164 : vector<1x128xf32>
    %166 = arith.addf %165, %158 : vector<1x128xf32>
    %167 = vector.broadcast %3 : f32 to vector<1x128xf32>
    %168 = arith.addf %166, %167 : vector<1x128xf32>
    %cst_60 = arith.constant 0.000000e+00 : f32
    %169 = vector.broadcast %cst_60 : f32 to vector<1x128xf32>
    %170 = arith.subf %169, %168 : vector<1x128xf32>
    %171 = math.exp %170 : vector<1x128xf32>
    %cst_61 = arith.constant 1.000000e+00 : f32
    %172 = vector.broadcast %cst_61 : f32 to vector<1x128xf32>
    %173 = arith.addf %172, %171 : vector<1x128xf32>
    %cst_62 = arith.constant 1.000000e+00 : f32
    %174 = vector.broadcast %cst_62 : f32 to vector<1x128xf32>
    %175 = arith.divf %174, %173 : vector<1x128xf32>
    %cst_63 = arith.constant 1.000000e+00 : f32
    %176 = vector.broadcast %cst_63 : f32 to vector<1x128xf32>
    %177 = arith.addf %176, %175 : vector<1x128xf32>
    %178 = vector.broadcast %177 : vector<1x128xf32> to vector<16x128xf32>
    %179 = arith.mulf %143, %178 : vector<16x128xf32>
    %cst_64 = arith.constant dense<0.000000e+00> : vector<16xf32>
    %180 = vector.multi_reduction <add>, %179, %cst_64 [1] : vector<16x128xf32> to vector<16xf32>
    %181 = vector.shape_cast %180 : vector<16xf32> to vector<16x1xf32>
    %cst_65 = arith.constant 1.280000e+02 : f32
    %182 = vector.broadcast %cst_65 : f32 to vector<16x1xf32>
    %183 = arith.divf %181, %182 : vector<16x1xf32>
    %c80 = arith.constant 80 : index
    %c0_66 = arith.constant 0 : index
    %184 = vector.load %arg8[%c80, %c0_66] : memref<112x16xf32, #tpu.memory_space<vmem>>, vector<8x16xf32>
    %cst_67 = arith.constant dense<0.000000e+00> : vector<8x1xf32>
    %185 = tpu.matmul %184, %183, %cst_67 {dimension_numbers = #tpu.dot_dimension_numbers<[1], [0], [0], [1], [0, 0, 1, 1], [], []>} : vector<8x16xf32>, vector<16x1xf32>, vector<8x1xf32> -> vector<8x1xf32>
    %186 = vector.extract_strided_slice %85 {offsets = [0, 6], sizes = [8, 1], strides = [1, 1]} : vector<16x16xf32> to vector<8x1xf32>
    %187 = arith.addf %185, %186 : vector<8x1xf32>
    %cst_68 = arith.constant 0.000000e+00 : f32
    %188 = vector.broadcast %cst_68 : f32 to vector<8x1xf32>
    %189 = arith.maximumf %187, %188 : vector<8x1xf32>
    %c88 = arith.constant 88 : index
    %c0_69 = arith.constant 0 : index
    %190 = vector.load %arg8[%c88, %c0_69] : memref<112x16xf32, #tpu.memory_space<vmem>>, vector<8x16xf32>
    %cst_70 = arith.constant dense<0.000000e+00> : vector<16x1xf32>
    %191 = tpu.matmul %190, %189, %cst_70 {dimension_numbers = #tpu.dot_dimension_numbers<[0], [0], [1], [1], [0, 1, 1, 1], [], []>} : vector<8x16xf32>, vector<8x1xf32>, vector<16x1xf32> -> vector<16x1xf32>
    %192 = vector.extract_strided_slice %85 {offsets = [0, 7], sizes = [16, 1], strides = [1, 1]} : vector<16x16xf32> to vector<16x1xf32>
    %193 = arith.addf %191, %192 : vector<16x1xf32>
    %cst_71 = arith.constant 0.000000e+00 : f32
    %194 = vector.broadcast %cst_71 : f32 to vector<16x1xf32>
    %195 = arith.subf %194, %193 : vector<16x1xf32>
    %196 = math.exp %195 : vector<16x1xf32>
    %cst_72 = arith.constant 1.000000e+00 : f32
    %197 = vector.broadcast %cst_72 : f32 to vector<16x1xf32>
    %198 = arith.addf %197, %196 : vector<16x1xf32>
    %cst_73 = arith.constant 1.000000e+00 : f32
    %199 = vector.broadcast %cst_73 : f32 to vector<16x1xf32>
    %200 = arith.divf %199, %198 : vector<16x1xf32>
    %cst_74 = arith.constant 1.000000e+00 : f32
    %201 = vector.broadcast %cst_74 : f32 to vector<16x1xf32>
    %202 = arith.addf %201, %200 : vector<16x1xf32>
    %203 = vector.broadcast %202 : vector<16x1xf32> to vector<16x128xf32>
    %204 = arith.mulf %179, %203 : vector<16x128xf32>
    %205 = vector.extract_strided_slice %85 {offsets = [0, 2], sizes = [16, 1], strides = [1, 1]} : vector<16x16xf32> to vector<16x1xf32>
    %206 = vector.broadcast %205 : vector<16x1xf32> to vector<16x128xf32>
    %207 = arith.mulf %204, %206 : vector<16x128xf32>
    %208 = vector.extract_strided_slice %85 {offsets = [0, 3], sizes = [16, 1], strides = [1, 1]} : vector<16x16xf32> to vector<16x1xf32>
    %209 = vector.broadcast %208 : vector<16x1xf32> to vector<16x128xf32>
    %210 = arith.addf %207, %209 : vector<16x128xf32>
    %cst_75 = arith.constant 0.000000e+00 : f32
    %211 = vector.broadcast %cst_75 : f32 to vector<16x128xf32>
    %212 = arith.maximumf %210, %211 : vector<16x128xf32>
    %cst_76 = arith.constant 0.000000e+00 : f32
    %213 = vector.broadcast %cst_76 : f32 to vector<16x64xf32>
    %214 = tpu.concatenate %213, %212, %213 in 1 : vector<16x64xf32>, vector<16x128xf32>, vector<16x64xf32> -> vector<16x256xf32>
    %215 = vector.extract_strided_slice %214 {offsets = [0, 0], sizes = [16, 128], strides = [1, 1]} : vector<16x256xf32> to vector<16x128xf32>
    %c0_77 = arith.constant 0 : index
    %c0_78 = arith.constant 0 : index
    %216 = vector.load %arg12[%c0_77, %c0_78] : memref<144x128xf32, #tpu.memory_space<vmem>>, vector<16x128xf32>
    tpu.vector_store %arg12[%c0_77, %c0_78], %215 {strides = array<i32>} : memref<144x128xf32, #tpu.memory_space<vmem>>, vector<16x128xf32>,
    %217 = vector.extract_strided_slice %214 {offsets = [0, 16], sizes = [16, 128], strides = [1, 1]} : vector<16x256xf32> to vector<16x128xf32>
    %c16 = arith.constant 16 : index
    %c0_79 = arith.constant 0 : index
    %218 = vector.load %arg12[%c16, %c0_79] : memref<144x128xf32, #tpu.memory_space<vmem>>, vector<16x128xf32>
    tpu.vector_store %arg12[%c16, %c0_79], %217 {strides = array<i32>} : memref<144x128xf32, #tpu.memory_space<vmem>>, vector<16x128xf32>,
    %219 = vector.extract_strided_slice %214 {offsets = [0, 32], sizes = [16, 128], strides = [1, 1]} : vector<16x256xf32> to vector<16x128xf32>
    %c32 = arith.constant 32 : index
    %c0_80 = arith.constant 0 : index
    %220 = vector.load %arg12[%c32, %c0_80] : memref<144x128xf32, #tpu.memory_space<vmem>>, vector<16x128xf32>
    tpu.vector_store %arg12[%c32, %c0_80], %219 {strides = array<i32>} : memref<144x128xf32, #tpu.memory_space<vmem>>, vector<16x128xf32>,
    %221 = vector.extract_strided_slice %214 {offsets = [0, 48], sizes = [16, 128], strides = [1, 1]} : vector<16x256xf32> to vector<16x128xf32>
    %c48_81 = arith.constant 48 : index
    %c0_82 = arith.constant 0 : index
    %222 = vector.load %arg12[%c48_81, %c0_82] : memref<144x128xf32, #tpu.memory_space<vmem>>, vector<16x128xf32>
    tpu.vector_store %arg12[%c48_81, %c0_82], %221 {strides = array<i32>} : memref<144x128xf32, #tpu.memory_space<vmem>>, vector<16x128xf32>,
    %223 = vector.extract_strided_slice %214 {offsets = [0, 64], sizes = [16, 128], strides = [1, 1]} : vector<16x256xf32> to vector<16x128xf32>
    %c64_83 = arith.constant 64 : index
    %c0_84 = arith.constant 0 : index
    %224 = vector.load %arg12[%c64_83, %c0_84] : memref<144x128xf32, #tpu.memory_space<vmem>>, vector<16x128xf32>
    tpu.vector_store %arg12[%c64_83, %c0_84], %223 {strides = array<i32>} : memref<144x128xf32, #tpu.memory_space<vmem>>, vector<16x128xf32>,
    %225 = vector.extract_strided_slice %214 {offsets = [0, 80], sizes = [16, 128], strides = [1, 1]} : vector<16x256xf32> to vector<16x128xf32>
    %c80_85 = arith.constant 80 : index
    %c0_86 = arith.constant 0 : index
    %226 = vector.load %arg12[%c80_85, %c0_86] : memref<144x128xf32, #tpu.memory_space<vmem>>, vector<16x128xf32>
    tpu.vector_store %arg12[%c80_85, %c0_86], %225 {strides = array<i32>} : memref<144x128xf32, #tpu.memory_space<vmem>>, vector<16x128xf32>,
    %227 = vector.extract_strided_slice %214 {offsets = [0, 96], sizes = [16, 128], strides = [1, 1]} : vector<16x256xf32> to vector<16x128xf32>
    %c96_87 = arith.constant 96 : index
    %c0_88 = arith.constant 0 : index
    %228 = vector.load %arg12[%c96_87, %c0_88] : memref<144x128xf32, #tpu.memory_space<vmem>>, vector<16x128xf32>
    tpu.vector_store %arg12[%c96_87, %c0_88], %227 {strides = array<i32>} : memref<144x128xf32, #tpu.memory_space<vmem>>, vector<16x128xf32>,
    %229 = vector.extract_strided_slice %214 {offsets = [0, 112], sizes = [16, 128], strides = [1, 1]} : vector<16x256xf32> to vector<16x128xf32>
    %c112 = arith.constant 112 : index
    %c0_89 = arith.constant 0 : index
    %230 = vector.load %arg12[%c112, %c0_89] : memref<144x128xf32, #tpu.memory_space<vmem>>, vector<16x128xf32>
    tpu.vector_store %arg12[%c112, %c0_89], %229 {strides = array<i32>} : memref<144x128xf32, #tpu.memory_space<vmem>>, vector<16x128xf32>,
    %231 = vector.extract_strided_slice %214 {offsets = [0, 128], sizes = [16, 128], strides = [1, 1]} : vector<16x256xf32> to vector<16x128xf32>
    %c128_90 = arith.constant 128 : index
    %c0_91 = arith.constant 0 : index
    %232 = vector.load %arg12[%c128_90, %c0_91] : memref<144x128xf32, #tpu.memory_space<vmem>>, vector<16x128xf32>
    tpu.vector_store %arg12[%c128_90, %c0_91], %231 {strides = array<i32>} : memref<144x128xf32, #tpu.memory_space<vmem>>, vector<16x128xf32>,
    %c0_92 = arith.constant 0 : index
    %c0_93 = arith.constant 0 : index
    %233 = vector.load %arg7[%c0_92, %c0_93] : memref<16x144xf32, #tpu.memory_space<vmem>>, vector<16x144xf32>
    %c0_94 = arith.constant 0 : index
    %c0_95 = arith.constant 0 : index
    %234 = vector.load %arg12[%c0_94, %c0_95] : memref<144x128xf32, #tpu.memory_space<vmem>>, vector<144x128xf32>
    %cst_96 = arith.constant dense<0.000000e+00> : vector<16x128xf32>
    %235 = tpu.matmul %233, %234, %cst_96 {dimension_numbers = #tpu.dot_dimension_numbers<[1], [0], [0], [1], [0, 0, 1, 1], [], []>} : vector<16x144xf32>, vector<144x128xf32>, vector<16x128xf32> -> vector<16x128xf32>
    %236 = vector.extract_strided_slice %85 {offsets = [0, 4], sizes = [16, 1], strides = [1, 1]} : vector<16x16xf32> to vector<16x1xf32>
    %237 = vector.broadcast %236 : vector<16x1xf32> to vector<16x128xf32>
    %238 = arith.mulf %235, %237 : vector<16x128xf32>
    %239 = vector.extract_strided_slice %85 {offsets = [0, 5], sizes = [16, 1], strides = [1, 1]} : vector<16x16xf32> to vector<16x1xf32>
    %240 = vector.broadcast %239 : vector<16x1xf32> to vector<16x128xf32>
    %241 = arith.addf %238, %240 : vector<16x128xf32>
    %242 = arith.addf %241, %1 : vector<16x128xf32>
    %cst_97 = arith.constant 0.000000e+00 : f32
    %243 = vector.broadcast %cst_97 : f32 to vector<16x128xf32>
    %244 = arith.maximumf %242, %243 : vector<16x128xf32>
    %c0_98 = arith.constant 0 : index
    %c0_99 = arith.constant 0 : index
    %c0_100 = arith.constant 0 : index
    %245 = vector.load %arg10[%c0_98, %c0_99, %c0_100] : memref<1x16x128xf32, #tpu.memory_space<vmem>>, vector<1x16x128xf32>
    %246 = vector.shape_cast %245 : vector<1x16x128xf32> to vector<16x128xf32>
    %247 = vector.shape_cast %244 : vector<16x128xf32> to vector<1x16x128xf32>
    tpu.vector_store %arg10[%c0_98, %c0_99, %c0_100], %247 {strides = array<i32>} : memref<1x16x128xf32, #tpu.memory_space<vmem>>, vector<1x16x128xf32>,
    return
  }
  func.func @transform_0(%arg0: i32) -> (i32, i32, i32) {
    %c0_i32 = arith.constant 0 : i32
    %c0_i32_0 = arith.constant 0 : i32
    %c0_i32_1 = arith.constant 0 : i32
    return %arg0, %c0_i32, %c0_i32_0 : i32, i32, i32
  }
  func.func @transform_1(%arg0: i32) -> (i32, i32, i32) {
    %c0_i32 = arith.constant 0 : i32
    %c0_i32_0 = arith.constant 0 : i32
    %c0_i32_1 = arith.constant 0 : i32
    return %arg0, %c0_i32, %c0_i32_0 : i32, i32, i32
  }
  func.func @transform_2(%arg0: i32) -> (i32, i32, i32) {
    %c0_i32 = arith.constant 0 : i32
    %c0_i32_0 = arith.constant 0 : i32
    %c0_i32_1 = arith.constant 0 : i32
    %c0_i32_2 = arith.constant 0 : i32
    return %c0_i32, %c0_i32_0, %c0_i32_1 : i32, i32, i32
  }
  func.func @transform_3(%arg0: i32) -> (i32, i32) {
    %c0_i32 = arith.constant 0 : i32
    %c0_i32_0 = arith.constant 0 : i32
    %c0_i32_1 = arith.constant 0 : i32
    return %c0_i32, %c0_i32_0 : i32, i32
  }
  func.func @transform_4(%arg0: i32) -> (i32, i32) {
    %c0_i32 = arith.constant 0 : i32
    %c0_i32_0 = arith.constant 0 : i32
    %c0_i32_1 = arith.constant 0 : i32
    return %c0_i32, %c0_i32_0 : i32, i32
  }
  func.func @transform_5(%arg0: i32) -> (i32, i32) {
    %c0_i32 = arith.constant 0 : i32
    %c0_i32_0 = arith.constant 0 : i32
    %c0_i32_1 = arith.constant 0 : i32
    return %c0_i32, %c0_i32_0 : i32, i32
  }
  func.func @transform_6(%arg0: i32) -> (i32, i32) {
    %c0_i32 = arith.constant 0 : i32
    %c0_i32_0 = arith.constant 0 : i32
    %c0_i32_1 = arith.constant 0 : i32
    return %c0_i32, %c0_i32_0 : i32, i32
  }
  func.func @transform_7(%arg0: i32) -> (i32, i32) {
    %c0_i32 = arith.constant 0 : i32
    %c0_i32_0 = arith.constant 0 : i32
    %c0_i32_1 = arith.constant 0 : i32
    return %c0_i32, %c0_i32_0 : i32, i32
  }
  func.func @transform_8(%arg0: i32) -> i32 {
    %c0_i32 = arith.constant 0 : i32
    %c0_i32_0 = arith.constant 0 : i32
    return %c0_i32 : i32
  }
  func.func @transform_9(%arg0: i32) -> (i32, i32, i32) {
    %c0_i32 = arith.constant 0 : i32
    %c0_i32_0 = arith.constant 0 : i32
    %c0_i32_1 = arith.constant 0 : i32
    return %arg0, %c0_i32, %c0_i32_0 : i32, i32, i32
  }
}

</mosaic_0001>

<llo_original>
// kernel: tile.9
$region0: #{tile.9}
  %s0 = inlined_call_operand.vmem [shape: f32[3,8,16,8,16], index: 0, kind: input, shape index: {}]
  %s1 = inlined_call_operand.vmem [shape: f32[3,128,128], index: 1, kind: output, shape index: {}]
  %v2 = vld [vmem:[%s0] ss:$8 sm:$0xf]
  %v3 = vld [vmem:[%s0] ss:$8 sm:$0xf0]
  %vm4 = vcmask 1047556
  %v5 = vsel %vm4, %v3, %v2
  %vm6 = vcmask 130048
  %7 = vst.msk [vmem:[%s1] sm:$0xff] %vm6, %v5
  %s8 = scalar_lea.vmem %s0, 64
  %v9 = vld [vmem:[%s8] ss:$8 sm:$0xf]
  %s10 = scalar_lea.vmem %s0, 64
  %v11 = vld [vmem:[%s10] ss:$8 sm:$0xf0]
  %vm12 = vcmask 1047556
  %v13 = vsel %vm12, %v11, %v9
  %vm14 = vcmask 130048
  %s15 = scalar_lea.vmem %s1, 8
  %16 = vst.msk [vmem:[%s15] sm:$0xff] %vm14, %v13
  %s17 = scalar_lea.vmem %s0, 128
  %v18 = vld [vmem:[%s17] ss:$8 sm:$0xf]
  %s19 = scalar_lea.vmem %s0, 128
  %v20 = vld [vmem:[%s19] ss:$8 sm:$0xf0]
  %vm21 = vcmask 1047556
  %v22 = vsel %vm21, %v20, %v18
  %vm23 = vcmask 130048
  %s24 = scalar_lea.vmem %s1, 16
  %25 = vst.msk [vmem:[%s24] sm:$0xff] %vm23, %v22
  %s26 = scalar_lea.vmem %s0, 192
  %v27 = vld [vmem:[%s26] ss:$8 sm:$0xf]
  %s28 = scalar_lea.vmem %s0, 192
  %v29 = vld [vmem:[%s28] ss:$8 sm:$0xf0]
  %vm30 = vcmask 1047556
  %v31 = vsel %vm30, %v29, %v27
  %vm32 = vcmask 130048
  %s33 = scalar_lea.vmem %s1, 24
  %34 = vst.msk [vmem:[%s33] sm:$0xff] %vm32, %v31
  %s35 = scalar_lea.vmem %s0, 256
  %v36 = vld [vmem:[%s35] ss:$8 sm:$0xf]
  %s37 = scalar_lea.vmem %s0, 256
  %v38 = vld [vmem:[%s37] ss:$8 sm:$0xf0]
  %vm39 = vcmask 1047556
  %v40 = vsel %vm39, %v38, %v36
  %vm41 = vcmask 130048
  %s42 = scalar_lea.vmem %s1, 32
  %43 = vst.msk [vmem:[%s42] sm:$0xff] %vm41, %v40
  %s44 = scalar_lea.vmem %s0, 320
  %v45 = vld [vmem:[%s44] ss:$8 sm:$0xf]
  %s46 = scalar_lea.vmem %s0, 320
  %v47 = vld [vmem:[%s46] ss:$8 sm:$0xf0]
  %vm48 = vcmask 1047556
  %v49 = vsel %vm48, %v47, %v45
  %vm50 = vcmask 130048
  %s51 = scalar_lea.vmem %s1, 40
  %52 = vst.msk [vmem:[%s51] sm:$0xff] %vm50, %v49
  %s53 = scalar_lea.vmem %s0, 384
  %v54 = vld [vmem:[%s53] ss:$8 sm:$0xf]
  %s55 = scalar_lea.vmem %s0, 384
  %v56 = vld [vmem:[%s55] ss:$8 sm:$0xf0]
  %vm57 = vcmask 1047556
  %v58 = vsel %vm57, %v56, %v54
  %vm59 = vcmask 130048
  %s60 = scalar_lea.vmem %s1, 48
  %61 = vst.msk [vmem:[%s60] sm:$0xff] %vm59, %v58
  %s62 = scalar_lea.vmem %s0, 448
  %v63 = vld [vmem:[%s62] ss:$8 sm:$0xf]
  %s64 = scalar_lea.vmem %s0, 448
  %v65 = vld [vmem:[%s64] ss:$8 sm:$0xf0]
  %vm66 = vcmask 1047556
  %v67 = vsel %vm66, %v65, %v63
  %vm68 = vcmask 130048
  %s69 = scalar_lea.vmem %s1, 56
  %70 = vst.msk [vmem:[%s69] sm:$0xff] %vm68, %v67
  %s71 = scalar_lea.vmem %s0, 512
  %v72 = vld [vmem:[%s71] ss:$8 sm:$0xf]
  %s73 = scalar_lea.vmem %s0, 512
  %v74 = vld [vmem:[%s73] ss:$8 sm:$0xf0]
  %vm75 = vcmask 1047556
  %v76 = vsel %vm75, %v74, %v72
  %vm77 = vcmask 130048
  %s78 = scalar_lea.vmem %s1, 64
  %79 = vst.msk [vmem:[%s78] sm:$0xff] %vm77, %v76
  %s80 = scalar_lea.vmem %s0, 576
  %v81 = vld [vmem:[%s80] ss:$8 sm:$0xf]
  %s82 = scalar_lea.vmem %s0, 576
  %v83 = vld [vmem:[%s82] ss:$8 sm:$0xf0]
  %vm84 = vcmask 1047556
  %v85 = vsel %vm84, %v83, %v81
  %vm86 = vcmask 130048
  %s87 = scalar_lea.vmem %s1, 72
  %88 = vst.msk [vmem:[%s87] sm:$0xff] %vm86, %v85
  %s89 = scalar_lea.vmem %s0, 640
  %v90 = vld [vmem:[%s89] ss:$8 sm:$0xf]
  %s91 = scalar_lea.vmem %s0, 640
  %v92 = vld [vmem:[%s91] ss:$8 sm:$0xf0]
  %vm93 = vcmask 1047556
  %v94 = vsel %vm93, %v92, %v90
  %vm95 = vcmask 130048
  %s96 = scalar_lea.vmem %s1, 80
  %97 = vst.msk [vmem:[%s96] sm:$0xff] %vm95, %v94
  %s98 = scalar_lea.vmem %s0, 704
  %v99 = vld [vmem:[%s98] ss:$8 sm:$0xf]
  %s100 = scalar_lea.vmem %s0, 704
  %v101 = vld [vmem:[%s100] ss:$8 sm:$0xf0]
  %vm102 = vcmask 1047556
  %v103 = vsel %vm102, %v101, %v99
  %vm104 = vcmask 130048
  %s105 = scalar_lea.vmem %s1, 88
  %106 = vst.msk [vmem:[%s105] sm:$0xff] %vm104, %v103
  %s107 = scalar_lea.vmem %s0, 768
  %v108 = vld [vmem:[%s107] ss:$8 sm:$0xf]
  %s109 = scalar_lea.vmem %s0, 768
  %v110 = vld [vmem:[%s109] ss:$8 sm:$0xf0]
  %vm111 = vcmask 1047556
  %v112 = vsel %vm111, %v110, %v108
  %vm113 = vcmask 130048
  %s114 = scalar_lea.vmem %s1, 96
  %115 = vst.msk [vmem:[%s114] sm:$0xff] %vm113, %v112
  %s116 = scalar_lea.vmem %s0, 832
  %v117 = vld [vmem:[%s116] ss:$8 sm:$0xf]
  %s118 = scalar_lea.vmem %s0, 832
  %v119 = vld [vmem:[%s118] ss:$8 sm:$0xf0]
  %vm120 = vcmask 1047556
  %v121 = vsel %vm120, %v119, %v117
  %vm122 = vcmask 130048
  %s123 = scalar_lea.vmem %s1, 104
  %124 = vst.msk [vmem:[%s123] sm:$0xff] %vm122, %v121
  %s125 = scalar_lea.vmem %s0, 896
  %v126 = vld [vmem:[%s125] ss:$8 sm:$0xf]
  %s127 = scalar_lea.vmem %s0, 896
  %v128 = vld [vmem:[%s127] ss:$8 sm:$0xf0]
  %vm129 = vcmask 1047556
  %v130 = vsel %vm129, %v128, %v126
  %vm131 = vcmask 130048
  %s132 = scalar_lea.vmem %s1, 112
  %133 = vst.msk [vmem:[%s132] sm:$0xff] %vm131, %v130
  %s134 = scalar_lea.vmem %s0, 960
  %v135 = vld [vmem:[%s134] ss:$8 sm:$0xf]
  %s136 = scalar_lea.vmem %s0, 960
  %v137 = vld [vmem:[%s136] ss:$8 sm:$0xf0]
  %vm138 = vcmask 1047556
  %v139 = vsel %vm138, %v137, %v135
  %vm140 = vcmask 130048
  %s141 = scalar_lea.vmem %s1, 120
  %142 = vst.msk [vmem:[%s141] sm:$0xff] %vm140, %v139
  %s143 = scalar_lea.vmem %s0, 1024
  %v144 = vld [vmem:[%s143] ss:$8 sm:$0xf]
  %s145 = scalar_lea.vmem %s0, 1024
  %v146 = vld [vmem:[%s145] ss:$8 sm:$0xf0]
  %vm147 = vcmask 1047556
  %v148 = vsel %vm147, %v146, %v144
  %vm149 = vcmask 130048
  %s150 = scalar_lea.vmem %s1, 128
  %151 = vst.msk [vmem:[%s150] sm:$0xff] %vm149, %v148
  %s152 = scalar_lea.vmem %s0, 1088
  %v153 = vld [vmem:[%s152] ss:$8 sm:$0xf]
  %s154 = scalar_lea.vmem %s0, 1088
  %v155 = vld [vmem:[%s154] ss:$8 sm:$0xf0]
  %vm156 = vcmask 1047556
  %v157 = vsel %vm156, %v155, %v153
  %vm158 = vcmask 130048
  %s159 = scalar_lea.vmem %s1, 136
  %160 = vst.msk [vmem:[%s159] sm:$0xff] %vm158, %v157
  %s161 = scalar_lea.vmem %s0, 1152
  %v162 = vld [vmem:[%s161] ss:$8 sm:$0xf]
  %s163 = scalar_lea.vmem %s0, 1152
  %v164 = vld [vmem:[%s163] ss:$8 sm:$0xf0]
  %vm165 = vcmask 1047556
  %v166 = vsel %vm165, %v164, %v162
  %vm167 = vcmask 130048
  %s168 = scalar_lea.vmem %s1, 144
  %169 = vst.msk [vmem:[%s168] sm:$0xff] %vm167, %v166
  %s170 = scalar_lea.vmem %s0, 1216
  %v171 = vld [vmem:[%s170] ss:$8 sm:$0xf]
  %s172 = scalar_lea.vmem %s0, 1216
  %v173 = vld [vmem:[%s172] ss:$8 sm:$0xf0]
  %vm174 = vcmask 1047556
  %v175 = vsel %vm174, %v173, %v171
  %vm176 = vcmask 130048
  %s177 = scalar_lea.vmem %s1, 152
  %178 = vst.msk [vmem:[%s177] sm:$0xff] %vm176, %v175
  %s179 = scalar_lea.vmem %s0, 1280
  %v180 = vld [vmem:[%s179] ss:$8 sm:$0xf]
  %s181 = scalar_lea.vmem %s0, 1280
  %v182 = vld [vmem:[%s181] ss:$8 sm:$0xf0]
  %vm183 = vcmask 1047556
  %v184 = vsel %vm183, %v182, %v180
  %vm185 = vcmask 130048
  %s186 = scalar_lea.vmem %s1, 160
  %187 = vst.msk [vmem:[%s186] sm:$0xff] %vm185, %v184
  %s188 = scalar_lea.vmem %s0, 1344
  %v189 = vld [vmem:[%s188] ss:$8 sm:$0xf]
  %s190 = scalar_lea.vmem %s0, 1344
  %v191 = vld [vmem:[%s190] ss:$8 sm:$0xf0]
  %vm192 = vcmask 1047556
  %v193 = vsel %vm192, %v191, %v189
  %vm194 = vcmask 130048
  %s195 = scalar_lea.vmem %s1, 168
  %196 = vst.msk [vmem:[%s195] sm:$0xff] %vm194, %v193
  %s197 = scalar_lea.vmem %s0, 1408
  %v198 = vld [vmem:[%s197] ss:$8 sm:$0xf]
  %s199 = scalar_lea.vmem %s0, 1408
  %v200 = vld [vmem:[%s199] ss:$8 sm:$0xf0]
  %vm201 = vcmask 1047556
  %v202 = vsel %vm201, %v200, %v198
  %vm203 = vcmask 130048
  %s204 = scalar_lea.vmem %s1, 176
  %205 = vst.msk [vmem:[%s204] sm:$0xff] %vm203, %v202
  %s206 = scalar_lea.vmem %s0, 1472
  %v207 = vld [vmem:[%s206] ss:$8 sm:$0xf]
  %s208 = scalar_lea.vmem %s0, 1472
  %v209 = vld [vmem:[%s208] ss:$8 sm:$0xf0]
  %vm210 = vcmask 1047556
  %v211 = vsel %vm210, %v209, %v207
  %vm212 = vcmask 130048
  %s213 = scalar_lea.vmem %s1, 184
  %214 = vst.msk [vmem:[%s213] sm:$0xff] %vm212, %v211
  %s215 = scalar_lea.vmem %s0, 1536
  %v216 = vld [vmem:[%s215] ss:$8 sm:$0xf]
  %s217 = scalar_lea.vmem %s0, 1536
  %v218 = vld [vmem:[%s217] ss:$8 sm:$0xf0]
  %vm219 = vcmask 1047556
  %v220 = vsel %vm219, %v218, %v216
  %vm221 = vcmask 130048
  %s222 = scalar_lea.vmem %s1, 192
  %223 = vst.msk [vmem:[%s222] sm:$0xff] %vm221, %v220
  %s224 = scalar_lea.vmem %s0, 1600
  %v225 = vld [vmem:[%s224] ss:$8 sm:$0xf]
  %s226 = scalar_lea.vmem %s0, 1600
  %v227 = vld [vmem:[%s226] ss:$8 sm:$0xf0]
  %vm228 = vcmask 1047556
  %v229 = vsel %vm228, %v227, %v225
  %vm230 = vcmask 130048
  %s231 = scalar_lea.vmem %s1, 200
  %232 = vst.msk [vmem:[%s231] sm:$0xff] %vm230, %v229
  %s233 = scalar_lea.vmem %s0, 1664
  %v234 = vld [vmem:[%s233] ss:$8 sm:$0xf]
  %s235 = scalar_lea.vmem %s0, 1664
  %v236 = vld [vmem:[%s235] ss:$8 sm:$0xf0]
  %vm237 = vcmask 1047556
  %v238 = vsel %vm237, %v236, %v234
  %vm239 = vcmask 130048
  %s240 = scalar_lea.vmem %s1, 208
  %241 = vst.msk [vmem:[%s240] sm:$0xff] %vm239, %v238
  %s242 = scalar_lea.vmem %s0, 1728
  %v243 = vld [vmem:[%s242] ss:$8 sm:$0xf]
  %s244 = scalar_lea.vmem %s0, 1728
  %v245 = vld [vmem:[%s244] ss:$8 sm:$0xf0]
  %vm246 = vcmask 1047556
  %v247 = vsel %vm246, %v245, %v243
  %vm248 = vcmask 130048
  %s249 = scalar_lea.vmem %s1, 216
  %250 = vst.msk [vmem:[%s249] sm:$0xff] %vm248, %v247
  %s251 = scalar_lea.vmem %s0, 1792
  %v252 = vld [vmem:[%s251] ss:$8 sm:$0xf]
  %s253 = scalar_lea.vmem %s0, 1792
  %v254 = vld [vmem:[%s253] ss:$8 sm:$0xf0]
  %vm255 = vcmask 1047556
  %v256 = vsel %vm255, %v254, %v252
  %vm257 = vcmask 130048
  %s258 = scalar_lea.vmem %s1, 224
  %259 = vst.msk [vmem:[%s258] sm:$0xff] %vm257, %v256
  %s260 = scalar_lea.vmem %s0, 1856
  %v261 = vld [vmem:[%s260] ss:$8 sm:$0xf]
  %s262 = scalar_lea.vmem %s0, 1856
  %v263 = vld [vmem:[%s262] ss:$8 sm:$0xf0]
  %vm264 = vcmask 1047556
  %v265 = vsel %vm264, %v263, %v261
  %vm266 = vcmask 130048
  %s267 = scalar_lea.vmem %s1, 232
  %268 = vst.msk [vmem:[%s267] sm:$0xff] %vm266, %v265
  %s269 = scalar_lea.vmem %s0, 1920
  %v270 = vld [vmem:[%s269] ss:$8 sm:$0xf]
  %s271 = scalar_lea.vmem %s0, 1920
  %v272 = vld [vmem:[%s271] ss:$8 sm:$0xf0]
  %vm273 = vcmask 1047556
  %v274 = vsel %vm273, %v272, %v270
  %vm275 = vcmask 130048
  %s276 = scalar_lea.vmem %s1, 240
  %277 = vst.msk [vmem:[%s276] sm:$0xff] %vm275, %v274
  %s278 = scalar_lea.vmem %s0, 1984
  %v279 = vld [vmem:[%s278] ss:$8 sm:$0xf]
  %s280 = scalar_lea.vmem %s0, 1984
  %v281 = vld [vmem:[%s280] ss:$8 sm:$0xf0]
  %vm282 = vcmask 1047556
  %v283 = vsel %vm282, %v281, %v279
  %vm284 = vcmask 130048
  %s285 = scalar_lea.vmem %s1, 248
  %286 = vst.msk [vmem:[%s285] sm:$0xff] %vm284, %v283
  %s287 = scalar_lea.vmem %s0, 2048
  %v288 = vld [vmem:[%s287] ss:$8 sm:$0xf]
  %s289 = scalar_lea.vmem %s0, 2048
  %v290 = vld [vmem:[%s289] ss:$8 sm:$0xf0]
  %vm291 = vcmask 1047556
  %v292 = vsel %vm291, %v290, %v288
  %vm293 = vcmask 130048
  %s294 = scalar_lea.vmem %s1, 256
  %295 = vst.msk [vmem:[%s294] sm:$0xff] %vm293, %v292
  %s296 = scalar_lea.vmem %s0, 2112
  %v297 = vld [vmem:[%s296] ss:$8 sm:$0xf]
  %s298 = scalar_lea.vmem %s0, 2112
  %v299 = vld [vmem:[%s298] ss:$8 sm:$0xf0]
  %vm300 = vcmask 1047556
  %v301 = vsel %vm300, %v299, %v297
  %vm302 = vcmask 130048
  %s303 = scalar_lea.vmem %s1, 264
  %304 = vst.msk [vmem:[%s303] sm:$0xff] %vm302, %v301
  %s305 = scalar_lea.vmem %s0, 2176
  %v306 = vld [vmem:[%s305] ss:$8 sm:$0xf]
  %s307 = scalar_lea.vmem %s0, 2176
  %v308 = vld [vmem:[%s307] ss:$8 sm:$0xf0]
  %vm309 = vcmask 1047556
  %v310 = vsel %vm309, %v308, %v306
  %vm311 = vcmask 130048
  %s312 = scalar_lea.vmem %s1, 272
  %313 = vst.msk [vmem:[%s312] sm:$0xff] %vm311, %v310
  %s314 = scalar_lea.vmem %s0, 2240
  %v315 = vld [vmem:[%s314] ss:$8 sm:$0xf]
  %s316 = scalar_lea.vmem %s0, 2240
  %v317 = vld [vmem:[%s316] ss:$8 sm:$0xf0]
  %vm318 = vcmask 1047556
  %v319 = vsel %vm318, %v317, %v315
  %vm320 = vcmask 130048
  %s321 = scalar_lea.vmem %s1, 280
  %322 = vst.msk [vmem:[%s321] sm:$0xff] %vm320, %v319
  %s323 = scalar_lea.vmem %s0, 2304
  %v324 = vld [vmem:[%s323] ss:$8 sm:$0xf]
  %s325 = scalar_lea.vmem %s0, 2304
  %v326 = vld [vmem:[%s325] ss:$8 sm:$0xf0]
  %vm327 = vcmask 1047556
  %v328 = vsel %vm327, %v326, %v324
  %vm329 = vcmask 130048
  %s330 = scalar_lea.vmem %s1, 288
  %331 = vst.msk [vmem:[%s330] sm:$0xff] %vm329, %v328
  %s332 = scalar_lea.vmem %s0, 2368
  %v333 = vld [vmem:[%s332] ss:$8 sm:$0xf]
  %s334 = scalar_lea.vmem %s0, 2368
  %v335 = vld [vmem:[%s334] ss:$8 sm:$0xf0]
  %vm336 = vcmask 1047556
  %v337 = vsel %vm336, %v335, %v333
  %vm338 = vcmask 130048
  %s339 = scalar_lea.vmem %s1, 296
  %340 = vst.msk [vmem:[%s339] sm:$0xff] %vm338, %v337
  %s341 = scalar_lea.vmem %s0, 2432
  %v342 = vld [vmem:[%s341] ss:$8 sm:$0xf]
  %s343 = scalar_lea.vmem %s0, 2432
  %v344 = vld [vmem:[%s343] ss:$8 sm:$0xf0]
  %vm345 = vcmask 1047556
  %v346 = vsel %vm345, %v344, %v342
  %vm347 = vcmask 130048
  %s348 = scalar_lea.vmem %s1, 304
  %349 = vst.msk [vmem:[%s348] sm:$0xff] %vm347, %v346
  %s350 = scalar_lea.vmem %s0, 2496
  %v351 = vld [vmem:[%s350] ss:$8 sm:$0xf]
  %s352 = scalar_lea.vmem %s0, 2496
  %v353 = vld [vmem:[%s352] ss:$8 sm:$0xf0]
  %vm354 = vcmask 1047556
  %v355 = vsel %vm354, %v353, %v351
  %vm356 = vcmask 130048
  %s357 = scalar_lea.vmem %s1, 312
  %358 = vst.msk [vmem:[%s357] sm:$0xff] %vm356, %v355
  %s359 = scalar_lea.vmem %s0, 2560
  %v360 = vld [vmem:[%s359] ss:$8 sm:$0xf]
  %s361 = scalar_lea.vmem %s0, 2560
  %v362 = vld [vmem:[%s361] ss:$8 sm:$0xf0]
  %vm363 = vcmask 1047556
  %v364 = vsel %vm363, %v362, %v360
  %vm365 = vcmask 130048
  %s366 = scalar_lea.vmem %s1, 320
  %367 = vst.msk [vmem:[%s366] sm:$0xff] %vm365, %v364
  %s368 = scalar_lea.vmem %s0, 2624
  %v369 = vld [vmem:[%s368] ss:$8 sm:$0xf]
  %s370 = scalar_lea.vmem %s0, 2624
  %v371 = vld [vmem:[%s370] ss:$8 sm:$0xf0]
  %vm372 = vcmask 1047556
  %v373 = vsel %vm372, %v371, %v369
  %vm374 = vcmask 130048
  %s375 = scalar_lea.vmem %s1, 328
  %376 = vst.msk [vmem:[%s375] sm:$0xff] %vm374, %v373
  %s377 = scalar_lea.vmem %s0, 2688
  %v378 = vld [vmem:[%s377] ss:$8 sm:$0xf]
  %s379 = scalar_lea.vmem %s0, 2688
  %v380 = vld [vmem:[%s379] ss:$8 sm:$0xf0]
  %vm381 = vcmask 1047556
  %v382 = vsel %vm381, %v380, %v378
  %vm383 = vcmask 130048
  %s384 = scalar_lea.vmem %s1, 336
  %385 = vst.msk [vmem:[%s384] sm:$0xff] %vm383, %v382
  %s386 = scalar_lea.vmem %s0, 2752
  %v387 = vld [vmem:[%s386] ss:$8 sm:$0xf]
  %s388 = scalar_lea.vmem %s0, 2752
  %v389 = vld [vmem:[%s388] ss:$8 sm:$0xf0]
  %vm390 = vcmask 1047556
  %v391 = vsel %vm390, %v389, %v387
  %vm392 = vcmask 130048
  %s393 = scalar_lea.vmem %s1, 344
  %394 = vst.msk [vmem:[%s393] sm:$0xff] %vm392, %v391
  %s395 = scalar_lea.vmem %s0, 2816
  %v396 = vld [vmem:[%s395] ss:$8 sm:$0xf]
  %s397 = scalar_lea.vmem %s0, 2816
  %v398 = vld [vmem:[%s397] ss:$8 sm:$0xf0]
  %vm399 = vcmask 1047556
  %v400 = vsel %vm399, %v398, %v396
  %vm401 = vcmask 130048
  %s402 = scalar_lea.vmem %s1, 352
  %403 = vst.msk [vmem:[%s402] sm:$0xff] %vm401, %v400
  %s404 = scalar_lea.vmem %s0, 2880
  %v405 = vld [vmem:[%s404] ss:$8 sm:$0xf]
  %s406 = scalar_lea.vmem %s0, 2880
  %v407 = vld [vmem:[%s406] ss:$8 sm:$0xf0]
  %vm408 = vcmask 1047556
  %v409 = vsel %vm408, %v407, %v405
  %vm410 = vcmask 130048
  %s411 = scalar_lea.vmem %s1, 360
  %412 = vst.msk [vmem:[%s411] sm:$0xff] %vm410, %v409
  %s413 = scalar_lea.vmem %s0, 2944
  %v414 = vld [vmem:[%s413] ss:$8 sm:$0xf]
  %s415 = scalar_lea.vmem %s0, 2944
  %v416 = vld [vmem:[%s415] ss:$8 sm:$0xf0]
  %vm417 = vcmask 1047556
  %v418 = vsel %vm417, %v416, %v414
  %vm419 = vcmask 130048
  %s420 = scalar_lea.vmem %s1, 368
  %421 = vst.msk [vmem:[%s420] sm:$0xff] %vm419, %v418
  %s422 = scalar_lea.vmem %s0, 3008
  %v423 = vld [vmem:[%s422] ss:$8 sm:$0xf]
  %s424 = scalar_lea.vmem %s0, 3008
  %v425 = vld [vmem:[%s424] ss:$8 sm:$0xf0]
  %vm426 = vcmask 1047556
  %v427 = vsel %vm426, %v425, %v423
  %vm428 = vcmask 130048
  %s429 = scalar_lea.vmem %s1, 376
  %430 = vst.msk [vmem:[%s429] sm:$0xff] %vm428, %v427
  %s431 = scalar_lea.vmem %s0, 7
  %v432 = vld [vmem:[%s431] ss:$8 sm:$0xf]
  %s433 = scalar_lea.vmem %s0, 7
  %v434 = vld [vmem:[%s433] ss:$8 sm:$0xf0]
  %vm435 = vcmask 1047556
  %v436 = vsel %vm435, %v434, %v432
  %437 = vrot.lane.b32.xlu0 %v436, 112
  %v438 = vpop.permute.xlu0 %437
  %vm439 = vcmask 1048448
  %440 = vst.msk [vmem:[%s1] sm:$0xff] %vm439, %v438
  %s441 = scalar_lea.vmem %s0, 263
  %v442 = vld [vmem:[%s441] ss:$8 sm:$0xf]
  %s443 = scalar_lea.vmem %s0, 263
  %v444 = vld [vmem:[%s443] ss:$8 sm:$0xf0]
  %vm445 = vcmask 1047556
  %v446 = vsel %vm445, %v444, %v442
  %447 = vrot.lane.b32.xlu0 %v446, 112
  %v448 = vpop.permute.xlu0 %447
  %vm449 = vcmask 1048448
  %s450 = scalar_lea.vmem %s1, 32
  %451 = vst.msk [vmem:[%s450] sm:$0xff] %vm449, %v448
  %s452 = scalar_lea.vmem %s0, 519
  %v453 = vld [vmem:[%s452] ss:$8 sm:$0xf]
  %s454 = scalar_lea.vmem %s0, 519
  %v455 = vld [vmem:[%s454] ss:$8 sm:$0xf0]
  %vm456 = vcmask 1047556
  %v457 = vsel %vm456, %v455, %v453
  %458 = vrot.lane.b32.xlu0 %v457, 112
  %v459 = vpop.permute.xlu0 %458
  %vm460 = vcmask 1048448
  %s461 = scalar_lea.vmem %s1, 64
  %462 = vst.msk [vmem:[%s461] sm:$0xff] %vm460, %v459
  %s463 = scalar_lea.vmem %s0, 775
  %v464 = vld [vmem:[%s463] ss:$8 sm:$0xf]
  %s465 = scalar_lea.vmem %s0, 775
  %v466 = vld [vmem:[%s465] ss:$8 sm:$0xf0]
  %vm467 = vcmask 1047556
  %v468 = vsel %vm467, %v466, %v464
  %469 = vrot.lane.b32.xlu0 %v468, 112
  %v470 = vpop.permute.xlu0 %469
  %vm471 = vcmask 1048448
  %s472 = scalar_lea.vmem %s1, 96
  %473 = vst.msk [vmem:[%s472] sm:$0xff] %vm471, %v470
  %s474 = scalar_lea.vmem %s0, 1031
  %v475 = vld [vmem:[%s474] ss:$8 sm:$0xf]
  %s476 = scalar_lea.vmem %s0, 1031
  %v477 = vld [vmem:[%s476] ss:$8 sm:$0xf0]
  %vm478 = vcmask 1047556
  %v479 = vsel %vm478, %v477, %v475
  %480 = vrot.lane.b32.xlu0 %v479, 112
  %v481 = vpop.permute.xlu0 %480
  %vm482 = vcmask 1048448
  %s483 = scalar_lea.vmem %s1, 128
  %484 = vst.msk [vmem:[%s483] sm:$0xff] %vm482, %v481
  %s485 = scalar_lea.vmem %s0, 1287
  %v486 = vld [vmem:[%s485] ss:$8 sm:$0xf]
  %s487 = scalar_lea.vmem %s0, 1287
  %v488 = vld [vmem:[%s487] ss:$8 sm:$0xf0]
  %vm489 = vcmask 1047556
  %v490 = vsel %vm489, %v488, %v486
  %491 = vrot.lane.b32.xlu0 %v490, 112
  %v492 = vpop.permute.xlu0 %491
  %vm493 = vcmask 1048448
  %s494 = scalar_lea.vmem %s1, 160
  %495 = vst.msk [vmem:[%s494] sm:$0xff] %vm493, %v492
  %s496 = scalar_lea.vmem %s0, 1543
  %v497 = vld [vmem:[%s496] ss:$8 sm:$0xf]
  %s498 = scalar_lea.vmem %s0, 1543
  %v499 = vld [vmem:[%s498] ss:$8 sm:$0xf0]
  %vm500 = vcmask 1047556
  %v501 = vsel %vm500, %v499, %v497
  %502 = vrot.lane.b32.xlu0 %v501, 112
  %v503 = vpop.permute.xlu0 %502
  %vm504 = vcmask 1048448
  %s505 = scalar_lea.vmem %s1, 192
  %506 = vst.msk [vmem:[%s505] sm:$0xff] %vm504, %v503
  %s507 = scalar_lea.vmem %s0, 1799
  %v508 = vld [vmem:[%s507] ss:$8 sm:$0xf]
  %s509 = scalar_lea.vmem %s0, 1799
  %v510 = vld [vmem:[%s509] ss:$8 sm:$0xf0]
  %vm511 = vcmask 1047556
  %v512 = vsel %vm511, %v510, %v508
  %513 = vrot.lane.b32.xlu0 %v512, 112
  %v514 = vpop.permute.xlu0 %513
  %vm515 = vcmask 1048448
  %s516 = scalar_lea.vmem %s1, 224
  %517 = vst.msk [vmem:[%s516] sm:$0xff] %vm515, %v514
  %s518 = scalar_lea.vmem %s0, 2055
  %v519 = vld [vmem:[%s518] ss:$8 sm:$0xf]
  %s520 = scalar_lea.vmem %s0, 2055
  %v521 = vld [vmem:[%s520] ss:$8 sm:$0xf0]
  %vm522 = vcmask 1047556
  %v523 = vsel %vm522, %v521, %v519
  %524 = vrot.lane.b32.xlu0 %v523, 112
  %v525 = vpop.permute.xlu0 %524
  %vm526 = vcmask 1048448
  %s527 = scalar_lea.vmem %s1, 256
  %528 = vst.msk [vmem:[%s527] sm:$0xff] %vm526, %v525
  %s529 = scalar_lea.vmem %s0, 2311
  %v530 = vld [vmem:[%s529] ss:$8 sm:$0xf]
  %s531 = scalar_lea.vmem %s0, 2311
  %v532 = vld [vmem:[%s531] ss:$8 sm:$0xf0]
  %vm533 = vcmask 1047556
  %v534 = vsel %vm533, %v532, %v530
  %535 = vrot.lane.b32.xlu0 %v534, 112
  %v536 = vpop.permute.xlu0 %535
  %vm537 = vcmask 1048448
  %s538 = scalar_lea.vmem %s1, 288
  %539 = vst.msk [vmem:[%s538] sm:$0xff] %vm537, %v536
  %s540 = scalar_lea.vmem %s0, 2567
  %v541 = vld [vmem:[%s540] ss:$8 sm:$0xf]
  %s542 = scalar_lea.vmem %s0, 2567
  %v543 = vld [vmem:[%s542] ss:$8 sm:$0xf0]
  %vm544 = vcmask 1047556
  %v545 = vsel %vm544, %v543, %v541
  %546 = vrot.lane.b32.xlu0 %v545, 112
  %v547 = vpop.permute.xlu0 %546
  %vm548 = vcmask 1048448
  %s549 = scalar_lea.vmem %s1, 320
  %550 = vst.msk [vmem:[%s549] sm:$0xff] %vm548, %v547
  %s551 = scalar_lea.vmem %s0, 2823
  %v552 = vld [vmem:[%s551] ss:$8 sm:$0xf]
  %s553 = scalar_lea.vmem %s0, 2823
  %v554 = vld [vmem:[%s553] ss:$8 sm:$0xf0]
  %vm555 = vcmask 1047556
  %v556 = vsel %vm555, %v554, %v552
  %557 = vrot.lane.b32.xlu0 %v556, 112
  %v558 = vpop.permute.xlu0 %557
  %vm559 = vcmask 1048448
  %s560 = scalar_lea.vmem %s1, 352
  %561 = vst.msk [vmem:[%s560] sm:$0xff] %vm559, %v558
  %s562 = scalar_lea.vmem %s0, 71
  %v563 = vld [vmem:[%s562] ss:$8 sm:$0xf]
  %s564 = scalar_lea.vmem %s0, 71
  %v565 = vld [vmem:[%s564] ss:$8 sm:$0xf0]
  %vm566 = vcmask 1047556
  %v567 = vsel %vm566, %v565, %v563
  %568 = vrot.lane.b32.xlu0 %v567, 112
  %v569 = vpop.permute.xlu0 %568
  %vm570 = vcmask 1048448
  %s571 = scalar_lea.vmem %s1, 8
  %572 = vst.msk [vmem:[%s571] sm:$0xff] %vm570, %v569
  %s573 = scalar_lea.vmem %s0, 327
  %v574 = vld [vmem:[%s573] ss:$8 sm:$0xf]
  %s575 = scalar_lea.vmem %s0, 327
  %v576 = vld [vmem:[%s575] ss:$8 sm:$0xf0]
  %vm577 = vcmask 1047556
  %v578 = vsel %vm577, %v576, %v574
  %579 = vrot.lane.b32.xlu0 %v578, 112
  %v580 = vpop.permute.xlu0 %579
  %vm581 = vcmask 1048448
  %s582 = scalar_lea.vmem %s1, 40
  %583 = vst.msk [vmem:[%s582] sm:$0xff] %vm581, %v580
  %s584 = scalar_lea.vmem %s0, 583
  %v585 = vld [vmem:[%s584] ss:$8 sm:$0xf]
  %s586 = scalar_lea.vmem %s0, 583
  %v587 = vld [vmem:[%s586] ss:$8 sm:$0xf0]
  %vm588 = vcmask 1047556
  %v589 = vsel %vm588, %v587, %v585
  %590 = vrot.lane.b32.xlu0 %v589, 112
  %v591 = vpop.permute.xlu0 %590
  %vm592 = vcmask 1048448
  %s593 = scalar_lea.vmem %s1, 72
  %594 = vst.msk [vmem:[%s593] sm:$0xff] %vm592, %v591
  %s595 = scalar_lea.vmem %s0, 839
  %v596 = vld [vmem:[%s595] ss:$8 sm:$0xf]
  %s597 = scalar_lea.vmem %s0, 839
  %v598 = vld [vmem:[%s597] ss:$8 sm:$0xf0]
  %vm599 = vcmask 1047556
  %v600 = vsel %vm599, %v598, %v596
  %601 = vrot.lane.b32.xlu0 %v600, 112
  %v602 = vpop.permute.xlu0 %601
  %vm603 = vcmask 1048448
  %s604 = scalar_lea.vmem %s1, 104
  %605 = vst.msk [vmem:[%s604] sm:$0xff] %vm603, %v602
  %s606 = scalar_lea.vmem %s0, 1095
  %v607 = vld [vmem:[%s606] ss:$8 sm:$0xf]
  %s608 = scalar_lea.vmem %s0, 1095
  %v609 = vld [vmem:[%s608] ss:$8 sm:$0xf0]
  %vm610 = vcmask 1047556
  %v611 = vsel %vm610, %v609, %v607
  %612 = vrot.lane.b32.xlu0 %v611, 112
  %v613 = vpop.permute.xlu0 %612
  %vm614 = vcmask 1048448
  %s615 = scalar_lea.vmem %s1, 136
  %616 = vst.msk [vmem:[%s615] sm:$0xff] %vm614, %v613
  %s617 = scalar_lea.vmem %s0, 1351
  %v618 = vld [vmem:[%s617] ss:$8 sm:$0xf]
  %s619 = scalar_lea.vmem %s0, 1351
  %v620 = vld [vmem:[%s619] ss:$8 sm:$0xf0]
  %vm621 = vcmask 1047556
  %v622 = vsel %vm621, %v620, %v618
  %623 = vrot.lane.b32.xlu0 %v622, 112
  %v624 = vpop.permute.xlu0 %623
  %vm625 = vcmask 1048448
  %s626 = scalar_lea.vmem %s1, 168
  %627 = vst.msk [vmem:[%s626] sm:$0xff] %vm625, %v624
  %s628 = scalar_lea.vmem %s0, 1607
  %v629 = vld [vmem:[%s628] ss:$8 sm:$0xf]
  %s630 = scalar_lea.vmem %s0, 1607
  %v631 = vld [vmem:[%s630] ss:$8 sm:$0xf0]
  %vm632 = vcmask 1047556
  %v633 = vsel %vm632, %v631, %v629
  %634 = vrot.lane.b32.xlu0 %v633, 112
  %v635 = vpop.permute.xlu0 %634
  %vm636 = vcmask 1048448
  %s637 = scalar_lea.vmem %s1, 200
  %638 = vst.msk [vmem:[%s637] sm:$0xff] %vm636, %v635
  %s639 = scalar_lea.vmem %s0, 1863
  %v640 = vld [vmem:[%s639] ss:$8 sm:$0xf]
  %s641 = scalar_lea.vmem %s0, 1863
  %v642 = vld [vmem:[%s641] ss:$8 sm:$0xf0]
  %vm643 = vcmask 1047556
  %v644 = vsel %vm643, %v642, %v640
  %645 = vrot.lane.b32.xlu0 %v644, 112
  %v646 = vpop.permute.xlu0 %645
  %vm647 = vcmask 1048448
  %s648 = scalar_lea.vmem %s1, 232
  %649 = vst.msk [vmem:[%s648] sm:$0xff] %vm647, %v646
  %s650 = scalar_lea.vmem %s0, 2119
  %v651 = vld [vmem:[%s650] ss:$8 sm:$0xf]
  %s652 = scalar_lea.vmem %s0, 2119
  %v653 = vld [vmem:[%s652] ss:$8 sm:$0xf0]
  %vm654 = vcmask 1047556
  %v655 = vsel %vm654, %v653, %v651
  %656 = vrot.lane.b32.xlu0 %v655, 112
  %v657 = vpop.permute.xlu0 %656
  %vm658 = vcmask 1048448
  %s659 = scalar_lea.vmem %s1, 264
  %660 = vst.msk [vmem:[%s659] sm:$0xff] %vm658, %v657
  %s661 = scalar_lea.vmem %s0, 2375
  %v662 = vld [vmem:[%s661] ss:$8 sm:$0xf]
  %s663 = scalar_lea.vmem %s0, 2375
  %v664 = vld [vmem:[%s663] ss:$8 sm:$0xf0]
  %vm665 = vcmask 1047556
  %v666 = vsel %vm665, %v664, %v662
  %667 = vrot.lane.b32.xlu0 %v666, 112
  %v668 = vpop.permute.xlu0 %667
  %vm669 = vcmask 1048448
  %s670 = scalar_lea.vmem %s1, 296
  %671 = vst.msk [vmem:[%s670] sm:$0xff] %vm669, %v668
  %s672 = scalar_lea.vmem %s0, 2631
  %v673 = vld [vmem:[%s672] ss:$8 sm:$0xf]
  %s674 = scalar_lea.vmem %s0, 2631
  %v675 = vld [vmem:[%s674] ss:$8 sm:$0xf0]
  %vm676 = vcmask 1047556
  %v677 = vsel %vm676, %v675, %v673
  %678 = vrot.lane.b32.xlu0 %v677, 112
  %v679 = vpop.permute.xlu0 %678
  %vm680 = vcmask 1048448
  %s681 = scalar_lea.vmem %s1, 328
  %682 = vst.msk [vmem:[%s681] sm:$0xff] %vm680, %v679
  %s683 = scalar_lea.vmem %s0, 2887
  %v684 = vld [vmem:[%s683] ss:$8 sm:$0xf]
  %s685 = scalar_lea.vmem %s0, 2887
  %v686 = vld [vmem:[%s685] ss:$8 sm:$0xf0]
  %vm687 = vcmask 1047556
  %v688 = vsel %vm687, %v686, %v684
  %689 = vrot.lane.b32.xlu0 %v688, 112
  %v690 = vpop.permute.xlu0 %689
  %vm691 = vcmask 1048448
  %s692 = scalar_lea.vmem %s1, 360
  %693 = vst.msk [vmem:[%s692] sm:$0xff] %vm691, %v690
  %s694 = scalar_lea.vmem %s0, 135
  %v695 = vld [vmem:[%s694] ss:$8 sm:$0xf]
  %s696 = scalar_lea.vmem %s0, 135
  %v697 = vld [vmem:[%s696] ss:$8 sm:$0xf0]
  %vm698 = vcmask 1047556
  %v699 = vsel %vm698, %v697, %v695
  %700 = vrot.lane.b32.xlu0 %v699, 112
  %v701 = vpop.permute.xlu0 %700
  %vm702 = vcmask 1048448
  %s703 = scalar_lea.vmem %s1, 16
  %704 = vst.msk [vmem:[%s703] sm:$0xff] %vm702, %v701
  %s705 = scalar_lea.vmem %s0, 391
  %v706 = vld [vmem:[%s705] ss:$8 sm:$0xf]
  %s707 = scalar_lea.vmem %s0, 391
  %v708 = vld [vmem:[%s707] ss:$8 sm:$0xf0]
  %vm709 = vcmask 1047556
  %v710 = vsel %vm709, %v708, %v706
  %711 = vrot.lane.b32.xlu0 %v710, 112
  %v712 = vpop.permute.xlu0 %711
  %vm713 = vcmask 1048448
  %s714 = scalar_lea.vmem %s1, 48
  %715 = vst.msk [vmem:[%s714] sm:$0xff] %vm713, %v712
  %s716 = scalar_lea.vmem %s0, 647
  %v717 = vld [vmem:[%s716] ss:$8 sm:$0xf]
  %s718 = scalar_lea.vmem %s0, 647
  %v719 = vld [vmem:[%s718] ss:$8 sm:$0xf0]
  %vm720 = vcmask 1047556
  %v721 = vsel %vm720, %v719, %v717
  %722 = vrot.lane.b32.xlu0 %v721, 112
  %v723 = vpop.permute.xlu0 %722
  %vm724 = vcmask 1048448
  %s725 = scalar_lea.vmem %s1, 80
  %726 = vst.msk [vmem:[%s725] sm:$0xff] %vm724, %v723
  %s727 = scalar_lea.vmem %s0, 903
  %v728 = vld [vmem:[%s727] ss:$8 sm:$0xf]
  %s729 = scalar_lea.vmem %s0, 903
  %v730 = vld [vmem:[%s729] ss:$8 sm:$0xf0]
  %vm731 = vcmask 1047556
  %v732 = vsel %vm731, %v730, %v728
  %733 = vrot.lane.b32.xlu0 %v732, 112
  %v734 = vpop.permute.xlu0 %733
  %vm735 = vcmask 1048448
  %s736 = scalar_lea.vmem %s1, 112
  %737 = vst.msk [vmem:[%s736] sm:$0xff] %vm735, %v734
  %s738 = scalar_lea.vmem %s0, 1159
  %v739 = vld [vmem:[%s738] ss:$8 sm:$0xf]
  %s740 = scalar_lea.vmem %s0, 1159
  %v741 = vld [vmem:[%s740] ss:$8 sm:$0xf0]
  %vm742 = vcmask 1047556
  %v743 = vsel %vm742, %v741, %v739
  %744 = vrot.lane.b32.xlu0 %v743, 112
  %v745 = vpop.permute.xlu0 %744
  %vm746 = vcmask 1048448
  %s747 = scalar_lea.vmem %s1, 144
  %748 = vst.msk [vmem:[%s747] sm:$0xff] %vm746, %v745
  %s749 = scalar_lea.vmem %s0, 1415
  %v750 = vld [vmem:[%s749] ss:$8 sm:$0xf]
  %s751 = scalar_lea.vmem %s0, 1415
  %v752 = vld [vmem:[%s751] ss:$8 sm:$0xf0]
  %vm753 = vcmask 1047556
  %v754 = vsel %vm753, %v752, %v750
  %755 = vrot.lane.b32.xlu0 %v754, 112
  %v756 = vpop.permute.xlu0 %755
  %vm757 = vcmask 1048448
  %s758 = scalar_lea.vmem %s1, 176
  %759 = vst.msk [vmem:[%s758] sm:$0xff] %vm757, %v756
  %s760 = scalar_lea.vmem %s0, 1671
  %v761 = vld [vmem:[%s760] ss:$8 sm:$0xf]
  %s762 = scalar_lea.vmem %s0, 1671
  %v763 = vld [vmem:[%s762] ss:$8 sm:$0xf0]
  %vm764 = vcmask 1047556
  %v765 = vsel %vm764, %v763, %v761
  %766 = vrot.lane.b32.xlu0 %v765, 112
  %v767 = vpop.permute.xlu0 %766
  %vm768 = vcmask 1048448
  %s769 = scalar_lea.vmem %s1, 208
  %770 = vst.msk [vmem:[%s769] sm:$0xff] %vm768, %v767
  %s771 = scalar_lea.vmem %s0, 1927
  %v772 = vld [vmem:[%s771] ss:$8 sm:$0xf]
  %s773 = scalar_lea.vmem %s0, 1927
  %v774 = vld [vmem:[%s773] ss:$8 sm:$0xf0]
  %vm775 = vcmask 1047556
  %v776 = vsel %vm775, %v774, %v772
  %777 = vrot.lane.b32.xlu0 %v776, 112
  %v778 = vpop.permute.xlu0 %777
  %vm779 = vcmask 1048448
  %s780 = scalar_lea.vmem %s1, 240
  %781 = vst.msk [vmem:[%s780] sm:$0xff] %vm779, %v778
  %s782 = scalar_lea.vmem %s0, 2183
  %v783 = vld [vmem:[%s782] ss:$8 sm:$0xf]
  %s784 = scalar_lea.vmem %s0, 2183
  %v785 = vld [vmem:[%s784] ss:$8 sm:$0xf0]
  %vm786 = vcmask 1047556
  %v787 = vsel %vm786, %v785, %v783
  %788 = vrot.lane.b32.xlu0 %v787, 112
  %v789 = vpop.permute.xlu0 %788
  %vm790 = vcmask 1048448
  %s791 = scalar_lea.vmem %s1, 272
  %792 = vst.msk [vmem:[%s791] sm:$0xff] %vm790, %v789
  %s793 = scalar_lea.vmem %s0, 2439
  %v794 = vld [vmem:[%s793] ss:$8 sm:$0xf]
  %s795 = scalar_lea.vmem %s0, 2439
  %v796 = vld [vmem:[%s795] ss:$8 sm:$0xf0]
  %vm797 = vcmask 1047556
  %v798 = vsel %vm797, %v796, %v794
  %799 = vrot.lane.b32.xlu0 %v798, 112
  %v800 = vpop.permute.xlu0 %799
  %vm801 = vcmask 1048448
  %s802 = scalar_lea.vmem %s1, 304
  %803 = vst.msk [vmem:[%s802] sm:$0xff] %vm801, %v800
  %s804 = scalar_lea.vmem %s0, 2695
  %v805 = vld [vmem:[%s804] ss:$8 sm:$0xf]
  %s806 = scalar_lea.vmem %s0, 2695
  %v807 = vld [vmem:[%s806] ss:$8 sm:$0xf0]
  %vm808 = vcmask 1047556
  %v809 = vsel %vm808, %v807, %v805
  %810 = vrot.lane.b32.xlu0 %v809, 112
  %v811 = vpop.permute.xlu0 %810
  %vm812 = vcmask 1048448
  %s813 = scalar_lea.vmem %s1, 336
  %814 = vst.msk [vmem:[%s813] sm:$0xff] %vm812, %v811
  %s815 = scalar_lea.vmem %s0, 2951
  %v816 = vld [vmem:[%s815] ss:$8 sm:$0xf]
  %s817 = scalar_lea.vmem %s0, 2951
  %v818 = vld [vmem:[%s817] ss:$8 sm:$0xf0]
  %vm819 = vcmask 1047556
  %v820 = vsel %vm819, %v818, %v816
  %821 = vrot.lane.b32.xlu0 %v820, 112
  %v822 = vpop.permute.xlu0 %821
  %vm823 = vcmask 1048448
  %s824 = scalar_lea.vmem %s1, 368
  %825 = vst.msk [vmem:[%s824] sm:$0xff] %vm823, %v822
  %s826 = scalar_lea.vmem %s0, 199
  %v827 = vld [vmem:[%s826] ss:$8 sm:$0xf]
  %s828 = scalar_lea.vmem %s0, 199
  %v829 = vld [vmem:[%s828] ss:$8 sm:$0xf0]
  %vm830 = vcmask 1047556
  %v831 = vsel %vm830, %v829, %v827
  %832 = vrot.lane.b32.xlu0 %v831, 112
  %v833 = vpop.permute.xlu0 %832
  %vm834 = vcmask 1048448
  %s835 = scalar_lea.vmem %s1, 24
  %836 = vst.msk [vmem:[%s835] sm:$0xff] %vm834, %v833
  %s837 = scalar_lea.vmem %s0, 455
  %v838 = vld [vmem:[%s837] ss:$8 sm:$0xf]
  %s839 = scalar_lea.vmem %s0, 455
  %v840 = vld [vmem:[%s839] ss:$8 sm:$0xf0]
  %vm841 = vcmask 1047556
  %v842 = vsel %vm841, %v840, %v838
  %843 = vrot.lane.b32.xlu0 %v842, 112
  %v844 = vpop.permute.xlu0 %843
  %vm845 = vcmask 1048448
  %s846 = scalar_lea.vmem %s1, 56
  %847 = vst.msk [vmem:[%s846] sm:$0xff] %vm845, %v844
  %s848 = scalar_lea.vmem %s0, 711
  %v849 = vld [vmem:[%s848] ss:$8 sm:$0xf]
  %s850 = scalar_lea.vmem %s0, 711
  %v851 = vld [vmem:[%s850] ss:$8 sm:$0xf0]
  %vm852 = vcmask 1047556
  %v853 = vsel %vm852, %v851, %v849
  %854 = vrot.lane.b32.xlu0 %v853, 112
  %v855 = vpop.permute.xlu0 %854
  %vm856 = vcmask 1048448
  %s857 = scalar_lea.vmem %s1, 88
  %858 = vst.msk [vmem:[%s857] sm:$0xff] %vm856, %v855
  %s859 = scalar_lea.vmem %s0, 967
  %v860 = vld [vmem:[%s859] ss:$8 sm:$0xf]
  %s861 = scalar_lea.vmem %s0, 967
  %v862 = vld [vmem:[%s861] ss:$8 sm:$0xf0]
  %vm863 = vcmask 1047556
  %v864 = vsel %vm863, %v862, %v860
  %865 = vrot.lane.b32.xlu0 %v864, 112
  %v866 = vpop.permute.xlu0 %865
  %vm867 = vcmask 1048448
  %s868 = scalar_lea.vmem %s1, 120
  %869 = vst.msk [vmem:[%s868] sm:$0xff] %vm867, %v866
  %s870 = scalar_lea.vmem %s0, 1223
  %v871 = vld [vmem:[%s870] ss:$8 sm:$0xf]
  %s872 = scalar_lea.vmem %s0, 1223
  %v873 = vld [vmem:[%s872] ss:$8 sm:$0xf0]
  %vm874 = vcmask 1047556
  %v875 = vsel %vm874, %v873, %v871
  %876 = vrot.lane.b32.xlu0 %v875, 112
  %v877 = vpop.permute.xlu0 %876
  %vm878 = vcmask 1048448
  %s879 = scalar_lea.vmem %s1, 152
  %880 = vst.msk [vmem:[%s879] sm:$0xff] %vm878, %v877
  %s881 = scalar_lea.vmem %s0, 1479
  %v882 = vld [vmem:[%s881] ss:$8 sm:$0xf]
  %s883 = scalar_lea.vmem %s0, 1479
  %v884 = vld [vmem:[%s883] ss:$8 sm:$0xf0]
  %vm885 = vcmask 1047556
  %v886 = vsel %vm885, %v884, %v882
  %887 = vrot.lane.b32.xlu0 %v886, 112
  %v888 = vpop.permute.xlu0 %887
  %vm889 = vcmask 1048448
  %s890 = scalar_lea.vmem %s1, 184
  %891 = vst.msk [vmem:[%s890] sm:$0xff] %vm889, %v888
  %s892 = scalar_lea.vmem %s0, 1735
  %v893 = vld [vmem:[%s892] ss:$8 sm:$0xf]
  %s894 = scalar_lea.vmem %s0, 1735
  %v895 = vld [vmem:[%s894] ss:$8 sm:$0xf0]
  %vm896 = vcmask 1047556
  %v897 = vsel %vm896, %v895, %v893
  %898 = vrot.lane.b32.xlu0 %v897, 112
  %v899 = vpop.permute.xlu0 %898
  %vm900 = vcmask 1048448
  %s901 = scalar_lea.vmem %s1, 216
  %902 = vst.msk [vmem:[%s901] sm:$0xff] %vm900, %v899
  %s903 = scalar_lea.vmem %s0, 1991
  %v904 = vld [vmem:[%s903] ss:$8 sm:$0xf]
  %s905 = scalar_lea.vmem %s0, 1991
  %v906 = vld [vmem:[%s905] ss:$8 sm:$0xf0]
  %vm907 = vcmask 1047556
  %v908 = vsel %vm907, %v906, %v904
  %909 = vrot.lane.b32.xlu0 %v908, 112
  %v910 = vpop.permute.xlu0 %909
  %vm911 = vcmask 1048448
  %s912 = scalar_lea.vmem %s1, 248
  %913 = vst.msk [vmem:[%s912] sm:$0xff] %vm911, %v910
  %s914 = scalar_lea.vmem %s0, 2247
  %v915 = vld [vmem:[%s914] ss:$8 sm:$0xf]
  %s916 = scalar_lea.vmem %s0, 2247
  %v917 = vld [vmem:[%s916] ss:$8 sm:$0xf0]
  %vm918 = vcmask 1047556
  %v919 = vsel %vm918, %v917, %v915
  %920 = vrot.lane.b32.xlu0 %v919, 112
  %v921 = vpop.permute.xlu0 %920
  %vm922 = vcmask 1048448
  %s923 = scalar_lea.vmem %s1, 280
  %924 = vst.msk [vmem:[%s923] sm:$0xff] %vm922, %v921
  %s925 = scalar_lea.vmem %s0, 2503
  %v926 = vld [vmem:[%s925] ss:$8 sm:$0xf]
  %s927 = scalar_lea.vmem %s0, 2503
  %v928 = vld [vmem:[%s927] ss:$8 sm:$0xf0]
  %vm929 = vcmask 1047556
  %v930 = vsel %vm929, %v928, %v926
  %931 = vrot.lane.b32.xlu0 %v930, 112
  %v932 = vpop.permute.xlu0 %931
  %vm933 = vcmask 1048448
  %s934 = scalar_lea.vmem %s1, 312
  %935 = vst.msk [vmem:[%s934] sm:$0xff] %vm933, %v932
  %s936 = scalar_lea.vmem %s0, 2759
  %v937 = vld [vmem:[%s936] ss:$8 sm:$0xf]
  %s938 = scalar_lea.vmem %s0, 2759
  %v939 = vld [vmem:[%s938] ss:$8 sm:$0xf0]
  %vm940 = vcmask 1047556
  %v941 = vsel %vm940, %v939, %v937
  %942 = vrot.lane.b32.xlu0 %v941, 112
  %v943 = vpop.permute.xlu0 %942
  %vm944 = vcmask 1048448
  %s945 = scalar_lea.vmem %s1, 344
  %946 = vst.msk [vmem:[%s945] sm:$0xff] %vm944, %v943
  %s947 = scalar_lea.vmem %s0, 3015
  %v948 = vld [vmem:[%s947] ss:$8 sm:$0xf]
  %s949 = scalar_lea.vmem %s0, 3015
  %v950 = vld [vmem:[%s949] ss:$8 sm:$0xf0]
  %vm951 = vcmask 1047556
  %v952 = vsel %vm951, %v950, %v948
  %953 = vrot.lane.b32.xlu0 %v952, 112
  %v954 = vpop.permute.xlu0 %953
  %vm955 = vcmask 1048448
  %s956 = scalar_lea.vmem %s1, 376
  %957 = vst.msk [vmem:[%s956] sm:$0xff] %vm955, %v954
  %s958 = scalar_lea.vmem %s0, 6
  %v959 = vld [vmem:[%s958] ss:$8 sm:$0xf]
  %s960 = scalar_lea.vmem %s0, 6
  %v961 = vld [vmem:[%s960] ss:$8 sm:$0xf0]
  %vm962 = vcmask 1047556
  %v963 = vsel %vm962, %v961, %v959
  %964 = vrot.lane.b32.xlu0 %v963, 96
  %v965 = vpop.permute.xlu0 %964
  %vm966 = vcmask 917248
  %967 = vst.msk [vmem:[%s1] sm:$0xff] %vm966, %v965
  %s968 = scalar_lea.vmem %s0, 262
  %v969 = vld [vmem:[%s968] ss:$8 sm:$0xf]
  %s970 = scalar_lea.vmem %s0, 262
  %v971 = vld [vmem:[%s970] ss:$8 sm:$0xf0]
  %vm972 = vcmask 1047556
  %v973 = vsel %vm972, %v971, %v969
  %974 = vrot.lane.b32.xlu0 %v973, 96
  %v975 = vpop.permute.xlu0 %974
  %vm976 = vcmask 917248
  %s977 = scalar_lea.vmem %s1, 32
  %978 = vst.msk [vmem:[%s977] sm:$0xff] %vm976, %v975
  %s979 = scalar_lea.vmem %s0, 518
  %v980 = vld [vmem:[%s979] ss:$8 sm:$0xf]
  %s981 = scalar_lea.vmem %s0, 518
  %v982 = vld [vmem:[%s981] ss:$8 sm:$0xf0]
  %vm983 = vcmask 1047556
  %v984 = vsel %vm983, %v982, %v980
  %985 = vrot.lane.b32.xlu0 %v984, 96
  %v986 = vpop.permute.xlu0 %985
  %vm987 = vcmask 917248
  %s988 = scalar_lea.vmem %s1, 64
  %989 = vst.msk [vmem:[%s988] sm:$0xff] %vm987, %v986
  %s990 = scalar_lea.vmem %s0, 774
  %v991 = vld [vmem:[%s990] ss:$8 sm:$0xf]
  %s992 = scalar_lea.vmem %s0, 774
  %v993 = vld [vmem:[%s992] ss:$8 sm:$0xf0]
  %vm994 = vcmask 1047556
  %v995 = vsel %vm994, %v993, %v991
  %996 = vrot.lane.b32.xlu0 %v995, 96
  %v997 = vpop.permute.xlu0 %996
  %vm998 = vcmask 917248
  %s999 = scalar_lea.vmem %s1, 96
  %1000 = vst.msk [vmem:[%s999] sm:$0xff] %vm998, %v997
  %s1001 = scalar_lea.vmem %s0, 1030
  %v1002 = vld [vmem:[%s1001] ss:$8 sm:$0xf]
  %s1003 = scalar_lea.vmem %s0, 1030
  %v1004 = vld [vmem:[%s1003] ss:$8 sm:$0xf0]
  %vm1005 = vcmask 1047556
  %v1006 = vsel %vm1005, %v1004, %v1002
  %1007 = vrot.lane.b32.xlu0 %v1006, 96
  %v1008 = vpop.permute.xlu0 %1007
  %vm1009 = vcmask 917248
  %s1010 = scalar_lea.vmem %s1, 128
  %1011 = vst.msk [vmem:[%s1010] sm:$0xff] %vm1009, %v1008
  %s1012 = scalar_lea.vmem %s0, 1286
  %v1013 = vld [vmem:[%s1012] ss:$8 sm:$0xf]
  %s1014 = scalar_lea.vmem %s0, 1286
  %v1015 = vld [vmem:[%s1014] ss:$8 sm:$0xf0]
  %vm1016 = vcmask 1047556
  %v1017 = vsel %vm1016, %v1015, %v1013
  %1018 = vrot.lane.b32.xlu0 %v1017, 96
  %v1019 = vpop.permute.xlu0 %1018
  %vm1020 = vcmask 917248
  %s1021 = scalar_lea.vmem %s1, 160
  %1022 = vst.msk [vmem:[%s1021] sm:$0xff] %vm1020, %v1019
  %s1023 = scalar_lea.vmem %s0, 1542
  %v1024 = vld [vmem:[%s1023] ss:$8 sm:$0xf]
  %s1025 = scalar_lea.vmem %s0, 1542
  %v1026 = vld [vmem:[%s1025] ss:$8 sm:$0xf0]
  %vm1027 = vcmask 1047556
  %v1028 = vsel %vm1027, %v1026, %v1024
  %1029 = vrot.lane.b32.xlu0 %v1028, 96
  %v1030 = vpop.permute.xlu0 %1029
  %vm1031 = vcmask 917248
  %s1032 = scalar_lea.vmem %s1, 192
  %1033 = vst.msk [vmem:[%s1032] sm:$0xff] %vm1031, %v1030
  %s1034 = scalar_lea.vmem %s0, 1798
  %v1035 = vld [vmem:[%s1034] ss:$8 sm:$0xf]
  %s1036 = scalar_lea.vmem %s0, 1798
  %v1037 = vld [vmem:[%s1036] ss:$8 sm:$0xf0]
  %vm1038 = vcmask 1047556
  %v1039 = vsel %vm1038, %v1037, %v1035
  %1040 = vrot.lane.b32.xlu0 %v1039, 96
  %v1041 = vpop.permute.xlu0 %1040
  %vm1042 = vcmask 917248
  %s1043 = scalar_lea.vmem %s1, 224
  %1044 = vst.msk [vmem:[%s1043] sm:$0xff] %vm1042, %v1041
  %s1045 = scalar_lea.vmem %s0, 2054
  %v1046 = vld [vmem:[%s1045] ss:$8 sm:$0xf]
  %s1047 = scalar_lea.vmem %s0, 2054
  %v1048 = vld [vmem:[%s1047] ss:$8 sm:$0xf0]
  %vm1049 = vcmask 1047556
  %v1050 = vsel %vm1049, %v1048, %v1046
  %1051 = vrot.lane.b32.xlu0 %v1050, 96
  %v1052 = vpop.permute.xlu0 %1051
  %vm1053 = vcmask 917248
  %s1054 = scalar_lea.vmem %s1, 256
  %1055 = vst.msk [vmem:[%s1054] sm:$0xff] %vm1053, %v1052
  %s1056 = scalar_lea.vmem %s0, 2310
  %v1057 = vld [vmem:[%s1056] ss:$8 sm:$0xf]
  %s1058 = scalar_lea.vmem %s0, 2310
  %v1059 = vld [vmem:[%s1058] ss:$8 sm:$0xf0]
  %vm1060 = vcmask 1047556
  %v1061 = vsel %vm1060, %v1059, %v1057
  %1062 = vrot.lane.b32.xlu0 %v1061, 96
  %v1063 = vpop.permute.xlu0 %1062
  %vm1064 = vcmask 917248
  %s1065 = scalar_lea.vmem %s1, 288
  %1066 = vst.msk [vmem:[%s1065] sm:$0xff] %vm1064, %v1063
  %s1067 = scalar_lea.vmem %s0, 2566
  %v1068 = vld [vmem:[%s1067] ss:$8 sm:$0xf]
  %s1069 = scalar_lea.vmem %s0, 2566
  %v1070 = vld [vmem:[%s1069] ss:$8 sm:$0xf0]
  %vm1071 = vcmask 1047556
  %v1072 = vsel %vm1071, %v1070, %v1068
  %1073 = vrot.lane.b32.xlu0 %v1072, 96
  %v1074 = vpop.permute.xlu0 %1073
  %vm1075 = vcmask 917248
  %s1076 = scalar_lea.vmem %s1, 320
  %1077 = vst.msk [vmem:[%s1076] sm:$0xff] %vm1075, %v1074
  %s1078 = scalar_lea.vmem %s0, 2822
  %v1079 = vld [vmem:[%s1078] ss:$8 sm:$0xf]
  %s1080 = scalar_lea.vmem %s0, 2822
  %v1081 = vld [vmem:[%s1080] ss:$8 sm:$0xf0]
  %vm1082 = vcmask 1047556
  %v1083 = vsel %vm1082, %v1081, %v1079
  %1084 = vrot.lane.b32.xlu0 %v1083, 96
  %v1085 = vpop.permute.xlu0 %1084
  %vm1086 = vcmask 917248
  %s1087 = scalar_lea.vmem %s1, 352
  %1088 = vst.msk [vmem:[%s1087] sm:$0xff] %vm1086, %v1085
  %s1089 = scalar_lea.vmem %s0, 70
  %v1090 = vld [vmem:[%s1089] ss:$8 sm:$0xf]
  %s1091 = scalar_lea.vmem %s0, 70
  %v1092 = vld [vmem:[%s1091] ss:$8 sm:$0xf0]
  %vm1093 = vcmask 1047556
  %v1094 = vsel %vm1093, %v1092, %v1090
  %1095 = vrot.lane.b32.xlu0 %v1094, 96
  %v1096 = vpop.permute.xlu0 %1095
  %vm1097 = vcmask 917248
  %s1098 = scalar_lea.vmem %s1, 8
  %1099 = vst.msk [vmem:[%s1098] sm:$0xff] %vm1097, %v1096
  %s1100 = scalar_lea.vmem %s0, 326
  %v1101 = vld [vmem:[%s1100] ss:$8 sm:$0xf]
  %s1102 = scalar_lea.vmem %s0, 326
  %v1103 = vld [vmem:[%s1102] ss:$8 sm:$0xf0]
  %vm1104 = vcmask 1047556
  %v1105 = vsel %vm1104, %v1103, %v1101
  %1106 = vrot.lane.b32.xlu0 %v1105, 96
  %v1107 = vpop.permute.xlu0 %1106
  %vm1108 = vcmask 917248
  %s1109 = scalar_lea.vmem %s1, 40
  %1110 = vst.msk [vmem:[%s1109] sm:$0xff] %vm1108, %v1107
  %s1111 = scalar_lea.vmem %s0, 582
  %v1112 = vld [vmem:[%s1111] ss:$8 sm:$0xf]
  %s1113 = scalar_lea.vmem %s0, 582
  %v1114 = vld [vmem:[%s1113] ss:$8 sm:$0xf0]
  %vm1115 = vcmask 1047556
  %v1116 = vsel %vm1115, %v1114, %v1112
  %1117 = vrot.lane.b32.xlu0 %v1116, 96
  %v1118 = vpop.permute.xlu0 %1117
  %vm1119 = vcmask 917248
  %s1120 = scalar_lea.vmem %s1, 72
  %1121 = vst.msk [vmem:[%s1120] sm:$0xff] %vm1119, %v1118
  %s1122 = scalar_lea.vmem %s0, 838
  %v1123 = vld [vmem:[%s1122] ss:$8 sm:$0xf]
  %s1124 = scalar_lea.vmem %s0, 838
  %v1125 = vld [vmem:[%s1124] ss:$8 sm:$0xf0]
  %vm1126 = vcmask 1047556
  %v1127 = vsel %vm1126, %v1125, %v1123
  %1128 = vrot.lane.b32.xlu0 %v1127, 96
  %v1129 = vpop.permute.xlu0 %1128
  %vm1130 = vcmask 917248
  %s1131 = scalar_lea.vmem %s1, 104
  %1132 = vst.msk [vmem:[%s1131] sm:$0xff] %vm1130, %v1129
  %s1133 = scalar_lea.vmem %s0, 1094
  %v1134 = vld [vmem:[%s1133] ss:$8 sm:$0xf]
  %s1135 = scalar_lea.vmem %s0, 1094
  %v1136 = vld [vmem:[%s1135] ss:$8 sm:$0xf0]
  %vm1137 = vcmask 1047556
  %v1138 = vsel %vm1137, %v1136, %v1134
  %1139 = vrot.lane.b32.xlu0 %v1138, 96
  %v1140 = vpop.permute.xlu0 %1139
  %vm1141 = vcmask 917248
  %s1142 = scalar_lea.vmem %s1, 136
  %1143 = vst.msk [vmem:[%s1142] sm:$0xff] %vm1141, %v1140
  %s1144 = scalar_lea.vmem %s0, 1350
  %v1145 = vld [vmem:[%s1144] ss:$8 sm:$0xf]
  %s1146 = scalar_lea.vmem %s0, 1350
  %v1147 = vld [vmem:[%s1146] ss:$8 sm:$0xf0]
  %vm1148 = vcmask 1047556
  %v1149 = vsel %vm1148, %v1147, %v1145
  %1150 = vrot.lane.b32.xlu0 %v1149, 96
  %v1151 = vpop.permute.xlu0 %1150
  %vm1152 = vcmask 917248
  %s1153 = scalar_lea.vmem %s1, 168
  %1154 = vst.msk [vmem:[%s1153] sm:$0xff] %vm1152, %v1151
  %s1155 = scalar_lea.vmem %s0, 1606
  %v1156 = vld [vmem:[%s1155] ss:$8 sm:$0xf]
  %s1157 = scalar_lea.vmem %s0, 1606
  %v1158 = vld [vmem:[%s1157] ss:$8 sm:$0xf0]
  %vm1159 = vcmask 1047556
  %v1160 = vsel %vm1159, %v1158, %v1156
  %1161 = vrot.lane.b32.xlu0 %v1160, 96
  %v1162 = vpop.permute.xlu0 %1161
  %vm1163 = vcmask 917248
  %s1164 = scalar_lea.vmem %s1, 200
  %1165 = vst.msk [vmem:[%s1164] sm:$0xff] %vm1163, %v1162
  %s1166 = scalar_lea.vmem %s0, 1862
  %v1167 = vld [vmem:[%s1166] ss:$8 sm:$0xf]
  %s1168 = scalar_lea.vmem %s0, 1862
  %v1169 = vld [vmem:[%s1168] ss:$8 sm:$0xf0]
  %vm1170 = vcmask 1047556
  %v1171 = vsel %vm1170, %v1169, %v1167
  %1172 = vrot.lane.b32.xlu0 %v1171, 96
  %v1173 = vpop.permute.xlu0 %1172
  %vm1174 = vcmask 917248
  %s1175 = scalar_lea.vmem %s1, 232
  %1176 = vst.msk [vmem:[%s1175] sm:$0xff] %vm1174, %v1173
  %s1177 = scalar_lea.vmem %s0, 2118
  %v1178 = vld [vmem:[%s1177] ss:$8 sm:$0xf]
  %s1179 = scalar_lea.vmem %s0, 2118
  %v1180 = vld [vmem:[%s1179] ss:$8 sm:$0xf0]
  %vm1181 = vcmask 1047556
  %v1182 = vsel %vm1181, %v1180, %v1178
  %1183 = vrot.lane.b32.xlu0 %v1182, 96
  %v1184 = vpop.permute.xlu0 %1183
  %vm1185 = vcmask 917248
  %s1186 = scalar_lea.vmem %s1, 264
  %1187 = vst.msk [vmem:[%s1186] sm:$0xff] %vm1185, %v1184
  %s1188 = scalar_lea.vmem %s0, 2374
  %v1189 = vld [vmem:[%s1188] ss:$8 sm:$0xf]
  %s1190 = scalar_lea.vmem %s0, 2374
  %v1191 = vld [vmem:[%s1190] ss:$8 sm:$0xf0]
  %vm1192 = vcmask 1047556
  %v1193 = vsel %vm1192, %v1191, %v1189
  %1194 = vrot.lane.b32.xlu0 %v1193, 96
  %v1195 = vpop.permute.xlu0 %1194
  %vm1196 = vcmask 917248
  %s1197 = scalar_lea.vmem %s1, 296
  %1198 = vst.msk [vmem:[%s1197] sm:$0xff] %vm1196, %v1195
  %s1199 = scalar_lea.vmem %s0, 2630
  %v1200 = vld [vmem:[%s1199] ss:$8 sm:$0xf]
  %s1201 = scalar_lea.vmem %s0, 2630
  %v1202 = vld [vmem:[%s1201] ss:$8 sm:$0xf0]
  %vm1203 = vcmask 1047556
  %v1204 = vsel %vm1203, %v1202, %v1200
  %1205 = vrot.lane.b32.xlu0 %v1204, 96
  %v1206 = vpop.permute.xlu0 %1205
  %vm1207 = vcmask 917248
  %s1208 = scalar_lea.vmem %s1, 328
  %1209 = vst.msk [vmem:[%s1208] sm:$0xff] %vm1207, %v1206
  %s1210 = scalar_lea.vmem %s0, 2886
  %v1211 = vld [vmem:[%s1210] ss:$8 sm:$0xf]
  %s1212 = scalar_lea.vmem %s0, 2886
  %v1213 = vld [vmem:[%s1212] ss:$8 sm:$0xf0]
  %vm1214 = vcmask 1047556
  %v1215 = vsel %vm1214, %v1213, %v1211
  %1216 = vrot.lane.b32.xlu0 %v1215, 96
  %v1217 = vpop.permute.xlu0 %1216
  %vm1218 = vcmask 917248
  %s1219 = scalar_lea.vmem %s1, 360
  %1220 = vst.msk [vmem:[%s1219] sm:$0xff] %vm1218, %v1217
  %s1221 = scalar_lea.vmem %s0, 134
  %v1222 = vld [vmem:[%s1221] ss:$8 sm:$0xf]
  %s1223 = scalar_lea.vmem %s0, 134
  %v1224 = vld [vmem:[%s1223] ss:$8 sm:$0xf0]
  %vm1225 = vcmask 1047556
  %v1226 = vsel %vm1225, %v1224, %v1222
  %1227 = vrot.lane.b32.xlu0 %v1226, 96
  %v1228 = vpop.permute.xlu0 %1227
  %vm1229 = vcmask 917248
  %s1230 = scalar_lea.vmem %s1, 16
  %1231 = vst.msk [vmem:[%s1230] sm:$0xff] %vm1229, %v1228
  %s1232 = scalar_lea.vmem %s0, 390
  %v1233 = vld [vmem:[%s1232] ss:$8 sm:$0xf]
  %s1234 = scalar_lea.vmem %s0, 390
  %v1235 = vld [vmem:[%s1234] ss:$8 sm:$0xf0]
  %vm1236 = vcmask 1047556
  %v1237 = vsel %vm1236, %v1235, %v1233
  %1238 = vrot.lane.b32.xlu0 %v1237, 96
  %v1239 = vpop.permute.xlu0 %1238
  %vm1240 = vcmask 917248
  %s1241 = scalar_lea.vmem %s1, 48
  %1242 = vst.msk [vmem:[%s1241] sm:$0xff] %vm1240, %v1239
  %s1243 = scalar_lea.vmem %s0, 646
  %v1244 = vld [vmem:[%s1243] ss:$8 sm:$0xf]
  %s1245 = scalar_lea.vmem %s0, 646
  %v1246 = vld [vmem:[%s1245] ss:$8 sm:$0xf0]
  %vm1247 = vcmask 1047556
  %v1248 = vsel %vm1247, %v1246, %v1244
  %1249 = vrot.lane.b32.xlu0 %v1248, 96
  %v1250 = vpop.permute.xlu0 %1249
  %vm1251 = vcmask 917248
  %s1252 = scalar_lea.vmem %s1, 80
  %1253 = vst.msk [vmem:[%s1252] sm:$0xff] %vm1251, %v1250
  %s1254 = scalar_lea.vmem %s0, 902
  %v1255 = vld [vmem:[%s1254] ss:$8 sm:$0xf]
  %s1256 = scalar_lea.vmem %s0, 902
  %v1257 = vld [vmem:[%s1256] ss:$8 sm:$0xf0]
  %vm1258 = vcmask 1047556
  %v1259 = vsel %vm1258, %v1257, %v1255
  %1260 = vrot.lane.b32.xlu0 %v1259, 96
  %v1261 = vpop.permute.xlu0 %1260
  %vm1262 = vcmask 917248
  %s1263 = scalar_lea.vmem %s1, 112
  %1264 = vst.msk [vmem:[%s1263] sm:$0xff] %vm1262, %v1261
  %s1265 = scalar_lea.vmem %s0, 1158
  %v1266 = vld [vmem:[%s1265] ss:$8 sm:$0xf]
  %s1267 = scalar_lea.vmem %s0, 1158
  %v1268 = vld [vmem:[%s1267] ss:$8 sm:$0xf0]
  %vm1269 = vcmask 1047556
  %v1270 = vsel %vm1269, %v1268, %v1266
  %1271 = vrot.lane.b32.xlu0 %v1270, 96
  %v1272 = vpop.permute.xlu0 %1271
  %vm1273 = vcmask 917248
  %s1274 = scalar_lea.vmem %s1, 144
  %1275 = vst.msk [vmem:[%s1274] sm:$0xff] %vm1273, %v1272
  %s1276 = scalar_lea.vmem %s0, 1414
  %v1277 = vld [vmem:[%s1276] ss:$8 sm:$0xf]
  %s1278 = scalar_lea.vmem %s0, 1414
  %v1279 = vld [vmem:[%s1278] ss:$8 sm:$0xf0]
  %vm1280 = vcmask 1047556
  %v1281 = vsel %vm1280, %v1279, %v1277
  %1282 = vrot.lane.b32.xlu0 %v1281, 96
  %v1283 = vpop.permute.xlu0 %1282
  %vm1284 = vcmask 917248
  %s1285 = scalar_lea.vmem %s1, 176
  %1286 = vst.msk [vmem:[%s1285] sm:$0xff] %vm1284, %v1283
  %s1287 = scalar_lea.vmem %s0, 1670
  %v1288 = vld [vmem:[%s1287] ss:$8 sm:$0xf]
  %s1289 = scalar_lea.vmem %s0, 1670
  %v1290 = vld [vmem:[%s1289] ss:$8 sm:$0xf0]
  %vm1291 = vcmask 1047556
  %v1292 = vsel %vm1291, %v1290, %v1288
  %1293 = vrot.lane.b32.xlu0 %v1292, 96
  %v1294 = vpop.permute.xlu0 %1293
  %vm1295 = vcmask 917248
  %s1296 = scalar_lea.vmem %s1, 208
  %1297 = vst.msk [vmem:[%s1296] sm:$0xff] %vm1295, %v1294
  %s1298 = scalar_lea.vmem %s0, 1926
  %v1299 = vld [vmem:[%s1298] ss:$8 sm:$0xf]
  %s1300 = scalar_lea.vmem %s0, 1926
  %v1301 = vld [vmem:[%s1300] ss:$8 sm:$0xf0]
  %vm1302 = vcmask 1047556
  %v1303 = vsel %vm1302, %v1301, %v1299
  %1304 = vrot.lane.b32.xlu0 %v1303, 96
  %v1305 = vpop.permute.xlu0 %1304
  %vm1306 = vcmask 917248
  %s1307 = scalar_lea.vmem %s1, 240
  %1308 = vst.msk [vmem:[%s1307] sm:$0xff] %vm1306, %v1305
  %s1309 = scalar_lea.vmem %s0, 2182
  %v1310 = vld [vmem:[%s1309] ss:$8 sm:$0xf]
  %s1311 = scalar_lea.vmem %s0, 2182
  %v1312 = vld [vmem:[%s1311] ss:$8 sm:$0xf0]
  %vm1313 = vcmask 1047556
  %v1314 = vsel %vm1313, %v1312, %v1310
  %1315 = vrot.lane.b32.xlu0 %v1314, 96
  %v1316 = vpop.permute.xlu0 %1315
  %vm1317 = vcmask 917248
  %s1318 = scalar_lea.vmem %s1, 272
  %1319 = vst.msk [vmem:[%s1318] sm:$0xff] %vm1317, %v1316
  %s1320 = scalar_lea.vmem %s0, 2438
  %v1321 = vld [vmem:[%s1320] ss:$8 sm:$0xf]
  %s1322 = scalar_lea.vmem %s0, 2438
  %v1323 = vld [vmem:[%s1322] ss:$8 sm:$0xf0]
  %vm1324 = vcmask 1047556
  %v1325 = vsel %vm1324, %v1323, %v1321
  %1326 = vrot.lane.b32.xlu0 %v1325, 96
  %v1327 = vpop.permute.xlu0 %1326
  %vm1328 = vcmask 917248
  %s1329 = scalar_lea.vmem %s1, 304
  %1330 = vst.msk [vmem:[%s1329] sm:$0xff] %vm1328, %v1327
  %s1331 = scalar_lea.vmem %s0, 2694
  %v1332 = vld [vmem:[%s1331] ss:$8 sm:$0xf]
  %s1333 = scalar_lea.vmem %s0, 2694
  %v1334 = vld [vmem:[%s1333] ss:$8 sm:$0xf0]
  %vm1335 = vcmask 1047556
  %v1336 = vsel %vm1335, %v1334, %v1332
  %1337 = vrot.lane.b32.xlu0 %v1336, 96
  %v1338 = vpop.permute.xlu0 %1337
  %vm1339 = vcmask 917248
  %s1340 = scalar_lea.vmem %s1, 336
  %1341 = vst.msk [vmem:[%s1340] sm:$0xff] %vm1339, %v1338
  %s1342 = scalar_lea.vmem %s0, 2950
  %v1343 = vld [vmem:[%s1342] ss:$8 sm:$0xf]
  %s1344 = scalar_lea.vmem %s0, 2950
  %v1345 = vld [vmem:[%s1344] ss:$8 sm:$0xf0]
  %vm1346 = vcmask 1047556
  %v1347 = vsel %vm1346, %v1345, %v1343
  %1348 = vrot.lane.b32.xlu0 %v1347, 96
  %v1349 = vpop.permute.xlu0 %1348
  %vm1350 = vcmask 917248
  %s1351 = scalar_lea.vmem %s1, 368
  %1352 = vst.msk [vmem:[%s1351] sm:$0xff] %vm1350, %v1349
  %s1353 = scalar_lea.vmem %s0, 198
  %v1354 = vld [vmem:[%s1353] ss:$8 sm:$0xf]
  %s1355 = scalar_lea.vmem %s0, 198
  %v1356 = vld [vmem:[%s1355] ss:$8 sm:$0xf0]
  %vm1357 = vcmask 1047556
  %v1358 = vsel %vm1357, %v1356, %v1354
  %1359 = vrot.lane.b32.xlu0 %v1358, 96
  %v1360 = vpop.permute.xlu0 %1359
  %vm1361 = vcmask 917248
  %s1362 = scalar_lea.vmem %s1, 24
  %1363 = vst.msk [vmem:[%s1362] sm:$0xff] %vm1361, %v1360
  %s1364 = scalar_lea.vmem %s0, 454
  %v1365 = vld [vmem:[%s1364] ss:$8 sm:$0xf]
  %s1366 = scalar_lea.vmem %s0, 454
  %v1367 = vld [vmem:[%s1366] ss:$8 sm:$0xf0]
  %vm1368 = vcmask 1047556
  %v1369 = vsel %vm1368, %v1367, %v1365
  %1370 = vrot.lane.b32.xlu0 %v1369, 96
  %v1371 = vpop.permute.xlu0 %1370
  %vm1372 = vcmask 917248
  %s1373 = scalar_lea.vmem %s1, 56
  %1374 = vst.msk [vmem:[%s1373] sm:$0xff] %vm1372, %v1371
  %s1375 = scalar_lea.vmem %s0, 710
  %v1376 = vld [vmem:[%s1375] ss:$8 sm:$0xf]
  %s1377 = scalar_lea.vmem %s0, 710
  %v1378 = vld [vmem:[%s1377] ss:$8 sm:$0xf0]
  %vm1379 = vcmask 1047556
  %v1380 = vsel %vm1379, %v1378, %v1376
  %1381 = vrot.lane.b32.xlu0 %v1380, 96
  %v1382 = vpop.permute.xlu0 %1381
  %vm1383 = vcmask 917248
  %s1384 = scalar_lea.vmem %s1, 88
  %1385 = vst.msk [vmem:[%s1384] sm:$0xff] %vm1383, %v1382
  %s1386 = scalar_lea.vmem %s0, 966
  %v1387 = vld [vmem:[%s1386] ss:$8 sm:$0xf]
  %s1388 = scalar_lea.vmem %s0, 966
  %v1389 = vld [vmem:[%s1388] ss:$8 sm:$0xf0]
  %vm1390 = vcmask 1047556
  %v1391 = vsel %vm1390, %v1389, %v1387
  %1392 = vrot.lane.b32.xlu0 %v1391, 96
  %v1393 = vpop.permute.xlu0 %1392
  %vm1394 = vcmask 917248
  %s1395 = scalar_lea.vmem %s1, 120
  %1396 = vst.msk [vmem:[%s1395] sm:$0xff] %vm1394, %v1393
  %s1397 = scalar_lea.vmem %s0, 1222
  %v1398 = vld [vmem:[%s1397] ss:$8 sm:$0xf]
  %s1399 = scalar_lea.vmem %s0, 1222
  %v1400 = vld [vmem:[%s1399] ss:$8 sm:$0xf0]
  %vm1401 = vcmask 1047556
  %v1402 = vsel %vm1401, %v1400, %v1398
  %1403 = vrot.lane.b32.xlu0 %v1402, 96
  %v1404 = vpop.permute.xlu0 %1403
  %vm1405 = vcmask 917248
  %s1406 = scalar_lea.vmem %s1, 152
  %1407 = vst.msk [vmem:[%s1406] sm:$0xff] %vm1405, %v1404
  %s1408 = scalar_lea.vmem %s0, 1478
  %v1409 = vld [vmem:[%s1408] ss:$8 sm:$0xf]
  %s1410 = scalar_lea.vmem %s0, 1478
  %v1411 = vld [vmem:[%s1410] ss:$8 sm:$0xf0]
  %vm1412 = vcmask 1047556
  %v1413 = vsel %vm1412, %v1411, %v1409
  %1414 = vrot.lane.b32.xlu0 %v1413, 96
  %v1415 = vpop.permute.xlu0 %1414
  %vm1416 = vcmask 917248
  %s1417 = scalar_lea.vmem %s1, 184
  %1418 = vst.msk [vmem:[%s1417] sm:$0xff] %vm1416, %v1415
  %s1419 = scalar_lea.vmem %s0, 1734
  %v1420 = vld [vmem:[%s1419] ss:$8 sm:$0xf]
  %s1421 = scalar_lea.vmem %s0, 1734
  %v1422 = vld [vmem:[%s1421] ss:$8 sm:$0xf0]
  %vm1423 = vcmask 1047556
  %v1424 = vsel %vm1423, %v1422, %v1420
  %1425 = vrot.lane.b32.xlu0 %v1424, 96
  %v1426 = vpop.permute.xlu0 %1425
  %vm1427 = vcmask 917248
  %s1428 = scalar_lea.vmem %s1, 216
  %1429 = vst.msk [vmem:[%s1428] sm:$0xff] %vm1427, %v1426
  %s1430 = scalar_lea.vmem %s0, 1990
  %v1431 = vld [vmem:[%s1430] ss:$8 sm:$0xf]
  %s1432 = scalar_lea.vmem %s0, 1990
  %v1433 = vld [vmem:[%s1432] ss:$8 sm:$0xf0]
  %vm1434 = vcmask 1047556
  %v1435 = vsel %vm1434, %v1433, %v1431
  %1436 = vrot.lane.b32.xlu0 %v1435, 96
  %v1437 = vpop.permute.xlu0 %1436
  %vm1438 = vcmask 917248
  %s1439 = scalar_lea.vmem %s1, 248
  %1440 = vst.msk [vmem:[%s1439] sm:$0xff] %vm1438, %v1437
  %s1441 = scalar_lea.vmem %s0, 2246
  %v1442 = vld [vmem:[%s1441] ss:$8 sm:$0xf]
  %s1443 = scalar_lea.vmem %s0, 2246
  %v1444 = vld [vmem:[%s1443] ss:$8 sm:$0xf0]
  %vm1445 = vcmask 1047556
  %v1446 = vsel %vm1445, %v1444, %v1442
  %1447 = vrot.lane.b32.xlu0 %v1446, 96
  %v1448 = vpop.permute.xlu0 %1447
  %vm1449 = vcmask 917248
  %s1450 = scalar_lea.vmem %s1, 280
  %1451 = vst.msk [vmem:[%s1450] sm:$0xff] %vm1449, %v1448
  %s1452 = scalar_lea.vmem %s0, 2502
  %v1453 = vld [vmem:[%s1452] ss:$8 sm:$0xf]
  %s1454 = scalar_lea.vmem %s0, 2502
  %v1455 = vld [vmem:[%s1454] ss:$8 sm:$0xf0]
  %vm1456 = vcmask 1047556
  %v1457 = vsel %vm1456, %v1455, %v1453
  %1458 = vrot.lane.b32.xlu0 %v1457, 96
  %v1459 = vpop.permute.xlu0 %1458
  %vm1460 = vcmask 917248
  %s1461 = scalar_lea.vmem %s1, 312
  %1462 = vst.msk [vmem:[%s1461] sm:$0xff] %vm1460, %v1459
  %s1463 = scalar_lea.vmem %s0, 2758
  %v1464 = vld [vmem:[%s1463] ss:$8 sm:$0xf]
  %s1465 = scalar_lea.vmem %s0, 2758
  %v1466 = vld [vmem:[%s1465] ss:$8 sm:$0xf0]
  %vm1467 = vcmask 1047556
  %v1468 = vsel %vm1467, %v1466, %v1464
  %1469 = vrot.lane.b32.xlu0 %v1468, 96
  %v1470 = vpop.permute.xlu0 %1469
  %vm1471 = vcmask 917248
  %s1472 = scalar_lea.vmem %s1, 344
  %1473 = vst.msk [vmem:[%s1472] sm:$0xff] %vm1471, %v1470
  %s1474 = scalar_lea.vmem %s0, 3014
  %v1475 = vld [vmem:[%s1474] ss:$8 sm:$0xf]
  %s1476 = scalar_lea.vmem %s0, 3014
  %v1477 = vld [vmem:[%s1476] ss:$8 sm:$0xf0]
  %vm1478 = vcmask 1047556
  %v1479 = vsel %vm1478, %v1477, %v1475
  %1480 = vrot.lane.b32.xlu0 %v1479, 96
  %v1481 = vpop.permute.xlu0 %1480
  %vm1482 = vcmask 917248
  %s1483 = scalar_lea.vmem %s1, 376
  %1484 = vst.msk [vmem:[%s1483] sm:$0xff] %vm1482, %v1481
  %s1485 = scalar_lea.vmem %s0, 5
  %v1486 = vld [vmem:[%s1485] ss:$8 sm:$0xf]
  %s1487 = scalar_lea.vmem %s0, 5
  %v1488 = vld [vmem:[%s1487] ss:$8 sm:$0xf0]
  %vm1489 = vcmask 1047556
  %v1490 = vsel %vm1489, %v1488, %v1486
  %1491 = vrot.lane.b32.xlu0 %v1490, 80
  %v1492 = vpop.permute.xlu0 %1491
  %vm1493 = vcmask 786048
  %1494 = vst.msk [vmem:[%s1] sm:$0xff] %vm1493, %v1492
  %s1495 = scalar_lea.vmem %s0, 261
  %v1496 = vld [vmem:[%s1495] ss:$8 sm:$0xf]
  %s1497 = scalar_lea.vmem %s0, 261
  %v1498 = vld [vmem:[%s1497] ss:$8 sm:$0xf0]
  %vm1499 = vcmask 1047556
  %v1500 = vsel %vm1499, %v1498, %v1496
  %1501 = vrot.lane.b32.xlu0 %v1500, 80
  %v1502 = vpop.permute.xlu0 %1501
  %vm1503 = vcmask 786048
  %s1504 = scalar_lea.vmem %s1, 32
  %1505 = vst.msk [vmem:[%s1504] sm:$0xff] %vm1503, %v1502
  %s1506 = scalar_lea.vmem %s0, 517
  %v1507 = vld [vmem:[%s1506] ss:$8 sm:$0xf]
  %s1508 = scalar_lea.vmem %s0, 517
  %v1509 = vld [vmem:[%s1508] ss:$8 sm:$0xf0]
  %vm1510 = vcmask 1047556
  %v1511 = vsel %vm1510, %v1509, %v1507
  %1512 = vrot.lane.b32.xlu0 %v1511, 80
  %v1513 = vpop.permute.xlu0 %1512
  %vm1514 = vcmask 786048
  %s1515 = scalar_lea.vmem %s1, 64
  %1516 = vst.msk [vmem:[%s1515] sm:$0xff] %vm1514, %v1513
  %s1517 = scalar_lea.vmem %s0, 773
  %v1518 = vld [vmem:[%s1517] ss:$8 sm:$0xf]
  %s1519 = scalar_lea.vmem %s0, 773
  %v1520 = vld [vmem:[%s1519] ss:$8 sm:$0xf0]
  %vm1521 = vcmask 1047556
  %v1522 = vsel %vm1521, %v1520, %v1518
  %1523 = vrot.lane.b32.xlu0 %v1522, 80
  %v1524 = vpop.permute.xlu0 %1523
  %vm1525 = vcmask 786048
  %s1526 = scalar_lea.vmem %s1, 96
  %1527 = vst.msk [vmem:[%s1526] sm:$0xff] %vm1525, %v1524
  %s1528 = scalar_lea.vmem %s0, 1029
  %v1529 = vld [vmem:[%s1528] ss:$8 sm:$0xf]
  %s1530 = scalar_lea.vmem %s0, 1029
  %v1531 = vld [vmem:[%s1530] ss:$8 sm:$0xf0]
  %vm1532 = vcmask 1047556
  %v1533 = vsel %vm1532, %v1531, %v1529
  %1534 = vrot.lane.b32.xlu0 %v1533, 80
  %v1535 = vpop.permute.xlu0 %1534
  %vm1536 = vcmask 786048
  %s1537 = scalar_lea.vmem %s1, 128
  %1538 = vst.msk [vmem:[%s1537] sm:$0xff] %vm1536, %v1535
  %s1539 = scalar_lea.vmem %s0, 1285
  %v1540 = vld [vmem:[%s1539] ss:$8 sm:$0xf]
  %s1541 = scalar_lea.vmem %s0, 1285
  %v1542 = vld [vmem:[%s1541] ss:$8 sm:$0xf0]
  %vm1543 = vcmask 1047556
  %v1544 = vsel %vm1543, %v1542, %v1540
  %1545 = vrot.lane.b32.xlu0 %v1544, 80
  %v1546 = vpop.permute.xlu0 %1545
  %vm1547 = vcmask 786048
  %s1548 = scalar_lea.vmem %s1, 160
  %1549 = vst.msk [vmem:[%s1548] sm:$0xff] %vm1547, %v1546
  %s1550 = scalar_lea.vmem %s0, 1541
  %v1551 = vld [vmem:[%s1550] ss:$8 sm:$0xf]
  %s1552 = scalar_lea.vmem %s0, 1541
  %v1553 = vld [vmem:[%s1552] ss:$8 sm:$0xf0]
  %vm1554 = vcmask 1047556
  %v1555 = vsel %vm1554, %v1553, %v1551
  %1556 = vrot.lane.b32.xlu0 %v1555, 80
  %v1557 = vpop.permute.xlu0 %1556
  %vm1558 = vcmask 786048
  %s1559 = scalar_lea.vmem %s1, 192
  %1560 = vst.msk [vmem:[%s1559] sm:$0xff] %vm1558, %v1557
  %s1561 = scalar_lea.vmem %s0, 1797
  %v1562 = vld [vmem:[%s1561] ss:$8 sm:$0xf]
  %s1563 = scalar_lea.vmem %s0, 1797
  %v1564 = vld [vmem:[%s1563] ss:$8 sm:$0xf0]
  %vm1565 = vcmask 1047556
  %v1566 = vsel %vm1565, %v1564, %v1562
  %1567 = vrot.lane.b32.xlu0 %v1566, 80
  %v1568 = vpop.permute.xlu0 %1567
  %vm1569 = vcmask 786048
  %s1570 = scalar_lea.vmem %s1, 224
  %1571 = vst.msk [vmem:[%s1570] sm:$0xff] %vm1569, %v1568
  %s1572 = scalar_lea.vmem %s0, 2053
  %v1573 = vld [vmem:[%s1572] ss:$8 sm:$0xf]
  %s1574 = scalar_lea.vmem %s0, 2053
  %v1575 = vld [vmem:[%s1574] ss:$8 sm:$0xf0]
  %vm1576 = vcmask 1047556
  %v1577 = vsel %vm1576, %v1575, %v1573
  %1578 = vrot.lane.b32.xlu0 %v1577, 80
  %v1579 = vpop.permute.xlu0 %1578
  %vm1580 = vcmask 786048
  %s1581 = scalar_lea.vmem %s1, 256
  %1582 = vst.msk [vmem:[%s1581] sm:$0xff] %vm1580, %v1579
  %s1583 = scalar_lea.vmem %s0, 2309
  %v1584 = vld [vmem:[%s1583] ss:$8 sm:$0xf]
  %s1585 = scalar_lea.vmem %s0, 2309
  %v1586 = vld [vmem:[%s1585] ss:$8 sm:$0xf0]
  %vm1587 = vcmask 1047556
  %v1588 = vsel %vm1587, %v1586, %v1584
  %1589 = vrot.lane.b32.xlu0 %v1588, 80
  %v1590 = vpop.permute.xlu0 %1589
  %vm1591 = vcmask 786048
  %s1592 = scalar_lea.vmem %s1, 288
  %1593 = vst.msk [vmem:[%s1592] sm:$0xff] %vm1591, %v1590
  %s1594 = scalar_lea.vmem %s0, 2565
  %v1595 = vld [vmem:[%s1594] ss:$8 sm:$0xf]
  %s1596 = scalar_lea.vmem %s0, 2565
  %v1597 = vld [vmem:[%s1596] ss:$8 sm:$0xf0]
  %vm1598 = vcmask 1047556
  %v1599 = vsel %vm1598, %v1597, %v1595
  %1600 = vrot.lane.b32.xlu0 %v1599, 80
  %v1601 = vpop.permute.xlu0 %1600
  %vm1602 = vcmask 786048
  %s1603 = scalar_lea.vmem %s1, 320
  %1604 = vst.msk [vmem:[%s1603] sm:$0xff] %vm1602, %v1601
  %s1605 = scalar_lea.vmem %s0, 2821
  %v1606 = vld [vmem:[%s1605] ss:$8 sm:$0xf]
  %s1607 = scalar_lea.vmem %s0, 2821
  %v1608 = vld [vmem:[%s1607] ss:$8 sm:$0xf0]
  %vm1609 = vcmask 1047556
  %v1610 = vsel %vm1609, %v1608, %v1606
  %1611 = vrot.lane.b32.xlu0 %v1610, 80
  %v1612 = vpop.permute.xlu0 %1611
  %vm1613 = vcmask 786048
  %s1614 = scalar_lea.vmem %s1, 352
  %1615 = vst.msk [vmem:[%s1614] sm:$0xff] %vm1613, %v1612
  %s1616 = scalar_lea.vmem %s0, 69
  %v1617 = vld [vmem:[%s1616] ss:$8 sm:$0xf]
  %s1618 = scalar_lea.vmem %s0, 69
  %v1619 = vld [vmem:[%s1618] ss:$8 sm:$0xf0]
  %vm1620 = vcmask 1047556
  %v1621 = vsel %vm1620, %v1619, %v1617
  %1622 = vrot.lane.b32.xlu0 %v1621, 80
  %v1623 = vpop.permute.xlu0 %1622
  %vm1624 = vcmask 786048
  %s1625 = scalar_lea.vmem %s1, 8
  %1626 = vst.msk [vmem:[%s1625] sm:$0xff] %vm1624, %v1623
  %s1627 = scalar_lea.vmem %s0, 325
  %v1628 = vld [vmem:[%s1627] ss:$8 sm:$0xf]
  %s1629 = scalar_lea.vmem %s0, 325
  %v1630 = vld [vmem:[%s1629] ss:$8 sm:$0xf0]
  %vm1631 = vcmask 1047556
  %v1632 = vsel %vm1631, %v1630, %v1628
  %1633 = vrot.lane.b32.xlu0 %v1632, 80
  %v1634 = vpop.permute.xlu0 %1633
  %vm1635 = vcmask 786048
  %s1636 = scalar_lea.vmem %s1, 40
  %1637 = vst.msk [vmem:[%s1636] sm:$0xff] %vm1635, %v1634
  %s1638 = scalar_lea.vmem %s0, 581
  %v1639 = vld [vmem:[%s1638] ss:$8 sm:$0xf]
  %s1640 = scalar_lea.vmem %s0, 581
  %v1641 = vld [vmem:[%s1640] ss:$8 sm:$0xf0]
  %vm1642 = vcmask 1047556
  %v1643 = vsel %vm1642, %v1641, %v1639
  %1644 = vrot.lane.b32.xlu0 %v1643, 80
  %v1645 = vpop.permute.xlu0 %1644
  %vm1646 = vcmask 786048
  %s1647 = scalar_lea.vmem %s1, 72
  %1648 = vst.msk [vmem:[%s1647] sm:$0xff] %vm1646, %v1645
  %s1649 = scalar_lea.vmem %s0, 837
  %v1650 = vld [vmem:[%s1649] ss:$8 sm:$0xf]
  %s1651 = scalar_lea.vmem %s0, 837
  %v1652 = vld [vmem:[%s1651] ss:$8 sm:$0xf0]
  %vm1653 = vcmask 1047556
  %v1654 = vsel %vm1653, %v1652, %v1650
  %1655 = vrot.lane.b32.xlu0 %v1654, 80
  %v1656 = vpop.permute.xlu0 %1655
  %vm1657 = vcmask 786048
  %s1658 = scalar_lea.vmem %s1, 104
  %1659 = vst.msk [vmem:[%s1658] sm:$0xff] %vm1657, %v1656
  %s1660 = scalar_lea.vmem %s0, 1093
  %v1661 = vld [vmem:[%s1660] ss:$8 sm:$0xf]
  %s1662 = scalar_lea.vmem %s0, 1093
  %v1663 = vld [vmem:[%s1662] ss:$8 sm:$0xf0]
  %vm1664 = vcmask 1047556
  %v1665 = vsel %vm1664, %v1663, %v1661
  %1666 = vrot.lane.b32.xlu0 %v1665, 80
  %v1667 = vpop.permute.xlu0 %1666
  %vm1668 = vcmask 786048
  %s1669 = scalar_lea.vmem %s1, 136
  %1670 = vst.msk [vmem:[%s1669] sm:$0xff] %vm1668, %v1667
  %s1671 = scalar_lea.vmem %s0, 1349
  %v1672 = vld [vmem:[%s1671] ss:$8 sm:$0xf]
  %s1673 = scalar_lea.vmem %s0, 1349
  %v1674 = vld [vmem:[%s1673] ss:$8 sm:$0xf0]
  %vm1675 = vcmask 1047556
  %v1676 = vsel %vm1675, %v1674, %v1672
  %1677 = vrot.lane.b32.xlu0 %v1676, 80
  %v1678 = vpop.permute.xlu0 %1677
  %vm1679 = vcmask 786048
  %s1680 = scalar_lea.vmem %s1, 168
  %1681 = vst.msk [vmem:[%s1680] sm:$0xff] %vm1679, %v1678
  %s1682 = scalar_lea.vmem %s0, 1605
  %v1683 = vld [vmem:[%s1682] ss:$8 sm:$0xf]
  %s1684 = scalar_lea.vmem %s0, 1605
  %v1685 = vld [vmem:[%s1684] ss:$8 sm:$0xf0]
  %vm1686 = vcmask 1047556
  %v1687 = vsel %vm1686, %v1685, %v1683
  %1688 = vrot.lane.b32.xlu0 %v1687, 80
  %v1689 = vpop.permute.xlu0 %1688
  %vm1690 = vcmask 786048
  %s1691 = scalar_lea.vmem %s1, 200
  %1692 = vst.msk [vmem:[%s1691] sm:$0xff] %vm1690, %v1689
  %s1693 = scalar_lea.vmem %s0, 1861
  %v1694 = vld [vmem:[%s1693] ss:$8 sm:$0xf]
  %s1695 = scalar_lea.vmem %s0, 1861
  %v1696 = vld [vmem:[%s1695] ss:$8 sm:$0xf0]
  %vm1697 = vcmask 1047556
  %v1698 = vsel %vm1697, %v1696, %v1694
  %1699 = vrot.lane.b32.xlu0 %v1698, 80
  %v1700 = vpop.permute.xlu0 %1699
  %vm1701 = vcmask 786048
  %s1702 = scalar_lea.vmem %s1, 232
  %1703 = vst.msk [vmem:[%s1702] sm:$0xff] %vm1701, %v1700
  %s1704 = scalar_lea.vmem %s0, 2117
  %v1705 = vld [vmem:[%s1704] ss:$8 sm:$0xf]
  %s1706 = scalar_lea.vmem %s0, 2117
  %v1707 = vld [vmem:[%s1706] ss:$8 sm:$0xf0]
  %vm1708 = vcmask 1047556
  %v1709 = vsel %vm1708, %v1707, %v1705
  %1710 = vrot.lane.b32.xlu0 %v1709, 80
  %v1711 = vpop.permute.xlu0 %1710
  %vm1712 = vcmask 786048
  %s1713 = scalar_lea.vmem %s1, 264
  %1714 = vst.msk [vmem:[%s1713] sm:$0xff] %vm1712, %v1711
  %s1715 = scalar_lea.vmem %s0, 2373
  %v1716 = vld [vmem:[%s1715] ss:$8 sm:$0xf]
  %s1717 = scalar_lea.vmem %s0, 2373
  %v1718 = vld [vmem:[%s1717] ss:$8 sm:$0xf0]
  %vm1719 = vcmask 1047556
  %v1720 = vsel %vm1719, %v1718, %v1716
  %1721 = vrot.lane.b32.xlu0 %v1720, 80
  %v1722 = vpop.permute.xlu0 %1721
  %vm1723 = vcmask 786048
  %s1724 = scalar_lea.vmem %s1, 296
  %1725 = vst.msk [vmem:[%s1724] sm:$0xff] %vm1723, %v1722
  %s1726 = scalar_lea.vmem %s0, 2629
  %v1727 = vld [vmem:[%s1726] ss:$8 sm:$0xf]
  %s1728 = scalar_lea.vmem %s0, 2629
  %v1729 = vld [vmem:[%s1728] ss:$8 sm:$0xf0]
  %vm1730 = vcmask 1047556
  %v1731 = vsel %vm1730, %v1729, %v1727
  %1732 = vrot.lane.b32.xlu0 %v1731, 80
  %v1733 = vpop.permute.xlu0 %1732
  %vm1734 = vcmask 786048
  %s1735 = scalar_lea.vmem %s1, 328
  %1736 = vst.msk [vmem:[%s1735] sm:$0xff] %vm1734, %v1733
  %s1737 = scalar_lea.vmem %s0, 2885
  %v1738 = vld [vmem:[%s1737] ss:$8 sm:$0xf]
  %s1739 = scalar_lea.vmem %s0, 2885
  %v1740 = vld [vmem:[%s1739] ss:$8 sm:$0xf0]
  %vm1741 = vcmask 1047556
  %v1742 = vsel %vm1741, %v1740, %v1738
  %1743 = vrot.lane.b32.xlu0 %v1742, 80
  %v1744 = vpop.permute.xlu0 %1743
  %vm1745 = vcmask 786048
  %s1746 = scalar_lea.vmem %s1, 360
  %1747 = vst.msk [vmem:[%s1746] sm:$0xff] %vm1745, %v1744
  %s1748 = scalar_lea.vmem %s0, 133
  %v1749 = vld [vmem:[%s1748] ss:$8 sm:$0xf]
  %s1750 = scalar_lea.vmem %s0, 133
  %v1751 = vld [vmem:[%s1750] ss:$8 sm:$0xf0]
  %vm1752 = vcmask 1047556
  %v1753 = vsel %vm1752, %v1751, %v1749
  %1754 = vrot.lane.b32.xlu0 %v1753, 80
  %v1755 = vpop.permute.xlu0 %1754
  %vm1756 = vcmask 786048
  %s1757 = scalar_lea.vmem %s1, 16
  %1758 = vst.msk [vmem:[%s1757] sm:$0xff] %vm1756, %v1755
  %s1759 = scalar_lea.vmem %s0, 389
  %v1760 = vld [vmem:[%s1759] ss:$8 sm:$0xf]
  %s1761 = scalar_lea.vmem %s0, 389
  %v1762 = vld [vmem:[%s1761] ss:$8 sm:$0xf0]
  %vm1763 = vcmask 1047556
  %v1764 = vsel %vm1763, %v1762, %v1760
  %1765 = vrot.lane.b32.xlu0 %v1764, 80
  %v1766 = vpop.permute.xlu0 %1765
  %vm1767 = vcmask 786048
  %s1768 = scalar_lea.vmem %s1, 48
  %1769 = vst.msk [vmem:[%s1768] sm:$0xff] %vm1767, %v1766
  %s1770 = scalar_lea.vmem %s0, 645
  %v1771 = vld [vmem:[%s1770] ss:$8 sm:$0xf]
  %s1772 = scalar_lea.vmem %s0, 645
  %v1773 = vld [vmem:[%s1772] ss:$8 sm:$0xf0]
  %vm1774 = vcmask 1047556
  %v1775 = vsel %vm1774, %v1773, %v1771
  %1776 = vrot.lane.b32.xlu0 %v1775, 80
  %v1777 = vpop.permute.xlu0 %1776
  %vm1778 = vcmask 786048
  %s1779 = scalar_lea.vmem %s1, 80
  %1780 = vst.msk [vmem:[%s1779] sm:$0xff] %vm1778, %v1777
  %s1781 = scalar_lea.vmem %s0, 901
  %v1782 = vld [vmem:[%s1781] ss:$8 sm:$0xf]
  %s1783 = scalar_lea.vmem %s0, 901
  %v1784 = vld [vmem:[%s1783] ss:$8 sm:$0xf0]
  %vm1785 = vcmask 1047556
  %v1786 = vsel %vm1785, %v1784, %v1782
  %1787 = vrot.lane.b32.xlu0 %v1786, 80
  %v1788 = vpop.permute.xlu0 %1787
  %vm1789 = vcmask 786048
  %s1790 = scalar_lea.vmem %s1, 112
  %1791 = vst.msk [vmem:[%s1790] sm:$0xff] %vm1789, %v1788
  %s1792 = scalar_lea.vmem %s0, 1157
  %v1793 = vld [vmem:[%s1792] ss:$8 sm:$0xf]
  %s1794 = scalar_lea.vmem %s0, 1157
  %v1795 = vld [vmem:[%s1794] ss:$8 sm:$0xf0]
  %vm1796 = vcmask 1047556
  %v1797 = vsel %vm1796, %v1795, %v1793
  %1798 = vrot.lane.b32.xlu0 %v1797, 80
  %v1799 = vpop.permute.xlu0 %1798
  %vm1800 = vcmask 786048
  %s1801 = scalar_lea.vmem %s1, 144
  %1802 = vst.msk [vmem:[%s1801] sm:$0xff] %vm1800, %v1799
  %s1803 = scalar_lea.vmem %s0, 1413
  %v1804 = vld [vmem:[%s1803] ss:$8 sm:$0xf]
  %s1805 = scalar_lea.vmem %s0, 1413
  %v1806 = vld [vmem:[%s1805] ss:$8 sm:$0xf0]
  %vm1807 = vcmask 1047556
  %v1808 = vsel %vm1807, %v1806, %v1804
  %1809 = vrot.lane.b32.xlu0 %v1808, 80
  %v1810 = vpop.permute.xlu0 %1809
  %vm1811 = vcmask 786048
  %s1812 = scalar_lea.vmem %s1, 176
  %1813 = vst.msk [vmem:[%s1812] sm:$0xff] %vm1811, %v1810
  %s1814 = scalar_lea.vmem %s0, 1669
  %v1815 = vld [vmem:[%s1814] ss:$8 sm:$0xf]
  %s1816 = scalar_lea.vmem %s0, 1669
  %v1817 = vld [vmem:[%s1816] ss:$8 sm:$0xf0]
  %vm1818 = vcmask 1047556
  %v1819 = vsel %vm1818, %v1817, %v1815
  %1820 = vrot.lane.b32.xlu0 %v1819, 80
  %v1821 = vpop.permute.xlu0 %1820
  %vm1822 = vcmask 786048
  %s1823 = scalar_lea.vmem %s1, 208
  %1824 = vst.msk [vmem:[%s1823] sm:$0xff] %vm1822, %v1821
  %s1825 = scalar_lea.vmem %s0, 1925
  %v1826 = vld [vmem:[%s1825] ss:$8 sm:$0xf]
  %s1827 = scalar_lea.vmem %s0, 1925
  %v1828 = vld [vmem:[%s1827] ss:$8 sm:$0xf0]
  %vm1829 = vcmask 1047556
  %v1830 = vsel %vm1829, %v1828, %v1826
  %1831 = vrot.lane.b32.xlu0 %v1830, 80
  %v1832 = vpop.permute.xlu0 %1831
  %vm1833 = vcmask 786048
  %s1834 = scalar_lea.vmem %s1, 240
  %1835 = vst.msk [vmem:[%s1834] sm:$0xff] %vm1833, %v1832
  %s1836 = scalar_lea.vmem %s0, 2181
  %v1837 = vld [vmem:[%s1836] ss:$8 sm:$0xf]
  %s1838 = scalar_lea.vmem %s0, 2181
  %v1839 = vld [vmem:[%s1838] ss:$8 sm:$0xf0]
  %vm1840 = vcmask 1047556
  %v1841 = vsel %vm1840, %v1839, %v1837
  %1842 = vrot.lane.b32.xlu0 %v1841, 80
  %v1843 = vpop.permute.xlu0 %1842
  %vm1844 = vcmask 786048
  %s1845 = scalar_lea.vmem %s1, 272
  %1846 = vst.msk [vmem:[%s1845] sm:$0xff] %vm1844, %v1843
  %s1847 = scalar_lea.vmem %s0, 2437
  %v1848 = vld [vmem:[%s1847] ss:$8 sm:$0xf]
  %s1849 = scalar_lea.vmem %s0, 2437
  %v1850 = vld [vmem:[%s1849] ss:$8 sm:$0xf0]
  %vm1851 = vcmask 1047556
  %v1852 = vsel %vm1851, %v1850, %v1848
  %1853 = vrot.lane.b32.xlu0 %v1852, 80
  %v1854 = vpop.permute.xlu0 %1853
  %vm1855 = vcmask 786048
  %s1856 = scalar_lea.vmem %s1, 304
  %1857 = vst.msk [vmem:[%s1856] sm:$0xff] %vm1855, %v1854
  %s1858 = scalar_lea.vmem %s0, 2693
  %v1859 = vld [vmem:[%s1858] ss:$8 sm:$0xf]
  %s1860 = scalar_lea.vmem %s0, 2693
  %v1861 = vld [vmem:[%s1860] ss:$8 sm:$0xf0]
  %vm1862 = vcmask 1047556
  %v1863 = vsel %vm1862, %v1861, %v1859
  %1864 = vrot.lane.b32.xlu0 %v1863, 80
  %v1865 = vpop.permute.xlu0 %1864
  %vm1866 = vcmask 786048
  %s1867 = scalar_lea.vmem %s1, 336
  %1868 = vst.msk [vmem:[%s1867] sm:$0xff] %vm1866, %v1865
  %s1869 = scalar_lea.vmem %s0, 2949
  %v1870 = vld [vmem:[%s1869] ss:$8 sm:$0xf]
  %s1871 = scalar_lea.vmem %s0, 2949
  %v1872 = vld [vmem:[%s1871] ss:$8 sm:$0xf0]
  %vm1873 = vcmask 1047556
  %v1874 = vsel %vm1873, %v1872, %v1870
  %1875 = vrot.lane.b32.xlu0 %v1874, 80
  %v1876 = vpop.permute.xlu0 %1875
  %vm1877 = vcmask 786048
  %s1878 = scalar_lea.vmem %s1, 368
  %1879 = vst.msk [vmem:[%s1878] sm:$0xff] %vm1877, %v1876
  %s1880 = scalar_lea.vmem %s0, 197
  %v1881 = vld [vmem:[%s1880] ss:$8 sm:$0xf]
  %s1882 = scalar_lea.vmem %s0, 197
  %v1883 = vld [vmem:[%s1882] ss:$8 sm:$0xf0]
  %vm1884 = vcmask 1047556
  %v1885 = vsel %vm1884, %v1883, %v1881
  %1886 = vrot.lane.b32.xlu0 %v1885, 80
  %v1887 = vpop.permute.xlu0 %1886
  %vm1888 = vcmask 786048
  %s1889 = scalar_lea.vmem %s1, 24
  %1890 = vst.msk [vmem:[%s1889] sm:$0xff] %vm1888, %v1887
  %s1891 = scalar_lea.vmem %s0, 453
  %v1892 = vld [vmem:[%s1891] ss:$8 sm:$0xf]
  %s1893 = scalar_lea.vmem %s0, 453
  %v1894 = vld [vmem:[%s1893] ss:$8 sm:$0xf0]
  %vm1895 = vcmask 1047556
  %v1896 = vsel %vm1895, %v1894, %v1892
  %1897 = vrot.lane.b32.xlu0 %v1896, 80
  %v1898 = vpop.permute.xlu0 %1897
  %vm1899 = vcmask 786048
  %s1900 = scalar_lea.vmem %s1, 56
  %1901 = vst.msk [vmem:[%s1900] sm:$0xff] %vm1899, %v1898
  %s1902 = scalar_lea.vmem %s0, 709
  %v1903 = vld [vmem:[%s1902] ss:$8 sm:$0xf]
  %s1904 = scalar_lea.vmem %s0, 709
  %v1905 = vld [vmem:[%s1904] ss:$8 sm:$0xf0]
  %vm1906 = vcmask 1047556
  %v1907 = vsel %vm1906, %v1905, %v1903
  %1908 = vrot.lane.b32.xlu0 %v1907, 80
  %v1909 = vpop.permute.xlu0 %1908
  %vm1910 = vcmask 786048
  %s1911 = scalar_lea.vmem %s1, 88
  %1912 = vst.msk [vmem:[%s1911] sm:$0xff] %vm1910, %v1909
  %s1913 = scalar_lea.vmem %s0, 965
  %v1914 = vld [vmem:[%s1913] ss:$8 sm:$0xf]
  %s1915 = scalar_lea.vmem %s0, 965
  %v1916 = vld [vmem:[%s1915] ss:$8 sm:$0xf0]
  %vm1917 = vcmask 1047556
  %v1918 = vsel %vm1917, %v1916, %v1914
  %1919 = vrot.lane.b32.xlu0 %v1918, 80
  %v1920 = vpop.permute.xlu0 %1919
  %vm1921 = vcmask 786048
  %s1922 = scalar_lea.vmem %s1, 120
  %1923 = vst.msk [vmem:[%s1922] sm:$0xff] %vm1921, %v1920
  %s1924 = scalar_lea.vmem %s0, 1221
  %v1925 = vld [vmem:[%s1924] ss:$8 sm:$0xf]
  %s1926 = scalar_lea.vmem %s0, 1221
  %v1927 = vld [vmem:[%s1926] ss:$8 sm:$0xf0]
  %vm1928 = vcmask 1047556
  %v1929 = vsel %vm1928, %v1927, %v1925
  %1930 = vrot.lane.b32.xlu0 %v1929, 80
  %v1931 = vpop.permute.xlu0 %1930
  %vm1932 = vcmask 786048
  %s1933 = scalar_lea.vmem %s1, 152
  %1934 = vst.msk [vmem:[%s1933] sm:$0xff] %vm1932, %v1931
  %s1935 = scalar_lea.vmem %s0, 1477
  %v1936 = vld [vmem:[%s1935] ss:$8 sm:$0xf]
  %s1937 = scalar_lea.vmem %s0, 1477
  %v1938 = vld [vmem:[%s1937] ss:$8 sm:$0xf0]
  %vm1939 = vcmask 1047556
  %v1940 = vsel %vm1939, %v1938, %v1936
  %1941 = vrot.lane.b32.xlu0 %v1940, 80
  %v1942 = vpop.permute.xlu0 %1941
  %vm1943 = vcmask 786048
  %s1944 = scalar_lea.vmem %s1, 184
  %1945 = vst.msk [vmem:[%s1944] sm:$0xff] %vm1943, %v1942
  %s1946 = scalar_lea.vmem %s0, 1733
  %v1947 = vld [vmem:[%s1946] ss:$8 sm:$0xf]
  %s1948 = scalar_lea.vmem %s0, 1733
  %v1949 = vld [vmem:[%s1948] ss:$8 sm:$0xf0]
  %vm1950 = vcmask 1047556
  %v1951 = vsel %vm1950, %v1949, %v1947
  %1952 = vrot.lane.b32.xlu0 %v1951, 80
  %v1953 = vpop.permute.xlu0 %1952
  %vm1954 = vcmask 786048
  %s1955 = scalar_lea.vmem %s1, 216
  %1956 = vst.msk [vmem:[%s1955] sm:$0xff] %vm1954, %v1953
  %s1957 = scalar_lea.vmem %s0, 1989
  %v1958 = vld [vmem:[%s1957] ss:$8 sm:$0xf]
  %s1959 = scalar_lea.vmem %s0, 1989
  %v1960 = vld [vmem:[%s1959] ss:$8 sm:$0xf0]
  %vm1961 = vcmask 1047556
  %v1962 = vsel %vm1961, %v1960, %v1958
  %1963 = vrot.lane.b32.xlu0 %v1962, 80
  %v1964 = vpop.permute.xlu0 %1963
  %vm1965 = vcmask 786048
  %s1966 = scalar_lea.vmem %s1, 248
  %1967 = vst.msk [vmem:[%s1966] sm:$0xff] %vm1965, %v1964
  %s1968 = scalar_lea.vmem %s0, 2245
  %v1969 = vld [vmem:[%s1968] ss:$8 sm:$0xf]
  %s1970 = scalar_lea.vmem %s0, 2245
  %v1971 = vld [vmem:[%s1970] ss:$8 sm:$0xf0]
  %vm1972 = vcmask 1047556
  %v1973 = vsel %vm1972, %v1971, %v1969
  %1974 = vrot.lane.b32.xlu0 %v1973, 80
  %v1975 = vpop.permute.xlu0 %1974
  %vm1976 = vcmask 786048
  %s1977 = scalar_lea.vmem %s1, 280
  %1978 = vst.msk [vmem:[%s1977] sm:$0xff] %vm1976, %v1975
  %s1979 = scalar_lea.vmem %s0, 2501
  %v1980 = vld [vmem:[%s1979] ss:$8 sm:$0xf]
  %s1981 = scalar_lea.vmem %s0, 2501
  %v1982 = vld [vmem:[%s1981] ss:$8 sm:$0xf0]
  %vm1983 = vcmask 1047556
  %v1984 = vsel %vm1983, %v1982, %v1980
  %1985 = vrot.lane.b32.xlu0 %v1984, 80
  %v1986 = vpop.permute.xlu0 %1985
  %vm1987 = vcmask 786048
  %s1988 = scalar_lea.vmem %s1, 312
  %1989 = vst.msk [vmem:[%s1988] sm:$0xff] %vm1987, %v1986
  %s1990 = scalar_lea.vmem %s0, 2757
  %v1991 = vld [vmem:[%s1990] ss:$8 sm:$0xf]
  %s1992 = scalar_lea.vmem %s0, 2757
  %v1993 = vld [vmem:[%s1992] ss:$8 sm:$0xf0]
  %vm1994 = vcmask 1047556
  %v1995 = vsel %vm1994, %v1993, %v1991
  %1996 = vrot.lane.b32.xlu0 %v1995, 80
  %v1997 = vpop.permute.xlu0 %1996
  %vm1998 = vcmask 786048
  %s1999 = scalar_lea.vmem %s1, 344
  %2000 = vst.msk [vmem:[%s1999] sm:$0xff] %vm1998, %v1997
  %s2001 = scalar_lea.vmem %s0, 3013
  %v2002 = vld [vmem:[%s2001] ss:$8 sm:$0xf]
  %s2003 = scalar_lea.vmem %s0, 3013
  %v2004 = vld [vmem:[%s2003] ss:$8 sm:$0xf0]
  %vm2005 = vcmask 1047556
  %v2006 = vsel %vm2005, %v2004, %v2002
  %2007 = vrot.lane.b32.xlu0 %v2006, 80
  %v2008 = vpop.permute.xlu0 %2007
  %vm2009 = vcmask 786048
  %s2010 = scalar_lea.vmem %s1, 376
  %2011 = vst.msk [vmem:[%s2010] sm:$0xff] %vm2009, %v2008
  %s2012 = scalar_lea.vmem %s0, 4
  %v2013 = vld [vmem:[%s2012] ss:$8 sm:$0xf]
  %s2014 = scalar_lea.vmem %s0, 4
  %v2015 = vld [vmem:[%s2014] ss:$8 sm:$0xf0]
  %vm2016 = vcmask 1047556
  %v2017 = vsel %vm2016, %v2015, %v2013
  %2018 = vrot.lane.b32.xlu0 %v2017, 64
  %v2019 = vpop.permute.xlu0 %2018
  %vm2020 = vcmask 654848
  %2021 = vst.msk [vmem:[%s1] sm:$0xff] %vm2020, %v2019
  %s2022 = scalar_lea.vmem %s0, 260
  %v2023 = vld [vmem:[%s2022] ss:$8 sm:$0xf]
  %s2024 = scalar_lea.vmem %s0, 260
  %v2025 = vld [vmem:[%s2024] ss:$8 sm:$0xf0]
  %vm2026 = vcmask 1047556
  %v2027 = vsel %vm2026, %v2025, %v2023
  %2028 = vrot.lane.b32.xlu0 %v2027, 64
  %v2029 = vpop.permute.xlu0 %2028
  %vm2030 = vcmask 654848
  %s2031 = scalar_lea.vmem %s1, 32
  %2032 = vst.msk [vmem:[%s2031] sm:$0xff] %vm2030, %v2029
  %s2033 = scalar_lea.vmem %s0, 516
  %v2034 = vld [vmem:[%s2033] ss:$8 sm:$0xf]
  %s2035 = scalar_lea.vmem %s0, 516
  %v2036 = vld [vmem:[%s2035] ss:$8 sm:$0xf0]
  %vm2037 = vcmask 1047556
  %v2038 = vsel %vm2037, %v2036, %v2034
  %2039 = vrot.lane.b32.xlu0 %v2038, 64
  %v2040 = vpop.permute.xlu0 %2039
  %vm2041 = vcmask 654848
  %s2042 = scalar_lea.vmem %s1, 64
  %2043 = vst.msk [vmem:[%s2042] sm:$0xff] %vm2041, %v2040
  %s2044 = scalar_lea.vmem %s0, 772
  %v2045 = vld [vmem:[%s2044] ss:$8 sm:$0xf]
  %s2046 = scalar_lea.vmem %s0, 772
  %v2047 = vld [vmem:[%s2046] ss:$8 sm:$0xf0]
  %vm2048 = vcmask 1047556
  %v2049 = vsel %vm2048, %v2047, %v2045
  %2050 = vrot.lane.b32.xlu0 %v2049, 64
  %v2051 = vpop.permute.xlu0 %2050
  %vm2052 = vcmask 654848
  %s2053 = scalar_lea.vmem %s1, 96
  %2054 = vst.msk [vmem:[%s2053] sm:$0xff] %vm2052, %v2051
  %s2055 = scalar_lea.vmem %s0, 1028
  %v2056 = vld [vmem:[%s2055] ss:$8 sm:$0xf]
  %s2057 = scalar_lea.vmem %s0, 1028
  %v2058 = vld [vmem:[%s2057] ss:$8 sm:$0xf0]
  %vm2059 = vcmask 1047556
  %v2060 = vsel %vm2059, %v2058, %v2056
  %2061 = vrot.lane.b32.xlu0 %v2060, 64
  %v2062 = vpop.permute.xlu0 %2061
  %vm2063 = vcmask 654848
  %s2064 = scalar_lea.vmem %s1, 128
  %2065 = vst.msk [vmem:[%s2064] sm:$0xff] %vm2063, %v2062
  %s2066 = scalar_lea.vmem %s0, 1284
  %v2067 = vld [vmem:[%s2066] ss:$8 sm:$0xf]
  %s2068 = scalar_lea.vmem %s0, 1284
  %v2069 = vld [vmem:[%s2068] ss:$8 sm:$0xf0]
  %vm2070 = vcmask 1047556
  %v2071 = vsel %vm2070, %v2069, %v2067
  %2072 = vrot.lane.b32.xlu0 %v2071, 64
  %v2073 = vpop.permute.xlu0 %2072
  %vm2074 = vcmask 654848
  %s2075 = scalar_lea.vmem %s1, 160
  %2076 = vst.msk [vmem:[%s2075] sm:$0xff] %vm2074, %v2073
  %s2077 = scalar_lea.vmem %s0, 1540
  %v2078 = vld [vmem:[%s2077] ss:$8 sm:$0xf]
  %s2079 = scalar_lea.vmem %s0, 1540
  %v2080 = vld [vmem:[%s2079] ss:$8 sm:$0xf0]
  %vm2081 = vcmask 1047556
  %v2082 = vsel %vm2081, %v2080, %v2078
  %2083 = vrot.lane.b32.xlu0 %v2082, 64
  %v2084 = vpop.permute.xlu0 %2083
  %vm2085 = vcmask 654848
  %s2086 = scalar_lea.vmem %s1, 192
  %2087 = vst.msk [vmem:[%s2086] sm:$0xff] %vm2085, %v2084
  %s2088 = scalar_lea.vmem %s0, 1796
  %v2089 = vld [vmem:[%s2088] ss:$8 sm:$0xf]
  %s2090 = scalar_lea.vmem %s0, 1796
  %v2091 = vld [vmem:[%s2090] ss:$8 sm:$0xf0]
  %vm2092 = vcmask 1047556
  %v2093 = vsel %vm2092, %v2091, %v2089
  %2094 = vrot.lane.b32.xlu0 %v2093, 64
  %v2095 = vpop.permute.xlu0 %2094
  %vm2096 = vcmask 654848
  %s2097 = scalar_lea.vmem %s1, 224
  %2098 = vst.msk [vmem:[%s2097] sm:$0xff] %vm2096, %v2095
  %s2099 = scalar_lea.vmem %s0, 2052
  %v2100 = vld [vmem:[%s2099] ss:$8 sm:$0xf]
  %s2101 = scalar_lea.vmem %s0, 2052
  %v2102 = vld [vmem:[%s2101] ss:$8 sm:$0xf0]
  %vm2103 = vcmask 1047556
  %v2104 = vsel %vm2103, %v2102, %v2100
  %2105 = vrot.lane.b32.xlu0 %v2104, 64
  %v2106 = vpop.permute.xlu0 %2105
  %vm2107 = vcmask 654848
  %s2108 = scalar_lea.vmem %s1, 256
  %2109 = vst.msk [vmem:[%s2108] sm:$0xff] %vm2107, %v2106
  %s2110 = scalar_lea.vmem %s0, 2308
  %v2111 = vld [vmem:[%s2110] ss:$8 sm:$0xf]
  %s2112 = scalar_lea.vmem %s0, 2308
  %v2113 = vld [vmem:[%s2112] ss:$8 sm:$0xf0]
  %vm2114 = vcmask 1047556
  %v2115 = vsel %vm2114, %v2113, %v2111
  %2116 = vrot.lane.b32.xlu0 %v2115, 64
  %v2117 = vpop.permute.xlu0 %2116
  %vm2118 = vcmask 654848
  %s2119 = scalar_lea.vmem %s1, 288
  %2120 = vst.msk [vmem:[%s2119] sm:$0xff] %vm2118, %v2117
  %s2121 = scalar_lea.vmem %s0, 2564
  %v2122 = vld [vmem:[%s2121] ss:$8 sm:$0xf]
  %s2123 = scalar_lea.vmem %s0, 2564
  %v2124 = vld [vmem:[%s2123] ss:$8 sm:$0xf0]
  %vm2125 = vcmask 1047556
  %v2126 = vsel %vm2125, %v2124, %v2122
  %2127 = vrot.lane.b32.xlu0 %v2126, 64
  %v2128 = vpop.permute.xlu0 %2127
  %vm2129 = vcmask 654848
  %s2130 = scalar_lea.vmem %s1, 320
  %2131 = vst.msk [vmem:[%s2130] sm:$0xff] %vm2129, %v2128
  %s2132 = scalar_lea.vmem %s0, 2820
  %v2133 = vld [vmem:[%s2132] ss:$8 sm:$0xf]
  %s2134 = scalar_lea.vmem %s0, 2820
  %v2135 = vld [vmem:[%s2134] ss:$8 sm:$0xf0]
  %vm2136 = vcmask 1047556
  %v2137 = vsel %vm2136, %v2135, %v2133
  %2138 = vrot.lane.b32.xlu0 %v2137, 64
  %v2139 = vpop.permute.xlu0 %2138
  %vm2140 = vcmask 654848
  %s2141 = scalar_lea.vmem %s1, 352
  %2142 = vst.msk [vmem:[%s2141] sm:$0xff] %vm2140, %v2139
  %s2143 = scalar_lea.vmem %s0, 68
  %v2144 = vld [vmem:[%s2143] ss:$8 sm:$0xf]
  %s2145 = scalar_lea.vmem %s0, 68
  %v2146 = vld [vmem:[%s2145] ss:$8 sm:$0xf0]
  %vm2147 = vcmask 1047556
  %v2148 = vsel %vm2147, %v2146, %v2144
  %2149 = vrot.lane.b32.xlu0 %v2148, 64
  %v2150 = vpop.permute.xlu0 %2149
  %vm2151 = vcmask 654848
  %s2152 = scalar_lea.vmem %s1, 8
  %2153 = vst.msk [vmem:[%s2152] sm:$0xff] %vm2151, %v2150
  %s2154 = scalar_lea.vmem %s0, 324
  %v2155 = vld [vmem:[%s2154] ss:$8 sm:$0xf]
  %s2156 = scalar_lea.vmem %s0, 324
  %v2157 = vld [vmem:[%s2156] ss:$8 sm:$0xf0]
  %vm2158 = vcmask 1047556
  %v2159 = vsel %vm2158, %v2157, %v2155
  %2160 = vrot.lane.b32.xlu0 %v2159, 64
  %v2161 = vpop.permute.xlu0 %2160
  %vm2162 = vcmask 654848
  %s2163 = scalar_lea.vmem %s1, 40
  %2164 = vst.msk [vmem:[%s2163] sm:$0xff] %vm2162, %v2161
  %s2165 = scalar_lea.vmem %s0, 580
  %v2166 = vld [vmem:[%s2165] ss:$8 sm:$0xf]
  %s2167 = scalar_lea.vmem %s0, 580
  %v2168 = vld [vmem:[%s2167] ss:$8 sm:$0xf0]
  %vm2169 = vcmask 1047556
  %v2170 = vsel %vm2169, %v2168, %v2166
  %2171 = vrot.lane.b32.xlu0 %v2170, 64
  %v2172 = vpop.permute.xlu0 %2171
  %vm2173 = vcmask 654848
  %s2174 = scalar_lea.vmem %s1, 72
  %2175 = vst.msk [vmem:[%s2174] sm:$0xff] %vm2173, %v2172
  %s2176 = scalar_lea.vmem %s0, 836
  %v2177 = vld [vmem:[%s2176] ss:$8 sm:$0xf]
  %s2178 = scalar_lea.vmem %s0, 836
  %v2179 = vld [vmem:[%s2178] ss:$8 sm:$0xf0]
  %vm2180 = vcmask 1047556
  %v2181 = vsel %vm2180, %v2179, %v2177
  %2182 = vrot.lane.b32.xlu0 %v2181, 64
  %v2183 = vpop.permute.xlu0 %2182
  %vm2184 = vcmask 654848
  %s2185 = scalar_lea.vmem %s1, 104
  %2186 = vst.msk [vmem:[%s2185] sm:$0xff] %vm2184, %v2183
  %s2187 = scalar_lea.vmem %s0, 1092
  %v2188 = vld [vmem:[%s2187] ss:$8 sm:$0xf]
  %s2189 = scalar_lea.vmem %s0, 1092
  %v2190 = vld [vmem:[%s2189] ss:$8 sm:$0xf0]
  %vm2191 = vcmask 1047556
  %v2192 = vsel %vm2191, %v2190, %v2188
  %2193 = vrot.lane.b32.xlu0 %v2192, 64
  %v2194 = vpop.permute.xlu0 %2193
  %vm2195 = vcmask 654848
  %s2196 = scalar_lea.vmem %s1, 136
  %2197 = vst.msk [vmem:[%s2196] sm:$0xff] %vm2195, %v2194
  %s2198 = scalar_lea.vmem %s0, 1348
  %v2199 = vld [vmem:[%s2198] ss:$8 sm:$0xf]
  %s2200 = scalar_lea.vmem %s0, 1348
  %v2201 = vld [vmem:[%s2200] ss:$8 sm:$0xf0]
  %vm2202 = vcmask 1047556
  %v2203 = vsel %vm2202, %v2201, %v2199
  %2204 = vrot.lane.b32.xlu0 %v2203, 64
  %v2205 = vpop.permute.xlu0 %2204
  %vm2206 = vcmask 654848
  %s2207 = scalar_lea.vmem %s1, 168
  %2208 = vst.msk [vmem:[%s2207] sm:$0xff] %vm2206, %v2205
  %s2209 = scalar_lea.vmem %s0, 1604
  %v2210 = vld [vmem:[%s2209] ss:$8 sm:$0xf]
  %s2211 = scalar_lea.vmem %s0, 1604
  %v2212 = vld [vmem:[%s2211] ss:$8 sm:$0xf0]
  %vm2213 = vcmask 1047556
  %v2214 = vsel %vm2213, %v2212, %v2210
  %2215 = vrot.lane.b32.xlu0 %v2214, 64
  %v2216 = vpop.permute.xlu0 %2215
  %vm2217 = vcmask 654848
  %s2218 = scalar_lea.vmem %s1, 200
  %2219 = vst.msk [vmem:[%s2218] sm:$0xff] %vm2217, %v2216
  %s2220 = scalar_lea.vmem %s0, 1860
  %v2221 = vld [vmem:[%s2220] ss:$8 sm:$0xf]
  %s2222 = scalar_lea.vmem %s0, 1860
  %v2223 = vld [vmem:[%s2222] ss:$8 sm:$0xf0]
  %vm2224 = vcmask 1047556
  %v2225 = vsel %vm2224, %v2223, %v2221
  %2226 = vrot.lane.b32.xlu0 %v2225, 64
  %v2227 = vpop.permute.xlu0 %2226
  %vm2228 = vcmask 654848
  %s2229 = scalar_lea.vmem %s1, 232
  %2230 = vst.msk [vmem:[%s2229] sm:$0xff] %vm2228, %v2227
  %s2231 = scalar_lea.vmem %s0, 2116
  %v2232 = vld [vmem:[%s2231] ss:$8 sm:$0xf]
  %s2233 = scalar_lea.vmem %s0, 2116
  %v2234 = vld [vmem:[%s2233] ss:$8 sm:$0xf0]
  %vm2235 = vcmask 1047556
  %v2236 = vsel %vm2235, %v2234, %v2232
  %2237 = vrot.lane.b32.xlu0 %v2236, 64
  %v2238 = vpop.permute.xlu0 %2237
  %vm2239 = vcmask 654848
  %s2240 = scalar_lea.vmem %s1, 264
  %2241 = vst.msk [vmem:[%s2240] sm:$0xff] %vm2239, %v2238
  %s2242 = scalar_lea.vmem %s0, 2372
  %v2243 = vld [vmem:[%s2242] ss:$8 sm:$0xf]
  %s2244 = scalar_lea.vmem %s0, 2372
  %v2245 = vld [vmem:[%s2244] ss:$8 sm:$0xf0]
  %vm2246 = vcmask 1047556
  %v2247 = vsel %vm2246, %v2245, %v2243
  %2248 = vrot.lane.b32.xlu0 %v2247, 64
  %v2249 = vpop.permute.xlu0 %2248
  %vm2250 = vcmask 654848
  %s2251 = scalar_lea.vmem %s1, 296
  %2252 = vst.msk [vmem:[%s2251] sm:$0xff] %vm2250, %v2249
  %s2253 = scalar_lea.vmem %s0, 2628
  %v2254 = vld [vmem:[%s2253] ss:$8 sm:$0xf]
  %s2255 = scalar_lea.vmem %s0, 2628
  %v2256 = vld [vmem:[%s2255] ss:$8 sm:$0xf0]
  %vm2257 = vcmask 1047556
  %v2258 = vsel %vm2257, %v2256, %v2254
  %2259 = vrot.lane.b32.xlu0 %v2258, 64
  %v2260 = vpop.permute.xlu0 %2259
  %vm2261 = vcmask 654848
  %s2262 = scalar_lea.vmem %s1, 328
  %2263 = vst.msk [vmem:[%s2262] sm:$0xff] %vm2261, %v2260
  %s2264 = scalar_lea.vmem %s0, 2884
  %v2265 = vld [vmem:[%s2264] ss:$8 sm:$0xf]
  %s2266 = scalar_lea.vmem %s0, 2884
  %v2267 = vld [vmem:[%s2266] ss:$8 sm:$0xf0]
  %vm2268 = vcmask 1047556
  %v2269 = vsel %vm2268, %v2267, %v2265
  %2270 = vrot.lane.b32.xlu0 %v2269, 64
  %v2271 = vpop.permute.xlu0 %2270
  %vm2272 = vcmask 654848
  %s2273 = scalar_lea.vmem %s1, 360
  %2274 = vst.msk [vmem:[%s2273] sm:$0xff] %vm2272, %v2271
  %s2275 = scalar_lea.vmem %s0, 132
  %v2276 = vld [vmem:[%s2275] ss:$8 sm:$0xf]
  %s2277 = scalar_lea.vmem %s0, 132
  %v2278 = vld [vmem:[%s2277] ss:$8 sm:$0xf0]
  %vm2279 = vcmask 1047556
  %v2280 = vsel %vm2279, %v2278, %v2276
  %2281 = vrot.lane.b32.xlu0 %v2280, 64
  %v2282 = vpop.permute.xlu0 %2281
  %vm2283 = vcmask 654848
  %s2284 = scalar_lea.vmem %s1, 16
  %2285 = vst.msk [vmem:[%s2284] sm:$0xff] %vm2283, %v2282
  %s2286 = scalar_lea.vmem %s0, 388
  %v2287 = vld [vmem:[%s2286] ss:$8 sm:$0xf]
  %s2288 = scalar_lea.vmem %s0, 388
  %v2289 = vld [vmem:[%s2288] ss:$8 sm:$0xf0]
  %vm2290 = vcmask 1047556
  %v2291 = vsel %vm2290, %v2289, %v2287
  %2292 = vrot.lane.b32.xlu0 %v2291, 64
  %v2293 = vpop.permute.xlu0 %2292
  %vm2294 = vcmask 654848
  %s2295 = scalar_lea.vmem %s1, 48
  %2296 = vst.msk [vmem:[%s2295] sm:$0xff] %vm2294, %v2293
  %s2297 = scalar_lea.vmem %s0, 644
  %v2298 = vld [vmem:[%s2297] ss:$8 sm:$0xf]
  %s2299 = scalar_lea.vmem %s0, 644
  %v2300 = vld [vmem:[%s2299] ss:$8 sm:$0xf0]
  %vm2301 = vcmask 1047556
  %v2302 = vsel %vm2301, %v2300, %v2298
  %2303 = vrot.lane.b32.xlu0 %v2302, 64
  %v2304 = vpop.permute.xlu0 %2303
  %vm2305 = vcmask 654848
  %s2306 = scalar_lea.vmem %s1, 80
  %2307 = vst.msk [vmem:[%s2306] sm:$0xff] %vm2305, %v2304
  %s2308 = scalar_lea.vmem %s0, 900
  %v2309 = vld [vmem:[%s2308] ss:$8 sm:$0xf]
  %s2310 = scalar_lea.vmem %s0, 900
  %v2311 = vld [vmem:[%s2310] ss:$8 sm:$0xf0]
  %vm2312 = vcmask 1047556
  %v2313 = vsel %vm2312, %v2311, %v2309
  %2314 = vrot.lane.b32.xlu0 %v2313, 64
  %v2315 = vpop.permute.xlu0 %2314
  %vm2316 = vcmask 654848
  %s2317 = scalar_lea.vmem %s1, 112
  %2318 = vst.msk [vmem:[%s2317] sm:$0xff] %vm2316, %v2315
  %s2319 = scalar_lea.vmem %s0, 1156
  %v2320 = vld [vmem:[%s2319] ss:$8 sm:$0xf]
  %s2321 = scalar_lea.vmem %s0, 1156
  %v2322 = vld [vmem:[%s2321] ss:$8 sm:$0xf0]
  %vm2323 = vcmask 1047556
  %v2324 = vsel %vm2323, %v2322, %v2320
  %2325 = vrot.lane.b32.xlu0 %v2324, 64
  %v2326 = vpop.permute.xlu0 %2325
  %vm2327 = vcmask 654848
  %s2328 = scalar_lea.vmem %s1, 144
  %2329 = vst.msk [vmem:[%s2328] sm:$0xff] %vm2327, %v2326
  %s2330 = scalar_lea.vmem %s0, 1412
  %v2331 = vld [vmem:[%s2330] ss:$8 sm:$0xf]
  %s2332 = scalar_lea.vmem %s0, 1412
  %v2333 = vld [vmem:[%s2332] ss:$8 sm:$0xf0]
  %vm2334 = vcmask 1047556
  %v2335 = vsel %vm2334, %v2333, %v2331
  %2336 = vrot.lane.b32.xlu0 %v2335, 64
  %v2337 = vpop.permute.xlu0 %2336
  %vm2338 = vcmask 654848
  %s2339 = scalar_lea.vmem %s1, 176
  %2340 = vst.msk [vmem:[%s2339] sm:$0xff] %vm2338, %v2337
  %s2341 = scalar_lea.vmem %s0, 1668
  %v2342 = vld [vmem:[%s2341] ss:$8 sm:$0xf]
  %s2343 = scalar_lea.vmem %s0, 1668
  %v2344 = vld [vmem:[%s2343] ss:$8 sm:$0xf0]
  %vm2345 = vcmask 1047556
  %v2346 = vsel %vm2345, %v2344, %v2342
  %2347 = vrot.lane.b32.xlu0 %v2346, 64
  %v2348 = vpop.permute.xlu0 %2347
  %vm2349 = vcmask 654848
  %s2350 = scalar_lea.vmem %s1, 208
  %2351 = vst.msk [vmem:[%s2350] sm:$0xff] %vm2349, %v2348
  %s2352 = scalar_lea.vmem %s0, 1924
  %v2353 = vld [vmem:[%s2352] ss:$8 sm:$0xf]
  %s2354 = scalar_lea.vmem %s0, 1924
  %v2355 = vld [vmem:[%s2354] ss:$8 sm:$0xf0]
  %vm2356 = vcmask 1047556
  %v2357 = vsel %vm2356, %v2355, %v2353
  %2358 = vrot.lane.b32.xlu0 %v2357, 64
  %v2359 = vpop.permute.xlu0 %2358
  %vm2360 = vcmask 654848
  %s2361 = scalar_lea.vmem %s1, 240
  %2362 = vst.msk [vmem:[%s2361] sm:$0xff] %vm2360, %v2359
  %s2363 = scalar_lea.vmem %s0, 2180
  %v2364 = vld [vmem:[%s2363] ss:$8 sm:$0xf]
  %s2365 = scalar_lea.vmem %s0, 2180
  %v2366 = vld [vmem:[%s2365] ss:$8 sm:$0xf0]
  %vm2367 = vcmask 1047556
  %v2368 = vsel %vm2367, %v2366, %v2364
  %2369 = vrot.lane.b32.xlu0 %v2368, 64
  %v2370 = vpop.permute.xlu0 %2369
  %vm2371 = vcmask 654848
  %s2372 = scalar_lea.vmem %s1, 272
  %2373 = vst.msk [vmem:[%s2372] sm:$0xff] %vm2371, %v2370
  %s2374 = scalar_lea.vmem %s0, 2436
  %v2375 = vld [vmem:[%s2374] ss:$8 sm:$0xf]
  %s2376 = scalar_lea.vmem %s0, 2436
  %v2377 = vld [vmem:[%s2376] ss:$8 sm:$0xf0]
  %vm2378 = vcmask 1047556
  %v2379 = vsel %vm2378, %v2377, %v2375
  %2380 = vrot.lane.b32.xlu0 %v2379, 64
  %v2381 = vpop.permute.xlu0 %2380
  %vm2382 = vcmask 654848
  %s2383 = scalar_lea.vmem %s1, 304
  %2384 = vst.msk [vmem:[%s2383] sm:$0xff] %vm2382, %v2381
  %s2385 = scalar_lea.vmem %s0, 2692
  %v2386 = vld [vmem:[%s2385] ss:$8 sm:$0xf]
  %s2387 = scalar_lea.vmem %s0, 2692
  %v2388 = vld [vmem:[%s2387] ss:$8 sm:$0xf0]
  %vm2389 = vcmask 1047556
  %v2390 = vsel %vm2389, %v2388, %v2386
  %2391 = vrot.lane.b32.xlu0 %v2390, 64
  %v2392 = vpop.permute.xlu0 %2391
  %vm2393 = vcmask 654848
  %s2394 = scalar_lea.vmem %s1, 336
  %2395 = vst.msk [vmem:[%s2394] sm:$0xff] %vm2393, %v2392
  %s2396 = scalar_lea.vmem %s0, 2948
  %v2397 = vld [vmem:[%s2396] ss:$8 sm:$0xf]
  %s2398 = scalar_lea.vmem %s0, 2948
  %v2399 = vld [vmem:[%s2398] ss:$8 sm:$0xf0]
  %vm2400 = vcmask 1047556
  %v2401 = vsel %vm2400, %v2399, %v2397
  %2402 = vrot.lane.b32.xlu0 %v2401, 64
  %v2403 = vpop.permute.xlu0 %2402
  %vm2404 = vcmask 654848
  %s2405 = scalar_lea.vmem %s1, 368
  %2406 = vst.msk [vmem:[%s2405] sm:$0xff] %vm2404, %v2403
  %s2407 = scalar_lea.vmem %s0, 196
  %v2408 = vld [vmem:[%s2407] ss:$8 sm:$0xf]
  %s2409 = scalar_lea.vmem %s0, 196
  %v2410 = vld [vmem:[%s2409] ss:$8 sm:$0xf0]
  %vm2411 = vcmask 1047556
  %v2412 = vsel %vm2411, %v2410, %v2408
  %2413 = vrot.lane.b32.xlu0 %v2412, 64
  %v2414 = vpop.permute.xlu0 %2413
  %vm2415 = vcmask 654848
  %s2416 = scalar_lea.vmem %s1, 24
  %2417 = vst.msk [vmem:[%s2416] sm:$0xff] %vm2415, %v2414
  %s2418 = scalar_lea.vmem %s0, 452
  %v2419 = vld [vmem:[%s2418] ss:$8 sm:$0xf]
  %s2420 = scalar_lea.vmem %s0, 452
  %v2421 = vld [vmem:[%s2420] ss:$8 sm:$0xf0]
  %vm2422 = vcmask 1047556
  %v2423 = vsel %vm2422, %v2421, %v2419
  %2424 = vrot.lane.b32.xlu0 %v2423, 64
  %v2425 = vpop.permute.xlu0 %2424
  %vm2426 = vcmask 654848
  %s2427 = scalar_lea.vmem %s1, 56
  %2428 = vst.msk [vmem:[%s2427] sm:$0xff] %vm2426, %v2425
  %s2429 = scalar_lea.vmem %s0, 708
  %v2430 = vld [vmem:[%s2429] ss:$8 sm:$0xf]
  %s2431 = scalar_lea.vmem %s0, 708
  %v2432 = vld [vmem:[%s2431] ss:$8 sm:$0xf0]
  %vm2433 = vcmask 1047556
  %v2434 = vsel %vm2433, %v2432, %v2430
  %2435 = vrot.lane.b32.xlu0 %v2434, 64
  %v2436 = vpop.permute.xlu0 %2435
  %vm2437 = vcmask 654848
  %s2438 = scalar_lea.vmem %s1, 88
  %2439 = vst.msk [vmem:[%s2438] sm:$0xff] %vm2437, %v2436
  %s2440 = scalar_lea.vmem %s0, 964
  %v2441 = vld [vmem:[%s2440] ss:$8 sm:$0xf]
  %s2442 = scalar_lea.vmem %s0, 964
  %v2443 = vld [vmem:[%s2442] ss:$8 sm:$0xf0]
  %vm2444 = vcmask 1047556
  %v2445 = vsel %vm2444, %v2443, %v2441
  %2446 = vrot.lane.b32.xlu0 %v2445, 64
  %v2447 = vpop.permute.xlu0 %2446
  %vm2448 = vcmask 654848
  %s2449 = scalar_lea.vmem %s1, 120
  %2450 = vst.msk [vmem:[%s2449] sm:$0xff] %vm2448, %v2447
  %s2451 = scalar_lea.vmem %s0, 1220
  %v2452 = vld [vmem:[%s2451] ss:$8 sm:$0xf]
  %s2453 = scalar_lea.vmem %s0, 1220
  %v2454 = vld [vmem:[%s2453] ss:$8 sm:$0xf0]
  %vm2455 = vcmask 1047556
  %v2456 = vsel %vm2455, %v2454, %v2452
  %2457 = vrot.lane.b32.xlu0 %v2456, 64
  %v2458 = vpop.permute.xlu0 %2457
  %vm2459 = vcmask 654848
  %s2460 = scalar_lea.vmem %s1, 152
  %2461 = vst.msk [vmem:[%s2460] sm:$0xff] %vm2459, %v2458
  %s2462 = scalar_lea.vmem %s0, 1476
  %v2463 = vld [vmem:[%s2462] ss:$8 sm:$0xf]
  %s2464 = scalar_lea.vmem %s0, 1476
  %v2465 = vld [vmem:[%s2464] ss:$8 sm:$0xf0]
  %vm2466 = vcmask 1047556
  %v2467 = vsel %vm2466, %v2465, %v2463
  %2468 = vrot.lane.b32.xlu0 %v2467, 64
  %v2469 = vpop.permute.xlu0 %2468
  %vm2470 = vcmask 654848
  %s2471 = scalar_lea.vmem %s1, 184
  %2472 = vst.msk [vmem:[%s2471] sm:$0xff] %vm2470, %v2469
  %s2473 = scalar_lea.vmem %s0, 1732
  %v2474 = vld [vmem:[%s2473] ss:$8 sm:$0xf]
  %s2475 = scalar_lea.vmem %s0, 1732
  %v2476 = vld [vmem:[%s2475] ss:$8 sm:$0xf0]
  %vm2477 = vcmask 1047556
  %v2478 = vsel %vm2477, %v2476, %v2474
  %2479 = vrot.lane.b32.xlu0 %v2478, 64
  %v2480 = vpop.permute.xlu0 %2479
  %vm2481 = vcmask 654848
  %s2482 = scalar_lea.vmem %s1, 216
  %2483 = vst.msk [vmem:[%s2482] sm:$0xff] %vm2481, %v2480
  %s2484 = scalar_lea.vmem %s0, 1988
  %v2485 = vld [vmem:[%s2484] ss:$8 sm:$0xf]
  %s2486 = scalar_lea.vmem %s0, 1988
  %v2487 = vld [vmem:[%s2486] ss:$8 sm:$0xf0]
  %vm2488 = vcmask 1047556
  %v2489 = vsel %vm2488, %v2487, %v2485
  %2490 = vrot.lane.b32.xlu0 %v2489, 64
  %v2491 = vpop.permute.xlu0 %2490
  %vm2492 = vcmask 654848
  %s2493 = scalar_lea.vmem %s1, 248
  %2494 = vst.msk [vmem:[%s2493] sm:$0xff] %vm2492, %v2491
  %s2495 = scalar_lea.vmem %s0, 2244
  %v2496 = vld [vmem:[%s2495] ss:$8 sm:$0xf]
  %s2497 = scalar_lea.vmem %s0, 2244
  %v2498 = vld [vmem:[%s2497] ss:$8 sm:$0xf0]
  %vm2499 = vcmask 1047556
  %v2500 = vsel %vm2499, %v2498, %v2496
  %2501 = vrot.lane.b32.xlu0 %v2500, 64
  %v2502 = vpop.permute.xlu0 %2501
  %vm2503 = vcmask 654848
  %s2504 = scalar_lea.vmem %s1, 280
  %2505 = vst.msk [vmem:[%s2504] sm:$0xff] %vm2503, %v2502
  %s2506 = scalar_lea.vmem %s0, 2500
  %v2507 = vld [vmem:[%s2506] ss:$8 sm:$0xf]
  %s2508 = scalar_lea.vmem %s0, 2500
  %v2509 = vld [vmem:[%s2508] ss:$8 sm:$0xf0]
  %vm2510 = vcmask 1047556
  %v2511 = vsel %vm2510, %v2509, %v2507
  %2512 = vrot.lane.b32.xlu0 %v2511, 64
  %v2513 = vpop.permute.xlu0 %2512
  %vm2514 = vcmask 654848
  %s2515 = scalar_lea.vmem %s1, 312
  %2516 = vst.msk [vmem:[%s2515] sm:$0xff] %vm2514, %v2513
  %s2517 = scalar_lea.vmem %s0, 2756
  %v2518 = vld [vmem:[%s2517] ss:$8 sm:$0xf]
  %s2519 = scalar_lea.vmem %s0, 2756
  %v2520 = vld [vmem:[%s2519] ss:$8 sm:$0xf0]
  %vm2521 = vcmask 1047556
  %v2522 = vsel %vm2521, %v2520, %v2518
  %2523 = vrot.lane.b32.xlu0 %v2522, 64
  %v2524 = vpop.permute.xlu0 %2523
  %vm2525 = vcmask 654848
  %s2526 = scalar_lea.vmem %s1, 344
  %2527 = vst.msk [vmem:[%s2526] sm:$0xff] %vm2525, %v2524
  %s2528 = scalar_lea.vmem %s0, 3012
  %v2529 = vld [vmem:[%s2528] ss:$8 sm:$0xf]
  %s2530 = scalar_lea.vmem %s0, 3012
  %v2531 = vld [vmem:[%s2530] ss:$8 sm:$0xf0]
  %vm2532 = vcmask 1047556
  %v2533 = vsel %vm2532, %v2531, %v2529
  %2534 = vrot.lane.b32.xlu0 %v2533, 64
  %v2535 = vpop.permute.xlu0 %2534
  %vm2536 = vcmask 654848
  %s2537 = scalar_lea.vmem %s1, 376
  %2538 = vst.msk [vmem:[%s2537] sm:$0xff] %vm2536, %v2535
  %s2539 = scalar_lea.vmem %s0, 3
  %v2540 = vld [vmem:[%s2539] ss:$8 sm:$0xf]
  %s2541 = scalar_lea.vmem %s0, 3
  %v2542 = vld [vmem:[%s2541] ss:$8 sm:$0xf0]
  %vm2543 = vcmask 1047556
  %v2544 = vsel %vm2543, %v2542, %v2540
  %2545 = vrot.lane.b32.xlu0 %v2544, 48
  %v2546 = vpop.permute.xlu0 %2545
  %vm2547 = vcmask 523648
  %2548 = vst.msk [vmem:[%s1] sm:$0xff] %vm2547, %v2546
  %s2549 = scalar_lea.vmem %s0, 259
  %v2550 = vld [vmem:[%s2549] ss:$8 sm:$0xf]
  %s2551 = scalar_lea.vmem %s0, 259
  %v2552 = vld [vmem:[%s2551] ss:$8 sm:$0xf0]
  %vm2553 = vcmask 1047556
  %v2554 = vsel %vm2553, %v2552, %v2550
  %2555 = vrot.lane.b32.xlu0 %v2554, 48
  %v2556 = vpop.permute.xlu0 %2555
  %vm2557 = vcmask 523648
  %s2558 = scalar_lea.vmem %s1, 32
  %2559 = vst.msk [vmem:[%s2558] sm:$0xff] %vm2557, %v2556
  %s2560 = scalar_lea.vmem %s0, 515
  %v2561 = vld [vmem:[%s2560] ss:$8 sm:$0xf]
  %s2562 = scalar_lea.vmem %s0, 515
  %v2563 = vld [vmem:[%s2562] ss:$8 sm:$0xf0]
  %vm2564 = vcmask 1047556
  %v2565 = vsel %vm2564, %v2563, %v2561
  %2566 = vrot.lane.b32.xlu0 %v2565, 48
  %v2567 = vpop.permute.xlu0 %2566
  %vm2568 = vcmask 523648
  %s2569 = scalar_lea.vmem %s1, 64
  %2570 = vst.msk [vmem:[%s2569] sm:$0xff] %vm2568, %v2567
  %s2571 = scalar_lea.vmem %s0, 771
  %v2572 = vld [vmem:[%s2571] ss:$8 sm:$0xf]
  %s2573 = scalar_lea.vmem %s0, 771
  %v2574 = vld [vmem:[%s2573] ss:$8 sm:$0xf0]
  %vm2575 = vcmask 1047556
  %v2576 = vsel %vm2575, %v2574, %v2572
  %2577 = vrot.lane.b32.xlu0 %v2576, 48
  %v2578 = vpop.permute.xlu0 %2577
  %vm2579 = vcmask 523648
  %s2580 = scalar_lea.vmem %s1, 96
  %2581 = vst.msk [vmem:[%s2580] sm:$0xff] %vm2579, %v2578
  %s2582 = scalar_lea.vmem %s0, 1027
  %v2583 = vld [vmem:[%s2582] ss:$8 sm:$0xf]
  %s2584 = scalar_lea.vmem %s0, 1027
  %v2585 = vld [vmem:[%s2584] ss:$8 sm:$0xf0]
  %vm2586 = vcmask 1047556
  %v2587 = vsel %vm2586, %v2585, %v2583
  %2588 = vrot.lane.b32.xlu0 %v2587, 48
  %v2589 = vpop.permute.xlu0 %2588
  %vm2590 = vcmask 523648
  %s2591 = scalar_lea.vmem %s1, 128
  %2592 = vst.msk [vmem:[%s2591] sm:$0xff] %vm2590, %v2589
  %s2593 = scalar_lea.vmem %s0, 1283
  %v2594 = vld [vmem:[%s2593] ss:$8 sm:$0xf]
  %s2595 = scalar_lea.vmem %s0, 1283
  %v2596 = vld [vmem:[%s2595] ss:$8 sm:$0xf0]
  %vm2597 = vcmask 1047556
  %v2598 = vsel %vm2597, %v2596, %v2594
  %2599 = vrot.lane.b32.xlu0 %v2598, 48
  %v2600 = vpop.permute.xlu0 %2599
  %vm2601 = vcmask 523648
  %s2602 = scalar_lea.vmem %s1, 160
  %2603 = vst.msk [vmem:[%s2602] sm:$0xff] %vm2601, %v2600
  %s2604 = scalar_lea.vmem %s0, 1539
  %v2605 = vld [vmem:[%s2604] ss:$8 sm:$0xf]
  %s2606 = scalar_lea.vmem %s0, 1539
  %v2607 = vld [vmem:[%s2606] ss:$8 sm:$0xf0]
  %vm2608 = vcmask 1047556
  %v2609 = vsel %vm2608, %v2607, %v2605
  %2610 = vrot.lane.b32.xlu0 %v2609, 48
  %v2611 = vpop.permute.xlu0 %2610
  %vm2612 = vcmask 523648
  %s2613 = scalar_lea.vmem %s1, 192
  %2614 = vst.msk [vmem:[%s2613] sm:$0xff] %vm2612, %v2611
  %s2615 = scalar_lea.vmem %s0, 1795
  %v2616 = vld [vmem:[%s2615] ss:$8 sm:$0xf]
  %s2617 = scalar_lea.vmem %s0, 1795
  %v2618 = vld [vmem:[%s2617] ss:$8 sm:$0xf0]
  %vm2619 = vcmask 1047556
  %v2620 = vsel %vm2619, %v2618, %v2616
  %2621 = vrot.lane.b32.xlu0 %v2620, 48
  %v2622 = vpop.permute.xlu0 %2621
  %vm2623 = vcmask 523648
  %s2624 = scalar_lea.vmem %s1, 224
  %2625 = vst.msk [vmem:[%s2624] sm:$0xff] %vm2623, %v2622
  %s2626 = scalar_lea.vmem %s0, 2051
  %v2627 = vld [vmem:[%s2626] ss:$8 sm:$0xf]
  %s2628 = scalar_lea.vmem %s0, 2051
  %v2629 = vld [vmem:[%s2628] ss:$8 sm:$0xf0]
  %vm2630 = vcmask 1047556
  %v2631 = vsel %vm2630, %v2629, %v2627
  %2632 = vrot.lane.b32.xlu0 %v2631, 48
  %v2633 = vpop.permute.xlu0 %2632
  %vm2634 = vcmask 523648
  %s2635 = scalar_lea.vmem %s1, 256
  %2636 = vst.msk [vmem:[%s2635] sm:$0xff] %vm2634, %v2633
  %s2637 = scalar_lea.vmem %s0, 2307
  %v2638 = vld [vmem:[%s2637] ss:$8 sm:$0xf]
  %s2639 = scalar_lea.vmem %s0, 2307
  %v2640 = vld [vmem:[%s2639] ss:$8 sm:$0xf0]
  %vm2641 = vcmask 1047556
  %v2642 = vsel %vm2641, %v2640, %v2638
  %2643 = vrot.lane.b32.xlu0 %v2642, 48
  %v2644 = vpop.permute.xlu0 %2643
  %vm2645 = vcmask 523648
  %s2646 = scalar_lea.vmem %s1, 288
  %2647 = vst.msk [vmem:[%s2646] sm:$0xff] %vm2645, %v2644
  %s2648 = scalar_lea.vmem %s0, 2563
  %v2649 = vld [vmem:[%s2648] ss:$8 sm:$0xf]
  %s2650 = scalar_lea.vmem %s0, 2563
  %v2651 = vld [vmem:[%s2650] ss:$8 sm:$0xf0]
  %vm2652 = vcmask 1047556
  %v2653 = vsel %vm2652, %v2651, %v2649
  %2654 = vrot.lane.b32.xlu0 %v2653, 48
  %v2655 = vpop.permute.xlu0 %2654
  %vm2656 = vcmask 523648
  %s2657 = scalar_lea.vmem %s1, 320
  %2658 = vst.msk [vmem:[%s2657] sm:$0xff] %vm2656, %v2655
  %s2659 = scalar_lea.vmem %s0, 2819
  %v2660 = vld [vmem:[%s2659] ss:$8 sm:$0xf]
  %s2661 = scalar_lea.vmem %s0, 2819
  %v2662 = vld [vmem:[%s2661] ss:$8 sm:$0xf0]
  %vm2663 = vcmask 1047556
  %v2664 = vsel %vm2663, %v2662, %v2660
  %2665 = vrot.lane.b32.xlu0 %v2664, 48
  %v2666 = vpop.permute.xlu0 %2665
  %vm2667 = vcmask 523648
  %s2668 = scalar_lea.vmem %s1, 352
  %2669 = vst.msk [vmem:[%s2668] sm:$0xff] %vm2667, %v2666
  %s2670 = scalar_lea.vmem %s0, 67
  %v2671 = vld [vmem:[%s2670] ss:$8 sm:$0xf]
  %s2672 = scalar_lea.vmem %s0, 67
  %v2673 = vld [vmem:[%s2672] ss:$8 sm:$0xf0]
  %vm2674 = vcmask 1047556
  %v2675 = vsel %vm2674, %v2673, %v2671
  %2676 = vrot.lane.b32.xlu0 %v2675, 48
  %v2677 = vpop.permute.xlu0 %2676
  %vm2678 = vcmask 523648
  %s2679 = scalar_lea.vmem %s1, 8
  %2680 = vst.msk [vmem:[%s2679] sm:$0xff] %vm2678, %v2677
  %s2681 = scalar_lea.vmem %s0, 323
  %v2682 = vld [vmem:[%s2681] ss:$8 sm:$0xf]
  %s2683 = scalar_lea.vmem %s0, 323
  %v2684 = vld [vmem:[%s2683] ss:$8 sm:$0xf0]
  %vm2685 = vcmask 1047556
  %v2686 = vsel %vm2685, %v2684, %v2682
  %2687 = vrot.lane.b32.xlu0 %v2686, 48
  %v2688 = vpop.permute.xlu0 %2687
  %vm2689 = vcmask 523648
  %s2690 = scalar_lea.vmem %s1, 40
  %2691 = vst.msk [vmem:[%s2690] sm:$0xff] %vm2689, %v2688
  %s2692 = scalar_lea.vmem %s0, 579
  %v2693 = vld [vmem:[%s2692] ss:$8 sm:$0xf]
  %s2694 = scalar_lea.vmem %s0, 579
  %v2695 = vld [vmem:[%s2694] ss:$8 sm:$0xf0]
  %vm2696 = vcmask 1047556
  %v2697 = vsel %vm2696, %v2695, %v2693
  %2698 = vrot.lane.b32.xlu0 %v2697, 48
  %v2699 = vpop.permute.xlu0 %2698
  %vm2700 = vcmask 523648
  %s2701 = scalar_lea.vmem %s1, 72
  %2702 = vst.msk [vmem:[%s2701] sm:$0xff] %vm2700, %v2699
  %s2703 = scalar_lea.vmem %s0, 835
  %v2704 = vld [vmem:[%s2703] ss:$8 sm:$0xf]
  %s2705 = scalar_lea.vmem %s0, 835
  %v2706 = vld [vmem:[%s2705] ss:$8 sm:$0xf0]
  %vm2707 = vcmask 1047556
  %v2708 = vsel %vm2707, %v2706, %v2704
  %2709 = vrot.lane.b32.xlu0 %v2708, 48
  %v2710 = vpop.permute.xlu0 %2709
  %vm2711 = vcmask 523648
  %s2712 = scalar_lea.vmem %s1, 104
  %2713 = vst.msk [vmem:[%s2712] sm:$0xff] %vm2711, %v2710
  %s2714 = scalar_lea.vmem %s0, 1091
  %v2715 = vld [vmem:[%s2714] ss:$8 sm:$0xf]
  %s2716 = scalar_lea.vmem %s0, 1091
  %v2717 = vld [vmem:[%s2716] ss:$8 sm:$0xf0]
  %vm2718 = vcmask 1047556
  %v2719 = vsel %vm2718, %v2717, %v2715
  %2720 = vrot.lane.b32.xlu0 %v2719, 48
  %v2721 = vpop.permute.xlu0 %2720
  %vm2722 = vcmask 523648
  %s2723 = scalar_lea.vmem %s1, 136
  %2724 = vst.msk [vmem:[%s2723] sm:$0xff] %vm2722, %v2721
  %s2725 = scalar_lea.vmem %s0, 1347
  %v2726 = vld [vmem:[%s2725] ss:$8 sm:$0xf]
  %s2727 = scalar_lea.vmem %s0, 1347
  %v2728 = vld [vmem:[%s2727] ss:$8 sm:$0xf0]
  %vm2729 = vcmask 1047556
  %v2730 = vsel %vm2729, %v2728, %v2726
  %2731 = vrot.lane.b32.xlu0 %v2730, 48
  %v2732 = vpop.permute.xlu0 %2731
  %vm2733 = vcmask 523648
  %s2734 = scalar_lea.vmem %s1, 168
  %2735 = vst.msk [vmem:[%s2734] sm:$0xff] %vm2733, %v2732
  %s2736 = scalar_lea.vmem %s0, 1603
  %v2737 = vld [vmem:[%s2736] ss:$8 sm:$0xf]
  %s2738 = scalar_lea.vmem %s0, 1603
  %v2739 = vld [vmem:[%s2738] ss:$8 sm:$0xf0]
  %vm2740 = vcmask 1047556
  %v2741 = vsel %vm2740, %v2739, %v2737
  %2742 = vrot.lane.b32.xlu0 %v2741, 48
  %v2743 = vpop.permute.xlu0 %2742
  %vm2744 = vcmask 523648
  %s2745 = scalar_lea.vmem %s1, 200
  %2746 = vst.msk [vmem:[%s2745] sm:$0xff] %vm2744, %v2743
  %s2747 = scalar_lea.vmem %s0, 1859
  %v2748 = vld [vmem:[%s2747] ss:$8 sm:$0xf]
  %s2749 = scalar_lea.vmem %s0, 1859
  %v2750 = vld [vmem:[%s2749] ss:$8 sm:$0xf0]
  %vm2751 = vcmask 1047556
  %v2752 = vsel %vm2751, %v2750, %v2748
  %2753 = vrot.lane.b32.xlu0 %v2752, 48
  %v2754 = vpop.permute.xlu0 %2753
  %vm2755 = vcmask 523648
  %s2756 = scalar_lea.vmem %s1, 232
  %2757 = vst.msk [vmem:[%s2756] sm:$0xff] %vm2755, %v2754
  %s2758 = scalar_lea.vmem %s0, 2115
  %v2759 = vld [vmem:[%s2758] ss:$8 sm:$0xf]
  %s2760 = scalar_lea.vmem %s0, 2115
  %v2761 = vld [vmem:[%s2760] ss:$8 sm:$0xf0]
  %vm2762 = vcmask 1047556
  %v2763 = vsel %vm2762, %v2761, %v2759
  %2764 = vrot.lane.b32.xlu0 %v2763, 48
  %v2765 = vpop.permute.xlu0 %2764
  %vm2766 = vcmask 523648
  %s2767 = scalar_lea.vmem %s1, 264
  %2768 = vst.msk [vmem:[%s2767] sm:$0xff] %vm2766, %v2765
  %s2769 = scalar_lea.vmem %s0, 2371
  %v2770 = vld [vmem:[%s2769] ss:$8 sm:$0xf]
  %s2771 = scalar_lea.vmem %s0, 2371
  %v2772 = vld [vmem:[%s2771] ss:$8 sm:$0xf0]
  %vm2773 = vcmask 1047556
  %v2774 = vsel %vm2773, %v2772, %v2770
  %2775 = vrot.lane.b32.xlu0 %v2774, 48
  %v2776 = vpop.permute.xlu0 %2775
  %vm2777 = vcmask 523648
  %s2778 = scalar_lea.vmem %s1, 296
  %2779 = vst.msk [vmem:[%s2778] sm:$0xff] %vm2777, %v2776
  %s2780 = scalar_lea.vmem %s0, 2627
  %v2781 = vld [vmem:[%s2780] ss:$8 sm:$0xf]
  %s2782 = scalar_lea.vmem %s0, 2627
  %v2783 = vld [vmem:[%s2782] ss:$8 sm:$0xf0]
  %vm2784 = vcmask 1047556
  %v2785 = vsel %vm2784, %v2783, %v2781
  %2786 = vrot.lane.b32.xlu0 %v2785, 48
  %v2787 = vpop.permute.xlu0 %2786
  %vm2788 = vcmask 523648
  %s2789 = scalar_lea.vmem %s1, 328
  %2790 = vst.msk [vmem:[%s2789] sm:$0xff] %vm2788, %v2787
  %s2791 = scalar_lea.vmem %s0, 2883
  %v2792 = vld [vmem:[%s2791] ss:$8 sm:$0xf]
  %s2793 = scalar_lea.vmem %s0, 2883
  %v2794 = vld [vmem:[%s2793] ss:$8 sm:$0xf0]
  %vm2795 = vcmask 1047556
  %v2796 = vsel %vm2795, %v2794, %v2792
  %2797 = vrot.lane.b32.xlu0 %v2796, 48
  %v2798 = vpop.permute.xlu0 %2797
  %vm2799 = vcmask 523648
  %s2800 = scalar_lea.vmem %s1, 360
  %2801 = vst.msk [vmem:[%s2800] sm:$0xff] %vm2799, %v2798
  %s2802 = scalar_lea.vmem %s0, 131
  %v2803 = vld [vmem:[%s2802] ss:$8 sm:$0xf]
  %s2804 = scalar_lea.vmem %s0, 131
  %v2805 = vld [vmem:[%s2804] ss:$8 sm:$0xf0]
  %vm2806 = vcmask 1047556
  %v2807 = vsel %vm2806, %v2805, %v2803
  %2808 = vrot.lane.b32.xlu0 %v2807, 48
  %v2809 = vpop.permute.xlu0 %2808
  %vm2810 = vcmask 523648
  %s2811 = scalar_lea.vmem %s1, 16
  %2812 = vst.msk [vmem:[%s2811] sm:$0xff] %vm2810, %v2809
  %s2813 = scalar_lea.vmem %s0, 387
  %v2814 = vld [vmem:[%s2813] ss:$8 sm:$0xf]
  %s2815 = scalar_lea.vmem %s0, 387
  %v2816 = vld [vmem:[%s2815] ss:$8 sm:$0xf0]
  %vm2817 = vcmask 1047556
  %v2818 = vsel %vm2817, %v2816, %v2814
  %2819 = vrot.lane.b32.xlu0 %v2818, 48
  %v2820 = vpop.permute.xlu0 %2819
  %vm2821 = vcmask 523648
  %s2822 = scalar_lea.vmem %s1, 48
  %2823 = vst.msk [vmem:[%s2822] sm:$0xff] %vm2821, %v2820
  %s2824 = scalar_lea.vmem %s0, 643
  %v2825 = vld [vmem:[%s2824] ss:$8 sm:$0xf]
  %s2826 = scalar_lea.vmem %s0, 643
  %v2827 = vld [vmem:[%s2826] ss:$8 sm:$0xf0]
  %vm2828 = vcmask 1047556
  %v2829 = vsel %vm2828, %v2827, %v2825
  %2830 = vrot.lane.b32.xlu0 %v2829, 48
  %v2831 = vpop.permute.xlu0 %2830
  %vm2832 = vcmask 523648
  %s2833 = scalar_lea.vmem %s1, 80
  %2834 = vst.msk [vmem:[%s2833] sm:$0xff] %vm2832, %v2831
  %s2835 = scalar_lea.vmem %s0, 899
  %v2836 = vld [vmem:[%s2835] ss:$8 sm:$0xf]
  %s2837 = scalar_lea.vmem %s0, 899
  %v2838 = vld [vmem:[%s2837] ss:$8 sm:$0xf0]
  %vm2839 = vcmask 1047556
  %v2840 = vsel %vm2839, %v2838, %v2836
  %2841 = vrot.lane.b32.xlu0 %v2840, 48
  %v2842 = vpop.permute.xlu0 %2841
  %vm2843 = vcmask 523648
  %s2844 = scalar_lea.vmem %s1, 112
  %2845 = vst.msk [vmem:[%s2844] sm:$0xff] %vm2843, %v2842
  %s2846 = scalar_lea.vmem %s0, 1155
  %v2847 = vld [vmem:[%s2846] ss:$8 sm:$0xf]
  %s2848 = scalar_lea.vmem %s0, 1155
  %v2849 = vld [vmem:[%s2848] ss:$8 sm:$0xf0]
  %vm2850 = vcmask 1047556
  %v2851 = vsel %vm2850, %v2849, %v2847
  %2852 = vrot.lane.b32.xlu0 %v2851, 48
  %v2853 = vpop.permute.xlu0 %2852
  %vm2854 = vcmask 523648
  %s2855 = scalar_lea.vmem %s1, 144
  %2856 = vst.msk [vmem:[%s2855] sm:$0xff] %vm2854, %v2853
  %s2857 = scalar_lea.vmem %s0, 1411
  %v2858 = vld [vmem:[%s2857] ss:$8 sm:$0xf]
  %s2859 = scalar_lea.vmem %s0, 1411
  %v2860 = vld [vmem:[%s2859] ss:$8 sm:$0xf0]
  %vm2861 = vcmask 1047556
  %v2862 = vsel %vm2861, %v2860, %v2858
  %2863 = vrot.lane.b32.xlu0 %v2862, 48
  %v2864 = vpop.permute.xlu0 %2863
  %vm2865 = vcmask 523648
  %s2866 = scalar_lea.vmem %s1, 176
  %2867 = vst.msk [vmem:[%s2866] sm:$0xff] %vm2865, %v2864
  %s2868 = scalar_lea.vmem %s0, 1667
  %v2869 = vld [vmem:[%s2868] ss:$8 sm:$0xf]
  %s2870 = scalar_lea.vmem %s0, 1667
  %v2871 = vld [vmem:[%s2870] ss:$8 sm:$0xf0]
  %vm2872 = vcmask 1047556
  %v2873 = vsel %vm2872, %v2871, %v2869
  %2874 = vrot.lane.b32.xlu0 %v2873, 48
  %v2875 = vpop.permute.xlu0 %2874
  %vm2876 = vcmask 523648
  %s2877 = scalar_lea.vmem %s1, 208
  %2878 = vst.msk [vmem:[%s2877] sm:$0xff] %vm2876, %v2875
  %s2879 = scalar_lea.vmem %s0, 1923
  %v2880 = vld [vmem:[%s2879] ss:$8 sm:$0xf]
  %s2881 = scalar_lea.vmem %s0, 1923
  %v2882 = vld [vmem:[%s2881] ss:$8 sm:$0xf0]
  %vm2883 = vcmask 1047556
  %v2884 = vsel %vm2883, %v2882, %v2880
  %2885 = vrot.lane.b32.xlu0 %v2884, 48
  %v2886 = vpop.permute.xlu0 %2885
  %vm2887 = vcmask 523648
  %s2888 = scalar_lea.vmem %s1, 240
  %2889 = vst.msk [vmem:[%s2888] sm:$0xff] %vm2887, %v2886
  %s2890 = scalar_lea.vmem %s0, 2179
  %v2891 = vld [vmem:[%s2890] ss:$8 sm:$0xf]
  %s2892 = scalar_lea.vmem %s0, 2179
  %v2893 = vld [vmem:[%s2892] ss:$8 sm:$0xf0]
  %vm2894 = vcmask 1047556
  %v2895 = vsel %vm2894, %v2893, %v2891
  %2896 = vrot.lane.b32.xlu0 %v2895, 48
  %v2897 = vpop.permute.xlu0 %2896
  %vm2898 = vcmask 523648
  %s2899 = scalar_lea.vmem %s1, 272
  %2900 = vst.msk [vmem:[%s2899] sm:$0xff] %vm2898, %v2897
  %s2901 = scalar_lea.vmem %s0, 2435
  %v2902 = vld [vmem:[%s2901] ss:$8 sm:$0xf]
  %s2903 = scalar_lea.vmem %s0, 2435
  %v2904 = vld [vmem:[%s2903] ss:$8 sm:$0xf0]
  %vm2905 = vcmask 1047556
  %v2906 = vsel %vm2905, %v2904, %v2902
  %2907 = vrot.lane.b32.xlu0 %v2906, 48
  %v2908 = vpop.permute.xlu0 %2907
  %vm2909 = vcmask 523648
  %s2910 = scalar_lea.vmem %s1, 304
  %2911 = vst.msk [vmem:[%s2910] sm:$0xff] %vm2909, %v2908
  %s2912 = scalar_lea.vmem %s0, 2691
  %v2913 = vld [vmem:[%s2912] ss:$8 sm:$0xf]
  %s2914 = scalar_lea.vmem %s0, 2691
  %v2915 = vld [vmem:[%s2914] ss:$8 sm:$0xf0]
  %vm2916 = vcmask 1047556
  %v2917 = vsel %vm2916, %v2915, %v2913
  %2918 = vrot.lane.b32.xlu0 %v2917, 48
  %v2919 = vpop.permute.xlu0 %2918
  %vm2920 = vcmask 523648
  %s2921 = scalar_lea.vmem %s1, 336
  %2922 = vst.msk [vmem:[%s2921] sm:$0xff] %vm2920, %v2919
  %s2923 = scalar_lea.vmem %s0, 2947
  %v2924 = vld [vmem:[%s2923] ss:$8 sm:$0xf]
  %s2925 = scalar_lea.vmem %s0, 2947
  %v2926 = vld [vmem:[%s2925] ss:$8 sm:$0xf0]
  %vm2927 = vcmask 1047556
  %v2928 = vsel %vm2927, %v2926, %v2924
  %2929 = vrot.lane.b32.xlu0 %v2928, 48
  %v2930 = vpop.permute.xlu0 %2929
  %vm2931 = vcmask 523648
  %s2932 = scalar_lea.vmem %s1, 368
  %2933 = vst.msk [vmem:[%s2932] sm:$0xff] %vm2931, %v2930
  %s2934 = scalar_lea.vmem %s0, 195
  %v2935 = vld [vmem:[%s2934] ss:$8 sm:$0xf]
  %s2936 = scalar_lea.vmem %s0, 195
  %v2937 = vld [vmem:[%s2936] ss:$8 sm:$0xf0]
  %vm2938 = vcmask 1047556
  %v2939 = vsel %vm2938, %v2937, %v2935
  %2940 = vrot.lane.b32.xlu0 %v2939, 48
  %v2941 = vpop.permute.xlu0 %2940
  %vm2942 = vcmask 523648
  %s2943 = scalar_lea.vmem %s1, 24
  %2944 = vst.msk [vmem:[%s2943] sm:$0xff] %vm2942, %v2941
  %s2945 = scalar_lea.vmem %s0, 451
  %v2946 = vld [vmem:[%s2945] ss:$8 sm:$0xf]
  %s2947 = scalar_lea.vmem %s0, 451
  %v2948 = vld [vmem:[%s2947] ss:$8 sm:$0xf0]
  %vm2949 = vcmask 1047556
  %v2950 = vsel %vm2949, %v2948, %v2946
  %2951 = vrot.lane.b32.xlu0 %v2950, 48
  %v2952 = vpop.permute.xlu0 %2951
  %vm2953 = vcmask 523648
  %s2954 = scalar_lea.vmem %s1, 56
  %2955 = vst.msk [vmem:[%s2954] sm:$0xff] %vm2953, %v2952
  %s2956 = scalar_lea.vmem %s0, 707
  %v2957 = vld [vmem:[%s2956] ss:$8 sm:$0xf]
  %s2958 = scalar_lea.vmem %s0, 707
  %v2959 = vld [vmem:[%s2958] ss:$8 sm:$0xf0]
  %vm2960 = vcmask 1047556
  %v2961 = vsel %vm2960, %v2959, %v2957
  %2962 = vrot.lane.b32.xlu0 %v2961, 48
  %v2963 = vpop.permute.xlu0 %2962
  %vm2964 = vcmask 523648
  %s2965 = scalar_lea.vmem %s1, 88
  %2966 = vst.msk [vmem:[%s2965] sm:$0xff] %vm2964, %v2963
  %s2967 = scalar_lea.vmem %s0, 963
  %v2968 = vld [vmem:[%s2967] ss:$8 sm:$0xf]
  %s2969 = scalar_lea.vmem %s0, 963
  %v2970 = vld [vmem:[%s2969] ss:$8 sm:$0xf0]
  %vm2971 = vcmask 1047556
  %v2972 = vsel %vm2971, %v2970, %v2968
  %2973 = vrot.lane.b32.xlu0 %v2972, 48
  %v2974 = vpop.permute.xlu0 %2973
  %vm2975 = vcmask 523648
  %s2976 = scalar_lea.vmem %s1, 120
  %2977 = vst.msk [vmem:[%s2976] sm:$0xff] %vm2975, %v2974
  %s2978 = scalar_lea.vmem %s0, 1219
  %v2979 = vld [vmem:[%s2978] ss:$8 sm:$0xf]
  %s2980 = scalar_lea.vmem %s0, 1219
  %v2981 = vld [vmem:[%s2980] ss:$8 sm:$0xf0]
  %vm2982 = vcmask 1047556
  %v2983 = vsel %vm2982, %v2981, %v2979
  %2984 = vrot.lane.b32.xlu0 %v2983, 48
  %v2985 = vpop.permute.xlu0 %2984
  %vm2986 = vcmask 523648
  %s2987 = scalar_lea.vmem %s1, 152
  %2988 = vst.msk [vmem:[%s2987] sm:$0xff] %vm2986, %v2985
  %s2989 = scalar_lea.vmem %s0, 1475
  %v2990 = vld [vmem:[%s2989] ss:$8 sm:$0xf]
  %s2991 = scalar_lea.vmem %s0, 1475
  %v2992 = vld [vmem:[%s2991] ss:$8 sm:$0xf0]
  %vm2993 = vcmask 1047556
  %v2994 = vsel %vm2993, %v2992, %v2990
  %2995 = vrot.lane.b32.xlu0 %v2994, 48
  %v2996 = vpop.permute.xlu0 %2995
  %vm2997 = vcmask 523648
  %s2998 = scalar_lea.vmem %s1, 184
  %2999 = vst.msk [vmem:[%s2998] sm:$0xff] %vm2997, %v2996
  %s3000 = scalar_lea.vmem %s0, 1731
  %v3001 = vld [vmem:[%s3000] ss:$8 sm:$0xf]
  %s3002 = scalar_lea.vmem %s0, 1731
  %v3003 = vld [vmem:[%s3002] ss:$8 sm:$0xf0]
  %vm3004 = vcmask 1047556
  %v3005 = vsel %vm3004, %v3003, %v3001
  %3006 = vrot.lane.b32.xlu0 %v3005, 48
  %v3007 = vpop.permute.xlu0 %3006
  %vm3008 = vcmask 523648
  %s3009 = scalar_lea.vmem %s1, 216
  %3010 = vst.msk [vmem:[%s3009] sm:$0xff] %vm3008, %v3007
  %s3011 = scalar_lea.vmem %s0, 1987
  %v3012 = vld [vmem:[%s3011] ss:$8 sm:$0xf]
  %s3013 = scalar_lea.vmem %s0, 1987
  %v3014 = vld [vmem:[%s3013] ss:$8 sm:$0xf0]
  %vm3015 = vcmask 1047556
  %v3016 = vsel %vm3015, %v3014, %v3012
  %3017 = vrot.lane.b32.xlu0 %v3016, 48
  %v3018 = vpop.permute.xlu0 %3017
  %vm3019 = vcmask 523648
  %s3020 = scalar_lea.vmem %s1, 248
  %3021 = vst.msk [vmem:[%s3020] sm:$0xff] %vm3019, %v3018
  %s3022 = scalar_lea.vmem %s0, 2243
  %v3023 = vld [vmem:[%s3022] ss:$8 sm:$0xf]
  %s3024 = scalar_lea.vmem %s0, 2243
  %v3025 = vld [vmem:[%s3024] ss:$8 sm:$0xf0]
  %vm3026 = vcmask 1047556
  %v3027 = vsel %vm3026, %v3025, %v3023
  %3028 = vrot.lane.b32.xlu0 %v3027, 48
  %v3029 = vpop.permute.xlu0 %3028
  %vm3030 = vcmask 523648
  %s3031 = scalar_lea.vmem %s1, 280
  %3032 = vst.msk [vmem:[%s3031] sm:$0xff] %vm3030, %v3029
  %s3033 = scalar_lea.vmem %s0, 2499
  %v3034 = vld [vmem:[%s3033] ss:$8 sm:$0xf]
  %s3035 = scalar_lea.vmem %s0, 2499
  %v3036 = vld [vmem:[%s3035] ss:$8 sm:$0xf0]
  %vm3037 = vcmask 1047556
  %v3038 = vsel %vm3037, %v3036, %v3034
  %3039 = vrot.lane.b32.xlu0 %v3038, 48
  %v3040 = vpop.permute.xlu0 %3039
  %vm3041 = vcmask 523648
  %s3042 = scalar_lea.vmem %s1, 312
  %3043 = vst.msk [vmem:[%s3042] sm:$0xff] %vm3041, %v3040
  %s3044 = scalar_lea.vmem %s0, 2755
  %v3045 = vld [vmem:[%s3044] ss:$8 sm:$0xf]
  %s3046 = scalar_lea.vmem %s0, 2755
  %v3047 = vld [vmem:[%s3046] ss:$8 sm:$0xf0]
  %vm3048 = vcmask 1047556
  %v3049 = vsel %vm3048, %v3047, %v3045
  %3050 = vrot.lane.b32.xlu0 %v3049, 48
  %v3051 = vpop.permute.xlu0 %3050
  %vm3052 = vcmask 523648
  %s3053 = scalar_lea.vmem %s1, 344
  %3054 = vst.msk [vmem:[%s3053] sm:$0xff] %vm3052, %v3051
  %s3055 = scalar_lea.vmem %s0, 3011
  %v3056 = vld [vmem:[%s3055] ss:$8 sm:$0xf]
  %s3057 = scalar_lea.vmem %s0, 3011
  %v3058 = vld [vmem:[%s3057] ss:$8 sm:$0xf0]
  %vm3059 = vcmask 1047556
  %v3060 = vsel %vm3059, %v3058, %v3056
  %3061 = vrot.lane.b32.xlu0 %v3060, 48
  %v3062 = vpop.permute.xlu0 %3061
  %vm3063 = vcmask 523648
  %s3064 = scalar_lea.vmem %s1, 376
  %3065 = vst.msk [vmem:[%s3064] sm:$0xff] %vm3063, %v3062
  %s3066 = scalar_lea.vmem %s0, 2
  %v3067 = vld [vmem:[%s3066] ss:$8 sm:$0xf]
  %s3068 = scalar_lea.vmem %s0, 2
  %v3069 = vld [vmem:[%s3068] ss:$8 sm:$0xf0]
  %vm3070 = vcmask 1047556
  %v3071 = vsel %vm3070, %v3069, %v3067
  %3072 = vrot.lane.b32.xlu0 %v3071, 32
  %v3073 = vpop.permute.xlu0 %3072
  %vm3074 = vcmask 392448
  %3075 = vst.msk [vmem:[%s1] sm:$0xff] %vm3074, %v3073
  %s3076 = scalar_lea.vmem %s0, 258
  %v3077 = vld [vmem:[%s3076] ss:$8 sm:$0xf]
  %s3078 = scalar_lea.vmem %s0, 258
  %v3079 = vld [vmem:[%s3078] ss:$8 sm:$0xf0]
  %vm3080 = vcmask 1047556
  %v3081 = vsel %vm3080, %v3079, %v3077
  %3082 = vrot.lane.b32.xlu0 %v3081, 32
  %v3083 = vpop.permute.xlu0 %3082
  %vm3084 = vcmask 392448
  %s3085 = scalar_lea.vmem %s1, 32
  %3086 = vst.msk [vmem:[%s3085] sm:$0xff] %vm3084, %v3083
  %s3087 = scalar_lea.vmem %s0, 514
  %v3088 = vld [vmem:[%s3087] ss:$8 sm:$0xf]
  %s3089 = scalar_lea.vmem %s0, 514
  %v3090 = vld [vmem:[%s3089] ss:$8 sm:$0xf0]
  %vm3091 = vcmask 1047556
  %v3092 = vsel %vm3091, %v3090, %v3088
  %3093 = vrot.lane.b32.xlu0 %v3092, 32
  %v3094 = vpop.permute.xlu0 %3093
  %vm3095 = vcmask 392448
  %s3096 = scalar_lea.vmem %s1, 64
  %3097 = vst.msk [vmem:[%s3096] sm:$0xff] %vm3095, %v3094
  %s3098 = scalar_lea.vmem %s0, 770
  %v3099 = vld [vmem:[%s3098] ss:$8 sm:$0xf]
  %s3100 = scalar_lea.vmem %s0, 770
  %v3101 = vld [vmem:[%s3100] ss:$8 sm:$0xf0]
  %vm3102 = vcmask 1047556
  %v3103 = vsel %vm3102, %v3101, %v3099
  %3104 = vrot.lane.b32.xlu0 %v3103, 32
  %v3105 = vpop.permute.xlu0 %3104
  %vm3106 = vcmask 392448
  %s3107 = scalar_lea.vmem %s1, 96
  %3108 = vst.msk [vmem:[%s3107] sm:$0xff] %vm3106, %v3105
  %s3109 = scalar_lea.vmem %s0, 1026
  %v3110 = vld [vmem:[%s3109] ss:$8 sm:$0xf]
  %s3111 = scalar_lea.vmem %s0, 1026
  %v3112 = vld [vmem:[%s3111] ss:$8 sm:$0xf0]
  %vm3113 = vcmask 1047556
  %v3114 = vsel %vm3113, %v3112, %v3110
  %3115 = vrot.lane.b32.xlu0 %v3114, 32
  %v3116 = vpop.permute.xlu0 %3115
  %vm3117 = vcmask 392448
  %s3118 = scalar_lea.vmem %s1, 128
  %3119 = vst.msk [vmem:[%s3118] sm:$0xff] %vm3117, %v3116
  %s3120 = scalar_lea.vmem %s0, 1282
  %v3121 = vld [vmem:[%s3120] ss:$8 sm:$0xf]
  %s3122 = scalar_lea.vmem %s0, 1282
  %v3123 = vld [vmem:[%s3122] ss:$8 sm:$0xf0]
  %vm3124 = vcmask 1047556
  %v3125 = vsel %vm3124, %v3123, %v3121
  %3126 = vrot.lane.b32.xlu0 %v3125, 32
  %v3127 = vpop.permute.xlu0 %3126
  %vm3128 = vcmask 392448
  %s3129 = scalar_lea.vmem %s1, 160
  %3130 = vst.msk [vmem:[%s3129] sm:$0xff] %vm3128, %v3127
  %s3131 = scalar_lea.vmem %s0, 1538
  %v3132 = vld [vmem:[%s3131] ss:$8 sm:$0xf]
  %s3133 = scalar_lea.vmem %s0, 1538
  %v3134 = vld [vmem:[%s3133] ss:$8 sm:$0xf0]
  %vm3135 = vcmask 1047556
  %v3136 = vsel %vm3135, %v3134, %v3132
  %3137 = vrot.lane.b32.xlu0 %v3136, 32
  %v3138 = vpop.permute.xlu0 %3137
  %vm3139 = vcmask 392448
  %s3140 = scalar_lea.vmem %s1, 192
  %3141 = vst.msk [vmem:[%s3140] sm:$0xff] %vm3139, %v3138
  %s3142 = scalar_lea.vmem %s0, 1794
  %v3143 = vld [vmem:[%s3142] ss:$8 sm:$0xf]
  %s3144 = scalar_lea.vmem %s0, 1794
  %v3145 = vld [vmem:[%s3144] ss:$8 sm:$0xf0]
  %vm3146 = vcmask 1047556
  %v3147 = vsel %vm3146, %v3145, %v3143
  %3148 = vrot.lane.b32.xlu0 %v3147, 32
  %v3149 = vpop.permute.xlu0 %3148
  %vm3150 = vcmask 392448
  %s3151 = scalar_lea.vmem %s1, 224
  %3152 = vst.msk [vmem:[%s3151] sm:$0xff] %vm3150, %v3149
  %s3153 = scalar_lea.vmem %s0, 2050
  %v3154 = vld [vmem:[%s3153] ss:$8 sm:$0xf]
  %s3155 = scalar_lea.vmem %s0, 2050
  %v3156 = vld [vmem:[%s3155] ss:$8 sm:$0xf0]
  %vm3157 = vcmask 1047556
  %v3158 = vsel %vm3157, %v3156, %v3154
  %3159 = vrot.lane.b32.xlu0 %v3158, 32
  %v3160 = vpop.permute.xlu0 %3159
  %vm3161 = vcmask 392448
  %s3162 = scalar_lea.vmem %s1, 256
  %3163 = vst.msk [vmem:[%s3162] sm:$0xff] %vm3161, %v3160
  %s3164 = scalar_lea.vmem %s0, 2306
  %v3165 = vld [vmem:[%s3164] ss:$8 sm:$0xf]
  %s3166 = scalar_lea.vmem %s0, 2306
  %v3167 = vld [vmem:[%s3166] ss:$8 sm:$0xf0]
  %vm3168 = vcmask 1047556
  %v3169 = vsel %vm3168, %v3167, %v3165
  %3170 = vrot.lane.b32.xlu0 %v3169, 32
  %v3171 = vpop.permute.xlu0 %3170
  %vm3172 = vcmask 392448
  %s3173 = scalar_lea.vmem %s1, 288
  %3174 = vst.msk [vmem:[%s3173] sm:$0xff] %vm3172, %v3171
  %s3175 = scalar_lea.vmem %s0, 2562
  %v3176 = vld [vmem:[%s3175] ss:$8 sm:$0xf]
  %s3177 = scalar_lea.vmem %s0, 2562
  %v3178 = vld [vmem:[%s3177] ss:$8 sm:$0xf0]
  %vm3179 = vcmask 1047556
  %v3180 = vsel %vm3179, %v3178, %v3176
  %3181 = vrot.lane.b32.xlu0 %v3180, 32
  %v3182 = vpop.permute.xlu0 %3181
  %vm3183 = vcmask 392448
  %s3184 = scalar_lea.vmem %s1, 320
  %3185 = vst.msk [vmem:[%s3184] sm:$0xff] %vm3183, %v3182
  %s3186 = scalar_lea.vmem %s0, 2818
  %v3187 = vld [vmem:[%s3186] ss:$8 sm:$0xf]
  %s3188 = scalar_lea.vmem %s0, 2818
  %v3189 = vld [vmem:[%s3188] ss:$8 sm:$0xf0]
  %vm3190 = vcmask 1047556
  %v3191 = vsel %vm3190, %v3189, %v3187
  %3192 = vrot.lane.b32.xlu0 %v3191, 32
  %v3193 = vpop.permute.xlu0 %3192
  %vm3194 = vcmask 392448
  %s3195 = scalar_lea.vmem %s1, 352
  %3196 = vst.msk [vmem:[%s3195] sm:$0xff] %vm3194, %v3193
  %s3197 = scalar_lea.vmem %s0, 66
  %v3198 = vld [vmem:[%s3197] ss:$8 sm:$0xf]
  %s3199 = scalar_lea.vmem %s0, 66
  %v3200 = vld [vmem:[%s3199] ss:$8 sm:$0xf0]
  %vm3201 = vcmask 1047556
  %v3202 = vsel %vm3201, %v3200, %v3198
  %3203 = vrot.lane.b32.xlu0 %v3202, 32
  %v3204 = vpop.permute.xlu0 %3203
  %vm3205 = vcmask 392448
  %s3206 = scalar_lea.vmem %s1, 8
  %3207 = vst.msk [vmem:[%s3206] sm:$0xff] %vm3205, %v3204
  %s3208 = scalar_lea.vmem %s0, 322
  %v3209 = vld [vmem:[%s3208] ss:$8 sm:$0xf]
  %s3210 = scalar_lea.vmem %s0, 322
  %v3211 = vld [vmem:[%s3210] ss:$8 sm:$0xf0]
  %vm3212 = vcmask 1047556
  %v3213 = vsel %vm3212, %v3211, %v3209
  %3214 = vrot.lane.b32.xlu0 %v3213, 32
  %v3215 = vpop.permute.xlu0 %3214
  %vm3216 = vcmask 392448
  %s3217 = scalar_lea.vmem %s1, 40
  %3218 = vst.msk [vmem:[%s3217] sm:$0xff] %vm3216, %v3215
  %s3219 = scalar_lea.vmem %s0, 578
  %v3220 = vld [vmem:[%s3219] ss:$8 sm:$0xf]
  %s3221 = scalar_lea.vmem %s0, 578
  %v3222 = vld [vmem:[%s3221] ss:$8 sm:$0xf0]
  %vm3223 = vcmask 1047556
  %v3224 = vsel %vm3223, %v3222, %v3220
  %3225 = vrot.lane.b32.xlu0 %v3224, 32
  %v3226 = vpop.permute.xlu0 %3225
  %vm3227 = vcmask 392448
  %s3228 = scalar_lea.vmem %s1, 72
  %3229 = vst.msk [vmem:[%s3228] sm:$0xff] %vm3227, %v3226
  %s3230 = scalar_lea.vmem %s0, 834
  %v3231 = vld [vmem:[%s3230] ss:$8 sm:$0xf]
  %s3232 = scalar_lea.vmem %s0, 834
  %v3233 = vld [vmem:[%s3232] ss:$8 sm:$0xf0]
  %vm3234 = vcmask 1047556
  %v3235 = vsel %vm3234, %v3233, %v3231
  %3236 = vrot.lane.b32.xlu0 %v3235, 32
  %v3237 = vpop.permute.xlu0 %3236
  %vm3238 = vcmask 392448
  %s3239 = scalar_lea.vmem %s1, 104
  %3240 = vst.msk [vmem:[%s3239] sm:$0xff] %vm3238, %v3237
  %s3241 = scalar_lea.vmem %s0, 1090
  %v3242 = vld [vmem:[%s3241] ss:$8 sm:$0xf]
  %s3243 = scalar_lea.vmem %s0, 1090
  %v3244 = vld [vmem:[%s3243] ss:$8 sm:$0xf0]
  %vm3245 = vcmask 1047556
  %v3246 = vsel %vm3245, %v3244, %v3242
  %3247 = vrot.lane.b32.xlu0 %v3246, 32
  %v3248 = vpop.permute.xlu0 %3247
  %vm3249 = vcmask 392448
  %s3250 = scalar_lea.vmem %s1, 136
  %3251 = vst.msk [vmem:[%s3250] sm:$0xff] %vm3249, %v3248
  %s3252 = scalar_lea.vmem %s0, 1346
  %v3253 = vld [vmem:[%s3252] ss:$8 sm:$0xf]
  %s3254 = scalar_lea.vmem %s0, 1346
  %v3255 = vld [vmem:[%s3254] ss:$8 sm:$0xf0]
  %vm3256 = vcmask 1047556
  %v3257 = vsel %vm3256, %v3255, %v3253
  %3258 = vrot.lane.b32.xlu0 %v3257, 32
  %v3259 = vpop.permute.xlu0 %3258
  %vm3260 = vcmask 392448
  %s3261 = scalar_lea.vmem %s1, 168
  %3262 = vst.msk [vmem:[%s3261] sm:$0xff] %vm3260, %v3259
  %s3263 = scalar_lea.vmem %s0, 1602
  %v3264 = vld [vmem:[%s3263] ss:$8 sm:$0xf]
  %s3265 = scalar_lea.vmem %s0, 1602
  %v3266 = vld [vmem:[%s3265] ss:$8 sm:$0xf0]
  %vm3267 = vcmask 1047556
  %v3268 = vsel %vm3267, %v3266, %v3264
  %3269 = vrot.lane.b32.xlu0 %v3268, 32
  %v3270 = vpop.permute.xlu0 %3269
  %vm3271 = vcmask 392448
  %s3272 = scalar_lea.vmem %s1, 200
  %3273 = vst.msk [vmem:[%s3272] sm:$0xff] %vm3271, %v3270
  %s3274 = scalar_lea.vmem %s0, 1858
  %v3275 = vld [vmem:[%s3274] ss:$8 sm:$0xf]
  %s3276 = scalar_lea.vmem %s0, 1858
  %v3277 = vld [vmem:[%s3276] ss:$8 sm:$0xf0]
  %vm3278 = vcmask 1047556
  %v3279 = vsel %vm3278, %v3277, %v3275
  %3280 = vrot.lane.b32.xlu0 %v3279, 32
  %v3281 = vpop.permute.xlu0 %3280
  %vm3282 = vcmask 392448
  %s3283 = scalar_lea.vmem %s1, 232
  %3284 = vst.msk [vmem:[%s3283] sm:$0xff] %vm3282, %v3281
  %s3285 = scalar_lea.vmem %s0, 2114
  %v3286 = vld [vmem:[%s3285] ss:$8 sm:$0xf]
  %s3287 = scalar_lea.vmem %s0, 2114
  %v3288 = vld [vmem:[%s3287] ss:$8 sm:$0xf0]
  %vm3289 = vcmask 1047556
  %v3290 = vsel %vm3289, %v3288, %v3286
  %3291 = vrot.lane.b32.xlu0 %v3290, 32
  %v3292 = vpop.permute.xlu0 %3291
  %vm3293 = vcmask 392448
  %s3294 = scalar_lea.vmem %s1, 264
  %3295 = vst.msk [vmem:[%s3294] sm:$0xff] %vm3293, %v3292
  %s3296 = scalar_lea.vmem %s0, 2370
  %v3297 = vld [vmem:[%s3296] ss:$8 sm:$0xf]
  %s3298 = scalar_lea.vmem %s0, 2370
  %v3299 = vld [vmem:[%s3298] ss:$8 sm:$0xf0]
  %vm3300 = vcmask 1047556
  %v3301 = vsel %vm3300, %v3299, %v3297
  %3302 = vrot.lane.b32.xlu0 %v3301, 32
  %v3303 = vpop.permute.xlu0 %3302
  %vm3304 = vcmask 392448
  %s3305 = scalar_lea.vmem %s1, 296
  %3306 = vst.msk [vmem:[%s3305] sm:$0xff] %vm3304, %v3303
  %s3307 = scalar_lea.vmem %s0, 2626
  %v3308 = vld [vmem:[%s3307] ss:$8 sm:$0xf]
  %s3309 = scalar_lea.vmem %s0, 2626
  %v3310 = vld [vmem:[%s3309] ss:$8 sm:$0xf0]
  %vm3311 = vcmask 1047556
  %v3312 = vsel %vm3311, %v3310, %v3308
  %3313 = vrot.lane.b32.xlu0 %v3312, 32
  %v3314 = vpop.permute.xlu0 %3313
  %vm3315 = vcmask 392448
  %s3316 = scalar_lea.vmem %s1, 328
  %3317 = vst.msk [vmem:[%s3316] sm:$0xff] %vm3315, %v3314
  %s3318 = scalar_lea.vmem %s0, 2882
  %v3319 = vld [vmem:[%s3318] ss:$8 sm:$0xf]
  %s3320 = scalar_lea.vmem %s0, 2882
  %v3321 = vld [vmem:[%s3320] ss:$8 sm:$0xf0]
  %vm3322 = vcmask 1047556
  %v3323 = vsel %vm3322, %v3321, %v3319
  %3324 = vrot.lane.b32.xlu0 %v3323, 32
  %v3325 = vpop.permute.xlu0 %3324
  %vm3326 = vcmask 392448
  %s3327 = scalar_lea.vmem %s1, 360
  %3328 = vst.msk [vmem:[%s3327] sm:$0xff] %vm3326, %v3325
  %s3329 = scalar_lea.vmem %s0, 130
  %v3330 = vld [vmem:[%s3329] ss:$8 sm:$0xf]
  %s3331 = scalar_lea.vmem %s0, 130
  %v3332 = vld [vmem:[%s3331] ss:$8 sm:$0xf0]
  %vm3333 = vcmask 1047556
  %v3334 = vsel %vm3333, %v3332, %v3330
  %3335 = vrot.lane.b32.xlu0 %v3334, 32
  %v3336 = vpop.permute.xlu0 %3335
  %vm3337 = vcmask 392448
  %s3338 = scalar_lea.vmem %s1, 16
  %3339 = vst.msk [vmem:[%s3338] sm:$0xff] %vm3337, %v3336
  %s3340 = scalar_lea.vmem %s0, 386
  %v3341 = vld [vmem:[%s3340] ss:$8 sm:$0xf]
  %s3342 = scalar_lea.vmem %s0, 386
  %v3343 = vld [vmem:[%s3342] ss:$8 sm:$0xf0]
  %vm3344 = vcmask 1047556
  %v3345 = vsel %vm3344, %v3343, %v3341
  %3346 = vrot.lane.b32.xlu0 %v3345, 32
  %v3347 = vpop.permute.xlu0 %3346
  %vm3348 = vcmask 392448
  %s3349 = scalar_lea.vmem %s1, 48
  %3350 = vst.msk [vmem:[%s3349] sm:$0xff] %vm3348, %v3347
  %s3351 = scalar_lea.vmem %s0, 642
  %v3352 = vld [vmem:[%s3351] ss:$8 sm:$0xf]
  %s3353 = scalar_lea.vmem %s0, 642
  %v3354 = vld [vmem:[%s3353] ss:$8 sm:$0xf0]
  %vm3355 = vcmask 1047556
  %v3356 = vsel %vm3355, %v3354, %v3352
  %3357 = vrot.lane.b32.xlu0 %v3356, 32
  %v3358 = vpop.permute.xlu0 %3357
  %vm3359 = vcmask 392448
  %s3360 = scalar_lea.vmem %s1, 80
  %3361 = vst.msk [vmem:[%s3360] sm:$0xff] %vm3359, %v3358
  %s3362 = scalar_lea.vmem %s0, 898
  %v3363 = vld [vmem:[%s3362] ss:$8 sm:$0xf]
  %s3364 = scalar_lea.vmem %s0, 898
  %v3365 = vld [vmem:[%s3364] ss:$8 sm:$0xf0]
  %vm3366 = vcmask 1047556
  %v3367 = vsel %vm3366, %v3365, %v3363
  %3368 = vrot.lane.b32.xlu0 %v3367, 32
  %v3369 = vpop.permute.xlu0 %3368
  %vm3370 = vcmask 392448
  %s3371 = scalar_lea.vmem %s1, 112
  %3372 = vst.msk [vmem:[%s3371] sm:$0xff] %vm3370, %v3369
  %s3373 = scalar_lea.vmem %s0, 1154
  %v3374 = vld [vmem:[%s3373] ss:$8 sm:$0xf]
  %s3375 = scalar_lea.vmem %s0, 1154
  %v3376 = vld [vmem:[%s3375] ss:$8 sm:$0xf0]
  %vm3377 = vcmask 1047556
  %v3378 = vsel %vm3377, %v3376, %v3374
  %3379 = vrot.lane.b32.xlu0 %v3378, 32
  %v3380 = vpop.permute.xlu0 %3379
  %vm3381 = vcmask 392448
  %s3382 = scalar_lea.vmem %s1, 144
  %3383 = vst.msk [vmem:[%s3382] sm:$0xff] %vm3381, %v3380
  %s3384 = scalar_lea.vmem %s0, 1410
  %v3385 = vld [vmem:[%s3384] ss:$8 sm:$0xf]
  %s3386 = scalar_lea.vmem %s0, 1410
  %v3387 = vld [vmem:[%s3386] ss:$8 sm:$0xf0]
  %vm3388 = vcmask 1047556
  %v3389 = vsel %vm3388, %v3387, %v3385
  %3390 = vrot.lane.b32.xlu0 %v3389, 32
  %v3391 = vpop.permute.xlu0 %3390
  %vm3392 = vcmask 392448
  %s3393 = scalar_lea.vmem %s1, 176
  %3394 = vst.msk [vmem:[%s3393] sm:$0xff] %vm3392, %v3391
  %s3395 = scalar_lea.vmem %s0, 1666
  %v3396 = vld [vmem:[%s3395] ss:$8 sm:$0xf]
  %s3397 = scalar_lea.vmem %s0, 1666
  %v3398 = vld [vmem:[%s3397] ss:$8 sm:$0xf0]
  %vm3399 = vcmask 1047556
  %v3400 = vsel %vm3399, %v3398, %v3396
  %3401 = vrot.lane.b32.xlu0 %v3400, 32
  %v3402 = vpop.permute.xlu0 %3401
  %vm3403 = vcmask 392448
  %s3404 = scalar_lea.vmem %s1, 208
  %3405 = vst.msk [vmem:[%s3404] sm:$0xff] %vm3403, %v3402
  %s3406 = scalar_lea.vmem %s0, 1922
  %v3407 = vld [vmem:[%s3406] ss:$8 sm:$0xf]
  %s3408 = scalar_lea.vmem %s0, 1922
  %v3409 = vld [vmem:[%s3408] ss:$8 sm:$0xf0]
  %vm3410 = vcmask 1047556
  %v3411 = vsel %vm3410, %v3409, %v3407
  %3412 = vrot.lane.b32.xlu0 %v3411, 32
  %v3413 = vpop.permute.xlu0 %3412
  %vm3414 = vcmask 392448
  %s3415 = scalar_lea.vmem %s1, 240
  %3416 = vst.msk [vmem:[%s3415] sm:$0xff] %vm3414, %v3413
  %s3417 = scalar_lea.vmem %s0, 2178
  %v3418 = vld [vmem:[%s3417] ss:$8 sm:$0xf]
  %s3419 = scalar_lea.vmem %s0, 2178
  %v3420 = vld [vmem:[%s3419] ss:$8 sm:$0xf0]
  %vm3421 = vcmask 1047556
  %v3422 = vsel %vm3421, %v3420, %v3418
  %3423 = vrot.lane.b32.xlu0 %v3422, 32
  %v3424 = vpop.permute.xlu0 %3423
  %vm3425 = vcmask 392448
  %s3426 = scalar_lea.vmem %s1, 272
  %3427 = vst.msk [vmem:[%s3426] sm:$0xff] %vm3425, %v3424
  %s3428 = scalar_lea.vmem %s0, 2434
  %v3429 = vld [vmem:[%s3428] ss:$8 sm:$0xf]
  %s3430 = scalar_lea.vmem %s0, 2434
  %v3431 = vld [vmem:[%s3430] ss:$8 sm:$0xf0]
  %vm3432 = vcmask 1047556
  %v3433 = vsel %vm3432, %v3431, %v3429
  %3434 = vrot.lane.b32.xlu0 %v3433, 32
  %v3435 = vpop.permute.xlu0 %3434
  %vm3436 = vcmask 392448
  %s3437 = scalar_lea.vmem %s1, 304
  %3438 = vst.msk [vmem:[%s3437] sm:$0xff] %vm3436, %v3435
  %s3439 = scalar_lea.vmem %s0, 2690
  %v3440 = vld [vmem:[%s3439] ss:$8 sm:$0xf]
  %s3441 = scalar_lea.vmem %s0, 2690
  %v3442 = vld [vmem:[%s3441] ss:$8 sm:$0xf0]
  %vm3443 = vcmask 1047556
  %v3444 = vsel %vm3443, %v3442, %v3440
  %3445 = vrot.lane.b32.xlu0 %v3444, 32
  %v3446 = vpop.permute.xlu0 %3445
  %vm3447 = vcmask 392448
  %s3448 = scalar_lea.vmem %s1, 336
  %3449 = vst.msk [vmem:[%s3448] sm:$0xff] %vm3447, %v3446
  %s3450 = scalar_lea.vmem %s0, 2946
  %v3451 = vld [vmem:[%s3450] ss:$8 sm:$0xf]
  %s3452 = scalar_lea.vmem %s0, 2946
  %v3453 = vld [vmem:[%s3452] ss:$8 sm:$0xf0]
  %vm3454 = vcmask 1047556
  %v3455 = vsel %vm3454, %v3453, %v3451
  %3456 = vrot.lane.b32.xlu0 %v3455, 32
  %v3457 = vpop.permute.xlu0 %3456
  %vm3458 = vcmask 392448
  %s3459 = scalar_lea.vmem %s1, 368
  %3460 = vst.msk [vmem:[%s3459] sm:$0xff] %vm3458, %v3457
  %s3461 = scalar_lea.vmem %s0, 194
  %v3462 = vld [vmem:[%s3461] ss:$8 sm:$0xf]
  %s3463 = scalar_lea.vmem %s0, 194
  %v3464 = vld [vmem:[%s3463] ss:$8 sm:$0xf0]
  %vm3465 = vcmask 1047556
  %v3466 = vsel %vm3465, %v3464, %v3462
  %3467 = vrot.lane.b32.xlu0 %v3466, 32
  %v3468 = vpop.permute.xlu0 %3467
  %vm3469 = vcmask 392448
  %s3470 = scalar_lea.vmem %s1, 24
  %3471 = vst.msk [vmem:[%s3470] sm:$0xff] %vm3469, %v3468
  %s3472 = scalar_lea.vmem %s0, 450
  %v3473 = vld [vmem:[%s3472] ss:$8 sm:$0xf]
  %s3474 = scalar_lea.vmem %s0, 450
  %v3475 = vld [vmem:[%s3474] ss:$8 sm:$0xf0]
  %vm3476 = vcmask 1047556
  %v3477 = vsel %vm3476, %v3475, %v3473
  %3478 = vrot.lane.b32.xlu0 %v3477, 32
  %v3479 = vpop.permute.xlu0 %3478
  %vm3480 = vcmask 392448
  %s3481 = scalar_lea.vmem %s1, 56
  %3482 = vst.msk [vmem:[%s3481] sm:$0xff] %vm3480, %v3479
  %s3483 = scalar_lea.vmem %s0, 706
  %v3484 = vld [vmem:[%s3483] ss:$8 sm:$0xf]
  %s3485 = scalar_lea.vmem %s0, 706
  %v3486 = vld [vmem:[%s3485] ss:$8 sm:$0xf0]
  %vm3487 = vcmask 1047556
  %v3488 = vsel %vm3487, %v3486, %v3484
  %3489 = vrot.lane.b32.xlu0 %v3488, 32
  %v3490 = vpop.permute.xlu0 %3489
  %vm3491 = vcmask 392448
  %s3492 = scalar_lea.vmem %s1, 88
  %3493 = vst.msk [vmem:[%s3492] sm:$0xff] %vm3491, %v3490
  %s3494 = scalar_lea.vmem %s0, 962
  %v3495 = vld [vmem:[%s3494] ss:$8 sm:$0xf]
  %s3496 = scalar_lea.vmem %s0, 962
  %v3497 = vld [vmem:[%s3496] ss:$8 sm:$0xf0]
  %vm3498 = vcmask 1047556
  %v3499 = vsel %vm3498, %v3497, %v3495
  %3500 = vrot.lane.b32.xlu0 %v3499, 32
  %v3501 = vpop.permute.xlu0 %3500
  %vm3502 = vcmask 392448
  %s3503 = scalar_lea.vmem %s1, 120
  %3504 = vst.msk [vmem:[%s3503] sm:$0xff] %vm3502, %v3501
  %s3505 = scalar_lea.vmem %s0, 1218
  %v3506 = vld [vmem:[%s3505] ss:$8 sm:$0xf]
  %s3507 = scalar_lea.vmem %s0, 1218
  %v3508 = vld [vmem:[%s3507] ss:$8 sm:$0xf0]
  %vm3509 = vcmask 1047556
  %v3510 = vsel %vm3509, %v3508, %v3506
  %3511 = vrot.lane.b32.xlu0 %v3510, 32
  %v3512 = vpop.permute.xlu0 %3511
  %vm3513 = vcmask 392448
  %s3514 = scalar_lea.vmem %s1, 152
  %3515 = vst.msk [vmem:[%s3514] sm:$0xff] %vm3513, %v3512
  %s3516 = scalar_lea.vmem %s0, 1474
  %v3517 = vld [vmem:[%s3516] ss:$8 sm:$0xf]
  %s3518 = scalar_lea.vmem %s0, 1474
  %v3519 = vld [vmem:[%s3518] ss:$8 sm:$0xf0]
  %vm3520 = vcmask 1047556
  %v3521 = vsel %vm3520, %v3519, %v3517
  %3522 = vrot.lane.b32.xlu0 %v3521, 32
  %v3523 = vpop.permute.xlu0 %3522
  %vm3524 = vcmask 392448
  %s3525 = scalar_lea.vmem %s1, 184
  %3526 = vst.msk [vmem:[%s3525] sm:$0xff] %vm3524, %v3523
  %s3527 = scalar_lea.vmem %s0, 1730
  %v3528 = vld [vmem:[%s3527] ss:$8 sm:$0xf]
  %s3529 = scalar_lea.vmem %s0, 1730
  %v3530 = vld [vmem:[%s3529] ss:$8 sm:$0xf0]
  %vm3531 = vcmask 1047556
  %v3532 = vsel %vm3531, %v3530, %v3528
  %3533 = vrot.lane.b32.xlu0 %v3532, 32
  %v3534 = vpop.permute.xlu0 %3533
  %vm3535 = vcmask 392448
  %s3536 = scalar_lea.vmem %s1, 216
  %3537 = vst.msk [vmem:[%s3536] sm:$0xff] %vm3535, %v3534
  %s3538 = scalar_lea.vmem %s0, 1986
  %v3539 = vld [vmem:[%s3538] ss:$8 sm:$0xf]
  %s3540 = scalar_lea.vmem %s0, 1986
  %v3541 = vld [vmem:[%s3540] ss:$8 sm:$0xf0]
  %vm3542 = vcmask 1047556
  %v3543 = vsel %vm3542, %v3541, %v3539
  %3544 = vrot.lane.b32.xlu0 %v3543, 32
  %v3545 = vpop.permute.xlu0 %3544
  %vm3546 = vcmask 392448
  %s3547 = scalar_lea.vmem %s1, 248
  %3548 = vst.msk [vmem:[%s3547] sm:$0xff] %vm3546, %v3545
  %s3549 = scalar_lea.vmem %s0, 2242
  %v3550 = vld [vmem:[%s3549] ss:$8 sm:$0xf]
  %s3551 = scalar_lea.vmem %s0, 2242
  %v3552 = vld [vmem:[%s3551] ss:$8 sm:$0xf0]
  %vm3553 = vcmask 1047556
  %v3554 = vsel %vm3553, %v3552, %v3550
  %3555 = vrot.lane.b32.xlu0 %v3554, 32
  %v3556 = vpop.permute.xlu0 %3555
  %vm3557 = vcmask 392448
  %s3558 = scalar_lea.vmem %s1, 280
  %3559 = vst.msk [vmem:[%s3558] sm:$0xff] %vm3557, %v3556
  %s3560 = scalar_lea.vmem %s0, 2498
  %v3561 = vld [vmem:[%s3560] ss:$8 sm:$0xf]
  %s3562 = scalar_lea.vmem %s0, 2498
  %v3563 = vld [vmem:[%s3562] ss:$8 sm:$0xf0]
  %vm3564 = vcmask 1047556
  %v3565 = vsel %vm3564, %v3563, %v3561
  %3566 = vrot.lane.b32.xlu0 %v3565, 32
  %v3567 = vpop.permute.xlu0 %3566
  %vm3568 = vcmask 392448
  %s3569 = scalar_lea.vmem %s1, 312
  %3570 = vst.msk [vmem:[%s3569] sm:$0xff] %vm3568, %v3567
  %s3571 = scalar_lea.vmem %s0, 2754
  %v3572 = vld [vmem:[%s3571] ss:$8 sm:$0xf]
  %s3573 = scalar_lea.vmem %s0, 2754
  %v3574 = vld [vmem:[%s3573] ss:$8 sm:$0xf0]
  %vm3575 = vcmask 1047556
  %v3576 = vsel %vm3575, %v3574, %v3572
  %3577 = vrot.lane.b32.xlu0 %v3576, 32
  %v3578 = vpop.permute.xlu0 %3577
  %vm3579 = vcmask 392448
  %s3580 = scalar_lea.vmem %s1, 344
  %3581 = vst.msk [vmem:[%s3580] sm:$0xff] %vm3579, %v3578
  %s3582 = scalar_lea.vmem %s0, 3010
  %v3583 = vld [vmem:[%s3582] ss:$8 sm:$0xf]
  %s3584 = scalar_lea.vmem %s0, 3010
  %v3585 = vld [vmem:[%s3584] ss:$8 sm:$0xf0]
  %vm3586 = vcmask 1047556
  %v3587 = vsel %vm3586, %v3585, %v3583
  %3588 = vrot.lane.b32.xlu0 %v3587, 32
  %v3589 = vpop.permute.xlu0 %3588
  %vm3590 = vcmask 392448
  %s3591 = scalar_lea.vmem %s1, 376
  %3592 = vst.msk [vmem:[%s3591] sm:$0xff] %vm3590, %v3589
  %s3593 = scalar_lea.vmem %s0, 1
  %v3594 = vld [vmem:[%s3593] ss:$8 sm:$0xf]
  %s3595 = scalar_lea.vmem %s0, 1
  %v3596 = vld [vmem:[%s3595] ss:$8 sm:$0xf0]
  %vm3597 = vcmask 1047556
  %v3598 = vsel %vm3597, %v3596, %v3594
  %3599 = vrot.lane.b32.xlu0 %v3598, 16
  %v3600 = vpop.permute.xlu0 %3599
  %vm3601 = vcmask 261248
  %3602 = vst.msk [vmem:[%s1] sm:$0xff] %vm3601, %v3600
  %s3603 = scalar_lea.vmem %s0, 257
  %v3604 = vld [vmem:[%s3603] ss:$8 sm:$0xf]
  %s3605 = scalar_lea.vmem %s0, 257
  %v3606 = vld [vmem:[%s3605] ss:$8 sm:$0xf0]
  %vm3607 = vcmask 1047556
  %v3608 = vsel %vm3607, %v3606, %v3604
  %3609 = vrot.lane.b32.xlu0 %v3608, 16
  %v3610 = vpop.permute.xlu0 %3609
  %vm3611 = vcmask 261248
  %s3612 = scalar_lea.vmem %s1, 32
  %3613 = vst.msk [vmem:[%s3612] sm:$0xff] %vm3611, %v3610
  %s3614 = scalar_lea.vmem %s0, 513
  %v3615 = vld [vmem:[%s3614] ss:$8 sm:$0xf]
  %s3616 = scalar_lea.vmem %s0, 513
  %v3617 = vld [vmem:[%s3616] ss:$8 sm:$0xf0]
  %vm3618 = vcmask 1047556
  %v3619 = vsel %vm3618, %v3617, %v3615
  %3620 = vrot.lane.b32.xlu0 %v3619, 16
  %v3621 = vpop.permute.xlu0 %3620
  %vm3622 = vcmask 261248
  %s3623 = scalar_lea.vmem %s1, 64
  %3624 = vst.msk [vmem:[%s3623] sm:$0xff] %vm3622, %v3621
  %s3625 = scalar_lea.vmem %s0, 769
  %v3626 = vld [vmem:[%s3625] ss:$8 sm:$0xf]
  %s3627 = scalar_lea.vmem %s0, 769
  %v3628 = vld [vmem:[%s3627] ss:$8 sm:$0xf0]
  %vm3629 = vcmask 1047556
  %v3630 = vsel %vm3629, %v3628, %v3626
  %3631 = vrot.lane.b32.xlu0 %v3630, 16
  %v3632 = vpop.permute.xlu0 %3631
  %vm3633 = vcmask 261248
  %s3634 = scalar_lea.vmem %s1, 96
  %3635 = vst.msk [vmem:[%s3634] sm:$0xff] %vm3633, %v3632
  %s3636 = scalar_lea.vmem %s0, 1025
  %v3637 = vld [vmem:[%s3636] ss:$8 sm:$0xf]
  %s3638 = scalar_lea.vmem %s0, 1025
  %v3639 = vld [vmem:[%s3638] ss:$8 sm:$0xf0]
  %vm3640 = vcmask 1047556
  %v3641 = vsel %vm3640, %v3639, %v3637
  %3642 = vrot.lane.b32.xlu0 %v3641, 16
  %v3643 = vpop.permute.xlu0 %3642
  %vm3644 = vcmask 261248
  %s3645 = scalar_lea.vmem %s1, 128
  %3646 = vst.msk [vmem:[%s3645] sm:$0xff] %vm3644, %v3643
  %s3647 = scalar_lea.vmem %s0, 1281
  %v3648 = vld [vmem:[%s3647] ss:$8 sm:$0xf]
  %s3649 = scalar_lea.vmem %s0, 1281
  %v3650 = vld [vmem:[%s3649] ss:$8 sm:$0xf0]
  %vm3651 = vcmask 1047556
  %v3652 = vsel %vm3651, %v3650, %v3648
  %3653 = vrot.lane.b32.xlu0 %v3652, 16
  %v3654 = vpop.permute.xlu0 %3653
  %vm3655 = vcmask 261248
  %s3656 = scalar_lea.vmem %s1, 160
  %3657 = vst.msk [vmem:[%s3656] sm:$0xff] %vm3655, %v3654
  %s3658 = scalar_lea.vmem %s0, 1537
  %v3659 = vld [vmem:[%s3658] ss:$8 sm:$0xf]
  %s3660 = scalar_lea.vmem %s0, 1537
  %v3661 = vld [vmem:[%s3660] ss:$8 sm:$0xf0]
  %vm3662 = vcmask 1047556
  %v3663 = vsel %vm3662, %v3661, %v3659
  %3664 = vrot.lane.b32.xlu0 %v3663, 16
  %v3665 = vpop.permute.xlu0 %3664
  %vm3666 = vcmask 261248
  %s3667 = scalar_lea.vmem %s1, 192
  %3668 = vst.msk [vmem:[%s3667] sm:$0xff] %vm3666, %v3665
  %s3669 = scalar_lea.vmem %s0, 1793
  %v3670 = vld [vmem:[%s3669] ss:$8 sm:$0xf]
  %s3671 = scalar_lea.vmem %s0, 1793
  %v3672 = vld [vmem:[%s3671] ss:$8 sm:$0xf0]
  %vm3673 = vcmask 1047556
  %v3674 = vsel %vm3673, %v3672, %v3670
  %3675 = vrot.lane.b32.xlu0 %v3674, 16
  %v3676 = vpop.permute.xlu0 %3675
  %vm3677 = vcmask 261248
  %s3678 = scalar_lea.vmem %s1, 224
  %3679 = vst.msk [vmem:[%s3678] sm:$0xff] %vm3677, %v3676
  %s3680 = scalar_lea.vmem %s0, 2049
  %v3681 = vld [vmem:[%s3680] ss:$8 sm:$0xf]
  %s3682 = scalar_lea.vmem %s0, 2049
  %v3683 = vld [vmem:[%s3682] ss:$8 sm:$0xf0]
  %vm3684 = vcmask 1047556
  %v3685 = vsel %vm3684, %v3683, %v3681
  %3686 = vrot.lane.b32.xlu0 %v3685, 16
  %v3687 = vpop.permute.xlu0 %3686
  %vm3688 = vcmask 261248
  %s3689 = scalar_lea.vmem %s1, 256
  %3690 = vst.msk [vmem:[%s3689] sm:$0xff] %vm3688, %v3687
  %s3691 = scalar_lea.vmem %s0, 2305
  %v3692 = vld [vmem:[%s3691] ss:$8 sm:$0xf]
  %s3693 = scalar_lea.vmem %s0, 2305
  %v3694 = vld [vmem:[%s3693] ss:$8 sm:$0xf0]
  %vm3695 = vcmask 1047556
  %v3696 = vsel %vm3695, %v3694, %v3692
  %3697 = vrot.lane.b32.xlu0 %v3696, 16
  %v3698 = vpop.permute.xlu0 %3697
  %vm3699 = vcmask 261248
  %s3700 = scalar_lea.vmem %s1, 288
  %3701 = vst.msk [vmem:[%s3700] sm:$0xff] %vm3699, %v3698
  %s3702 = scalar_lea.vmem %s0, 2561
  %v3703 = vld [vmem:[%s3702] ss:$8 sm:$0xf]
  %s3704 = scalar_lea.vmem %s0, 2561
  %v3705 = vld [vmem:[%s3704] ss:$8 sm:$0xf0]
  %vm3706 = vcmask 1047556
  %v3707 = vsel %vm3706, %v3705, %v3703
  %3708 = vrot.lane.b32.xlu0 %v3707, 16
  %v3709 = vpop.permute.xlu0 %3708
  %vm3710 = vcmask 261248
  %s3711 = scalar_lea.vmem %s1, 320
  %3712 = vst.msk [vmem:[%s3711] sm:$0xff] %vm3710, %v3709
  %s3713 = scalar_lea.vmem %s0, 2817
  %v3714 = vld [vmem:[%s3713] ss:$8 sm:$0xf]
  %s3715 = scalar_lea.vmem %s0, 2817
  %v3716 = vld [vmem:[%s3715] ss:$8 sm:$0xf0]
  %vm3717 = vcmask 1047556
  %v3718 = vsel %vm3717, %v3716, %v3714
  %3719 = vrot.lane.b32.xlu0 %v3718, 16
  %v3720 = vpop.permute.xlu0 %3719
  %vm3721 = vcmask 261248
  %s3722 = scalar_lea.vmem %s1, 352
  %3723 = vst.msk [vmem:[%s3722] sm:$0xff] %vm3721, %v3720
  %s3724 = scalar_lea.vmem %s0, 65
  %v3725 = vld [vmem:[%s3724] ss:$8 sm:$0xf]
  %s3726 = scalar_lea.vmem %s0, 65
  %v3727 = vld [vmem:[%s3726] ss:$8 sm:$0xf0]
  %vm3728 = vcmask 1047556
  %v3729 = vsel %vm3728, %v3727, %v3725
  %3730 = vrot.lane.b32.xlu0 %v3729, 16
  %v3731 = vpop.permute.xlu0 %3730
  %vm3732 = vcmask 261248
  %s3733 = scalar_lea.vmem %s1, 8
  %3734 = vst.msk [vmem:[%s3733] sm:$0xff] %vm3732, %v3731
  %s3735 = scalar_lea.vmem %s0, 321
  %v3736 = vld [vmem:[%s3735] ss:$8 sm:$0xf]
  %s3737 = scalar_lea.vmem %s0, 321
  %v3738 = vld [vmem:[%s3737] ss:$8 sm:$0xf0]
  %vm3739 = vcmask 1047556
  %v3740 = vsel %vm3739, %v3738, %v3736
  %3741 = vrot.lane.b32.xlu0 %v3740, 16
  %v3742 = vpop.permute.xlu0 %3741
  %vm3743 = vcmask 261248
  %s3744 = scalar_lea.vmem %s1, 40
  %3745 = vst.msk [vmem:[%s3744] sm:$0xff] %vm3743, %v3742
  %s3746 = scalar_lea.vmem %s0, 577
  %v3747 = vld [vmem:[%s3746] ss:$8 sm:$0xf]
  %s3748 = scalar_lea.vmem %s0, 577
  %v3749 = vld [vmem:[%s3748] ss:$8 sm:$0xf0]
  %vm3750 = vcmask 1047556
  %v3751 = vsel %vm3750, %v3749, %v3747
  %3752 = vrot.lane.b32.xlu0 %v3751, 16
  %v3753 = vpop.permute.xlu0 %3752
  %vm3754 = vcmask 261248
  %s3755 = scalar_lea.vmem %s1, 72
  %3756 = vst.msk [vmem:[%s3755] sm:$0xff] %vm3754, %v3753
  %s3757 = scalar_lea.vmem %s0, 833
  %v3758 = vld [vmem:[%s3757] ss:$8 sm:$0xf]
  %s3759 = scalar_lea.vmem %s0, 833
  %v3760 = vld [vmem:[%s3759] ss:$8 sm:$0xf0]
  %vm3761 = vcmask 1047556
  %v3762 = vsel %vm3761, %v3760, %v3758
  %3763 = vrot.lane.b32.xlu0 %v3762, 16
  %v3764 = vpop.permute.xlu0 %3763
  %vm3765 = vcmask 261248
  %s3766 = scalar_lea.vmem %s1, 104
  %3767 = vst.msk [vmem:[%s3766] sm:$0xff] %vm3765, %v3764
  %s3768 = scalar_lea.vmem %s0, 1089
  %v3769 = vld [vmem:[%s3768] ss:$8 sm:$0xf]
  %s3770 = scalar_lea.vmem %s0, 1089
  %v3771 = vld [vmem:[%s3770] ss:$8 sm:$0xf0]
  %vm3772 = vcmask 1047556
  %v3773 = vsel %vm3772, %v3771, %v3769
  %3774 = vrot.lane.b32.xlu0 %v3773, 16
  %v3775 = vpop.permute.xlu0 %3774
  %vm3776 = vcmask 261248
  %s3777 = scalar_lea.vmem %s1, 136
  %3778 = vst.msk [vmem:[%s3777] sm:$0xff] %vm3776, %v3775
  %s3779 = scalar_lea.vmem %s0, 1345
  %v3780 = vld [vmem:[%s3779] ss:$8 sm:$0xf]
  %s3781 = scalar_lea.vmem %s0, 1345
  %v3782 = vld [vmem:[%s3781] ss:$8 sm:$0xf0]
  %vm3783 = vcmask 1047556
  %v3784 = vsel %vm3783, %v3782, %v3780
  %3785 = vrot.lane.b32.xlu0 %v3784, 16
  %v3786 = vpop.permute.xlu0 %3785
  %vm3787 = vcmask 261248
  %s3788 = scalar_lea.vmem %s1, 168
  %3789 = vst.msk [vmem:[%s3788] sm:$0xff] %vm3787, %v3786
  %s3790 = scalar_lea.vmem %s0, 1601
  %v3791 = vld [vmem:[%s3790] ss:$8 sm:$0xf]
  %s3792 = scalar_lea.vmem %s0, 1601
  %v3793 = vld [vmem:[%s3792] ss:$8 sm:$0xf0]
  %vm3794 = vcmask 1047556
  %v3795 = vsel %vm3794, %v3793, %v3791
  %3796 = vrot.lane.b32.xlu0 %v3795, 16
  %v3797 = vpop.permute.xlu0 %3796
  %vm3798 = vcmask 261248
  %s3799 = scalar_lea.vmem %s1, 200
  %3800 = vst.msk [vmem:[%s3799] sm:$0xff] %vm3798, %v3797
  %s3801 = scalar_lea.vmem %s0, 1857
  %v3802 = vld [vmem:[%s3801] ss:$8 sm:$0xf]
  %s3803 = scalar_lea.vmem %s0, 1857
  %v3804 = vld [vmem:[%s3803] ss:$8 sm:$0xf0]
  %vm3805 = vcmask 1047556
  %v3806 = vsel %vm3805, %v3804, %v3802
  %3807 = vrot.lane.b32.xlu0 %v3806, 16
  %v3808 = vpop.permute.xlu0 %3807
  %vm3809 = vcmask 261248
  %s3810 = scalar_lea.vmem %s1, 232
  %3811 = vst.msk [vmem:[%s3810] sm:$0xff] %vm3809, %v3808
  %s3812 = scalar_lea.vmem %s0, 2113
  %v3813 = vld [vmem:[%s3812] ss:$8 sm:$0xf]
  %s3814 = scalar_lea.vmem %s0, 2113
  %v3815 = vld [vmem:[%s3814] ss:$8 sm:$0xf0]
  %vm3816 = vcmask 1047556
  %v3817 = vsel %vm3816, %v3815, %v3813
  %3818 = vrot.lane.b32.xlu0 %v3817, 16
  %v3819 = vpop.permute.xlu0 %3818
  %vm3820 = vcmask 261248
  %s3821 = scalar_lea.vmem %s1, 264
  %3822 = vst.msk [vmem:[%s3821] sm:$0xff] %vm3820, %v3819
  %s3823 = scalar_lea.vmem %s0, 2369
  %v3824 = vld [vmem:[%s3823] ss:$8 sm:$0xf]
  %s3825 = scalar_lea.vmem %s0, 2369
  %v3826 = vld [vmem:[%s3825] ss:$8 sm:$0xf0]
  %vm3827 = vcmask 1047556
  %v3828 = vsel %vm3827, %v3826, %v3824
  %3829 = vrot.lane.b32.xlu0 %v3828, 16
  %v3830 = vpop.permute.xlu0 %3829
  %vm3831 = vcmask 261248
  %s3832 = scalar_lea.vmem %s1, 296
  %3833 = vst.msk [vmem:[%s3832] sm:$0xff] %vm3831, %v3830
  %s3834 = scalar_lea.vmem %s0, 2625
  %v3835 = vld [vmem:[%s3834] ss:$8 sm:$0xf]
  %s3836 = scalar_lea.vmem %s0, 2625
  %v3837 = vld [vmem:[%s3836] ss:$8 sm:$0xf0]
  %vm3838 = vcmask 1047556
  %v3839 = vsel %vm3838, %v3837, %v3835
  %3840 = vrot.lane.b32.xlu0 %v3839, 16
  %v3841 = vpop.permute.xlu0 %3840
  %vm3842 = vcmask 261248
  %s3843 = scalar_lea.vmem %s1, 328
  %3844 = vst.msk [vmem:[%s3843] sm:$0xff] %vm3842, %v3841
  %s3845 = scalar_lea.vmem %s0, 2881
  %v3846 = vld [vmem:[%s3845] ss:$8 sm:$0xf]
  %s3847 = scalar_lea.vmem %s0, 2881
  %v3848 = vld [vmem:[%s3847] ss:$8 sm:$0xf0]
  %vm3849 = vcmask 1047556
  %v3850 = vsel %vm3849, %v3848, %v3846
  %3851 = vrot.lane.b32.xlu0 %v3850, 16
  %v3852 = vpop.permute.xlu0 %3851
  %vm3853 = vcmask 261248
  %s3854 = scalar_lea.vmem %s1, 360
  %3855 = vst.msk [vmem:[%s3854] sm:$0xff] %vm3853, %v3852
  %s3856 = scalar_lea.vmem %s0, 129
  %v3857 = vld [vmem:[%s3856] ss:$8 sm:$0xf]
  %s3858 = scalar_lea.vmem %s0, 129
  %v3859 = vld [vmem:[%s3858] ss:$8 sm:$0xf0]
  %vm3860 = vcmask 1047556
  %v3861 = vsel %vm3860, %v3859, %v3857
  %3862 = vrot.lane.b32.xlu0 %v3861, 16
  %v3863 = vpop.permute.xlu0 %3862
  %vm3864 = vcmask 261248
  %s3865 = scalar_lea.vmem %s1, 16
  %3866 = vst.msk [vmem:[%s3865] sm:$0xff] %vm3864, %v3863
  %s3867 = scalar_lea.vmem %s0, 385
  %v3868 = vld [vmem:[%s3867] ss:$8 sm:$0xf]
  %s3869 = scalar_lea.vmem %s0, 385
  %v3870 = vld [vmem:[%s3869] ss:$8 sm:$0xf0]
  %vm3871 = vcmask 1047556
  %v3872 = vsel %vm3871, %v3870, %v3868
  %3873 = vrot.lane.b32.xlu0 %v3872, 16
  %v3874 = vpop.permute.xlu0 %3873
  %vm3875 = vcmask 261248
  %s3876 = scalar_lea.vmem %s1, 48
  %3877 = vst.msk [vmem:[%s3876] sm:$0xff] %vm3875, %v3874
  %s3878 = scalar_lea.vmem %s0, 641
  %v3879 = vld [vmem:[%s3878] ss:$8 sm:$0xf]
  %s3880 = scalar_lea.vmem %s0, 641
  %v3881 = vld [vmem:[%s3880] ss:$8 sm:$0xf0]
  %vm3882 = vcmask 1047556
  %v3883 = vsel %vm3882, %v3881, %v3879
  %3884 = vrot.lane.b32.xlu0 %v3883, 16
  %v3885 = vpop.permute.xlu0 %3884
  %vm3886 = vcmask 261248
  %s3887 = scalar_lea.vmem %s1, 80
  %3888 = vst.msk [vmem:[%s3887] sm:$0xff] %vm3886, %v3885
  %s3889 = scalar_lea.vmem %s0, 897
  %v3890 = vld [vmem:[%s3889] ss:$8 sm:$0xf]
  %s3891 = scalar_lea.vmem %s0, 897
  %v3892 = vld [vmem:[%s3891] ss:$8 sm:$0xf0]
  %vm3893 = vcmask 1047556
  %v3894 = vsel %vm3893, %v3892, %v3890
  %3895 = vrot.lane.b32.xlu0 %v3894, 16
  %v3896 = vpop.permute.xlu0 %3895
  %vm3897 = vcmask 261248
  %s3898 = scalar_lea.vmem %s1, 112
  %3899 = vst.msk [vmem:[%s3898] sm:$0xff] %vm3897, %v3896
  %s3900 = scalar_lea.vmem %s0, 1153
  %v3901 = vld [vmem:[%s3900] ss:$8 sm:$0xf]
  %s3902 = scalar_lea.vmem %s0, 1153
  %v3903 = vld [vmem:[%s3902] ss:$8 sm:$0xf0]
  %vm3904 = vcmask 1047556
  %v3905 = vsel %vm3904, %v3903, %v3901
  %3906 = vrot.lane.b32.xlu0 %v3905, 16
  %v3907 = vpop.permute.xlu0 %3906
  %vm3908 = vcmask 261248
  %s3909 = scalar_lea.vmem %s1, 144
  %3910 = vst.msk [vmem:[%s3909] sm:$0xff] %vm3908, %v3907
  %s3911 = scalar_lea.vmem %s0, 1409
  %v3912 = vld [vmem:[%s3911] ss:$8 sm:$0xf]
  %s3913 = scalar_lea.vmem %s0, 1409
  %v3914 = vld [vmem:[%s3913] ss:$8 sm:$0xf0]
  %vm3915 = vcmask 1047556
  %v3916 = vsel %vm3915, %v3914, %v3912
  %3917 = vrot.lane.b32.xlu0 %v3916, 16
  %v3918 = vpop.permute.xlu0 %3917
  %vm3919 = vcmask 261248
  %s3920 = scalar_lea.vmem %s1, 176
  %3921 = vst.msk [vmem:[%s3920] sm:$0xff] %vm3919, %v3918
  %s3922 = scalar_lea.vmem %s0, 1665
  %v3923 = vld [vmem:[%s3922] ss:$8 sm:$0xf]
  %s3924 = scalar_lea.vmem %s0, 1665
  %v3925 = vld [vmem:[%s3924] ss:$8 sm:$0xf0]
  %vm3926 = vcmask 1047556
  %v3927 = vsel %vm3926, %v3925, %v3923
  %3928 = vrot.lane.b32.xlu0 %v3927, 16
  %v3929 = vpop.permute.xlu0 %3928
  %vm3930 = vcmask 261248
  %s3931 = scalar_lea.vmem %s1, 208
  %3932 = vst.msk [vmem:[%s3931] sm:$0xff] %vm3930, %v3929
  %s3933 = scalar_lea.vmem %s0, 1921
  %v3934 = vld [vmem:[%s3933] ss:$8 sm:$0xf]
  %s3935 = scalar_lea.vmem %s0, 1921
  %v3936 = vld [vmem:[%s3935] ss:$8 sm:$0xf0]
  %vm3937 = vcmask 1047556
  %v3938 = vsel %vm3937, %v3936, %v3934
  %3939 = vrot.lane.b32.xlu0 %v3938, 16
  %v3940 = vpop.permute.xlu0 %3939
  %vm3941 = vcmask 261248
  %s3942 = scalar_lea.vmem %s1, 240
  %3943 = vst.msk [vmem:[%s3942] sm:$0xff] %vm3941, %v3940
  %s3944 = scalar_lea.vmem %s0, 2177
  %v3945 = vld [vmem:[%s3944] ss:$8 sm:$0xf]
  %s3946 = scalar_lea.vmem %s0, 2177
  %v3947 = vld [vmem:[%s3946] ss:$8 sm:$0xf0]
  %vm3948 = vcmask 1047556
  %v3949 = vsel %vm3948, %v3947, %v3945
  %3950 = vrot.lane.b32.xlu0 %v3949, 16
  %v3951 = vpop.permute.xlu0 %3950
  %vm3952 = vcmask 261248
  %s3953 = scalar_lea.vmem %s1, 272
  %3954 = vst.msk [vmem:[%s3953] sm:$0xff] %vm3952, %v3951
  %s3955 = scalar_lea.vmem %s0, 2433
  %v3956 = vld [vmem:[%s3955] ss:$8 sm:$0xf]
  %s3957 = scalar_lea.vmem %s0, 2433
  %v3958 = vld [vmem:[%s3957] ss:$8 sm:$0xf0]
  %vm3959 = vcmask 1047556
  %v3960 = vsel %vm3959, %v3958, %v3956
  %3961 = vrot.lane.b32.xlu0 %v3960, 16
  %v3962 = vpop.permute.xlu0 %3961
  %vm3963 = vcmask 261248
  %s3964 = scalar_lea.vmem %s1, 304
  %3965 = vst.msk [vmem:[%s3964] sm:$0xff] %vm3963, %v3962
  %s3966 = scalar_lea.vmem %s0, 2689
  %v3967 = vld [vmem:[%s3966] ss:$8 sm:$0xf]
  %s3968 = scalar_lea.vmem %s0, 2689
  %v3969 = vld [vmem:[%s3968] ss:$8 sm:$0xf0]
  %vm3970 = vcmask 1047556
  %v3971 = vsel %vm3970, %v3969, %v3967
  %3972 = vrot.lane.b32.xlu0 %v3971, 16
  %v3973 = vpop.permute.xlu0 %3972
  %vm3974 = vcmask 261248
  %s3975 = scalar_lea.vmem %s1, 336
  %3976 = vst.msk [vmem:[%s3975] sm:$0xff] %vm3974, %v3973
  %s3977 = scalar_lea.vmem %s0, 2945
  %v3978 = vld [vmem:[%s3977] ss:$8 sm:$0xf]
  %s3979 = scalar_lea.vmem %s0, 2945
  %v3980 = vld [vmem:[%s3979] ss:$8 sm:$0xf0]
  %vm3981 = vcmask 1047556
  %v3982 = vsel %vm3981, %v3980, %v3978
  %3983 = vrot.lane.b32.xlu0 %v3982, 16
  %v3984 = vpop.permute.xlu0 %3983
  %vm3985 = vcmask 261248
  %s3986 = scalar_lea.vmem %s1, 368
  %3987 = vst.msk [vmem:[%s3986] sm:$0xff] %vm3985, %v3984
  %s3988 = scalar_lea.vmem %s0, 193
  %v3989 = vld [vmem:[%s3988] ss:$8 sm:$0xf]
  %s3990 = scalar_lea.vmem %s0, 193
  %v3991 = vld [vmem:[%s3990] ss:$8 sm:$0xf0]
  %vm3992 = vcmask 1047556
  %v3993 = vsel %vm3992, %v3991, %v3989
  %3994 = vrot.lane.b32.xlu0 %v3993, 16
  %v3995 = vpop.permute.xlu0 %3994
  %vm3996 = vcmask 261248
  %s3997 = scalar_lea.vmem %s1, 24
  %3998 = vst.msk [vmem:[%s3997] sm:$0xff] %vm3996, %v3995
  %s3999 = scalar_lea.vmem %s0, 449
  %v4000 = vld [vmem:[%s3999] ss:$8 sm:$0xf]
  %s4001 = scalar_lea.vmem %s0, 449
  %v4002 = vld [vmem:[%s4001] ss:$8 sm:$0xf0]
  %vm4003 = vcmask 1047556
  %v4004 = vsel %vm4003, %v4002, %v4000
  %4005 = vrot.lane.b32.xlu0 %v4004, 16
  %v4006 = vpop.permute.xlu0 %4005
  %vm4007 = vcmask 261248
  %s4008 = scalar_lea.vmem %s1, 56
  %4009 = vst.msk [vmem:[%s4008] sm:$0xff] %vm4007, %v4006
  %s4010 = scalar_lea.vmem %s0, 705
  %v4011 = vld [vmem:[%s4010] ss:$8 sm:$0xf]
  %s4012 = scalar_lea.vmem %s0, 705
  %v4013 = vld [vmem:[%s4012] ss:$8 sm:$0xf0]
  %vm4014 = vcmask 1047556
  %v4015 = vsel %vm4014, %v4013, %v4011
  %4016 = vrot.lane.b32.xlu0 %v4015, 16
  %v4017 = vpop.permute.xlu0 %4016
  %vm4018 = vcmask 261248
  %s4019 = scalar_lea.vmem %s1, 88
  %4020 = vst.msk [vmem:[%s4019] sm:$0xff] %vm4018, %v4017
  %s4021 = scalar_lea.vmem %s0, 961
  %v4022 = vld [vmem:[%s4021] ss:$8 sm:$0xf]
  %s4023 = scalar_lea.vmem %s0, 961
  %v4024 = vld [vmem:[%s4023] ss:$8 sm:$0xf0]
  %vm4025 = vcmask 1047556
  %v4026 = vsel %vm4025, %v4024, %v4022
  %4027 = vrot.lane.b32.xlu0 %v4026, 16
  %v4028 = vpop.permute.xlu0 %4027
  %vm4029 = vcmask 261248
  %s4030 = scalar_lea.vmem %s1, 120
  %4031 = vst.msk [vmem:[%s4030] sm:$0xff] %vm4029, %v4028
  %s4032 = scalar_lea.vmem %s0, 1217
  %v4033 = vld [vmem:[%s4032] ss:$8 sm:$0xf]
  %s4034 = scalar_lea.vmem %s0, 1217
  %v4035 = vld [vmem:[%s4034] ss:$8 sm:$0xf0]
  %vm4036 = vcmask 1047556
  %v4037 = vsel %vm4036, %v4035, %v4033
  %4038 = vrot.lane.b32.xlu0 %v4037, 16
  %v4039 = vpop.permute.xlu0 %4038
  %vm4040 = vcmask 261248
  %s4041 = scalar_lea.vmem %s1, 152
  %4042 = vst.msk [vmem:[%s4041] sm:$0xff] %vm4040, %v4039
  %s4043 = scalar_lea.vmem %s0, 1473
  %v4044 = vld [vmem:[%s4043] ss:$8 sm:$0xf]
  %s4045 = scalar_lea.vmem %s0, 1473
  %v4046 = vld [vmem:[%s4045] ss:$8 sm:$0xf0]
  %vm4047 = vcmask 1047556
  %v4048 = vsel %vm4047, %v4046, %v4044
  %4049 = vrot.lane.b32.xlu0 %v4048, 16
  %v4050 = vpop.permute.xlu0 %4049
  %vm4051 = vcmask 261248
  %s4052 = scalar_lea.vmem %s1, 184
  %4053 = vst.msk [vmem:[%s4052] sm:$0xff] %vm4051, %v4050
  %s4054 = scalar_lea.vmem %s0, 1729
  %v4055 = vld [vmem:[%s4054] ss:$8 sm:$0xf]
  %s4056 = scalar_lea.vmem %s0, 1729
  %v4057 = vld [vmem:[%s4056] ss:$8 sm:$0xf0]
  %vm4058 = vcmask 1047556
  %v4059 = vsel %vm4058, %v4057, %v4055
  %4060 = vrot.lane.b32.xlu0 %v4059, 16
  %v4061 = vpop.permute.xlu0 %4060
  %vm4062 = vcmask 261248
  %s4063 = scalar_lea.vmem %s1, 216
  %4064 = vst.msk [vmem:[%s4063] sm:$0xff] %vm4062, %v4061
  %s4065 = scalar_lea.vmem %s0, 1985
  %v4066 = vld [vmem:[%s4065] ss:$8 sm:$0xf]
  %s4067 = scalar_lea.vmem %s0, 1985
  %v4068 = vld [vmem:[%s4067] ss:$8 sm:$0xf0]
  %vm4069 = vcmask 1047556
  %v4070 = vsel %vm4069, %v4068, %v4066
  %4071 = vrot.lane.b32.xlu0 %v4070, 16
  %v4072 = vpop.permute.xlu0 %4071
  %vm4073 = vcmask 261248
  %s4074 = scalar_lea.vmem %s1, 248
  %4075 = vst.msk [vmem:[%s4074] sm:$0xff] %vm4073, %v4072
  %s4076 = scalar_lea.vmem %s0, 2241
  %v4077 = vld [vmem:[%s4076] ss:$8 sm:$0xf]
  %s4078 = scalar_lea.vmem %s0, 2241
  %v4079 = vld [vmem:[%s4078] ss:$8 sm:$0xf0]
  %vm4080 = vcmask 1047556
  %v4081 = vsel %vm4080, %v4079, %v4077
  %4082 = vrot.lane.b32.xlu0 %v4081, 16
  %v4083 = vpop.permute.xlu0 %4082
  %vm4084 = vcmask 261248
  %s4085 = scalar_lea.vmem %s1, 280
  %4086 = vst.msk [vmem:[%s4085] sm:$0xff] %vm4084, %v4083
  %s4087 = scalar_lea.vmem %s0, 2497
  %v4088 = vld [vmem:[%s4087] ss:$8 sm:$0xf]
  %s4089 = scalar_lea.vmem %s0, 2497
  %v4090 = vld [vmem:[%s4089] ss:$8 sm:$0xf0]
  %vm4091 = vcmask 1047556
  %v4092 = vsel %vm4091, %v4090, %v4088
  %4093 = vrot.lane.b32.xlu0 %v4092, 16
  %v4094 = vpop.permute.xlu0 %4093
  %vm4095 = vcmask 261248
  %s4096 = scalar_lea.vmem %s1, 312
  %4097 = vst.msk [vmem:[%s4096] sm:$0xff] %vm4095, %v4094
  %s4098 = scalar_lea.vmem %s0, 2753
  %v4099 = vld [vmem:[%s4098] ss:$8 sm:$0xf]
  %s4100 = scalar_lea.vmem %s0, 2753
  %v4101 = vld [vmem:[%s4100] ss:$8 sm:$0xf0]
  %vm4102 = vcmask 1047556
  %v4103 = vsel %vm4102, %v4101, %v4099
  %4104 = vrot.lane.b32.xlu0 %v4103, 16
  %v4105 = vpop.permute.xlu0 %4104
  %vm4106 = vcmask 261248
  %s4107 = scalar_lea.vmem %s1, 344
  %4108 = vst.msk [vmem:[%s4107] sm:$0xff] %vm4106, %v4105
  %s4109 = scalar_lea.vmem %s0, 3009
  %v4110 = vld [vmem:[%s4109] ss:$8 sm:$0xf]
  %s4111 = scalar_lea.vmem %s0, 3009
  %v4112 = vld [vmem:[%s4111] ss:$8 sm:$0xf0]
  %vm4113 = vcmask 1047556
  %v4114 = vsel %vm4113, %v4112, %v4110
  %4115 = vrot.lane.b32.xlu0 %v4114, 16
  %v4116 = vpop.permute.xlu0 %4115
  %vm4117 = vcmask 261248
  %s4118 = scalar_lea.vmem %s1, 376
  %4119 = vst.msk [vmem:[%s4118] sm:$0xff] %vm4117, %v4116

// kernel: stgcn_block_apply.1
$region0: #{stgcn_block_apply.1}
  #allocation0 [shape = 'u32[]', space=smem, size = 0x4, offset = 0x4, fixed_abs, tag = 'smem constant byte address 0x4 - core index']
  #allocation1 [shape = 'u32[144,128]{1,0:T(1,128)}', space=vmem, size = 0x12000, scoped, tag = 'internal scratch']
  #allocation2 [shape = 'f32[384,128]{1,0:T(8,128)}', space=vmem, size = 0x30000, scoped, tag = 'scratch operand']
  #allocation3 [shape = 'f32[144,128]{1,0:T(8,128)}', space=vmem, size = 0x12000, scoped, tag = 'scratch operand']
  %s0 = inlined_call_operand.vmem [shape: f32[2,16,128], index: 0, kind: input, shape index: {}]
  %s1 = inlined_call_operand.vmem [shape: f32[2,16,128], index: 1, kind: input, shape index: {}]
  %s2 = inlined_call_operand.vmem [shape: f32[4,128,128], index: 2, kind: input, shape index: {}]
  %s3 = inlined_call_operand.vmem [shape: bf16[192,128], index: 3, kind: input, shape index: {}]
  %s4 = inlined_call_operand.vmem [shape: f32[1,192], index: 4, kind: input, shape index: {}]
  %s5 = inlined_call_operand.vmem [shape: f32[128,144], index: 5, kind: input, shape index: {}]
  %s6 = inlined_call_operand.vmem [shape: f32[16,144], index: 6, kind: input, shape index: {}]
  %s7 = inlined_call_operand.vmem [shape: f32[112,16], index: 7, kind: input, shape index: {}]
  %s8 = inlined_call_operand.vmem [shape: f32[2], index: 8, kind: input, shape index: {}]
  %s9 = inlined_call_operand.vmem [shape: f32[2,16,128], index: 9, kind: output, shape index: {}]
  %s10 = sld [smem:[#allocation0]]
  $region73: #{stgcn_block_apply.1} parent=0
    _
  %s12 = ssub.s32 1, %s10
  %s13 = scalar_select 0, %s12, %s10
  $region1: #{stgcn_block_apply.1} parent=0
    #allocation4 [shape = 'u8[512]{0}', space=smem, size = 0x200, scoped, tag = 'input window, operand 8, single buffered']
    #allocation5 [shape = 's32[2]{0}', space=sflag, size = 0x8, scoped, tag = 'scoped memory for stgcn_block_apply.1']
    %14 = vsyncpa [#allocation5], 0
    loop: start=0, step=1, limit=4
    $region2: #{stgcn_block_apply.1} parent=1 // loop_pre_header
      _
    $region3: #{stgcn_block_apply.1} parent=1 // loop_header
      %s16 = sphi 0, %s20
      %p17 = scmp.ge.s32.totalorder %s16, 4
      %s26 = sphi 0, %s28
      %s29 = sphi 0, %s26
      %s30 = sphi 0, %s29
      %s46 = sphi 0, %s30
      %s52 = sphi 0, %s54
      %s55 = sphi 0, %s52
      %s56 = sphi 0, %s55
      %s72 = sphi 0, %s56
      %s76 = sphi 0, %s76
      %s78 = sphi 0, %s76
      %s79 = sphi 0, %s78
      %s93 = sphi 0, %s79
      %s97 = sphi 0, %s97
      %s99 = sphi 0, %s97
      %s100 = sphi 0, %s99
      %s114 = sphi 0, %s100
      %s118 = sphi 0, %s118
      %s120 = sphi 0, %s118
      %s121 = sphi 0, %s120
      %s135 = sphi 0, %s121
      %s139 = sphi 0, %s139
      %s141 = sphi 0, %s139
      %s142 = sphi 0, %s141
      %s156 = sphi 0, %s142
      %s160 = sphi 0, %s160
      %s162 = sphi 0, %s160
      %s163 = sphi 0, %s162
      %s177 = sphi 0, %s163
      %s181 = sphi 0, %s181
      %s183 = sphi 0, %s181
      %s184 = sphi 0, %s183
      %s198 = sphi 0, %s184
      %s202 = sphi 0, %s202
      %s204 = sphi 0, %s202
      %s205 = sphi 0, %s204
      %s219 = sphi 0, %s205
      %s225 = sphi 0, %s227
      %s228 = sphi 0, %s225
      %s229 = sphi 0, %s228
      %s245 = sphi 0, %s229
    $region4: #{stgcn_block_apply.1} parent=1 // loop_header_branch
      %19 = sbr.rel (%p17) target = $region8
    $region5: #{stgcn_block_apply.1} parent=1 // loop_body
      %s21 = ssub.s32 %s16, 1
      %s22 = ssub.s32 %s16, 2
      %s23 = sadd.s32 %s16, 1
      %s24 = ssub.s32 %s16, %s23
      %p25 = scmp.eq.s32.totalorder %s24, 0
      %s27 = sadd.s32 %s26, 1
      %s28 = scalar_select %p25, %s26, %s27
      %p31 = pneg %p25
      %p32 = scmp.eq.s32.totalorder %s16, 1
      %p33 = por %p31, %p32
      %p34 = scmp.ne.s32.totalorder %s26, %s29
      %p35 = scmp.eq.s32.totalorder %s16, 0
      %p36 = por %p34, %p35
      %p37 = scmp.ne.s32.totalorder %s26, %s29
      %p38 = scmp.eq.s32.totalorder %s21, 1
      %p39 = por %p37, %p38
      %p40 = scmp.ne.s32.totalorder %s29, %s30
      %p41 = scmp.eq.s32.totalorder %s21, 0
      %p42 = por %p40, %p41
      %p43 = scmp.ne.s32.totalorder %s29, %s30
      %p44 = scmp.eq.s32.totalorder %s22, 1
      %p45 = por %p43, %p44
      %p47 = scmp.ne.s32.totalorder %s30, %s46
      %p48 = scmp.eq.s32.totalorder %s22, 0
      %p49 = por %p47, %p48
      %s50 = ssub.s32 %s16, %s23
      %p51 = scmp.eq.s32.totalorder %s50, 0
      %s53 = sadd.s32 %s52, 1
      %s54 = scalar_select %p51, %s52, %s53
      %p57 = pneg %p51
      %p58 = scmp.eq.s32.totalorder %s16, 1
      %p59 = por %p57, %p58
      %p60 = scmp.ne.s32.totalorder %s52, %s55
      %p61 = scmp.eq.s32.totalorder %s16, 0
      %p62 = por %p60, %p61
      %p63 = scmp.ne.s32.totalorder %s52, %s55
      %p64 = scmp.eq.s32.totalorder %s21, 1
      %p65 = por %p63, %p64
      %p66 = scmp.ne.s32.totalorder %s55, %s56
      %p67 = scmp.eq.s32.totalorder %s21, 0
      %p68 = por %p66, %p67
      %p69 = scmp.ne.s32.totalorder %s55, %s56
      %p70 = scmp.eq.s32.totalorder %s22, 1
      %p71 = por %p69, %p70
      %p73 = scmp.ne.s32.totalorder %s56, %s72
      %p74 = scmp.eq.s32.totalorder %s22, 0
      %p75 = por %p73, %p74
      %s77 = sadd.s32 %s76, 1
      %p80 = scmp.eq.s32.totalorder %s16, 1
      %p81 = scmp.ne.s32.totalorder %s76, %s78
      %p82 = scmp.eq.s32.totalorder %s16, 0
      %p83 = por %p81, %p82
      %p84 = scmp.ne.s32.totalorder %s76, %s78
      %p85 = scmp.eq.s32.totalorder %s21, 1
      %p86 = por %p84, %p85
      %p87 = scmp.ne.s32.totalorder %s78, %s79
      %p88 = scmp.eq.s32.totalorder %s21, 0
      %p89 = por %p87, %p88
      %p90 = scmp.ne.s32.totalorder %s78, %s79
      %p91 = scmp.eq.s32.totalorder %s22, 1
      %p92 = por %p90, %p91
      %p94 = scmp.ne.s32.totalorder %s79, %s93
      %p95 = scmp.eq.s32.totalorder %s22, 0
      %p96 = por %p94, %p95
      %s98 = sadd.s32 %s97, 1
      %p101 = scmp.eq.s32.totalorder %s16, 1
      %p102 = scmp.ne.s32.totalorder %s97, %s99
      %p103 = scmp.eq.s32.totalorder %s16, 0
      %p104 = por %p102, %p103
      %p105 = scmp.ne.s32.totalorder %s97, %s99
      %p106 = scmp.eq.s32.totalorder %s21, 1
      %p107 = por %p105, %p106
      %p108 = scmp.ne.s32.totalorder %s99, %s100
      %p109 = scmp.eq.s32.totalorder %s21, 0
      %p110 = por %p108, %p109
      %p111 = scmp.ne.s32.totalorder %s99, %s100
      %p112 = scmp.eq.s32.totalorder %s22, 1
      %p113 = por %p111, %p112
      %p115 = scmp.ne.s32.totalorder %s100, %s114
      %p116 = scmp.eq.s32.totalorder %s22, 0
      %p117 = por %p115, %p116
      %s119 = sadd.s32 %s118, 1
      %p122 = scmp.eq.s32.totalorder %s16, 1
      %p123 = scmp.ne.s32.totalorder %s118, %s120
      %p124 = scmp.eq.s32.totalorder %s16, 0
      %p125 = por %p123, %p124
      %p126 = scmp.ne.s32.totalorder %s118, %s120
      %p127 = scmp.eq.s32.totalorder %s21, 1
      %p128 = por %p126, %p127
      %p129 = scmp.ne.s32.totalorder %s120, %s121
      %p130 = scmp.eq.s32.totalorder %s21, 0
      %p131 = por %p129, %p130
      %p132 = scmp.ne.s32.totalorder %s120, %s121
      %p133 = scmp.eq.s32.totalorder %s22, 1
      %p134 = por %p132, %p133
      %p136 = scmp.ne.s32.totalorder %s121, %s135
      %p137 = scmp.eq.s32.totalorder %s22, 0
      %p138 = por %p136, %p137
      %s140 = sadd.s32 %s139, 1
      %p143 = scmp.eq.s32.totalorder %s16, 1
      %p144 = scmp.ne.s32.totalorder %s139, %s141
      %p145 = scmp.eq.s32.totalorder %s16, 0
      %p146 = por %p144, %p145
      %p147 = scmp.ne.s32.totalorder %s139, %s141
      %p148 = scmp.eq.s32.totalorder %s21, 1
      %p149 = por %p147, %p148
      %p150 = scmp.ne.s32.totalorder %s141, %s142
      %p151 = scmp.eq.s32.totalorder %s21, 0
      %p152 = por %p150, %p151
      %p153 = scmp.ne.s32.totalorder %s141, %s142
      %p154 = scmp.eq.s32.totalorder %s22, 1
      %p155 = por %p153, %p154
      %p157 = scmp.ne.s32.totalorder %s142, %s156
      %p158 = scmp.eq.s32.totalorder %s22, 0
      %p159 = por %p157, %p158
      %s161 = sadd.s32 %s160, 1
      %p164 = scmp.eq.s32.totalorder %s16, 1
      %p165 = scmp.ne.s32.totalorder %s160, %s162
      %p166 = scmp.eq.s32.totalorder %s16, 0
      %p167 = por %p165, %p166
      %p168 = scmp.ne.s32.totalorder %s160, %s162
      %p169 = scmp.eq.s32.totalorder %s21, 1
      %p170 = por %p168, %p169
      %p171 = scmp.ne.s32.totalorder %s162, %s163
      %p172 = scmp.eq.s32.totalorder %s21, 0
      %p173 = por %p171, %p172
      %p174 = scmp.ne.s32.totalorder %s162, %s163
      %p175 = scmp.eq.s32.totalorder %s22, 1
      %p176 = por %p174, %p175
      %p178 = scmp.ne.s32.totalorder %s163, %s177
      %p179 = scmp.eq.s32.totalorder %s22, 0
      %p180 = por %p178, %p179
      %s182 = sadd.s32 %s181, 1
      %p185 = scmp.eq.s32.totalorder %s16, 1
      %p186 = scmp.ne.s32.totalorder %s181, %s183
      %p187 = scmp.eq.s32.totalorder %s16, 0
      %p188 = por %p186, %p187
      %p189 = scmp.ne.s32.totalorder %s181, %s183
      %p190 = scmp.eq.s32.totalorder %s21, 1
      %p191 = por %p189, %p190
      %p192 = scmp.ne.s32.totalorder %s183, %s184
      %p193 = scmp.eq.s32.totalorder %s21, 0
      %p194 = por %p192, %p193
      %p195 = scmp.ne.s32.totalorder %s183, %s184
      %p196 = scmp.eq.s32.totalorder %s22, 1
      %p197 = por %p195, %p196
      %p199 = scmp.ne.s32.totalorder %s184, %s198
      %p200 = scmp.eq.s32.totalorder %s22, 0
      %p201 = por %p199, %p200
      %s203 = sadd.s32 %s202, 1
      %p206 = scmp.eq.s32.totalorder %s16, 1
      %p207 = scmp.ne.s32.totalorder %s202, %s204
      %p208 = scmp.eq.s32.totalorder %s16, 0
      %p209 = por %p207, %p208
      %p210 = scmp.ne.s32.totalorder %s202, %s204
      %p211 = scmp.eq.s32.totalorder %s21, 1
      %p212 = por %p210, %p211
      %p213 = scmp.ne.s32.totalorder %s204, %s205
      %p214 = scmp.eq.s32.totalorder %s21, 0
      %p215 = por %p213, %p214
      %p216 = scmp.ne.s32.totalorder %s204, %s205
      %p217 = scmp.eq.s32.totalorder %s22, 1
      %p218 = por %p216, %p217
      %p220 = scmp.ne.s32.totalorder %s205, %s219
      %p221 = scmp.eq.s32.totalorder %s22, 0
      %p222 = por %p220, %p221
      %s223 = ssub.s32 %s16, %s23
      %p224 = scmp.eq.s32.totalorder %s223, 0
      %s226 = sadd.s32 %s225, 1
      %s227 = scalar_select %p224, %s225, %s226
      %p230 = pneg %p224
      %p231 = scmp.eq.s32.totalorder %s16, 1
      %p232 = por %p230, %p231
      %p233 = scmp.ne.s32.totalorder %s225, %s228
      %p234 = scmp.eq.s32.totalorder %s16, 0
      %p235 = por %p233, %p234
      %p236 = scmp.ne.s32.totalorder %s225, %s228
      %p237 = scmp.eq.s32.totalorder %s21, 1
      %p238 = por %p236, %p237
      %p239 = scmp.ne.s32.totalorder %s228, %s229
      %p240 = scmp.eq.s32.totalorder %s21, 0
      %p241 = por %p239, %p240
      %p242 = scmp.ne.s32.totalorder %s228, %s229
      %p243 = scmp.eq.s32.totalorder %s22, 1
      %p244 = por %p242, %p243
      %p246 = scmp.ne.s32.totalorder %s229, %s245
      %p247 = scmp.eq.s32.totalorder %s22, 0
      %p248 = por %p246, %p247
      %p249 = scmp.le.s32.totalorder 1, %s16
      %p250 = scmp.lt.s32.totalorder %s16, 3
      %p251 = pnand %p249, %p250
      %p252 = pneg %p251
      // Predicated region
      $region9: #{stgcn_block_apply.1} parent=5 // pred_check
        _
      $region10: #{stgcn_block_apply.1} parent=5 // pred_check_branch
        %254 = sbr.rel (%p251) target = $region12
      $region11: #{stgcn_block_apply.1} parent=5 // pred_region
        %s255 = ssub.s32 %s16, 1
        // Predicated region
        $region13: #{stgcn_block_apply.1} parent=11 // pred_check
          %p256 = pneg %p89
        $region14: #{stgcn_block_apply.1} parent=11 // pred_check_branch
          %258 = sbr.rel (%p256) target = $region16
        $region15: #{stgcn_block_apply.1} parent=11 // pred_region
          _
        $region16: #{stgcn_block_apply.1} parent=11 // pred_fallthru
          _
        // Predicated region
        $region17: #{stgcn_block_apply.1} parent=11 // pred_check
          %p259 = pneg %p110
        $region18: #{stgcn_block_apply.1} parent=11 // pred_check_branch
          %261 = sbr.rel (%p259) target = $region20
        $region19: #{stgcn_block_apply.1} parent=11 // pred_region
          _
        $region20: #{stgcn_block_apply.1} parent=11 // pred_fallthru
          _
        // Predicated region
        $region21: #{stgcn_block_apply.1} parent=11 // pred_check
          %p262 = pneg %p131
        $region22: #{stgcn_block_apply.1} parent=11 // pred_check_branch
          %264 = sbr.rel (%p262) target = $region24
        $region23: #{stgcn_block_apply.1} parent=11 // pred_region
          _
        $region24: #{stgcn_block_apply.1} parent=11 // pred_fallthru
          _
        // Predicated region
        $region25: #{stgcn_block_apply.1} parent=11 // pred_check
          %p265 = pneg %p152
        $region26: #{stgcn_block_apply.1} parent=11 // pred_check_branch
          %267 = sbr.rel (%p265) target = $region28
        $region27: #{stgcn_block_apply.1} parent=11 // pred_region
          _
        $region28: #{stgcn_block_apply.1} parent=11 // pred_fallthru
          _
        // Predicated region
        $region29: #{stgcn_block_apply.1} parent=11 // pred_check
          %p268 = pneg %p173
        $region30: #{stgcn_block_apply.1} parent=11 // pred_check_branch
          %270 = sbr.rel (%p268) target = $region32
        $region31: #{stgcn_block_apply.1} parent=11 // pred_region
          _
        $region32: #{stgcn_block_apply.1} parent=11 // pred_fallthru
          _
        // Predicated region
        $region33: #{stgcn_block_apply.1} parent=11 // pred_check
          %p271 = pneg %p194
        $region34: #{stgcn_block_apply.1} parent=11 // pred_check_branch
          %273 = sbr.rel (%p271) target = $region36
        $region35: #{stgcn_block_apply.1} parent=11 // pred_region
          _
        $region36: #{stgcn_block_apply.1} parent=11 // pred_fallthru
          _
        // Predicated region
        $region37: #{stgcn_block_apply.1} parent=11 // pred_check
          %p274 = pneg %p215
        $region38: #{stgcn_block_apply.1} parent=11 // pred_check_branch
          %276 = sbr.rel (%p274) target = $region40
        $region39: #{stgcn_block_apply.1} parent=11 // pred_region
          %s278 = ssub.s32 16, 16
          %279 = vsyncadd [#allocation5], %s278
          %s281 = sshll.u32 %s8, 4
          %s282 = int_to_ptr.vmem [resolvable:$true] %s281
          %284 = dma.vmem_to_smem %s282, 16, [#allocation4], [#allocation5]
        $region40: #{stgcn_block_apply.1} parent=11 // pred_fallthru
          _
      $region12: #{stgcn_block_apply.1} parent=5 // pred_fallthru
        _
      %p285 = scmp.lt.s32.totalorder %s16, 2
      // Predicated region
      $region41: #{stgcn_block_apply.1} parent=5 // pred_check
        %p286 = pneg %p285
      $region42: #{stgcn_block_apply.1} parent=5 // pred_check_branch
        %288 = sbr.rel (%p286) target = $region44
      $region43: #{stgcn_block_apply.1} parent=5 // pred_region
        // Predicated region
        $region45: #{stgcn_block_apply.1} parent=43 // pred_check
          %p289 = pneg %p36
        $region46: #{stgcn_block_apply.1} parent=43 // pred_check_branch
          %291 = sbr.rel (%p289) target = $region48
        $region47: #{stgcn_block_apply.1} parent=43 // pred_region
          %p292 = scmp.lt.s32.totalorder %s16, 1
          %s293 = scalar_select %p292, %s16, 1
          %s294 = smul.addr %s293, 2
          %s295 = smul.addr %s294, 8
          %s296 = scalar_lea.vmem %s0, %s295
        $region48: #{stgcn_block_apply.1} parent=43 // pred_fallthru
          _
        // Predicated region
        $region49: #{stgcn_block_apply.1} parent=43 // pred_check
          %p297 = pneg %p62
        $region50: #{stgcn_block_apply.1} parent=43 // pred_check_branch
          %299 = sbr.rel (%p297) target = $region52
        $region51: #{stgcn_block_apply.1} parent=43 // pred_region
          %p300 = scmp.lt.s32.totalorder %s16, 1
          %s301 = scalar_select %p300, %s16, 1
          %s302 = smul.addr %s301, 2
          %s303 = smul.addr %s302, 8
          %s304 = scalar_lea.vmem %s1, %s303
        $region52: #{stgcn_block_apply.1} parent=43 // pred_fallthru
          _
      $region44: #{stgcn_block_apply.1} parent=5 // pred_fallthru
        _
      %p305 = scmp.le.s32.totalorder 1, %s16
      %p306 = scmp.lt.s32.totalorder %s16, 3
      %p307 = pnand %p305, %p306
      %p308 = pneg %p307
      // Predicated region
      $region53: #{stgcn_block_apply.1} parent=5 // pred_check
        _
      $region54: #{stgcn_block_apply.1} parent=5 // pred_check_branch
        %310 = sbr.rel (%p307) target = $region56
      $region55: #{stgcn_block_apply.1} parent=5 // pred_region
        %s311 = ssub.s32 %s16, 1
        // Predicated region
        $region57: #{stgcn_block_apply.1} parent=55 // pred_check
          %p312 = pneg %p215
        $region58: #{stgcn_block_apply.1} parent=55 // pred_check_branch
          %314 = sbr.rel (%p312) target = $region60
        $region59: #{stgcn_block_apply.1} parent=55 // pred_region
          %315 = dma.done [#allocation5], 16
        $region60: #{stgcn_block_apply.1} parent=55 // pred_fallthru
          _
        %316 = sfence
        %p317 = scmp.lt.s32.totalorder %s21, 1
        %s318 = scalar_select %p317, %s21, 1
        %s319 = smul.addr %s318, 2
        %s320 = smul.addr %s319, 8
        %s321 = scalar_lea.vmem %s0, %s320
        %p322 = pneg %p42
        %p323 = pneg %p39
        %p324 = scmp.lt.s32.totalorder %s21, 1
        %s325 = scalar_select %p324, %s21, 1
        %s326 = smul.addr %s325, 2
        %s327 = smul.addr %s326, 8
        %s328 = scalar_lea.vmem %s1, %s327
        %p329 = pneg %p68
        %p330 = pneg %p65
        %p331 = pneg %p89
        %p332 = pneg %p86
        %p333 = pneg %p110
        %p334 = pneg %p107
        %p335 = pneg %p131
        %p336 = pneg %p128
        %p337 = pneg %p152
        %p338 = pneg %p149
        %p339 = pneg %p173
        %p340 = pneg %p170
        %p341 = pneg %p194
        %p342 = pneg %p191
        %p343 = pneg %p215
        %p344 = pneg %p212
        %p345 = pneg %p241
        %p346 = pneg %p238
        %p347 = scmp.lt.s32.totalorder %s21, 1
        %s348 = scalar_select %p347, %s21, 1
        %s349 = smul.addr %s348, 2
        %s350 = smul.addr %s349, 8
        %s351 = scalar_lea.vmem %s9, %s350
        %p352 = scmp.lt.s32.totalorder %s21, 1
        %s353 = scalar_select %p352, %s21, 1
        %s354 = smul.addr %s353, 2
        %s355 = smul.addr %s354, 8
        %s356 = scalar_lea.vmem %s0, %s355
        %p357 = scmp.lt.s32.totalorder %s21, 1
        %s358 = scalar_select %p357, %s21, 1
        %s359 = smul.addr %s358, 2
        %s360 = smul.addr %s359, 8
        %s361 = scalar_lea.vmem %s1, %s360
        %p362 = scmp.lt.s32.totalorder %s21, 1
        %s363 = scalar_select %p362, %s21, 1
        %s364 = smul.addr %s363, 2
        %s365 = smul.addr %s364, 8
        %s366 = scalar_lea.vmem %s9, %s365
        %v368 = vld [vmem:[%s356] sm:$0xff]
        %v369 = vld [vmem:[%s356 + $0x8] sm:$0xff]
        %s370 = sld [smem:[#allocation4]]
        %s371 = sld [smem:[#allocation4 + $0x1]]
        %v372 = vld [vmem:[%s361] sm:$0xff]
        %v373 = vld [vmem:[%s361 + $0x8] sm:$0xff]
        %v374 = vpack.c.bf16 %v373, %v372
        %v375 = vld [vmem:[%s3] sm:$0xf]
        %v376 = vld [vmem:[%s3 + $0x4] sm:$0xf]
        %v377 = vld [vmem:[%s3 + $0x8] sm:$0xf]
        %v378 = vld [vmem:[%s3 + $0xc] sm:$0xf]
        %v379 = vld [vmem:[%s3 + $0x10] sm:$0xf]
        %v380 = vld [vmem:[%s3 + $0x14] sm:$0xf]
        %v381 = vld [vmem:[%s3 + $0x18] sm:$0xf]
        %v382 = vld [vmem:[%s3 + $0x1c] sm:$0xf]
        %v383 = vld [vmem:[%s3 + $0x20] sm:$0xf]
        %v384 = vld [vmem:[%s3 + $0x24] sm:$0xf]
        %v385 = vld [vmem:[%s3 + $0x28] sm:$0xf]
        %v386 = vld [vmem:[%s3 + $0x2c] sm:$0xf]
        %v387 = vld [vmem:[%s3 + $0x30] sm:$0xf]
        %v388 = vld [vmem:[%s3 + $0x34] sm:$0xf]
        %v389 = vld [vmem:[%s3 + $0x38] sm:$0xf]
        %v390 = vld [vmem:[%s3 + $0x3c] sm:$0xf]
        %v391 = vld [vmem:[%s3 + $0x40] sm:$0xf]
        %v392 = vld [vmem:[%s3 + $0x44] sm:$0xf]
        %v393 = vld [vmem:[%s3 + $0x48] sm:$0xf]
        %v394 = vld [vmem:[%s3 + $0x4c] sm:$0xf]
        %v395 = vld [vmem:[%s3 + $0x50] sm:$0xf]
        %v396 = vld [vmem:[%s3 + $0x54] sm:$0xf]
        %v397 = vld [vmem:[%s3 + $0x58] sm:$0xf]
        %v398 = vld [vmem:[%s3 + $0x5c] sm:$0xf]
        %v399 = vld [vmem:[%s4] sm:$0x3]
        %v401 = vlaneseq
        %v402 = vshrl.u32 %v401, 7
        %v403 = vsub.s32 0, %v402
        %v404 = vrot.slane %v399, %v403
        %v405 = vlaneseq
        %v406 = vshrl.u32 %v405, 7
        %v407 = vsub.s32 1, %v406
        %v408 = vrot.slane %v399, %v407
        %v435 = vunpack.c.l.b16 %v375
        %v436 = vunpack.c.l.b16 %v376
        %v437 = vunpack.c.l.b16 %v377
        %v438 = vunpack.c.l.b16 %v378
        %v439 = vunpack.c.l.b16 %v379
        %v440 = vunpack.c.l.b16 %v380
        %v441 = vunpack.c.l.b16 %v381
        %v442 = vunpack.c.l.b16 %v382
        %v443 = vunpack.c.l.b16 %v383
        %v444 = vunpack.c.l.b16 %v384
        %v445 = vunpack.c.l.b16 %v385
        %v446 = vunpack.c.l.b16 %v386
        %v447 = vunpack.c.l.b16 %v387
        %v448 = vunpack.c.l.b16 %v388
        %v449 = vunpack.c.l.b16 %v389
        %v450 = vunpack.c.l.b16 %v390
        %v451 = vunpack.c.l.b16 %v391
        %v452 = vunpack.c.l.b16 %v392
        %v453 = vunpack.c.l.b16 %v393
        %v454 = vunpack.c.l.b16 %v394
        %v455 = vunpack.c.l.b16 %v395
        %v456 = vunpack.c.l.b16 %v396
        %v457 = vunpack.c.l.b16 %v397
        %v458 = vunpack.c.l.b16 %v398
        %v459 = vpack.c.b16 %v436, %v435
        %v460 = vpack.c.b16 %v438, %v437
        %v461 = vpack.c.b16 %v440, %v439
        %v462 = vpack.c.b16 %v442, %v441
        %v463 = vpack.c.b16 %v444, %v443
        %v464 = vpack.c.b16 %v446, %v445
        %v465 = vpack.c.b16 %v448, %v447
        %v466 = vpack.c.b16 %v450, %v449
        %v467 = vpack.c.b16 %v452, %v451
        %v468 = vpack.c.b16 %v454, %v453
        %v469 = vpack.c.b16 %v456, %v455
        %v470 = vpack.c.b16 %v458, %v457
        %483 = vmatprep.subr.bf16.mxu0 0
        %484 = vmatpush1.bf16.xpose.msra.mxu0 %v466
        %485 = vmatprep.subr.bf16.mxu0 0
        %486 = vmatpush1.bf16.xpose.msra.mxu0 %v465
        %487 = vmatprep.subr.bf16.mxu0 0
        %488 = vmatpush1.bf16.xpose.msra.mxu0 %v464
        %489 = vmatprep.subr.bf16.mxu0 0
        %490 = vmatpush1.bf16.xpose.msra.mxu0 %v463
        %491 = vmatprep.subr.bf16.mxu0 0
        %492 = vmatpush1.bf16.xpose.msra.mxu0 %v462
        %493 = vmatprep.subr.bf16.mxu0 0
        %494 = vmatpush1.bf16.xpose.msra.mxu0 %v461
        %495 = vmatprep.subr.bf16.mxu0 0
        %496 = vmatpush1.bf16.xpose.msra.mxu0 %v460
        %497 = vmatprep.subr.bf16.mxu0 0
        %498 = vmatpush1.bf16.xpose.msra.mxu0 %v459
        %499 = vmatprep.subr.bf16.mxu0 0
        %500 = vmatpush2.bf16.xpose.msra.mxu0 0
        %501 = vmatprep.subr.bf16.mxu0 0
        %502 = vmatpush2.bf16.xpose.msra.mxu0 0
        %503 = vmatprep.subr.bf16.mxu0 0
        %504 = vmatpush2.bf16.xpose.msra.mxu0 0
        %505 = vmatprep.subr.bf16.mxu0 0
        %506 = vmatpush2.bf16.xpose.msra.mxu0 0
        %507 = vmatprep.subr.bf16.mxu0 0
        %508 = vmatpush2.bf16.xpose.msra.mxu0 %v470
        %509 = vmatprep.subr.bf16.mxu0 0
        %510 = vmatpush2.bf16.xpose.msra.mxu0 %v469
        %511 = vmatprep.subr.bf16.mxu0 0
        %512 = vmatpush2.bf16.xpose.msra.mxu0 %v468
        %513 = vmatprep.subr.bf16.mxu0 0
        %514 = vmatpush2.bf16.xpose.msra.mxu0 %v467
        %515 = vmatprep.mubr.bf16.mxu0 0
        %516 = vmatmul.mubr.bf16.gmra.mxu0 %v374
        %v517 = vpop.f32.mrf.mxu0
        %v518 = vadd.f32 %v404, %v517
        %v519 = vpop.f32.mrf.mxu0
        %v520 = vadd.f32 %v408, %v519
        %v521 = vpop.f32.mrf.mxu0
        %v522 = vadd.f32 %v404, %v521
        %v523 = vpop.f32.mrf.mxu0
        %v524 = vadd.f32 %v408, %v523
        %525 = vdwg.mxu0
        %v526 = vld [vmem:[%s7] sm:$0xff]
        %v527 = vld [vmem:[%s7 + $0x8] sm:$0xff]
        %v528 = vld [vmem:[%s7 + $0x10] sm:$0xff]
        %v529 = vld [vmem:[%s7 + $0x18] sm:$0xff]
        %v530 = vld [vmem:[%s7 + $0x20] sm:$0xff]
        %v531 = vld [vmem:[%s7 + $0x28] sm:$0xff]
        %vm532 = vcmask 130048
        %v534 = vsel %vm532, %v526, 0
        %v537 = vsel %vm532, %v527, 0
        %v540 = vsel %vm532, %v528, 0
        %v543 = vsel %vm532, %v529, 0
        %v546 = vsel %vm532, %v530, 0
        %v549 = vsel %vm532, %v531, 0
        %551 = vmatprep.subr.mxu0 0.0
        %552 = vmatpush1.msra.mxu0 0.0
        %553 = vmatprep.subr.mxu0 0.0
        %554 = vmatpush1.msra.mxu0 0.0
        %555 = vmatprep.subr.mxu0 0.0
        %556 = vmatpush1.msra.mxu0 0.0
        %557 = vmatprep.subr.mxu0 0.0
        %558 = vmatpush1.msra.mxu0 0.0
        %559 = vmatprep.subr.mxu0 0.0
        %560 = vmatpush1.msra.mxu0 0.0
        %561 = vmatprep.subr.mxu0 0.0
        %562 = vmatpush1.msra.mxu0 0.0
        %563 = vmatprep.subr.mxu0 0.0
        %564 = vmatpush1.msra.mxu0 0.0
        %565 = vmatprep.subr.mxu0 0.0
        %566 = vmatpush1.msra.mxu0 0.0
        %567 = vmatprep.subr.mxu0 0.0
        %568 = vmatpush1.msra.mxu0 0.0
        %569 = vmatprep.subr.mxu0 0.0
        %570 = vmatpush1.msra.mxu0 0.0
        %571 = vmatprep.subr.mxu0 0.0
        %572 = vmatpush1.msra.mxu0 0.0
        %573 = vmatprep.subr.mxu0 0.0
        %574 = vmatpush1.msra.mxu0 0.0
        %575 = vmatprep.subr.mxu0 0.0
        %576 = vmatpush1.msra.mxu0 0.0
        %577 = vmatprep.subr.mxu0 0.0
        %578 = vmatpush1.msra.mxu0 0.0
        %579 = vmatprep.subr.mxu0 0.0
        %580 = vmatpush1.msra.mxu0 %v369
        %581 = vmatprep.subr.mxu0 0.0
        %582 = vmatpush1.msra.mxu0 %v368
        %583 = vmatprep.subr.mxu0 0.0
        %584 = vmatpush2.msra.mxu0 0.0
        %585 = vmatprep.subr.mxu0 0.0
        %586 = vmatpush2.msra.mxu0 0.0
        %587 = vmatprep.subr.mxu0 0.0
        %588 = vmatpush2.msra.mxu0 0.0
        %589 = vmatprep.subr.mxu0 0.0
        %590 = vmatpush2.msra.mxu0 0.0
        %591 = vmatprep.subr.mxu0 0.0
        %592 = vmatpush2.msra.mxu0 0.0
        %593 = vmatprep.subr.mxu0 0.0
        %594 = vmatpush2.msra.mxu0 0.0
        %595 = vmatprep.subr.mxu0 0.0
        %596 = vmatpush2.msra.mxu0 0.0
        %597 = vmatprep.subr.mxu0 0.0
        %598 = vmatpush2.msra.mxu0 0.0
        %599 = vmatprep.subr.mxu0 0.0
        %600 = vmatpush2.msra.mxu0 0.0
        %601 = vmatprep.subr.mxu0 0.0
        %602 = vmatpush2.msra.mxu0 0.0
        %603 = vmatprep.subr.mxu0 0.0
        %604 = vmatpush2.msra.mxu0 0.0
        %605 = vmatprep.subr.mxu0 0.0
        %606 = vmatpush2.msra.mxu0 0.0
        %607 = vmatprep.subr.mxu0 0.0
        %608 = vmatpush2.msra.mxu0 0.0
        %609 = vmatprep.subr.mxu0 0.0
        %610 = vmatpush2.msra.mxu0 0.0
        %611 = vmatprep.subr.mxu0 0.0
        %612 = vmatpush2.msra.mxu0 0.0
        %613 = vmatprep.subr.mxu0 0.0
        %614 = vmatpush2.msra.mxu0 0.0
        %615 = vmatprep.mubr.f32.mxu0 0.0
        %616 = vmatmul.mubr.f32.gmra.mxu0 %v534
        %v617 = vpop.f32.mrf.mxu0
        %v618 = vadd.f32 0.0, %v617
        %v619 = vpop.f32.mrf.mxu0
        %620 = vmatprep.mubr.f32.mxu0 0.0
        %621 = vmatmul.mubr.f32.gmra.mxu0 %v537
        %v622 = vpop.f32.mrf.mxu0
        %v623 = vadd.f32 0.0, %v622
        %v624 = vpop.f32.mrf.mxu0
        %625 = vmatprep.mubr.f32.mxu0 0.0
        %626 = vmatmul.mubr.f32.gmra.mxu0 %v540
        %v627 = vpop.f32.mrf.mxu0
        %v628 = vadd.f32 0.0, %v627
        %v629 = vpop.f32.mrf.mxu0
        %630 = vmatprep.mubr.f32.mxu0 0.0
        %631 = vmatmul.mubr.f32.gmra.mxu0 %v543
        %v632 = vpop.f32.mrf.mxu0
        %v633 = vadd.f32 0.0, %v632
        %v634 = vpop.f32.mrf.mxu0
        %635 = vmatprep.mubr.f32.mxu0 0.0
        %636 = vmatmul.mubr.f32.gmra.mxu0 %v546
        %v637 = vpop.f32.mrf.mxu0
        %v638 = vadd.f32 0.0, %v637
        %v639 = vpop.f32.mrf.mxu0
        %640 = vmatprep.mubr.f32.mxu0 0.0
        %641 = vmatmul.mubr.f32.gmra.mxu0 %v549
        %v642 = vpop.f32.mrf.mxu0
        %v643 = vadd.f32 0.0, %v642
        %v644 = vpop.f32.mrf.mxu0
        %645 = vdwg.mxu0
        %v646 = vld [vmem:[%s2] sm:$0xff]
        %v647 = vld [vmem:[%s2 + $0x8] sm:$0xff]
        %v648 = vld [vmem:[%s2 + $0x10] sm:$0xff]
        %v649 = vld [vmem:[%s2 + $0x18] sm:$0xff]
        %v650 = vld [vmem:[%s2 + $0x20] sm:$0xff]
        %v651 = vld [vmem:[%s2 + $0x28] sm:$0xff]
        %v652 = vld [vmem:[%s2 + $0x30] sm:$0xff]
        %v653 = vld [vmem:[%s2 + $0x38] sm:$0xff]
        %v654 = vld [vmem:[%s2 + $0x40] sm:$0xff]
        %v655 = vld [vmem:[%s2 + $0x48] sm:$0xff]
        %v656 = vld [vmem:[%s2 + $0x50] sm:$0xff]
        %v657 = vld [vmem:[%s2 + $0x58] sm:$0xff]
        %v658 = vld [vmem:[%s2 + $0x60] sm:$0xff]
        %v659 = vld [vmem:[%s2 + $0x68] sm:$0xff]
        %v660 = vld [vmem:[%s2 + $0x70] sm:$0xff]
        %v661 = vld [vmem:[%s2 + $0x78] sm:$0xff]
        %664 = vrot.lane.b32.xlu0 %v518, 96
        %v665 = vpop.permute.xlu0 %664
        %666 = vrot.lane.b32.xlu0 %v522, 96
        %v667 = vpop.permute.xlu0 %666
        %vm668 = vcmask 261120
        %v669 = vsel %vm668, %v518, 0
        %v671 = vsel %vm668, %v522, 0
        %v673 = vsel %vm668, %v665, 0
        %v675 = vsel %vm668, %v667, 0
        %677 = vmatprep.subr.mxu0 0.0
        %678 = vmatpush1.xpose.msra.mxu0 0.0
        %679 = vmatprep.subr.mxu0 0.0
        %680 = vmatpush1.xpose.msra.mxu0 0.0
        %681 = vmatprep.subr.mxu0 0.0
        %682 = vmatpush1.xpose.msra.mxu0 0.0
        %683 = vmatprep.subr.mxu0 0.0
        %684 = vmatpush1.xpose.msra.mxu0 0.0
        %685 = vmatprep.subr.mxu0 0.0
        %686 = vmatpush1.xpose.msra.mxu0 0.0
        %687 = vmatprep.subr.mxu0 0.0
        %688 = vmatpush1.xpose.msra.mxu0 0.0
        %689 = vmatprep.subr.mxu0 0.0
        %690 = vmatpush1.xpose.msra.mxu0 0.0
        %691 = vmatprep.subr.mxu0 0.0
        %692 = vmatpush1.xpose.msra.mxu0 0.0
        %693 = vmatprep.subr.mxu0 0.0
        %694 = vmatpush1.xpose.msra.mxu0 0.0
        %695 = vmatprep.subr.mxu0 0.0
        %696 = vmatpush1.xpose.msra.mxu0 0.0
        %697 = vmatprep.subr.mxu0 0.0
        %698 = vmatpush1.xpose.msra.mxu0 0.0
        %699 = vmatprep.subr.mxu0 0.0
        %700 = vmatpush1.xpose.msra.mxu0 0.0
        %701 = vmatprep.subr.mxu0 0.0
        %702 = vmatpush1.xpose.msra.mxu0 0.0
        %703 = vmatprep.subr.mxu0 0.0
        %704 = vmatpush1.xpose.msra.mxu0 0.0
        %705 = vmatprep.subr.mxu0 0.0
        %706 = vmatpush1.xpose.msra.mxu0 %v675
        %707 = vmatprep.subr.mxu0 0.0
        %708 = vmatpush1.xpose.msra.mxu0 %v673
        %709 = vmatprep.subr.mxu0 0.0
        %710 = vmatpush2.xpose.msra.mxu0 0.0
        %711 = vmatprep.subr.mxu0 0.0
        %712 = vmatpush2.xpose.msra.mxu0 0.0
        %713 = vmatprep.subr.mxu0 0.0
        %714 = vmatpush2.xpose.msra.mxu0 0.0
        %715 = vmatprep.subr.mxu0 0.0
        %716 = vmatpush2.xpose.msra.mxu0 0.0
        %717 = vmatprep.subr.mxu0 0.0
        %718 = vmatpush2.xpose.msra.mxu0 0.0
        %719 = vmatprep.subr.mxu0 0.0
        %720 = vmatpush2.xpose.msra.mxu0 0.0
        %721 = vmatprep.subr.mxu0 0.0
        %722 = vmatpush2.xpose.msra.mxu0 0.0
        %723 = vmatprep.subr.mxu0 0.0
        %724 = vmatpush2.xpose.msra.mxu0 0.0
        %725 = vmatprep.subr.mxu0 0.0
        %726 = vmatpush2.xpose.msra.mxu0 0.0
        %727 = vmatprep.subr.mxu0 0.0
        %728 = vmatpush2.xpose.msra.mxu0 0.0
        %729 = vmatprep.subr.mxu0 0.0
        %730 = vmatpush2.xpose.msra.mxu0 0.0
        %731 = vmatprep.subr.mxu0 0.0
        %732 = vmatpush2.xpose.msra.mxu0 0.0
        %733 = vmatprep.subr.mxu0 0.0
        %734 = vmatpush2.xpose.msra.mxu0 0.0
        %735 = vmatprep.subr.mxu0 0.0
        %736 = vmatpush2.xpose.msra.mxu0 0.0
        %737 = vmatprep.subr.mxu0 0.0
        %738 = vmatpush2.xpose.msra.mxu0 0.0
        %739 = vmatprep.subr.mxu0 0.0
        %740 = vmatpush2.xpose.msra.mxu0 0.0
        %741 = vmatprep.mubr.f32.mxu0 0.0
        %742 = vmatmul.mubr.f32.gmra.mxu0 %v669
        %v743 = vpop.f32.mrf.mxu0
        %v744 = vadd.f32 0.0, %v743
        %v745 = vpop.f32.mrf.mxu0
        %746 = vmatprep.mubr.f32.mxu0 0.0
        %747 = vmatmul.mubr.f32.gmra.mxu0 %v671
        %v748 = vpop.f32.mrf.mxu0
        %v749 = vadd.f32 0.0, %v748
        %v750 = vpop.f32.mrf.mxu0
        %751 = vdwg.mxu0
        %v752 = vmul.f32 %v744, 0.03125
        %v753 = vmul.f32 %v749, 0.03125
        %v754 = vsel %vm532, %v752, -inf
        %v755 = vsel %vm532, %v753, -inf
        %v756 = vmax.f32 %v754, %v755
        %v757 = vrot.slane %v756, 4
        %v758 = vmax.f32 %v756, %v757
        %v759 = vrot.slane %v758, 2
        %v760 = vmax.f32 %v758, %v759
        %v761 = vrot.slane %v760, 1
        %v762 = vmax.f32 %v760, %v761
        %v763 = vsub.f32 %v752, %v762
        %v764 = vsub.f32 %v753, %v762
        %v765 = vmul.f32 %v763, 1.442695
        %v766 = vpow.pop %v765
        %v767 = vmul.f32 %v764, 1.442695
        %v768 = vpow.pop %v767
        %v769 = vsel %vm532, %v766, 0.0
        %v770 = vsel %vm532, %v768, 0.0
        %v771 = vadd.f32 %v769, %v770
        %v772 = vrot.slane %v771, 4
        %v773 = vadd.f32 %v771, %v772
        %v774 = vrot.slane %v773, 2
        %v775 = vadd.f32 %v773, %v774
        %v776 = vrot.slane %v775, 1
        %v777 = vadd.f32 %v775, %v776
        %v778 = vrcp.pop %v777
        %v779 = vmul.f32 %v766, %v778
        %v780 = vmul.f32 %v768, %v778
        %783 = vrot.lane.b32.xlu0 %v779, 16
        %v784 = vpop.permute.xlu0 %783
        %785 = vrot.lane.b32.xlu0 %v780, 16
        %v786 = vpop.permute.xlu0 %785
        %789 = vrot.lane.b32.xlu0 %v779, 32
        %v790 = vpop.permute.xlu0 %789
        %791 = vrot.lane.b32.xlu0 %v780, 32
        %v792 = vpop.permute.xlu0 %791
        %795 = vrot.lane.b32.xlu0 %v779, 48
        %v796 = vpop.permute.xlu0 %795
        %797 = vrot.lane.b32.xlu0 %v780, 48
        %v798 = vpop.permute.xlu0 %797
        %801 = vrot.lane.b32.xlu0 %v779, 64
        %v802 = vpop.permute.xlu0 %801
        %803 = vrot.lane.b32.xlu0 %v780, 64
        %v804 = vpop.permute.xlu0 %803
        %807 = vrot.lane.b32.xlu0 %v779, 80
        %v808 = vpop.permute.xlu0 %807
        %809 = vrot.lane.b32.xlu0 %v780, 80
        %v810 = vpop.permute.xlu0 %809
        %813 = vrot.lane.b32.xlu0 %v779, 96
        %v814 = vpop.permute.xlu0 %813
        %815 = vrot.lane.b32.xlu0 %v780, 96
        %v816 = vpop.permute.xlu0 %815
        %819 = vrot.lane.b32.xlu0 %v779, 112
        %v820 = vpop.permute.xlu0 %819
        %821 = vrot.lane.b32.xlu0 %v780, 112
        %v822 = vpop.permute.xlu0 %821
        %v825 = vsel %vm532, %v779, %v784
        %v826 = vsel %vm532, %v780, %v786
        %v827 = vsel %vm668, %v825, %v790
        %v828 = vsel %vm668, %v826, %v792
        %vm829 = vcmask 392192
        %v830 = vsel %vm829, %v827, %v796
        %v831 = vsel %vm829, %v828, %v798
        %vm832 = vcmask 523264
        %v833 = vsel %vm832, %v830, %v802
        %v834 = vsel %vm832, %v831, %v804
        %vm835 = vcmask 654336
        %v836 = vsel %vm835, %v833, %v808
        %v837 = vsel %vm835, %v834, %v810
        %vm838 = vcmask 785408
        %v839 = vsel %vm838, %v836, %v814
        %v840 = vsel %vm838, %v837, %v816
        %vm841 = vcmask 916480
        %v842 = vsel %vm841, %v839, %v820
        %v843 = vsel %vm841, %v840, %v822
        %s844 = scalar_lea.vmem %s2, 128
        %v845 = vld [vmem:[%s844] sm:$0xff]
        %v846 = vld [vmem:[%s844 + $0x8] sm:$0xff]
        %v847 = vld [vmem:[%s844 + $0x10] sm:$0xff]
        %v848 = vld [vmem:[%s844 + $0x18] sm:$0xff]
        %v849 = vld [vmem:[%s844 + $0x20] sm:$0xff]
        %v850 = vld [vmem:[%s844 + $0x28] sm:$0xff]
        %v851 = vld [vmem:[%s844 + $0x30] sm:$0xff]
        %v852 = vld [vmem:[%s844 + $0x38] sm:$0xff]
        %v853 = vld [vmem:[%s844 + $0x40] sm:$0xff]
        %v854 = vld [vmem:[%s844 + $0x48] sm:$0xff]
        %v855 = vld [vmem:[%s844 + $0x50] sm:$0xff]
        %v856 = vld [vmem:[%s844 + $0x58] sm:$0xff]
        %v857 = vld [vmem:[%s844 + $0x60] sm:$0xff]
        %v858 = vld [vmem:[%s844 + $0x68] sm:$0xff]
        %v859 = vld [vmem:[%s844 + $0x70] sm:$0xff]
        %v860 = vld [vmem:[%s844 + $0x78] sm:$0xff]
        %v861 = vmul.f32 %v646, %v842
        %v862 = vmul.f32 %v647, %v843
        %v863 = vmul.f32 %v648, %v842
        %v864 = vmul.f32 %v649, %v843
        %v865 = vmul.f32 %v650, %v842
        %v866 = vmul.f32 %v651, %v843
        %v867 = vmul.f32 %v652, %v842
        %v868 = vmul.f32 %v653, %v843
        %v869 = vmul.f32 %v654, %v842
        %v870 = vmul.f32 %v655, %v843
        %v871 = vmul.f32 %v656, %v842
        %v872 = vmul.f32 %v657, %v843
        %v873 = vmul.f32 %v658, %v842
        %v874 = vmul.f32 %v659, %v843
        %v875 = vmul.f32 %v660, %v842
        %v876 = vmul.f32 %v661, %v843
        %v877 = vadd.f32 %v845, %v861
        %v878 = vadd.f32 %v846, %v862
        %v879 = vadd.f32 %v847, %v863
        %v880 = vadd.f32 %v848, %v864
        %v881 = vadd.f32 %v849, %v865
        %v882 = vadd.f32 %v850, %v866
        %v883 = vadd.f32 %v851, %v867
        %v884 = vadd.f32 %v852, %v868
        %v885 = vadd.f32 %v853, %v869
        %v886 = vadd.f32 %v854, %v870
        %v887 = vadd.f32 %v855, %v871
        %v888 = vadd.f32 %v856, %v872
        %v889 = vadd.f32 %v857, %v873
        %v890 = vadd.f32 %v858, %v874
        %v891 = vadd.f32 %v859, %v875
        %v892 = vadd.f32 %v860, %v876
        %893 = vst [vmem:[#allocation2] sm:$0xff] %v877
        %894 = vst [vmem:[#allocation2 + $0x8] sm:$0xff] %v878
        %895 = vst [vmem:[#allocation2 + $0x10] sm:$0xff] %v879
        %896 = vst [vmem:[#allocation2 + $0x18] sm:$0xff] %v880
        %897 = vst [vmem:[#allocation2 + $0x20] sm:$0xff] %v881
        %898 = vst [vmem:[#allocation2 + $0x28] sm:$0xff] %v882
        %899 = vst [vmem:[#allocation2 + $0x30] sm:$0xff] %v883
        %900 = vst [vmem:[#allocation2 + $0x38] sm:$0xff] %v884
        %901 = vst [vmem:[#allocation2 + $0x40] sm:$0xff] %v885
        %902 = vst [vmem:[#allocation2 + $0x48] sm:$0xff] %v886
        %903 = vst [vmem:[#allocation2 + $0x50] sm:$0xff] %v887
        %904 = vst [vmem:[#allocation2 + $0x58] sm:$0xff] %v888
        %905 = vst [vmem:[#allocation2 + $0x60] sm:$0xff] %v889
        %906 = vst [vmem:[#allocation2 + $0x68] sm:$0xff] %v890
        %907 = vst [vmem:[#allocation2 + $0x70] sm:$0xff] %v891
        %908 = vst [vmem:[#allocation2 + $0x78] sm:$0xff] %v892
        %909 = vrot.lane.b32.xlu0 %v518, 64
        %v910 = vpop.permute.xlu0 %909
        %911 = vrot.lane.b32.xlu0 %v522, 64
        %v912 = vpop.permute.xlu0 %911
        %913 = vrot.lane.b32.xlu0 %v518, 32
        %v914 = vpop.permute.xlu0 %913
        %915 = vrot.lane.b32.xlu0 %v522, 32
        %v916 = vpop.permute.xlu0 %915
        %v917 = vsel %vm668, %v910, 0
        %v919 = vsel %vm668, %v912, 0
        %v921 = vsel %vm668, %v914, 0
        %v923 = vsel %vm668, %v916, 0
        %925 = vmatprep.subr.mxu0 0.0
        %926 = vmatpush1.xpose.msra.mxu0 0.0
        %927 = vmatprep.subr.mxu0 0.0
        %928 = vmatpush1.xpose.msra.mxu0 0.0
        %929 = vmatprep.subr.mxu0 0.0
        %930 = vmatpush1.xpose.msra.mxu0 0.0
        %931 = vmatprep.subr.mxu0 0.0
        %932 = vmatpush1.xpose.msra.mxu0 0.0
        %933 = vmatprep.subr.mxu0 0.0
        %934 = vmatpush1.xpose.msra.mxu0 0.0
        %935 = vmatprep.subr.mxu0 0.0
        %936 = vmatpush1.xpose.msra.mxu0 0.0
        %937 = vmatprep.subr.mxu0 0.0
        %938 = vmatpush1.xpose.msra.mxu0 0.0
        %939 = vmatprep.subr.mxu0 0.0
        %940 = vmatpush1.xpose.msra.mxu0 0.0
        %941 = vmatprep.subr.mxu0 0.0
        %942 = vmatpush1.xpose.msra.mxu0 0.0
        %943 = vmatprep.subr.mxu0 0.0
        %944 = vmatpush1.xpose.msra.mxu0 0.0
        %945 = vmatprep.subr.mxu0 0.0
        %946 = vmatpush1.xpose.msra.mxu0 0.0
        %947 = vmatprep.subr.mxu0 0.0
        %948 = vmatpush1.xpose.msra.mxu0 0.0
        %949 = vmatprep.subr.mxu0 0.0
        %950 = vmatpush1.xpose.msra.mxu0 0.0
        %951 = vmatprep.subr.mxu0 0.0
        %952 = vmatpush1.xpose.msra.mxu0 0.0
        %953 = vmatprep.subr.mxu0 0.0
        %954 = vmatpush1.xpose.msra.mxu0 %v923
        %955 = vmatprep.subr.mxu0 0.0
        %956 = vmatpush1.xpose.msra.mxu0 %v921
        %957 = vmatprep.subr.mxu0 0.0
        %958 = vmatpush2.xpose.msra.mxu0 0.0
        %959 = vmatprep.subr.mxu0 0.0
        %960 = vmatpush2.xpose.msra.mxu0 0.0
        %961 = vmatprep.subr.mxu0 0.0
        %962 = vmatpush2.xpose.msra.mxu0 0.0
        %963 = vmatprep.subr.mxu0 0.0
        %964 = vmatpush2.xpose.msra.mxu0 0.0
        %965 = vmatprep.subr.mxu0 0.0
        %966 = vmatpush2.xpose.msra.mxu0 0.0
        %967 = vmatprep.subr.mxu0 0.0
        %968 = vmatpush2.xpose.msra.mxu0 0.0
        %969 = vmatprep.subr.mxu0 0.0
        %970 = vmatpush2.xpose.msra.mxu0 0.0
        %971 = vmatprep.subr.mxu0 0.0
        %972 = vmatpush2.xpose.msra.mxu0 0.0
        %973 = vmatprep.subr.mxu0 0.0
        %974 = vmatpush2.xpose.msra.mxu0 0.0
        %975 = vmatprep.subr.mxu0 0.0
        %976 = vmatpush2.xpose.msra.mxu0 0.0
        %977 = vmatprep.subr.mxu0 0.0
        %978 = vmatpush2.xpose.msra.mxu0 0.0
        %979 = vmatprep.subr.mxu0 0.0
        %980 = vmatpush2.xpose.msra.mxu0 0.0
        %981 = vmatprep.subr.mxu0 0.0
        %982 = vmatpush2.xpose.msra.mxu0 0.0
        %983 = vmatprep.subr.mxu0 0.0
        %984 = vmatpush2.xpose.msra.mxu0 0.0
        %985 = vmatprep.subr.mxu0 0.0
        %986 = vmatpush2.xpose.msra.mxu0 0.0
        %987 = vmatprep.subr.mxu0 0.0
        %988 = vmatpush2.xpose.msra.mxu0 0.0
        %989 = vmatprep.mubr.f32.mxu0 0.0
        %990 = vmatmul.mubr.f32.gmra.mxu0 %v917
        %v991 = vpop.f32.mrf.mxu0
        %v992 = vadd.f32 0.0, %v991
        %v993 = vpop.f32.mrf.mxu0
        %994 = vmatprep.mubr.f32.mxu0 0.0
        %995 = vmatmul.mubr.f32.gmra.mxu0 %v919
        %v996 = vpop.f32.mrf.mxu0
        %v997 = vadd.f32 0.0, %v996
        %v998 = vpop.f32.mrf.mxu0
        %999 = vdwg.mxu0
        %v1000 = vmul.f32 %v992, 0.03125
        %v1001 = vmul.f32 %v997, 0.03125
        %v1002 = vsel %vm532, %v1000, -inf
        %v1003 = vsel %vm532, %v1001, -inf
        %v1004 = vmax.f32 %v1002, %v1003
        %v1005 = vrot.slane %v1004, 4
        %v1006 = vmax.f32 %v1004, %v1005
        %v1007 = vrot.slane %v1006, 2
        %v1008 = vmax.f32 %v1006, %v1007
        %v1009 = vrot.slane %v1008, 1
        %v1010 = vmax.f32 %v1008, %v1009
        %v1011 = vsub.f32 %v1000, %v1010
        %v1012 = vsub.f32 %v1001, %v1010
        %v1013 = vmul.f32 %v1011, 1.442695
        %v1014 = vpow.pop %v1013
        %v1015 = vmul.f32 %v1012, 1.442695
        %v1016 = vpow.pop %v1015
        %v1017 = vsel %vm532, %v1014, 0.0
        %v1018 = vsel %vm532, %v1016, 0.0
        %v1019 = vadd.f32 %v1017, %v1018
        %v1020 = vrot.slane %v1019, 4
        %v1021 = vadd.f32 %v1019, %v1020
        %v1022 = vrot.slane %v1021, 2
        %v1023 = vadd.f32 %v1021, %v1022
        %v1024 = vrot.slane %v1023, 1
        %v1025 = vadd.f32 %v1023, %v1024
        %v1026 = vrcp.pop %v1025
        %v1027 = vmul.f32 %v1014, %v1026
        %v1028 = vmul.f32 %v1016, %v1026
        %1031 = vrot.lane.b32.xlu0 %v1027, 16
        %v1032 = vpop.permute.xlu0 %1031
        %1033 = vrot.lane.b32.xlu0 %v1028, 16
        %v1034 = vpop.permute.xlu0 %1033
        %1037 = vrot.lane.b32.xlu0 %v1027, 32
        %v1038 = vpop.permute.xlu0 %1037
        %1039 = vrot.lane.b32.xlu0 %v1028, 32
        %v1040 = vpop.permute.xlu0 %1039
        %1043 = vrot.lane.b32.xlu0 %v1027, 48
        %v1044 = vpop.permute.xlu0 %1043
        %1045 = vrot.lane.b32.xlu0 %v1028, 48
        %v1046 = vpop.permute.xlu0 %1045
        %1049 = vrot.lane.b32.xlu0 %v1027, 64
        %v1050 = vpop.permute.xlu0 %1049
        %1051 = vrot.lane.b32.xlu0 %v1028, 64
        %v1052 = vpop.permute.xlu0 %1051
        %1055 = vrot.lane.b32.xlu0 %v1027, 80
        %v1056 = vpop.permute.xlu0 %1055
        %1057 = vrot.lane.b32.xlu0 %v1028, 80
        %v1058 = vpop.permute.xlu0 %1057
        %1061 = vrot.lane.b32.xlu0 %v1027, 96
        %v1062 = vpop.permute.xlu0 %1061
        %1063 = vrot.lane.b32.xlu0 %v1028, 96
        %v1064 = vpop.permute.xlu0 %1063
        %1067 = vrot.lane.b32.xlu0 %v1027, 112
        %v1068 = vpop.permute.xlu0 %1067
        %1069 = vrot.lane.b32.xlu0 %v1028, 112
        %v1070 = vpop.permute.xlu0 %1069
        %v1073 = vsel %vm532, %v1027, %v1032
        %v1074 = vsel %vm532, %v1028, %v1034
        %v1075 = vsel %vm668, %v1073, %v1038
        %v1076 = vsel %vm668, %v1074, %v1040
        %v1077 = vsel %vm829, %v1075, %v1044
        %v1078 = vsel %vm829, %v1076, %v1046
        %v1079 = vsel %vm832, %v1077, %v1050
        %v1080 = vsel %vm832, %v1078, %v1052
        %v1081 = vsel %vm835, %v1079, %v1056
        %v1082 = vsel %vm835, %v1080, %v1058
        %v1083 = vsel %vm838, %v1081, %v1062
        %v1084 = vsel %vm838, %v1082, %v1064
        %v1085 = vsel %vm841, %v1083, %v1068
        %v1086 = vsel %vm841, %v1084, %v1070
        %s1087 = scalar_lea.vmem %s2, 256
        %v1088 = vld [vmem:[%s1087] sm:$0xff]
        %v1089 = vld [vmem:[%s1087 + $0x8] sm:$0xff]
        %v1090 = vld [vmem:[%s1087 + $0x10] sm:$0xff]
        %v1091 = vld [vmem:[%s1087 + $0x18] sm:$0xff]
        %v1092 = vld [vmem:[%s1087 + $0x20] sm:$0xff]
        %v1093 = vld [vmem:[%s1087 + $0x28] sm:$0xff]
        %v1094 = vld [vmem:[%s1087 + $0x30] sm:$0xff]
        %v1095 = vld [vmem:[%s1087 + $0x38] sm:$0xff]
        %v1096 = vld [vmem:[%s1087 + $0x40] sm:$0xff]
        %v1097 = vld [vmem:[%s1087 + $0x48] sm:$0xff]
        %v1098 = vld [vmem:[%s1087 + $0x50] sm:$0xff]
        %v1099 = vld [vmem:[%s1087 + $0x58] sm:$0xff]
        %v1100 = vld [vmem:[%s1087 + $0x60] sm:$0xff]
        %v1101 = vld [vmem:[%s1087 + $0x68] sm:$0xff]
        %v1102 = vld [vmem:[%s1087 + $0x70] sm:$0xff]
        %v1103 = vld [vmem:[%s1087 + $0x78] sm:$0xff]
        %v1104 = vmul.f32 %v646, %v1085
        %v1105 = vmul.f32 %v647, %v1086
        %v1106 = vmul.f32 %v648, %v1085
        %v1107 = vmul.f32 %v649, %v1086
        %v1108 = vmul.f32 %v650, %v1085
        %v1109 = vmul.f32 %v651, %v1086
        %v1110 = vmul.f32 %v652, %v1085
        %v1111 = vmul.f32 %v653, %v1086
        %v1112 = vmul.f32 %v654, %v1085
        %v1113 = vmul.f32 %v655, %v1086
        %v1114 = vmul.f32 %v656, %v1085
        %v1115 = vmul.f32 %v657, %v1086
        %v1116 = vmul.f32 %v658, %v1085
        %v1117 = vmul.f32 %v659, %v1086
        %v1118 = vmul.f32 %v660, %v1085
        %v1119 = vmul.f32 %v661, %v1086
        %v1120 = vadd.f32 %v1088, %v1104
        %v1121 = vadd.f32 %v1089, %v1105
        %v1122 = vadd.f32 %v1090, %v1106
        %v1123 = vadd.f32 %v1091, %v1107
        %v1124 = vadd.f32 %v1092, %v1108
        %v1125 = vadd.f32 %v1093, %v1109
        %v1126 = vadd.f32 %v1094, %v1110
        %v1127 = vadd.f32 %v1095, %v1111
        %v1128 = vadd.f32 %v1096, %v1112
        %v1129 = vadd.f32 %v1097, %v1113
        %v1130 = vadd.f32 %v1098, %v1114
        %v1131 = vadd.f32 %v1099, %v1115
        %v1132 = vadd.f32 %v1100, %v1116
        %v1133 = vadd.f32 %v1101, %v1117
        %v1134 = vadd.f32 %v1102, %v1118
        %v1135 = vadd.f32 %v1103, %v1119
        %1136 = vst [vmem:[#allocation2 + $0x80] sm:$0xff] %v1120
        %1137 = vst [vmem:[#allocation2 + $0x88] sm:$0xff] %v1121
        %1138 = vst [vmem:[#allocation2 + $0x90] sm:$0xff] %v1122
        %1139 = vst [vmem:[#allocation2 + $0x98] sm:$0xff] %v1123
        %1140 = vst [vmem:[#allocation2 + $0xa0] sm:$0xff] %v1124
        %1141 = vst [vmem:[#allocation2 + $0xa8] sm:$0xff] %v1125
        %1142 = vst [vmem:[#allocation2 + $0xb0] sm:$0xff] %v1126
        %1143 = vst [vmem:[#allocation2 + $0xb8] sm:$0xff] %v1127
        %1144 = vst [vmem:[#allocation2 + $0xc0] sm:$0xff] %v1128
        %1145 = vst [vmem:[#allocation2 + $0xc8] sm:$0xff] %v1129
        %1146 = vst [vmem:[#allocation2 + $0xd0] sm:$0xff] %v1130
        %1147 = vst [vmem:[#allocation2 + $0xd8] sm:$0xff] %v1131
        %1148 = vst [vmem:[#allocation2 + $0xe0] sm:$0xff] %v1132
        %1149 = vst [vmem:[#allocation2 + $0xe8] sm:$0xff] %v1133
        %1150 = vst [vmem:[#allocation2 + $0xf0] sm:$0xff] %v1134
        %1151 = vst [vmem:[#allocation2 + $0xf8] sm:$0xff] %v1135
        %1154 = vrot.lane.b32.xlu0 %v520, 96
        %v1155 = vpop.permute.xlu0 %1154
        %1156 = vrot.lane.b32.xlu0 %v524, 96
        %v1157 = vpop.permute.xlu0 %1156
        %v1158 = vsel %vm668, %v520, 0
        %v1160 = vsel %vm668, %v524, 0
        %v1162 = vsel %vm668, %v1155, 0
        %v1164 = vsel %vm668, %v1157, 0
        %1166 = vmatprep.subr.mxu0 0.0
        %1167 = vmatpush1.xpose.msra.mxu0 0.0
        %1168 = vmatprep.subr.mxu0 0.0
        %1169 = vmatpush1.xpose.msra.mxu0 0.0
        %1170 = vmatprep.subr.mxu0 0.0
        %1171 = vmatpush1.xpose.msra.mxu0 0.0
        %1172 = vmatprep.subr.mxu0 0.0
        %1173 = vmatpush1.xpose.msra.mxu0 0.0
        %1174 = vmatprep.subr.mxu0 0.0
        %1175 = vmatpush1.xpose.msra.mxu0 0.0
        %1176 = vmatprep.subr.mxu0 0.0
        %1177 = vmatpush1.xpose.msra.mxu0 0.0
        %1178 = vmatprep.subr.mxu0 0.0
        %1179 = vmatpush1.xpose.msra.mxu0 0.0
        %1180 = vmatprep.subr.mxu0 0.0
        %1181 = vmatpush1.xpose.msra.mxu0 0.0
        %1182 = vmatprep.subr.mxu0 0.0
        %1183 = vmatpush1.xpose.msra.mxu0 0.0
        %1184 = vmatprep.subr.mxu0 0.0
        %1185 = vmatpush1.xpose.msra.mxu0 0.0
        %1186 = vmatprep.subr.mxu0 0.0
        %1187 = vmatpush1.xpose.msra.mxu0 0.0
        %1188 = vmatprep.subr.mxu0 0.0
        %1189 = vmatpush1.xpose.msra.mxu0 0.0
        %1190 = vmatprep.subr.mxu0 0.0
        %1191 = vmatpush1.xpose.msra.mxu0 0.0
        %1192 = vmatprep.subr.mxu0 0.0
        %1193 = vmatpush1.xpose.msra.mxu0 0.0
        %1194 = vmatprep.subr.mxu0 0.0
        %1195 = vmatpush1.xpose.msra.mxu0 %v1164
        %1196 = vmatprep.subr.mxu0 0.0
        %1197 = vmatpush1.xpose.msra.mxu0 %v1162
        %1198 = vmatprep.subr.mxu0 0.0
        %1199 = vmatpush2.xpose.msra.mxu0 0.0
        %1200 = vmatprep.subr.mxu0 0.0
        %1201 = vmatpush2.xpose.msra.mxu0 0.0
        %1202 = vmatprep.subr.mxu0 0.0
        %1203 = vmatpush2.xpose.msra.mxu0 0.0
        %1204 = vmatprep.subr.mxu0 0.0
        %1205 = vmatpush2.xpose.msra.mxu0 0.0
        %1206 = vmatprep.subr.mxu0 0.0
        %1207 = vmatpush2.xpose.msra.mxu0 0.0
        %1208 = vmatprep.subr.mxu0 0.0
        %1209 = vmatpush2.xpose.msra.mxu0 0.0
        %1210 = vmatprep.subr.mxu0 0.0
        %1211 = vmatpush2.xpose.msra.mxu0 0.0
        %1212 = vmatprep.subr.mxu0 0.0
        %1213 = vmatpush2.xpose.msra.mxu0 0.0
        %1214 = vmatprep.subr.mxu0 0.0
        %1215 = vmatpush2.xpose.msra.mxu0 0.0
        %1216 = vmatprep.subr.mxu0 0.0
        %1217 = vmatpush2.xpose.msra.mxu0 0.0
        %1218 = vmatprep.subr.mxu0 0.0
        %1219 = vmatpush2.xpose.msra.mxu0 0.0
        %1220 = vmatprep.subr.mxu0 0.0
        %1221 = vmatpush2.xpose.msra.mxu0 0.0
        %1222 = vmatprep.subr.mxu0 0.0
        %1223 = vmatpush2.xpose.msra.mxu0 0.0
        %1224 = vmatprep.subr.mxu0 0.0
        %1225 = vmatpush2.xpose.msra.mxu0 0.0
        %1226 = vmatprep.subr.mxu0 0.0
        %1227 = vmatpush2.xpose.msra.mxu0 0.0
        %1228 = vmatprep.subr.mxu0 0.0
        %1229 = vmatpush2.xpose.msra.mxu0 0.0
        %1230 = vmatprep.mubr.f32.mxu0 0.0
        %1231 = vmatmul.mubr.f32.gmra.mxu0 %v1158
        %v1232 = vpop.f32.mrf.mxu0
        %v1233 = vadd.f32 0.0, %v1232
        %v1234 = vpop.f32.mrf.mxu0
        %1235 = vmatprep.mubr.f32.mxu0 0.0
        %1236 = vmatmul.mubr.f32.gmra.mxu0 %v1160
        %v1237 = vpop.f32.mrf.mxu0
        %v1238 = vadd.f32 0.0, %v1237
        %v1239 = vpop.f32.mrf.mxu0
        %1240 = vdwg.mxu0
        %v1241 = vmul.f32 %v1233, 0.03125
        %v1242 = vmul.f32 %v1238, 0.03125
        %v1243 = vsel %vm532, %v1241, -inf
        %v1244 = vsel %vm532, %v1242, -inf
        %v1245 = vmax.f32 %v1243, %v1244
        %v1246 = vrot.slane %v1245, 4
        %v1247 = vmax.f32 %v1245, %v1246
        %v1248 = vrot.slane %v1247, 2
        %v1249 = vmax.f32 %v1247, %v1248
        %v1250 = vrot.slane %v1249, 1
        %v1251 = vmax.f32 %v1249, %v1250
        %v1252 = vsub.f32 %v1241, %v1251
        %v1253 = vsub.f32 %v1242, %v1251
        %v1254 = vmul.f32 %v1252, 1.442695
        %v1255 = vpow.pop %v1254
        %v1256 = vmul.f32 %v1253, 1.442695
        %v1257 = vpow.pop %v1256
        %v1258 = vsel %vm532, %v1255, 0.0
        %v1259 = vsel %vm532, %v1257, 0.0
        %v1260 = vadd.f32 %v1258, %v1259
        %v1261 = vrot.slane %v1260, 4
        %v1262 = vadd.f32 %v1260, %v1261
        %v1263 = vrot.slane %v1262, 2
        %v1264 = vadd.f32 %v1262, %v1263
        %v1265 = vrot.slane %v1264, 1
        %v1266 = vadd.f32 %v1264, %v1265
        %v1267 = vrcp.pop %v1266
        %v1268 = vmul.f32 %v1255, %v1267
        %v1269 = vmul.f32 %v1257, %v1267
        %1272 = vrot.lane.b32.xlu0 %v1268, 16
        %v1273 = vpop.permute.xlu0 %1272
        %1274 = vrot.lane.b32.xlu0 %v1269, 16
        %v1275 = vpop.permute.xlu0 %1274
        %1278 = vrot.lane.b32.xlu0 %v1268, 32
        %v1279 = vpop.permute.xlu0 %1278
        %1280 = vrot.lane.b32.xlu0 %v1269, 32
        %v1281 = vpop.permute.xlu0 %1280
        %1284 = vrot.lane.b32.xlu0 %v1268, 48
        %v1285 = vpop.permute.xlu0 %1284
        %1286 = vrot.lane.b32.xlu0 %v1269, 48
        %v1287 = vpop.permute.xlu0 %1286
        %1290 = vrot.lane.b32.xlu0 %v1268, 64
        %v1291 = vpop.permute.xlu0 %1290
        %1292 = vrot.lane.b32.xlu0 %v1269, 64
        %v1293 = vpop.permute.xlu0 %1292
        %1296 = vrot.lane.b32.xlu0 %v1268, 80
        %v1297 = vpop.permute.xlu0 %1296
        %1298 = vrot.lane.b32.xlu0 %v1269, 80
        %v1299 = vpop.permute.xlu0 %1298
        %1302 = vrot.lane.b32.xlu0 %v1268, 96
        %v1303 = vpop.permute.xlu0 %1302
        %1304 = vrot.lane.b32.xlu0 %v1269, 96
        %v1305 = vpop.permute.xlu0 %1304
        %1308 = vrot.lane.b32.xlu0 %v1268, 112
        %v1309 = vpop.permute.xlu0 %1308
        %1310 = vrot.lane.b32.xlu0 %v1269, 112
        %v1311 = vpop.permute.xlu0 %1310
        %v1314 = vsel %vm532, %v1268, %v1273
        %v1315 = vsel %vm532, %v1269, %v1275
        %v1316 = vsel %vm668, %v1314, %v1279
        %v1317 = vsel %vm668, %v1315, %v1281
        %v1318 = vsel %vm829, %v1316, %v1285
        %v1319 = vsel %vm829, %v1317, %v1287
        %v1320 = vsel %vm832, %v1318, %v1291
        %v1321 = vsel %vm832, %v1319, %v1293
        %v1322 = vsel %vm835, %v1320, %v1297
        %v1323 = vsel %vm835, %v1321, %v1299
        %v1324 = vsel %vm838, %v1322, %v1303
        %v1325 = vsel %vm838, %v1323, %v1305
        %v1326 = vsel %vm841, %v1324, %v1309
        %v1327 = vsel %vm841, %v1325, %v1311
        %s1328 = scalar_lea.vmem %s2, 384
        %v1329 = vld [vmem:[%s1328] sm:$0xff]
        %v1330 = vld [vmem:[%s1328 + $0x8] sm:$0xff]
        %v1331 = vld [vmem:[%s1328 + $0x10] sm:$0xff]
        %v1332 = vld [vmem:[%s1328 + $0x18] sm:$0xff]
        %v1333 = vld [vmem:[%s1328 + $0x20] sm:$0xff]
        %v1334 = vld [vmem:[%s1328 + $0x28] sm:$0xff]
        %v1335 = vld [vmem:[%s1328 + $0x30] sm:$0xff]
        %v1336 = vld [vmem:[%s1328 + $0x38] sm:$0xff]
        %v1337 = vld [vmem:[%s1328 + $0x40] sm:$0xff]
        %v1338 = vld [vmem:[%s1328 + $0x48] sm:$0xff]
        %v1339 = vld [vmem:[%s1328 + $0x50] sm:$0xff]
        %v1340 = vld [vmem:[%s1328 + $0x58] sm:$0xff]
        %v1341 = vld [vmem:[%s1328 + $0x60] sm:$0xff]
        %v1342 = vld [vmem:[%s1328 + $0x68] sm:$0xff]
        %v1343 = vld [vmem:[%s1328 + $0x70] sm:$0xff]
        %v1344 = vld [vmem:[%s1328 + $0x78] sm:$0xff]
        %v1345 = vmul.f32 %v646, %v1326
        %v1346 = vmul.f32 %v647, %v1327
        %v1347 = vmul.f32 %v648, %v1326
        %v1348 = vmul.f32 %v649, %v1327
        %v1349 = vmul.f32 %v650, %v1326
        %v1350 = vmul.f32 %v651, %v1327
        %v1351 = vmul.f32 %v652, %v1326
        %v1352 = vmul.f32 %v653, %v1327
        %v1353 = vmul.f32 %v654, %v1326
        %v1354 = vmul.f32 %v655, %v1327
        %v1355 = vmul.f32 %v656, %v1326
        %v1356 = vmul.f32 %v657, %v1327
        %v1357 = vmul.f32 %v658, %v1326
        %v1358 = vmul.f32 %v659, %v1327
        %v1359 = vmul.f32 %v660, %v1326
        %v1360 = vmul.f32 %v661, %v1327
        %v1361 = vadd.f32 %v1329, %v1345
        %v1362 = vadd.f32 %v1330, %v1346
        %v1363 = vadd.f32 %v1331, %v1347
        %v1364 = vadd.f32 %v1332, %v1348
        %v1365 = vadd.f32 %v1333, %v1349
        %v1366 = vadd.f32 %v1334, %v1350
        %v1367 = vadd.f32 %v1335, %v1351
        %v1368 = vadd.f32 %v1336, %v1352
        %v1369 = vadd.f32 %v1337, %v1353
        %v1370 = vadd.f32 %v1338, %v1354
        %v1371 = vadd.f32 %v1339, %v1355
        %v1372 = vadd.f32 %v1340, %v1356
        %v1373 = vadd.f32 %v1341, %v1357
        %v1374 = vadd.f32 %v1342, %v1358
        %v1375 = vadd.f32 %v1343, %v1359
        %v1376 = vadd.f32 %v1344, %v1360
        %1377 = vst [vmem:[#allocation2 + $0x100] sm:$0xff] %v1361
        %1378 = vst [vmem:[#allocation2 + $0x108] sm:$0xff] %v1362
        %1379 = vst [vmem:[#allocation2 + $0x110] sm:$0xff] %v1363
        %1380 = vst [vmem:[#allocation2 + $0x118] sm:$0xff] %v1364
        %1381 = vst [vmem:[#allocation2 + $0x120] sm:$0xff] %v1365
        %1382 = vst [vmem:[#allocation2 + $0x128] sm:$0xff] %v1366
        %1383 = vst [vmem:[#allocation2 + $0x130] sm:$0xff] %v1367
        %1384 = vst [vmem:[#allocation2 + $0x138] sm:$0xff] %v1368
        %1385 = vst [vmem:[#allocation2 + $0x140] sm:$0xff] %v1369
        %1386 = vst [vmem:[#allocation2 + $0x148] sm:$0xff] %v1370
        %1387 = vst [vmem:[#allocation2 + $0x150] sm:$0xff] %v1371
        %1388 = vst [vmem:[#allocation2 + $0x158] sm:$0xff] %v1372
        %1389 = vst [vmem:[#allocation2 + $0x160] sm:$0xff] %v1373
        %1390 = vst [vmem:[#allocation2 + $0x168] sm:$0xff] %v1374
        %1391 = vst [vmem:[#allocation2 + $0x170] sm:$0xff] %v1375
        %1392 = vst [vmem:[#allocation2 + $0x178] sm:$0xff] %v1376
        %v1393 = vld [vmem:[#allocation2] sm:$0xff]
        %v1394 = vld [vmem:[#allocation2 + $0x8] sm:$0xff]
        %v1395 = vld [vmem:[#allocation2 + $0x10] sm:$0xff]
        %v1396 = vld [vmem:[#allocation2 + $0x18] sm:$0xff]
        %v1397 = vld [vmem:[#allocation2 + $0x20] sm:$0xff]
        %v1398 = vld [vmem:[#allocation2 + $0x28] sm:$0xff]
        %v1399 = vld [vmem:[#allocation2 + $0x30] sm:$0xff]
        %v1400 = vld [vmem:[#allocation2 + $0x38] sm:$0xff]
        %v1401 = vld [vmem:[#allocation2 + $0x40] sm:$0xff]
        %v1402 = vld [vmem:[#allocation2 + $0x48] sm:$0xff]
        %v1403 = vld [vmem:[#allocation2 + $0x50] sm:$0xff]
        %v1404 = vld [vmem:[#allocation2 + $0x58] sm:$0xff]
        %v1405 = vld [vmem:[#allocation2 + $0x60] sm:$0xff]
        %v1406 = vld [vmem:[#allocation2 + $0x68] sm:$0xff]
        %v1407 = vld [vmem:[#allocation2 + $0x70] sm:$0xff]
        %v1408 = vld [vmem:[#allocation2 + $0x78] sm:$0xff]
        %v1409 = vld [vmem:[#allocation2 + $0x80] sm:$0xff]
        %v1410 = vld [vmem:[#allocation2 + $0x88] sm:$0xff]
        %v1411 = vld [vmem:[#allocation2 + $0x90] sm:$0xff]
        %v1412 = vld [vmem:[#allocation2 + $0x98] sm:$0xff]
        %v1413 = vld [vmem:[#allocation2 + $0xa0] sm:$0xff]
        %v1414 = vld [vmem:[#allocation2 + $0xa8] sm:$0xff]
        %v1415 = vld [vmem:[#allocation2 + $0xb0] sm:$0xff]
        %v1416 = vld [vmem:[#allocation2 + $0xb8] sm:$0xff]
        %v1417 = vld [vmem:[#allocation2 + $0xc0] sm:$0xff]
        %v1418 = vld [vmem:[#allocation2 + $0xc8] sm:$0xff]
        %v1419 = vld [vmem:[#allocation2 + $0xd0] sm:$0xff]
        %v1420 = vld [vmem:[#allocation2 + $0xd8] sm:$0xff]
        %v1421 = vld [vmem:[#allocation2 + $0xe0] sm:$0xff]
        %v1422 = vld [vmem:[#allocation2 + $0xe8] sm:$0xff]
        %v1423 = vld [vmem:[#allocation2 + $0xf0] sm:$0xff]
        %v1424 = vld [vmem:[#allocation2 + $0xf8] sm:$0xff]
        %v1425 = vld [vmem:[#allocation2 + $0x100] sm:$0xff]
        %v1426 = vld [vmem:[#allocation2 + $0x108] sm:$0xff]
        %v1427 = vld [vmem:[#allocation2 + $0x110] sm:$0xff]
        %v1428 = vld [vmem:[#allocation2 + $0x118] sm:$0xff]
        %v1429 = vld [vmem:[#allocation2 + $0x120] sm:$0xff]
        %v1430 = vld [vmem:[#allocation2 + $0x128] sm:$0xff]
        %v1431 = vld [vmem:[#allocation2 + $0x130] sm:$0xff]
        %v1432 = vld [vmem:[#allocation2 + $0x138] sm:$0xff]
        %v1433 = vld [vmem:[#allocation2 + $0x140] sm:$0xff]
        %v1434 = vld [vmem:[#allocation2 + $0x148] sm:$0xff]
        %v1435 = vld [vmem:[#allocation2 + $0x150] sm:$0xff]
        %v1436 = vld [vmem:[#allocation2 + $0x158] sm:$0xff]
        %v1437 = vld [vmem:[#allocation2 + $0x160] sm:$0xff]
        %v1438 = vld [vmem:[#allocation2 + $0x168] sm:$0xff]
        %v1439 = vld [vmem:[#allocation2 + $0x170] sm:$0xff]
        %v1440 = vld [vmem:[#allocation2 + $0x178] sm:$0xff]
        %1441 = vmatprep.subr.mxu0 0.0
        %1442 = vmatpush1.msra.mxu0 %v1408
        %1443 = vmatprep.subr.mxu0 0.0
        %1444 = vmatpush1.msra.mxu0 %v1407
        %1445 = vmatprep.subr.mxu0 0.0
        %1446 = vmatpush1.msra.mxu0 %v1406
        %1447 = vmatprep.subr.mxu0 0.0
        %1448 = vmatpush1.msra.mxu0 %v1405
        %1449 = vmatprep.subr.mxu0 0.0
        %1450 = vmatpush1.msra.mxu0 %v1404
        %1451 = vmatprep.subr.mxu0 0.0
        %1452 = vmatpush1.msra.mxu0 %v1403
        %1453 = vmatprep.subr.mxu0 0.0
        %1454 = vmatpush1.msra.mxu0 %v1402
        %1455 = vmatprep.subr.mxu0 0.0
        %1456 = vmatpush1.msra.mxu0 %v1401
        %1457 = vmatprep.subr.mxu0 0.0
        %1458 = vmatpush1.msra.mxu0 %v1400
        %1459 = vmatprep.subr.mxu0 0.0
        %1460 = vmatpush1.msra.mxu0 %v1399
        %1461 = vmatprep.subr.mxu0 0.0
        %1462 = vmatpush1.msra.mxu0 %v1398
        %1463 = vmatprep.subr.mxu0 0.0
        %1464 = vmatpush1.msra.mxu0 %v1397
        %1465 = vmatprep.subr.mxu0 0.0
        %1466 = vmatpush1.msra.mxu0 %v1396
        %1467 = vmatprep.subr.mxu0 0.0
        %1468 = vmatpush1.msra.mxu0 %v1395
        %1469 = vmatprep.subr.mxu0 0.0
        %1470 = vmatpush1.msra.mxu0 %v1394
        %1471 = vmatprep.subr.mxu0 0.0
        %1472 = vmatpush1.msra.mxu0 %v1393
        %1473 = vmatprep.subr.mxu0 0.0
        %1474 = vmatpush2.msra.mxu0 %v1424
        %1475 = vmatprep.subr.mxu0 0.0
        %1476 = vmatpush2.msra.mxu0 %v1423
        %1477 = vmatprep.subr.mxu0 0.0
        %1478 = vmatpush2.msra.mxu0 %v1422
        %1479 = vmatprep.subr.mxu0 0.0
        %1480 = vmatpush2.msra.mxu0 %v1421
        %1481 = vmatprep.subr.mxu0 0.0
        %1482 = vmatpush2.msra.mxu0 %v1420
        %1483 = vmatprep.subr.mxu0 0.0
        %1484 = vmatpush2.msra.mxu0 %v1419
        %1485 = vmatprep.subr.mxu0 0.0
        %1486 = vmatpush2.msra.mxu0 %v1418
        %1487 = vmatprep.subr.mxu0 0.0
        %1488 = vmatpush2.msra.mxu0 %v1417
        %1489 = vmatprep.subr.mxu0 0.0
        %1490 = vmatpush2.msra.mxu0 %v1416
        %1491 = vmatprep.subr.mxu0 0.0
        %1492 = vmatpush2.msra.mxu0 %v1415
        %1493 = vmatprep.subr.mxu0 0.0
        %1494 = vmatpush2.msra.mxu0 %v1414
        %1495 = vmatprep.subr.mxu0 0.0
        %1496 = vmatpush2.msra.mxu0 %v1413
        %1497 = vmatprep.subr.mxu0 0.0
        %1498 = vmatpush2.msra.mxu0 %v1412
        %1499 = vmatprep.subr.mxu0 0.0
        %1500 = vmatpush2.msra.mxu0 %v1411
        %1501 = vmatprep.subr.mxu0 0.0
        %1502 = vmatpush2.msra.mxu0 %v1410
        %1503 = vmatprep.subr.mxu0 0.0
        %1504 = vmatpush2.msra.mxu0 %v1409
        %1505 = vmatprep.mubr.f32.mxu0 %v628
        %1506 = vmatmul.mubr.f32.gmra.mxu0 %v618
        %v1507 = vpop.f32.mrf.mxu0
        %v1508 = vadd.f32 0.0, %v1507
        %v1509 = vpop.f32.mrf.mxu0
        %1510 = vmatprep.mubr.f32.mxu0 %v633
        %1511 = vmatmul.mubr.f32.gmra.mxu0 %v623
        %v1512 = vpop.f32.mrf.mxu0
        %v1513 = vadd.f32 0.0, %v1512
        %v1514 = vpop.f32.mrf.mxu0
        %1515 = vdwg.mxu0
        %1516 = vmatprep.subr.mxu0 0.0
        %1517 = vmatpush1.msra.mxu0 %v1440
        %1518 = vmatprep.subr.mxu0 0.0
        %1519 = vmatpush1.msra.mxu0 %v1439
        %1520 = vmatprep.subr.mxu0 0.0
        %1521 = vmatpush1.msra.mxu0 %v1438
        %1522 = vmatprep.subr.mxu0 0.0
        %1523 = vmatpush1.msra.mxu0 %v1437
        %1524 = vmatprep.subr.mxu0 0.0
        %1525 = vmatpush1.msra.mxu0 %v1436
        %1526 = vmatprep.subr.mxu0 0.0
        %1527 = vmatpush1.msra.mxu0 %v1435
        %1528 = vmatprep.subr.mxu0 0.0
        %1529 = vmatpush1.msra.mxu0 %v1434
        %1530 = vmatprep.subr.mxu0 0.0
        %1531 = vmatpush1.msra.mxu0 %v1433
        %1532 = vmatprep.subr.mxu0 0.0
        %1533 = vmatpush1.msra.mxu0 %v1432
        %1534 = vmatprep.subr.mxu0 0.0
        %1535 = vmatpush1.msra.mxu0 %v1431
        %1536 = vmatprep.subr.mxu0 0.0
        %1537 = vmatpush1.msra.mxu0 %v1430
        %1538 = vmatprep.subr.mxu0 0.0
        %1539 = vmatpush1.msra.mxu0 %v1429
        %1540 = vmatprep.subr.mxu0 0.0
        %1541 = vmatpush1.msra.mxu0 %v1428
        %1542 = vmatprep.subr.mxu0 0.0
        %1543 = vmatpush1.msra.mxu0 %v1427
        %1544 = vmatprep.subr.mxu0 0.0
        %1545 = vmatpush1.msra.mxu0 %v1426
        %1546 = vmatprep.subr.mxu0 0.0
        %1547 = vmatpush1.msra.mxu0 %v1425
        %1548 = vmatprep.subr.mxu0 0.0
        %1549 = vmatpush2.msra.mxu0 0.0
        %1550 = vmatprep.subr.mxu0 0.0
        %1551 = vmatpush2.msra.mxu0 0.0
        %1552 = vmatprep.subr.mxu0 0.0
        %1553 = vmatpush2.msra.mxu0 0.0
        %1554 = vmatprep.subr.mxu0 0.0
        %1555 = vmatpush2.msra.mxu0 0.0
        %1556 = vmatprep.subr.mxu0 0.0
        %1557 = vmatpush2.msra.mxu0 0.0
        %1558 = vmatprep.subr.mxu0 0.0
        %1559 = vmatpush2.msra.mxu0 0.0
        %1560 = vmatprep.subr.mxu0 0.0
        %1561 = vmatpush2.msra.mxu0 0.0
        %1562 = vmatprep.subr.mxu0 0.0
        %1563 = vmatpush2.msra.mxu0 0.0
        %1564 = vmatprep.subr.mxu0 0.0
        %1565 = vmatpush2.msra.mxu0 0.0
        %1566 = vmatprep.subr.mxu0 0.0
        %1567 = vmatpush2.msra.mxu0 0.0
        %1568 = vmatprep.subr.mxu0 0.0
        %1569 = vmatpush2.msra.mxu0 0.0
        %1570 = vmatprep.subr.mxu0 0.0
        %1571 = vmatpush2.msra.mxu0 0.0
        %1572 = vmatprep.subr.mxu0 0.0
        %1573 = vmatpush2.msra.mxu0 0.0
        %1574 = vmatprep.subr.mxu0 0.0
        %1575 = vmatpush2.msra.mxu0 0.0
        %1576 = vmatprep.subr.mxu0 0.0
        %1577 = vmatpush2.msra.mxu0 0.0
        %1578 = vmatprep.subr.mxu0 0.0
        %1579 = vmatpush2.msra.mxu0 0.0
        %1580 = vmatprep.mubr.f32.mxu0 0.0
        %1581 = vmatmul.mubr.f32.gmra.mxu0 %v638
        %v1582 = vpop.f32.mrf.mxu0
        %v1583 = vadd.f32 %v1508, %v1582
        %v1584 = vpop.f32.mrf.mxu0
        %1585 = vmatprep.mubr.f32.mxu0 0.0
        %1586 = vmatmul.mubr.f32.gmra.mxu0 %v643
        %v1587 = vpop.f32.mrf.mxu0
        %v1588 = vadd.f32 %v1513, %v1587
        %v1589 = vpop.f32.mrf.mxu0
        %1590 = vdwg.mxu0
        %v1591 = vld [vmem:[%s7 + $0x60] sm:$0xff]
        %v1592 = vld [vmem:[%s7 + $0x68] sm:$0xff]
        %1594 = vset.pattern.permute.xlu0 0
        %1595 = vperm.xlu0 %1594, %v1591
        %v1596 = vpop.permute.xlu0 %1595
        %1599 = vset.pattern.permute.xlu0 0
        %1600 = vperm.xlu0 %1599, %v1592
        %v1601 = vpop.permute.xlu0 %1600
        %v1603 = vmul.f32 %v1583, %v1596
        %v1604 = vmul.f32 %v1588, %v1601
        %1605 = vset.pattern.permute.xlu0 1
        %1606 = vperm.xlu0 %1605, %v1591
        %v1607 = vpop.permute.xlu0 %1606
        %1609 = vset.pattern.permute.xlu0 1
        %1610 = vperm.xlu0 %1609, %v1592
        %v1611 = vpop.permute.xlu0 %1610
        %v1613 = vadd.f32 %v1603, %v1607
        %v1614 = vadd.f32 %v1604, %v1611
        %v1615 = vadd.f32 %v1613, %v368
        %v1616 = vadd.f32 %v1614, %v369
        %v1617 = vmax.f32 %v1615, 0.0
        %v1618 = vmax.f32 %v1616, 0.0
        %v1619 = vld [vmem:[%s5 + $0x8] sm:$0xff]
        %v1620 = vld [vmem:[%s5 + $0x18] sm:$0xff]
        %v1621 = vld [vmem:[%s5 + $0x28] sm:$0xff]
        %v1622 = vld [vmem:[%s5 + $0x38] sm:$0xff]
        %v1623 = vld [vmem:[%s5 + $0x48] sm:$0xff]
        %v1624 = vld [vmem:[%s5 + $0x58] sm:$0xff]
        %v1625 = vld [vmem:[%s5 + $0x68] sm:$0xff]
        %v1626 = vld [vmem:[%s5 + $0x78] sm:$0xff]
        %v1627 = vld [vmem:[%s5 + $0x88] sm:$0xff]
        %v1628 = vld [vmem:[%s5 + $0x98] sm:$0xff]
        %v1629 = vld [vmem:[%s5 + $0xa8] sm:$0xff]
        %v1630 = vld [vmem:[%s5 + $0xb8] sm:$0xff]
        %v1631 = vld [vmem:[%s5 + $0xc8] sm:$0xff]
        %v1632 = vld [vmem:[%s5 + $0xd8] sm:$0xff]
        %v1633 = vld [vmem:[%s5 + $0xe8] sm:$0xff]
        %v1634 = vld [vmem:[%s5 + $0xf8] sm:$0xff]
        %1635 = vmatprep.subr.mxu0 0.0
        %1636 = vmatpush1.msra.mxu0 %v1634
        %1637 = vmatprep.subr.mxu0 0.0
        %1638 = vmatpush1.msra.mxu0 %v1633
        %1639 = vmatprep.subr.mxu0 0.0
        %1640 = vmatpush1.msra.mxu0 %v1632
        %1641 = vmatprep.subr.mxu0 0.0
        %1642 = vmatpush1.msra.mxu0 %v1631
        %1643 = vmatprep.subr.mxu0 0.0
        %1644 = vmatpush1.msra.mxu0 %v1630
        %1645 = vmatprep.subr.mxu0 0.0
        %1646 = vmatpush1.msra.mxu0 %v1629
        %1647 = vmatprep.subr.mxu0 0.0
        %1648 = vmatpush1.msra.mxu0 %v1628
        %1649 = vmatprep.subr.mxu0 0.0
        %1650 = vmatpush1.msra.mxu0 %v1627
        %1651 = vmatprep.subr.mxu0 0.0
        %1652 = vmatpush1.msra.mxu0 %v1626
        %1653 = vmatprep.subr.mxu0 0.0
        %1654 = vmatpush1.msra.mxu0 %v1625
        %1655 = vmatprep.subr.mxu0 0.0
        %1656 = vmatpush1.msra.mxu0 %v1624
        %1657 = vmatprep.subr.mxu0 0.0
        %1658 = vmatpush1.msra.mxu0 %v1623
        %1659 = vmatprep.subr.mxu0 0.0
        %1660 = vmatpush1.msra.mxu0 %v1622
        %1661 = vmatprep.subr.mxu0 0.0
        %1662 = vmatpush1.msra.mxu0 %v1621
        %1663 = vmatprep.subr.mxu0 0.0
        %1664 = vmatpush1.msra.mxu0 %v1620
        %1665 = vmatprep.subr.mxu0 0.0
        %1666 = vmatpush1.msra.mxu0 %v1619
        %1667 = vmatprep.subr.mxu0 0.0
        %1668 = vmatpush2.msra.mxu0 0.0
        %1669 = vmatprep.subr.mxu0 0.0
        %1670 = vmatpush2.msra.mxu0 0.0
        %1671 = vmatprep.subr.mxu0 0.0
        %1672 = vmatpush2.msra.mxu0 0.0
        %1673 = vmatprep.subr.mxu0 0.0
        %1674 = vmatpush2.msra.mxu0 0.0
        %1675 = vmatprep.subr.mxu0 0.0
        %1676 = vmatpush2.msra.mxu0 0.0
        %1677 = vmatprep.subr.mxu0 0.0
        %1678 = vmatpush2.msra.mxu0 0.0
        %1679 = vmatprep.subr.mxu0 0.0
        %1680 = vmatpush2.msra.mxu0 0.0
        %1681 = vmatprep.subr.mxu0 0.0
        %1682 = vmatpush2.msra.mxu0 0.0
        %1683 = vmatprep.subr.mxu0 0.0
        %1684 = vmatpush2.msra.mxu0 0.0
        %1685 = vmatprep.subr.mxu0 0.0
        %1686 = vmatpush2.msra.mxu0 0.0
        %1687 = vmatprep.subr.mxu0 0.0
        %1688 = vmatpush2.msra.mxu0 0.0
        %1689 = vmatprep.subr.mxu0 0.0
        %1690 = vmatpush2.msra.mxu0 0.0
        %1691 = vmatprep.subr.mxu0 0.0
        %1692 = vmatpush2.msra.mxu0 0.0
        %1693 = vmatprep.subr.mxu0 0.0
        %1694 = vmatpush2.msra.mxu0 0.0
        %1695 = vmatprep.subr.mxu0 0.0
        %1696 = vmatpush2.msra.mxu0 0.0
        %1697 = vmatprep.subr.mxu0 0.0
        %1698 = vmatpush2.msra.mxu0 0.0
        %1699 = vmatprep.mubr.f32.mxu0 0.0
        %1700 = vmatmul.mubr.f32.gmra.mxu0 %v1617
        %v1701 = vpop.f32.mrf.mxu0
        %v1702 = vadd.f32 0.0, %v1701
        %v1703 = vpop.f32.mrf.mxu0
        %1704 = vmatprep.mubr.f32.mxu0 0.0
        %1705 = vmatmul.mubr.f32.gmra.mxu0 %v1618
        %v1706 = vpop.f32.mrf.mxu0
        %v1707 = vadd.f32 0.0, %v1706
        %v1708 = vpop.f32.mrf.mxu0
        %1709 = vdwg.mxu0
        %v1710 = vld [vmem:[%s7 + $0x30] sm:$0xff]
        %v1711 = vld [vmem:[%s7 + $0x38] sm:$0xff]
        %v1713 = vsel %vm532, %v1710, 0
        %v1716 = vsel %vm532, %v1711, 0
        %1718 = vmatprep.subr.mxu0 0.0
        %1719 = vmatpush1.msra.mxu0 0.0
        %1720 = vmatprep.subr.mxu0 0.0
        %1721 = vmatpush1.msra.mxu0 0.0
        %1722 = vmatprep.subr.mxu0 0.0
        %1723 = vmatpush1.msra.mxu0 0.0
        %1724 = vmatprep.subr.mxu0 0.0
        %1725 = vmatpush1.msra.mxu0 0.0
        %1726 = vmatprep.subr.mxu0 0.0
        %1727 = vmatpush1.msra.mxu0 0.0
        %1728 = vmatprep.subr.mxu0 0.0
        %1729 = vmatpush1.msra.mxu0 0.0
        %1730 = vmatprep.subr.mxu0 0.0
        %1731 = vmatpush1.msra.mxu0 0.0
        %1732 = vmatprep.subr.mxu0 0.0
        %1733 = vmatpush1.msra.mxu0 0.0
        %1734 = vmatprep.subr.mxu0 0.0
        %1735 = vmatpush1.msra.mxu0 0.0
        %1736 = vmatprep.subr.mxu0 0.0
        %1737 = vmatpush1.msra.mxu0 0.0
        %1738 = vmatprep.subr.mxu0 0.0
        %1739 = vmatpush1.msra.mxu0 0.0
        %1740 = vmatprep.subr.mxu0 0.0
        %1741 = vmatpush1.msra.mxu0 0.0
        %1742 = vmatprep.subr.mxu0 0.0
        %1743 = vmatpush1.msra.mxu0 0.0
        %1744 = vmatprep.subr.mxu0 0.0
        %1745 = vmatpush1.msra.mxu0 0.0
        %1746 = vmatprep.subr.mxu0 0.0
        %1747 = vmatpush1.msra.mxu0 %v1707
        %1748 = vmatprep.subr.mxu0 0.0
        %1749 = vmatpush1.msra.mxu0 %v1702
        %1750 = vmatprep.subr.mxu0 0.0
        %1751 = vmatpush2.msra.mxu0 0.0
        %1752 = vmatprep.subr.mxu0 0.0
        %1753 = vmatpush2.msra.mxu0 0.0
        %1754 = vmatprep.subr.mxu0 0.0
        %1755 = vmatpush2.msra.mxu0 0.0
        %1756 = vmatprep.subr.mxu0 0.0
        %1757 = vmatpush2.msra.mxu0 0.0
        %1758 = vmatprep.subr.mxu0 0.0
        %1759 = vmatpush2.msra.mxu0 0.0
        %1760 = vmatprep.subr.mxu0 0.0
        %1761 = vmatpush2.msra.mxu0 0.0
        %1762 = vmatprep.subr.mxu0 0.0
        %1763 = vmatpush2.msra.mxu0 0.0
        %1764 = vmatprep.subr.mxu0 0.0
        %1765 = vmatpush2.msra.mxu0 0.0
        %1766 = vmatprep.subr.mxu0 0.0
        %1767 = vmatpush2.msra.mxu0 0.0
        %1768 = vmatprep.subr.mxu0 0.0
        %1769 = vmatpush2.msra.mxu0 0.0
        %1770 = vmatprep.subr.mxu0 0.0
        %1771 = vmatpush2.msra.mxu0 0.0
        %1772 = vmatprep.subr.mxu0 0.0
        %1773 = vmatpush2.msra.mxu0 0.0
        %1774 = vmatprep.subr.mxu0 0.0
        %1775 = vmatpush2.msra.mxu0 0.0
        %1776 = vmatprep.subr.mxu0 0.0
        %1777 = vmatpush2.msra.mxu0 0.0
        %1778 = vmatprep.subr.mxu0 0.0
        %1779 = vmatpush2.msra.mxu0 0.0
        %1780 = vmatprep.subr.mxu0 0.0
        %1781 = vmatpush2.msra.mxu0 0.0
        %1782 = vmatprep.mubr.f32.mxu0 0.0
        %1783 = vmatmul.mubr.f32.gmra.mxu0 %v1713
        %v1784 = vpop.f32.mrf.mxu0
        %v1785 = vadd.f32 0.0, %v1784
        %v1786 = vpop.f32.mrf.mxu0
        %1787 = vmatprep.mubr.f32.mxu0 0.0
        %1788 = vmatmul.mubr.f32.gmra.mxu0 %v1716
        %v1789 = vpop.f32.mrf.mxu0
        %v1790 = vadd.f32 0.0, %v1789
        %v1791 = vpop.f32.mrf.mxu0
        %1792 = vdwg.mxu0
        %1795 = vrot.lane.b32.xlu0 %v1785, 7
        %v1796 = vpop.permute.xlu0 %1795
        %1797 = vrot.lane.b32.xlu0 %v1790, 7
        %v1798 = vpop.permute.xlu0 %1797
        %vm1801 = vcmask 56320
        %v1802 = vsel %vm1801, 0.0, %v1796
        %v1803 = vsel %vm1801, 0.0, %v1798
        %vm1804 = vcmask 187392
        %v1805 = vsel %vm1804, %v1802, 0.0
        %v1806 = vsel %vm1804, %v1803, 0.0
        %v1808 = vrot.slane %v1805, 1
        %1809 = vrot.lane.b32.xlu0 %v1808, 127
        %v1810 = vpop.permute.xlu0 %1809
        %v1812 = vadd.f32 %v1805, %v1810
        %v1814 = vrot.slane %v1806, 1
        %1815 = vrot.lane.b32.xlu0 %v1814, 127
        %v1816 = vpop.permute.xlu0 %1815
        %v1818 = vadd.f32 %v1806, %v1816
        %v1820 = vrot.slane %v1812, 2
        %1821 = vrot.lane.b32.xlu0 %v1820, 126
        %v1822 = vpop.permute.xlu0 %1821
        %v1824 = vadd.f32 %v1812, %v1822
        %v1826 = vrot.slane %v1818, 2
        %1827 = vrot.lane.b32.xlu0 %v1826, 126
        %v1828 = vpop.permute.xlu0 %1827
        %v1830 = vadd.f32 %v1818, %v1828
        %v1831 = vrot.slane %v1806, 2
        %1832 = vrot.lane.b32.xlu0 %v1831, 126
        %v1833 = vpop.permute.xlu0 %1832
        %v1835 = vadd.f32 %v1818, %v1833
        %v1837 = vrot.slane %v1824, 4
        %1838 = vrot.lane.b32.xlu0 %v1837, 124
        %v1839 = vpop.permute.xlu0 %1838
        %v1841 = vadd.f32 %v1824, %v1839
        %v1843 = vrot.slane %v1835, 4
        %1844 = vrot.lane.b32.xlu0 %v1843, 124
        %v1845 = vpop.permute.xlu0 %1844
        %v1847 = vadd.f32 %v1830, %v1845
        %1849 = vrot.lane.b32.xlu0 %v1847, 120
        %v1850 = vpop.permute.xlu0 %1849
        %v1852 = vadd.f32 %v1841, %v1850
        %v1853 = vstv %s370
        %v1854 = vadd.f32 %v1852, %v1853
        %v1855 = vsub.f32 0.0, %v1854
        %v1856 = vmul.f32 %v1855, 1.442695
        %v1857 = vpow.pop %v1856
        %v1858 = vadd.f32 %v1857, 1.0
        %v1859 = vrcp.pop %v1858
        %v1860 = vmul.f32 1.0, %v1859
        %1862 = vrot.lane.b32.xlu0 %v1860, 16
        %v1863 = vpop.permute.xlu0 %1862
        %1865 = vrot.lane.b32.xlu0 %v1860, 32
        %v1866 = vpop.permute.xlu0 %1865
        %1868 = vrot.lane.b32.xlu0 %v1860, 48
        %v1869 = vpop.permute.xlu0 %1868
        %1871 = vrot.lane.b32.xlu0 %v1860, 64
        %v1872 = vpop.permute.xlu0 %1871
        %1874 = vrot.lane.b32.xlu0 %v1860, 80
        %v1875 = vpop.permute.xlu0 %1874
        %1877 = vrot.lane.b32.xlu0 %v1860, 96
        %v1878 = vpop.permute.xlu0 %1877
        %1880 = vrot.lane.b32.xlu0 %v1860, 112
        %v1881 = vpop.permute.xlu0 %1880
        %v1883 = vsel %vm532, %v1860, %v1863
        %v1884 = vsel %vm668, %v1883, %v1866
        %v1885 = vsel %vm829, %v1884, %v1869
        %v1886 = vsel %vm832, %v1885, %v1872
        %v1887 = vsel %vm835, %v1886, %v1875
        %v1888 = vsel %vm838, %v1887, %v1878
        %v1889 = vsel %vm841, %v1888, %v1881
        %v1890 = vadd.f32 %v1889, 1.0
        %v1891 = vlaneseq
        %v1892 = vshrl.u32 %v1891, 7
        %v1893 = vsub.s32 0, %v1892
        %v1894 = vrot.slane %v1890, %v1893
        %v1895 = vmul.f32 %v1617, %v1894
        %v1896 = vmul.f32 %v1618, %v1894
        %v1897 = vld [vmem:[%s5] sm:$0xff]
        %v1898 = vld [vmem:[%s5 + $0x10] sm:$0xff]
        %v1899 = vld [vmem:[%s5 + $0x20] sm:$0xff]
        %v1900 = vld [vmem:[%s5 + $0x30] sm:$0xff]
        %v1901 = vld [vmem:[%s5 + $0x40] sm:$0xff]
        %v1902 = vld [vmem:[%s5 + $0x50] sm:$0xff]
        %v1903 = vld [vmem:[%s5 + $0x60] sm:$0xff]
        %v1904 = vld [vmem:[%s5 + $0x70] sm:$0xff]
        %v1905 = vld [vmem:[%s5 + $0x80] sm:$0xff]
        %v1906 = vld [vmem:[%s5 + $0x90] sm:$0xff]
        %v1907 = vld [vmem:[%s5 + $0xa0] sm:$0xff]
        %v1908 = vld [vmem:[%s5 + $0xb0] sm:$0xff]
        %v1909 = vld [vmem:[%s5 + $0xc0] sm:$0xff]
        %v1910 = vld [vmem:[%s5 + $0xd0] sm:$0xff]
        %v1911 = vld [vmem:[%s5 + $0xe0] sm:$0xff]
        %v1912 = vld [vmem:[%s5 + $0xf0] sm:$0xff]
        %1913 = vmatprep.subr.mxu0 0.0
        %1914 = vmatpush1.msra.mxu0 %v1912
        %1915 = vmatprep.subr.mxu0 0.0
        %1916 = vmatpush1.msra.mxu0 %v1911
        %1917 = vmatprep.subr.mxu0 0.0
        %1918 = vmatpush1.msra.mxu0 %v1910
        %1919 = vmatprep.subr.mxu0 0.0
        %1920 = vmatpush1.msra.mxu0 %v1909
        %1921 = vmatprep.subr.mxu0 0.0
        %1922 = vmatpush1.msra.mxu0 %v1908
        %1923 = vmatprep.subr.mxu0 0.0
        %1924 = vmatpush1.msra.mxu0 %v1907
        %1925 = vmatprep.subr.mxu0 0.0
        %1926 = vmatpush1.msra.mxu0 %v1906
        %1927 = vmatprep.subr.mxu0 0.0
        %1928 = vmatpush1.msra.mxu0 %v1905
        %1929 = vmatprep.subr.mxu0 0.0
        %1930 = vmatpush1.msra.mxu0 %v1904
        %1931 = vmatprep.subr.mxu0 0.0
        %1932 = vmatpush1.msra.mxu0 %v1903
        %1933 = vmatprep.subr.mxu0 0.0
        %1934 = vmatpush1.msra.mxu0 %v1902
        %1935 = vmatprep.subr.mxu0 0.0
        %1936 = vmatpush1.msra.mxu0 %v1901
        %1937 = vmatprep.subr.mxu0 0.0
        %1938 = vmatpush1.msra.mxu0 %v1900
        %1939 = vmatprep.subr.mxu0 0.0
        %1940 = vmatpush1.msra.mxu0 %v1899
        %1941 = vmatprep.subr.mxu0 0.0
        %1942 = vmatpush1.msra.mxu0 %v1898
        %1943 = vmatprep.subr.mxu0 0.0
        %1944 = vmatpush1.msra.mxu0 %v1897
        %1945 = vmatprep.subr.mxu0 0.0
        %1946 = vmatpush2.msra.mxu0 0.0
        %1947 = vmatprep.subr.mxu0 0.0
        %1948 = vmatpush2.msra.mxu0 0.0
        %1949 = vmatprep.subr.mxu0 0.0
        %1950 = vmatpush2.msra.mxu0 0.0
        %1951 = vmatprep.subr.mxu0 0.0
        %1952 = vmatpush2.msra.mxu0 0.0
        %1953 = vmatprep.subr.mxu0 0.0
        %1954 = vmatpush2.msra.mxu0 0.0
        %1955 = vmatprep.subr.mxu0 0.0
        %1956 = vmatpush2.msra.mxu0 0.0
        %1957 = vmatprep.subr.mxu0 0.0
        %1958 = vmatpush2.msra.mxu0 0.0
        %1959 = vmatprep.subr.mxu0 0.0
        %1960 = vmatpush2.msra.mxu0 0.0
        %1961 = vmatprep.subr.mxu0 0.0
        %1962 = vmatpush2.msra.mxu0 0.0
        %1963 = vmatprep.subr.mxu0 0.0
        %1964 = vmatpush2.msra.mxu0 0.0
        %1965 = vmatprep.subr.mxu0 0.0
        %1966 = vmatpush2.msra.mxu0 0.0
        %1967 = vmatprep.subr.mxu0 0.0
        %1968 = vmatpush2.msra.mxu0 0.0
        %1969 = vmatprep.subr.mxu0 0.0
        %1970 = vmatpush2.msra.mxu0 0.0
        %1971 = vmatprep.subr.mxu0 0.0
        %1972 = vmatpush2.msra.mxu0 0.0
        %1973 = vmatprep.subr.mxu0 0.0
        %1974 = vmatpush2.msra.mxu0 0.0
        %1975 = vmatprep.subr.mxu0 0.0
        %1976 = vmatpush2.msra.mxu0 0.0
        %1977 = vmatprep.mubr.f32.mxu0 0.0
        %1978 = vmatmul.mubr.f32.gmra.mxu0 %v1895
        %v1979 = vpop.f32.mrf.mxu0
        %v1980 = vadd.f32 0.0, %v1979
        %v1981 = vpop.f32.mrf.mxu0
        %1982 = vmatprep.mubr.f32.mxu0 0.0
        %1983 = vmatmul.mubr.f32.gmra.mxu0 %v1896
        %v1984 = vpop.f32.mrf.mxu0
        %v1985 = vadd.f32 0.0, %v1984
        %v1986 = vpop.f32.mrf.mxu0
        %1987 = vdwg.mxu0
        %v1988 = vld [vmem:[%s7 + $0x40] sm:$0xff]
        %v1989 = vld [vmem:[%s7 + $0x48] sm:$0xff]
        %v1991 = vsel %vm532, %v1988, 0
        %v1994 = vsel %vm532, %v1989, 0
        %1996 = vmatprep.subr.mxu0 0.0
        %1997 = vmatpush1.msra.mxu0 0.0
        %1998 = vmatprep.subr.mxu0 0.0
        %1999 = vmatpush1.msra.mxu0 0.0
        %2000 = vmatprep.subr.mxu0 0.0
        %2001 = vmatpush1.msra.mxu0 0.0
        %2002 = vmatprep.subr.mxu0 0.0
        %2003 = vmatpush1.msra.mxu0 0.0
        %2004 = vmatprep.subr.mxu0 0.0
        %2005 = vmatpush1.msra.mxu0 0.0
        %2006 = vmatprep.subr.mxu0 0.0
        %2007 = vmatpush1.msra.mxu0 0.0
        %2008 = vmatprep.subr.mxu0 0.0
        %2009 = vmatpush1.msra.mxu0 0.0
        %2010 = vmatprep.subr.mxu0 0.0
        %2011 = vmatpush1.msra.mxu0 0.0
        %2012 = vmatprep.subr.mxu0 0.0
        %2013 = vmatpush1.msra.mxu0 0.0
        %2014 = vmatprep.subr.mxu0 0.0
        %2015 = vmatpush1.msra.mxu0 0.0
        %2016 = vmatprep.subr.mxu0 0.0
        %2017 = vmatpush1.msra.mxu0 0.0
        %2018 = vmatprep.subr.mxu0 0.0
        %2019 = vmatpush1.msra.mxu0 0.0
        %2020 = vmatprep.subr.mxu0 0.0
        %2021 = vmatpush1.msra.mxu0 0.0
        %2022 = vmatprep.subr.mxu0 0.0
        %2023 = vmatpush1.msra.mxu0 0.0
        %2024 = vmatprep.subr.mxu0 0.0
        %2025 = vmatpush1.msra.mxu0 %v1985
        %2026 = vmatprep.subr.mxu0 0.0
        %2027 = vmatpush1.msra.mxu0 %v1980
        %2028 = vmatprep.subr.mxu0 0.0
        %2029 = vmatpush2.msra.mxu0 0.0
        %2030 = vmatprep.subr.mxu0 0.0
        %2031 = vmatpush2.msra.mxu0 0.0
        %2032 = vmatprep.subr.mxu0 0.0
        %2033 = vmatpush2.msra.mxu0 0.0
        %2034 = vmatprep.subr.mxu0 0.0
        %2035 = vmatpush2.msra.mxu0 0.0
        %2036 = vmatprep.subr.mxu0 0.0
        %2037 = vmatpush2.msra.mxu0 0.0
        %2038 = vmatprep.subr.mxu0 0.0
        %2039 = vmatpush2.msra.mxu0 0.0
        %2040 = vmatprep.subr.mxu0 0.0
        %2041 = vmatpush2.msra.mxu0 0.0
        %2042 = vmatprep.subr.mxu0 0.0
        %2043 = vmatpush2.msra.mxu0 0.0
        %2044 = vmatprep.subr.mxu0 0.0
        %2045 = vmatpush2.msra.mxu0 0.0
        %2046 = vmatprep.subr.mxu0 0.0
        %2047 = vmatpush2.msra.mxu0 0.0
        %2048 = vmatprep.subr.mxu0 0.0
        %2049 = vmatpush2.msra.mxu0 0.0
        %2050 = vmatprep.subr.mxu0 0.0
        %2051 = vmatpush2.msra.mxu0 0.0
        %2052 = vmatprep.subr.mxu0 0.0
        %2053 = vmatpush2.msra.mxu0 0.0
        %2054 = vmatprep.subr.mxu0 0.0
        %2055 = vmatpush2.msra.mxu0 0.0
        %2056 = vmatprep.subr.mxu0 0.0
        %2057 = vmatpush2.msra.mxu0 0.0
        %2058 = vmatprep.subr.mxu0 0.0
        %2059 = vmatpush2.msra.mxu0 0.0
        %2060 = vmatprep.mubr.f32.mxu0 0.0
        %2061 = vmatmul.mubr.f32.gmra.mxu0 %v1991
        %v2062 = vpop.f32.mrf.mxu0
        %v2063 = vadd.f32 0.0, %v2062
        %v2064 = vpop.f32.mrf.mxu0
        %2065 = vmatprep.mubr.f32.mxu0 0.0
        %2066 = vmatmul.mubr.f32.gmra.mxu0 %v1994
        %v2067 = vpop.f32.mrf.mxu0
        %v2068 = vadd.f32 0.0, %v2067
        %v2069 = vpop.f32.mrf.mxu0
        %2070 = vdwg.mxu0
        %2073 = vrot.lane.b32.xlu0 %v2063, 64
        %v2074 = vpop.permute.xlu0 %2073
        %2075 = vrot.lane.b32.xlu0 %v2068, 64
        %v2076 = vpop.permute.xlu0 %2075
        %v2079 = vsel %vm832, 0.0, %v2074
        %v2080 = vsel %vm832, %v2074, 0.0
        %v2081 = vsel %vm832, %v2076, 0.0
        %v2084 = vrot.slane %v2079, 1
        %v2085 = vrot.slane %v2080, 1
        %2086 = vrot.lane.b32.xlu0 %v2084, 112
        %v2087 = vpop.permute.xlu0 %2086
        %2088 = vrot.lane.b32.xlu0 %v2085, 112
        %v2089 = vpop.permute.xlu0 %2088
        %v2090 = vsel %vm841, %v2087, %v2089
        %v2092 = vadd.f32 %v2079, %v2090
        %v2094 = vadd.f32 %v2080, %v2089
        %v2097 = vrot.slane %v2092, 2
        %v2098 = vrot.slane %v2094, 2
        %2099 = vrot.lane.b32.xlu0 %v2097, 96
        %v2100 = vpop.permute.xlu0 %2099
        %2101 = vrot.lane.b32.xlu0 %v2098, 96
        %v2102 = vpop.permute.xlu0 %2101
        %v2103 = vsel %vm838, %v2100, %v2102
        %v2105 = vadd.f32 %v2092, %v2103
        %v2107 = vadd.f32 %v2094, %v2102
        %v2110 = vrot.slane %v2105, 4
        %v2111 = vrot.slane %v2107, 4
        %2112 = vrot.lane.b32.xlu0 %v2110, 64
        %v2113 = vpop.permute.xlu0 %2112
        %2114 = vrot.lane.b32.xlu0 %v2111, 64
        %v2115 = vpop.permute.xlu0 %2114
        %v2116 = vsel %vm832, %v2113, %v2115
        %v2118 = vadd.f32 %v2105, %v2116
        %v2119 = vadd.f32 %v2118, %v2081
        %v2120 = vstv %s371
        %v2121 = vadd.f32 %v2119, %v2120
        %v2122 = vsub.f32 0.0, %v2121
        %v2123 = vmul.f32 %v2122, 1.442695
        %v2124 = vpow.pop %v2123
        %v2125 = vadd.f32 %v2124, 1.0
        %v2126 = vrcp.pop %v2125
        %v2127 = vmul.f32 1.0, %v2126
        %v2128 = vadd.f32 %v2127, 1.0
        %v2129 = vlaneseq
        %v2130 = vshrl.u32 %v2129, 7
        %v2131 = vsub.s32 0, %v2130
        %v2132 = vrot.slane %v2128, %v2131
        %v2133 = vmul.f32 %v1895, %v2132
        %v2134 = vmul.f32 %v1896, %v2132
        %2135 = vadd.xlane.f32.xlu0 %v2133
        %v2136 = vpop.xlane.xlu0 %2135
        %2137 = vadd.xlane.f32.xlu0 %v2134
        %v2138 = vpop.xlane.xlu0 %2137
        %v2139 = vrcp.pop 128.0
        %v2140 = vmul.f32 %v2136, %v2139
        %v2141 = vmul.f32 %v2138, %v2139
        %v2142 = vld [vmem:[%s7 + $0x50] sm:$0xff]
        %2143 = vrot.lane.b32.xlu0 %v1591, 122
        %v2144 = vpop.permute.xlu0 %2143
        %v2147 = vsel %vm532, %v2142, 0
        %2149 = vmatprep.subr.mxu0 0.0
        %2150 = vmatpush1.msra.mxu0 0.0
        %2151 = vmatprep.subr.mxu0 0.0
        %2152 = vmatpush1.msra.mxu0 0.0
        %2153 = vmatprep.subr.mxu0 0.0
        %2154 = vmatpush1.msra.mxu0 0.0
        %2155 = vmatprep.subr.mxu0 0.0
        %2156 = vmatpush1.msra.mxu0 0.0
        %2157 = vmatprep.subr.mxu0 0.0
        %2158 = vmatpush1.msra.mxu0 0.0
        %2159 = vmatprep.subr.mxu0 0.0
        %2160 = vmatpush1.msra.mxu0 0.0
        %2161 = vmatprep.subr.mxu0 0.0
        %2162 = vmatpush1.msra.mxu0 0.0
        %2163 = vmatprep.subr.mxu0 0.0
        %2164 = vmatpush1.msra.mxu0 0.0
        %2165 = vmatprep.subr.mxu0 0.0
        %2166 = vmatpush1.msra.mxu0 0.0
        %2167 = vmatprep.subr.mxu0 0.0
        %2168 = vmatpush1.msra.mxu0 0.0
        %2169 = vmatprep.subr.mxu0 0.0
        %2170 = vmatpush1.msra.mxu0 0.0
        %2171 = vmatprep.subr.mxu0 0.0
        %2172 = vmatpush1.msra.mxu0 0.0
        %2173 = vmatprep.subr.mxu0 0.0
        %2174 = vmatpush1.msra.mxu0 0.0
        %2175 = vmatprep.subr.mxu0 0.0
        %2176 = vmatpush1.msra.mxu0 0.0
        %2177 = vmatprep.subr.mxu0 0.0
        %2178 = vmatpush1.msra.mxu0 %v2141
        %2179 = vmatprep.subr.mxu0 0.0
        %2180 = vmatpush1.msra.mxu0 %v2140
        %2181 = vmatprep.subr.mxu0 0.0
        %2182 = vmatpush2.msra.mxu0 0.0
        %2183 = vmatprep.subr.mxu0 0.0
        %2184 = vmatpush2.msra.mxu0 0.0
        %2185 = vmatprep.subr.mxu0 0.0
        %2186 = vmatpush2.msra.mxu0 0.0
        %2187 = vmatprep.subr.mxu0 0.0
        %2188 = vmatpush2.msra.mxu0 0.0
        %2189 = vmatprep.subr.mxu0 0.0
        %2190 = vmatpush2.msra.mxu0 0.0
        %2191 = vmatprep.subr.mxu0 0.0
        %2192 = vmatpush2.msra.mxu0 0.0
        %2193 = vmatprep.subr.mxu0 0.0
        %2194 = vmatpush2.msra.mxu0 0.0
        %2195 = vmatprep.subr.mxu0 0.0
        %2196 = vmatpush2.msra.mxu0 0.0
        %2197 = vmatprep.subr.mxu0 0.0
        %2198 = vmatpush2.msra.mxu0 0.0
        %2199 = vmatprep.subr.mxu0 0.0
        %2200 = vmatpush2.msra.mxu0 0.0
        %2201 = vmatprep.subr.mxu0 0.0
        %2202 = vmatpush2.msra.mxu0 0.0
        %2203 = vmatprep.subr.mxu0 0.0
        %2204 = vmatpush2.msra.mxu0 0.0
        %2205 = vmatprep.subr.mxu0 0.0
        %2206 = vmatpush2.msra.mxu0 0.0
        %2207 = vmatprep.subr.mxu0 0.0
        %2208 = vmatpush2.msra.mxu0 0.0
        %2209 = vmatprep.subr.mxu0 0.0
        %2210 = vmatpush2.msra.mxu0 0.0
        %2211 = vmatprep.subr.mxu0 0.0
        %2212 = vmatpush2.msra.mxu0 0.0
        %2213 = vmatprep.mubr.f32.mxu0 0.0
        %2214 = vmatmul.mubr.f32.gmra.mxu0 %v2147
        %v2215 = vpop.f32.mrf.mxu0
        %v2216 = vadd.f32 %v2144, %v2215
        %v2217 = vpop.f32.mrf.mxu0
        %2218 = vdwg.mxu0
        %v2219 = vmax.f32 %v2216, 0.0
        %v2220 = vld [vmem:[%s7 + $0x58] sm:$0xff]
        %2221 = vxpose.xlu0.b32.start [1/16] %v2220, 128
        %2222 = vxpose.xlu0.b32.cont [2/16] 0.0, 128
        %2223 = vxpose.xlu0.b32.cont [3/16] 0.0, 128
        %2224 = vxpose.xlu0.b32.cont [4/16] 0.0, 128
        %2225 = vxpose.xlu0.b32.cont [5/16] 0.0, 128
        %2226 = vxpose.xlu0.b32.cont [6/16] 0.0, 128
        %2227 = vxpose.xlu0.b32.cont [7/16] 0.0, 128
        %2228 = vxpose.xlu0.b32.cont [8/16] 0.0, 128
        %2229 = vxpose.xlu0.b32.cont [9/16] 0.0, 128
        %2230 = vxpose.xlu0.b32.cont [10/16] 0.0, 128
        %2231 = vxpose.xlu0.b32.cont [11/16] 0.0, 128
        %2232 = vxpose.xlu0.b32.cont [12/16] 0.0, 128
        %2233 = vxpose.xlu0.b32.cont [13/16] 0.0, 128
        %2234 = vxpose.xlu0.b32.cont [14/16] 0.0, 128
        %2235 = vxpose.xlu0.b32.cont [15/16] 0.0, 128
        %2236 = vxpose.xlu0.b32.end [16/16] 0.0, 128
        %v2237 = vpop.trf.xlu0
        %v2238 = vpop.trf.xlu0
        %v2239 = vpop.trf.xlu0
        %v2240 = vpop.trf.xlu0
        %v2241 = vpop.trf.xlu0
        %v2242 = vpop.trf.xlu0
        %v2243 = vpop.trf.xlu0
        %v2244 = vpop.trf.xlu0
        %v2245 = vpop.trf.xlu0
        %v2246 = vpop.trf.xlu0
        %v2247 = vpop.trf.xlu0
        %v2248 = vpop.trf.xlu0
        %v2249 = vpop.trf.xlu0
        %v2250 = vpop.trf.xlu0
        %v2251 = vpop.trf.xlu0
        %v2252 = vpop.trf.xlu0
        %2253 = vrot.lane.b32.xlu0 %v1591, 121
        %v2254 = vpop.permute.xlu0 %2253
        %2255 = vrot.lane.b32.xlu0 %v1592, 121
        %v2256 = vpop.permute.xlu0 %2255
        %vm2259 = vcmask 64512
        %v2261 = vsel %vm2259, %v2237, 0
        %v2264 = vsel %vm2259, %v2238, 0
        %2266 = vmatprep.subr.mxu0 0.0
        %2267 = vmatpush1.msra.mxu0 0.0
        %2268 = vmatprep.subr.mxu0 0.0
        %2269 = vmatpush1.msra.mxu0 0.0
        %2270 = vmatprep.subr.mxu0 0.0
        %2271 = vmatpush1.msra.mxu0 0.0
        %2272 = vmatprep.subr.mxu0 0.0
        %2273 = vmatpush1.msra.mxu0 0.0
        %2274 = vmatprep.subr.mxu0 0.0
        %2275 = vmatpush1.msra.mxu0 0.0
        %2276 = vmatprep.subr.mxu0 0.0
        %2277 = vmatpush1.msra.mxu0 0.0
        %2278 = vmatprep.subr.mxu0 0.0
        %2279 = vmatpush1.msra.mxu0 0.0
        %2280 = vmatprep.subr.mxu0 0.0
        %2281 = vmatpush1.msra.mxu0 0.0
        %2282 = vmatprep.subr.mxu0 0.0
        %2283 = vmatpush1.msra.mxu0 0.0
        %2284 = vmatprep.subr.mxu0 0.0
        %2285 = vmatpush1.msra.mxu0 0.0
        %2286 = vmatprep.subr.mxu0 0.0
        %2287 = vmatpush1.msra.mxu0 0.0
        %2288 = vmatprep.subr.mxu0 0.0
        %2289 = vmatpush1.msra.mxu0 0.0
        %2290 = vmatprep.subr.mxu0 0.0
        %2291 = vmatpush1.msra.mxu0 0.0
        %2292 = vmatprep.subr.mxu0 0.0
        %2293 = vmatpush1.msra.mxu0 0.0
        %2294 = vmatprep.subr.mxu0 0.0
        %2295 = vmatpush1.msra.mxu0 0.0
        %2296 = vmatprep.subr.mxu0 0.0
        %2297 = vmatpush1.msra.mxu0 %v2219
        %2298 = vmatprep.subr.mxu0 0.0
        %2299 = vmatpush2.msra.mxu0 0.0
        %2300 = vmatprep.subr.mxu0 0.0
        %2301 = vmatpush2.msra.mxu0 0.0
        %2302 = vmatprep.subr.mxu0 0.0
        %2303 = vmatpush2.msra.mxu0 0.0
        %2304 = vmatprep.subr.mxu0 0.0
        %2305 = vmatpush2.msra.mxu0 0.0
        %2306 = vmatprep.subr.mxu0 0.0
        %2307 = vmatpush2.msra.mxu0 0.0
        %2308 = vmatprep.subr.mxu0 0.0
        %2309 = vmatpush2.msra.mxu0 0.0
        %2310 = vmatprep.subr.mxu0 0.0
        %2311 = vmatpush2.msra.mxu0 0.0
        %2312 = vmatprep.subr.mxu0 0.0
        %2313 = vmatpush2.msra.mxu0 0.0
        %2314 = vmatprep.subr.mxu0 0.0
        %2315 = vmatpush2.msra.mxu0 0.0
        %2316 = vmatprep.subr.mxu0 0.0
        %2317 = vmatpush2.msra.mxu0 0.0
        %2318 = vmatprep.subr.mxu0 0.0
        %2319 = vmatpush2.msra.mxu0 0.0
        %2320 = vmatprep.subr.mxu0 0.0
        %2321 = vmatpush2.msra.mxu0 0.0
        %2322 = vmatprep.subr.mxu0 0.0
        %2323 = vmatpush2.msra.mxu0 0.0
        %2324 = vmatprep.subr.mxu0 0.0
        %2325 = vmatpush2.msra.mxu0 0.0
        %2326 = vmatprep.subr.mxu0 0.0
        %2327 = vmatpush2.msra.mxu0 0.0
        %2328 = vmatprep.subr.mxu0 0.0
        %2329 = vmatpush2.msra.mxu0 0.0
        %2330 = vmatprep.mubr.f32.mxu0 0.0
        %2331 = vmatmul.mubr.f32.gmra.mxu0 %v2261
        %v2332 = vpop.f32.mrf.mxu0
        %v2333 = vadd.f32 %v2254, %v2332
        %v2334 = vpop.f32.mrf.mxu0
        %2335 = vmatprep.mubr.f32.mxu0 0.0
        %2336 = vmatmul.mubr.f32.gmra.mxu0 %v2264
        %v2337 = vpop.f32.mrf.mxu0
        %v2338 = vadd.f32 %v2256, %v2337
        %v2339 = vpop.f32.mrf.mxu0
        %2340 = vdwg.mxu0
        %v2341 = vsub.f32 0.0, %v2333
        %v2342 = vsub.f32 0.0, %v2338
        %v2343 = vmul.f32 %v2341, 1.442695
        %v2344 = vpow.pop %v2343
        %v2345 = vmul.f32 %v2342, 1.442695
        %v2346 = vpow.pop %v2345
        %v2347 = vadd.f32 %v2344, 1.0
        %v2348 = vadd.f32 %v2346, 1.0
        %v2349 = vrcp.pop %v2347
        %v2350 = vmul.f32 1.0, %v2349
        %v2351 = vrcp.pop %v2348
        %v2352 = vmul.f32 1.0, %v2351
        %v2353 = vadd.f32 %v2350, 1.0
        %v2354 = vadd.f32 %v2352, 1.0
        %2356 = vset.pattern.permute.xlu0 0
        %2357 = vperm.xlu0 %2356, %v2353
        %v2358 = vpop.permute.xlu0 %2357
        %2361 = vset.pattern.permute.xlu0 0
        %2362 = vperm.xlu0 %2361, %v2354
        %v2363 = vpop.permute.xlu0 %2362
        %v2365 = vmul.f32 %v2133, %v2358
        %v2366 = vmul.f32 %v2134, %v2363
        %2367 = vset.pattern.permute.xlu0 2
        %2368 = vperm.xlu0 %2367, %v1591
        %v2369 = vpop.permute.xlu0 %2368
        %2371 = vset.pattern.permute.xlu0 2
        %2372 = vperm.xlu0 %2371, %v1592
        %v2373 = vpop.permute.xlu0 %2372
        %v2375 = vmul.f32 %v2365, %v2369
        %v2376 = vmul.f32 %v2366, %v2373
        %2377 = vset.pattern.permute.xlu0 3
        %2378 = vperm.xlu0 %2377, %v1591
        %v2379 = vpop.permute.xlu0 %2378
        %2381 = vset.pattern.permute.xlu0 3
        %2382 = vperm.xlu0 %2381, %v1592
        %v2383 = vpop.permute.xlu0 %2382
        %v2385 = vadd.f32 %v2375, %v2379
        %v2386 = vadd.f32 %v2376, %v2383
        %v2387 = vmax.f32 %v2385, 0.0
        %v2388 = vmax.f32 %v2386, 0.0
        %2391 = vrot.lane.b32.xlu0 %v2387, 64
        %v2392 = vpop.permute.xlu0 %2391
        %2393 = vrot.lane.b32.xlu0 %v2388, 64
        %v2394 = vpop.permute.xlu0 %2393
        %v2397 = vsel %vm832, 0.0, %v2392
        %v2398 = vsel %vm832, 0.0, %v2394
        %v2399 = vsel %vm832, %v2392, 0.0
        %v2400 = vsel %vm832, %v2394, 0.0
        %2401 = vst [vmem:[#allocation3] sm:$0xff] %v2397
        %2402 = vst [vmem:[#allocation3 + $0x8] sm:$0xff] %v2398
        %2407 = vrot.lane.b32.xlu0 %v2397, 112
        %v2408 = vpop.permute.xlu0 %2407
        %2409 = vrot.lane.b32.xlu0 %v2399, 112
        %v2410 = vpop.permute.xlu0 %2409
        %2411 = vrot.lane.b32.xlu0 %v2398, 112
        %v2412 = vpop.permute.xlu0 %2411
        %2413 = vrot.lane.b32.xlu0 %v2400, 112
        %v2414 = vpop.permute.xlu0 %2413
        %v2415 = vsel %vm841, %v2408, %v2410
        %v2416 = vsel %vm841, %v2412, %v2414
        %2419 = vst [vmem:[#allocation3 + $0x10] sm:$0xff] %v2415
        %2420 = vst [vmem:[#allocation3 + $0x18] sm:$0xff] %v2416
        %2421 = vrot.lane.b32.xlu0 %v2397, 96
        %v2422 = vpop.permute.xlu0 %2421
        %2423 = vrot.lane.b32.xlu0 %v2399, 96
        %v2424 = vpop.permute.xlu0 %2423
        %2425 = vrot.lane.b32.xlu0 %v2398, 96
        %v2426 = vpop.permute.xlu0 %2425
        %2427 = vrot.lane.b32.xlu0 %v2400, 96
        %v2428 = vpop.permute.xlu0 %2427
        %v2429 = vsel %vm838, %v2422, %v2424
        %v2430 = vsel %vm838, %v2426, %v2428
        %2433 = vst [vmem:[#allocation3 + $0x20] sm:$0xff] %v2429
        %2434 = vst [vmem:[#allocation3 + $0x28] sm:$0xff] %v2430
        %2435 = vrot.lane.b32.xlu0 %v2397, 80
        %v2436 = vpop.permute.xlu0 %2435
        %2437 = vrot.lane.b32.xlu0 %v2399, 80
        %v2438 = vpop.permute.xlu0 %2437
        %2439 = vrot.lane.b32.xlu0 %v2398, 80
        %v2440 = vpop.permute.xlu0 %2439
        %2441 = vrot.lane.b32.xlu0 %v2400, 80
        %v2442 = vpop.permute.xlu0 %2441
        %v2443 = vsel %vm835, %v2436, %v2438
        %v2444 = vsel %vm835, %v2440, %v2442
        %2447 = vst [vmem:[#allocation3 + $0x30] sm:$0xff] %v2443
        %2448 = vst [vmem:[#allocation3 + $0x38] sm:$0xff] %v2444
        %2449 = vrot.lane.b32.xlu0 %v2397, 64
        %v2450 = vpop.permute.xlu0 %2449
        %2451 = vrot.lane.b32.xlu0 %v2399, 64
        %v2452 = vpop.permute.xlu0 %2451
        %2453 = vrot.lane.b32.xlu0 %v2398, 64
        %v2454 = vpop.permute.xlu0 %2453
        %2455 = vrot.lane.b32.xlu0 %v2400, 64
        %v2456 = vpop.permute.xlu0 %2455
        %v2457 = vsel %vm832, %v2450, %v2452
        %v2458 = vsel %vm832, %v2454, %v2456
        %2461 = vst [vmem:[#allocation3 + $0x40] sm:$0xff] %v2457
        %2462 = vst [vmem:[#allocation3 + $0x48] sm:$0xff] %v2458
        %2463 = vrot.lane.b32.xlu0 %v2397, 48
        %v2464 = vpop.permute.xlu0 %2463
        %2465 = vrot.lane.b32.xlu0 %v2399, 48
        %v2466 = vpop.permute.xlu0 %2465
        %2467 = vrot.lane.b32.xlu0 %v2398, 48
        %v2468 = vpop.permute.xlu0 %2467
        %2469 = vrot.lane.b32.xlu0 %v2400, 48
        %v2470 = vpop.permute.xlu0 %2469
        %v2471 = vsel %vm829, %v2464, %v2466
        %v2472 = vsel %vm829, %v2468, %v2470
        %2475 = vst [vmem:[#allocation3 + $0x50] sm:$0xff] %v2471
        %2476 = vst [vmem:[#allocation3 + $0x58] sm:$0xff] %v2472
        %2477 = vrot.lane.b32.xlu0 %v2397, 32
        %v2478 = vpop.permute.xlu0 %2477
        %2479 = vrot.lane.b32.xlu0 %v2399, 32
        %v2480 = vpop.permute.xlu0 %2479
        %2481 = vrot.lane.b32.xlu0 %v2398, 32
        %v2482 = vpop.permute.xlu0 %2481
        %2483 = vrot.lane.b32.xlu0 %v2400, 32
        %v2484 = vpop.permute.xlu0 %2483
        %v2485 = vsel %vm668, %v2478, %v2480
        %v2486 = vsel %vm668, %v2482, %v2484
        %2489 = vst [vmem:[#allocation3 + $0x60] sm:$0xff] %v2485
        %2490 = vst [vmem:[#allocation3 + $0x68] sm:$0xff] %v2486
        %2491 = vrot.lane.b32.xlu0 %v2397, 16
        %v2492 = vpop.permute.xlu0 %2491
        %2493 = vrot.lane.b32.xlu0 %v2399, 16
        %v2494 = vpop.permute.xlu0 %2493
        %2495 = vrot.lane.b32.xlu0 %v2398, 16
        %v2496 = vpop.permute.xlu0 %2495
        %2497 = vrot.lane.b32.xlu0 %v2400, 16
        %v2498 = vpop.permute.xlu0 %2497
        %v2499 = vsel %vm532, %v2492, %v2494
        %v2500 = vsel %vm532, %v2496, %v2498
        %2503 = vst [vmem:[#allocation3 + $0x70] sm:$0xff] %v2499
        %2504 = vst [vmem:[#allocation3 + $0x78] sm:$0xff] %v2500
        %2505 = vst [vmem:[#allocation3 + $0x80] sm:$0xff] %v2399
        %2506 = vst [vmem:[#allocation3 + $0x88] sm:$0xff] %v2400
        %v2507 = vld [vmem:[%s6] sm:$0xff]
        %v2508 = vld [vmem:[%s6 + $0x8] sm:$0xff]
        %v2509 = vld [vmem:[%s6 + $0x10] sm:$0xff]
        %v2510 = vld [vmem:[%s6 + $0x18] sm:$0xff]
        %v2511 = vld [vmem:[#allocation3] sm:$0xff]
        %v2512 = vld [vmem:[#allocation3 + $0x8] sm:$0xff]
        %v2513 = vld [vmem:[#allocation3 + $0x10] sm:$0xff]
        %v2514 = vld [vmem:[#allocation3 + $0x18] sm:$0xff]
        %v2515 = vld [vmem:[#allocation3 + $0x20] sm:$0xff]
        %v2516 = vld [vmem:[#allocation3 + $0x28] sm:$0xff]
        %v2517 = vld [vmem:[#allocation3 + $0x30] sm:$0xff]
        %v2518 = vld [vmem:[#allocation3 + $0x38] sm:$0xff]
        %v2519 = vld [vmem:[#allocation3 + $0x40] sm:$0xff]
        %v2520 = vld [vmem:[#allocation3 + $0x48] sm:$0xff]
        %v2521 = vld [vmem:[#allocation3 + $0x50] sm:$0xff]
        %v2522 = vld [vmem:[#allocation3 + $0x58] sm:$0xff]
        %v2523 = vld [vmem:[#allocation3 + $0x60] sm:$0xff]
        %v2524 = vld [vmem:[#allocation3 + $0x68] sm:$0xff]
        %v2525 = vld [vmem:[#allocation3 + $0x70] sm:$0xff]
        %v2526 = vld [vmem:[#allocation3 + $0x78] sm:$0xff]
        %v2527 = vld [vmem:[#allocation3 + $0x80] sm:$0xff]
        %v2528 = vld [vmem:[#allocation3 + $0x88] sm:$0xff]
        %v2530 = vsel %vm532, %v2508, 0
        %v2533 = vsel %vm532, %v2510, 0
        %2535 = vmatprep.subr.mxu0 0.0
        %2536 = vmatpush1.msra.mxu0 %v2526
        %2537 = vmatprep.subr.mxu0 0.0
        %2538 = vmatpush1.msra.mxu0 %v2525
        %2539 = vmatprep.subr.mxu0 0.0
        %2540 = vmatpush1.msra.mxu0 %v2524
        %2541 = vmatprep.subr.mxu0 0.0
        %2542 = vmatpush1.msra.mxu0 %v2523
        %2543 = vmatprep.subr.mxu0 0.0
        %2544 = vmatpush1.msra.mxu0 %v2522
        %2545 = vmatprep.subr.mxu0 0.0
        %2546 = vmatpush1.msra.mxu0 %v2521
        %2547 = vmatprep.subr.mxu0 0.0
        %2548 = vmatpush1.msra.mxu0 %v2520
        %2549 = vmatprep.subr.mxu0 0.0
        %2550 = vmatpush1.msra.mxu0 %v2519
        %2551 = vmatprep.subr.mxu0 0.0
        %2552 = vmatpush1.msra.mxu0 %v2518
        %2553 = vmatprep.subr.mxu0 0.0
        %2554 = vmatpush1.msra.mxu0 %v2517
        %2555 = vmatprep.subr.mxu0 0.0
        %2556 = vmatpush1.msra.mxu0 %v2516
        %2557 = vmatprep.subr.mxu0 0.0
        %2558 = vmatpush1.msra.mxu0 %v2515
        %2559 = vmatprep.subr.mxu0 0.0
        %2560 = vmatpush1.msra.mxu0 %v2514
        %2561 = vmatprep.subr.mxu0 0.0
        %2562 = vmatpush1.msra.mxu0 %v2513
        %2563 = vmatprep.subr.mxu0 0.0
        %2564 = vmatpush1.msra.mxu0 %v2512
        %2565 = vmatprep.subr.mxu0 0.0
        %2566 = vmatpush1.msra.mxu0 %v2511
        %2567 = vmatprep.subr.mxu0 0.0
        %2568 = vmatpush2.msra.mxu0 0.0
        %2569 = vmatprep.subr.mxu0 0.0
        %2570 = vmatpush2.msra.mxu0 0.0
        %2571 = vmatprep.subr.mxu0 0.0
        %2572 = vmatpush2.msra.mxu0 0.0
        %2573 = vmatprep.subr.mxu0 0.0
        %2574 = vmatpush2.msra.mxu0 0.0
        %2575 = vmatprep.subr.mxu0 0.0
        %2576 = vmatpush2.msra.mxu0 0.0
        %2577 = vmatprep.subr.mxu0 0.0
        %2578 = vmatpush2.msra.mxu0 0.0
        %2579 = vmatprep.subr.mxu0 0.0
        %2580 = vmatpush2.msra.mxu0 0.0
        %2581 = vmatprep.subr.mxu0 0.0
        %2582 = vmatpush2.msra.mxu0 0.0
        %2583 = vmatprep.subr.mxu0 0.0
        %2584 = vmatpush2.msra.mxu0 0.0
        %2585 = vmatprep.subr.mxu0 0.0
        %2586 = vmatpush2.msra.mxu0 0.0
        %2587 = vmatprep.subr.mxu0 0.0
        %2588 = vmatpush2.msra.mxu0 0.0
        %2589 = vmatprep.subr.mxu0 0.0
        %2590 = vmatpush2.msra.mxu0 0.0
        %2591 = vmatprep.subr.mxu0 0.0
        %2592 = vmatpush2.msra.mxu0 0.0
        %2593 = vmatprep.subr.mxu0 0.0
        %2594 = vmatpush2.msra.mxu0 0.0
        %2595 = vmatprep.subr.mxu0 0.0
        %2596 = vmatpush2.msra.mxu0 %v2528
        %2597 = vmatprep.subr.mxu0 0.0
        %2598 = vmatpush2.msra.mxu0 %v2527
        %2599 = vmatprep.mubr.f32.mxu0 %v2530
        %2600 = vmatmul.mubr.f32.gmra.mxu0 %v2507
        %v2601 = vpop.f32.mrf.mxu0
        %v2602 = vadd.f32 0.0, %v2601
        %v2603 = vpop.f32.mrf.mxu0
        %2604 = vmatprep.mubr.f32.mxu0 %v2533
        %2605 = vmatmul.mubr.f32.gmra.mxu0 %v2509
        %v2606 = vpop.f32.mrf.mxu0
        %v2607 = vadd.f32 0.0, %v2606
        %v2608 = vpop.f32.mrf.mxu0
        %2609 = vdwg.mxu0
        %2610 = vset.pattern.permute.xlu0 4
        %2611 = vperm.xlu0 %2610, %v1591
        %v2612 = vpop.permute.xlu0 %2611
        %2614 = vset.pattern.permute.xlu0 4
        %2615 = vperm.xlu0 %2614, %v1592
        %v2616 = vpop.permute.xlu0 %2615
        %v2618 = vmul.f32 %v2602, %v2612
        %v2619 = vmul.f32 %v2607, %v2616
        %2620 = vset.pattern.permute.xlu0 5
        %2621 = vperm.xlu0 %2620, %v1591
        %v2622 = vpop.permute.xlu0 %2621
        %2624 = vset.pattern.permute.xlu0 5
        %2625 = vperm.xlu0 %2624, %v1592
        %v2626 = vpop.permute.xlu0 %2625
        %v2628 = vadd.f32 %v2618, %v2622
        %v2629 = vadd.f32 %v2619, %v2626
        %v2630 = vadd.f32 %v2628, %v368
        %v2631 = vadd.f32 %v2629, %v369
        %v2632 = vmax.f32 %v2630, 0.0
        %v2633 = vmax.f32 %v2631, 0.0
        %2634 = vst [vmem:[%s366] sm:$0xff] %v2632
        %2635 = vst [vmem:[%s366 + $0x8] sm:$0xff] %v2633
        %p2636 = scmp.lt.s32.totalorder %s21, 1
        %s2637 = scalar_select %p2636, %s21, 1
        %s2638 = smul.addr %s2637, 2
        %s2639 = smul.addr %s2638, 8
        %s2640 = scalar_lea.vmem %s9, %s2639
        // Predicated region
        $region61: #{stgcn_block_apply.1} parent=55 // pred_check
          %p2641 = pneg %p238
        $region62: #{stgcn_block_apply.1} parent=55 // pred_check_branch
          %2643 = sbr.rel (%p2641) target = $region64
        $region63: #{stgcn_block_apply.1} parent=55 // pred_region
          _
        $region64: #{stgcn_block_apply.1} parent=55 // pred_fallthru
          _
      $region56: #{stgcn_block_apply.1} parent=5 // pred_fallthru
        _
      %p2644 = scmp.le.s32.totalorder 2, %s16
      // Predicated region
      $region65: #{stgcn_block_apply.1} parent=5 // pred_check
        %p2645 = pneg %p2644
      $region66: #{stgcn_block_apply.1} parent=5 // pred_check_branch
        %2647 = sbr.rel (%p2645) target = $region68
      $region67: #{stgcn_block_apply.1} parent=5 // pred_region
        %s2648 = ssub.s32 %s16, 2
        // Predicated region
        $region69: #{stgcn_block_apply.1} parent=67 // pred_check
          %p2649 = pneg %p244
        $region70: #{stgcn_block_apply.1} parent=67 // pred_check_branch
          %2651 = sbr.rel (%p2649) target = $region72
        $region71: #{stgcn_block_apply.1} parent=67 // pred_region
          %p2652 = scmp.lt.s32.totalorder %s22, 1
          %s2653 = scalar_select %p2652, %s22, 1
          %s2654 = smul.addr %s2653, 2
          %s2655 = smul.addr %s2654, 8
          %s2656 = scalar_lea.vmem %s9, %s2655
        $region72: #{stgcn_block_apply.1} parent=67 // pred_fallthru
          _
      $region68: #{stgcn_block_apply.1} parent=5 // pred_fallthru
        _
    $region6: #{stgcn_block_apply.1} parent=1 // loop_footer
      %s20 = sadd.s32 1, %s16
    $region7: #{stgcn_block_apply.1} parent=1 // loop_footer_branch
      %15 = sbr.rel target = $region3
    $region8: #{stgcn_block_apply.1} parent=1 // loop_exit
      _
    %2657 = vsyncpa [#allocation5], 1
    %s2658 = scalar_lea.sflag [#allocation5], 1
    %2659 = vsyncpa %s2658, 1

</llo_original>
